<compile_context>
chip_gen: v7x
topology: tpu7x:2x2x1
jax: 0.10.0
libtpu: 0.0.40
codegen_flags: <defaults>
</compile_context>

<pallas_src>
import functools
import math

import jax
import jax.numpy as jnp
from jax.experimental import pallas as pl
from jax.experimental.pallas import tpu as pltpu


# ---------------------------------------------------------------------------
# Fully fused TVAE forward kernel (one batch tile per grid step)
# ---------------------------------------------------------------------------
def _tvae_fused_kernel(
    x_ref, eps_z_ref, eps_u_ref,
    w1_ref, b1_ref,          # merged z/u encoder layer 1: (D, 2H), (1, 2H)
    w2_ref, b2_ref,          # stacked layer 2: (2, H, H), (2, 1, H)
    w3_ref, b3_ref,          # stacked layer 3: (2, H, 2S), (2, 1, 2S)
    wd1_ref, bd1_ref,        # decoder layer 1: (S, H), (1, H)
    wd2_ref, bd2_ref,        # decoder layer 2: (H, H), (1, H)
    wd3_ref, bd3_ref,        # decoder layer 3: (H, D), (1, D)
    z_ref, u_ref, s_ref, probs_ref, klz_ref, klu_ref, nll_ref,
    *, s_dim, hidden, shifts,
):
    f32 = jnp.float32
    bf16 = jnp.bfloat16

    x = x_ref[...]                                    # (tm, D) f32
    x_bf = x.astype(bf16)

    # ---- merged z/u encoders, layer 1: one matmul feeds both encoders -----
    h1 = jnp.dot(x_bf, w1_ref[...], preferred_element_type=f32) + b1_ref[...]
    h1 = jnp.maximum(h1, 0.0)                         # (tm, 2H)
    h1_z = h1[:, :hidden].astype(bf16)
    h1_u = h1[:, hidden:].astype(bf16)

    def enc_tail(h, idx):
        # layer 2
        h2 = jnp.dot(h, w2_ref[idx], preferred_element_type=f32) + b2_ref[idx]
        h2 = jnp.maximum(h2, 0.0).astype(bf16)
        # layer 3 -> (tm, 2S) = [mu | logvar]
        o3 = jnp.dot(h2, w3_ref[idx], preferred_element_type=f32) + b3_ref[idx]
        return o3[:, :s_dim], o3[:, s_dim:]

    mu_z, lv_z = enc_tail(h1_z, 0)
    mu_u, lv_u = enc_tail(h1_u, 1)

    # ---- reparameterized samples + elementwise KL(q || N(0,1)) ------------
    z = mu_z + jnp.exp(0.5 * lv_z) * eps_z_ref[...]
    u = mu_u + jnp.exp(0.5 * lv_u) * eps_u_ref[...]
    z_ref[...] = z
    u_ref[...] = u
    klz_ref[...] = -0.5 * (1.0 + lv_z - mu_z * mu_z - jnp.exp(lv_z))
    klu_ref[...] = -0.5 * (1.0 + lv_u - mu_u * mu_u - jnp.exp(lv_u))

    # ---- grouper: s = z / sqrt(circular_window_sum(u^2) + eps) ------------
    # TODO(synk): if window grows, switch to log-step (doubling) roll
    # accumulation to keep XLU op count O(log W).
    u2 = u * u
    v = u2
    for d in shifts:
        v = v + pltpu.roll(u2, shift=d, axis=1)       # XLU work, free-ish when fused
    s = z * jax.lax.rsqrt(v + 1e-6)
    s_ref[...] = s

    # ---- decoder MLP (Bernoulli likelihood) --------------------------------
    hd = jnp.dot(s.astype(bf16), wd1_ref[...], preferred_element_type=f32) + bd1_ref[...]
    hd = jnp.maximum(hd, 0.0).astype(bf16)
    hd = jnp.dot(hd, wd2_ref[...], preferred_element_type=f32) + bd2_ref[...]
    hd = jnp.maximum(hd, 0.0).astype(bf16)
    logits = jnp.dot(hd, wd3_ref[...], preferred_element_type=f32) + bd3_ref[...]

    # Shared exponential for sigmoid and softplus (one EUP exp + one log1p):
    #   e = exp(-|l|)
    #   sigmoid(l)   = 1/(1+e)        if l >= 0 else e/(1+e)
    #   -log B(x|l)  = max(l,0) - x*l + log1p(e)
    e = jnp.exp(-jnp.abs(logits))
    den = 1.0 + e
    probs_ref[...] = jnp.where(logits >= 0.0, 1.0 / den, e / den)
    nll_ref[...] = jnp.maximum(logits, 0.0) - x * logits + jnp.log1p(e)


# ---------------------------------------------------------------------------
# BlockSpec helpers
# ---------------------------------------------------------------------------
def _tiled_spec(tm, ncols):
    # one batch tile per grid step
    return pl.BlockSpec((tm, ncols), lambda i: (i, 0))


def _const_spec(shape):
    # weights/biases: constant block index -> DMA'd once, VMEM-resident across
    # all grid steps (no per-step re-fetch)
    nd = len(shape)
    return pl.BlockSpec(shape, lambda i, _nd=nd: (0,) * _nd)


def _round_up(n, m):
    return ((n + m - 1) // m) * m


# ---------------------------------------------------------------------------
# Host-side wrapper
# ---------------------------------------------------------------------------
def tvae_forward(params, x, eps_z, eps_u, *, window=3, tile_m=128):
    B = x.shape[0]
    img_shape = x.shape
    x_flat = x.reshape(B, -1).astype(jnp.float32)
    D = x_flat.shape[1]
    S = eps_z.shape[1]
    H = params["w2_zu"].shape[1]

    # Batch tiling: tm rows per grid step (sublane-aligned); pad B if needed.
    tm = min(tile_m, _round_up(B, 8))
    Bp = _round_up(B, tm)
    if Bp != B:
        pad = Bp - B
        x_flat = jnp.pad(x_flat, ((0, pad), (0, 0)))
        eps_z = jnp.pad(eps_z, ((0, pad), (0, 0)))
        eps_u = jnp.pad(eps_u, ((0, pad), (0, 0)))
    grid = (Bp // tm,)

    half = window // 2
    # symmetric circular window; negative shift expressed as positive modulo S
    shifts = tuple([d for d in range(1, half + 1)] +
                   [(S - d) % S for d in range(1, half + 1)])

    weight_inputs = (
        params["w1_zu"], params["b1_zu"],
        params["w2_zu"], params["b2_zu"],
        params["w3_zu"], params["b3_zu"],
        params["wd1"], params["bd1"],
        params["wd2"], params["bd2"],
        params["wd3"], params["bd3"],
    )
    inputs = (x_flat, eps_z, eps_u) + weight_inputs

    in_specs = (
        [_tiled_spec(tm, D), _tiled_spec(tm, S), _tiled_spec(tm, S)]
        + [_const_spec(w.shape) for w in weight_inputs]
    )

    out_shapes = (
        jax.ShapeDtypeStruct((Bp, S), jnp.float32),   # z
        jax.ShapeDtypeStruct((Bp, S), jnp.float32),   # u
        jax.ShapeDtypeStruct((Bp, S), jnp.float32),   # s
        jax.ShapeDtypeStruct((Bp, D), jnp.float32),   # probs (flat)
        jax.ShapeDtypeStruct((Bp, S), jnp.float32),   # kl_z (elementwise)
        jax.ShapeDtypeStruct((Bp, S), jnp.float32),   # kl_u (elementwise)
        jax.ShapeDtypeStruct((Bp, D), jnp.float32),   # neg log p(x|z) (flat)
    )
    out_specs = tuple(_tiled_spec(tm, o.shape[1]) for o in out_shapes)

    z, u, s, probs_flat, kl_z, kl_u, nll_flat = pl.pallas_call(
        functools.partial(_tvae_fused_kernel, s_dim=S, hidden=H, shifts=shifts),
        out_shape=out_shapes,
        grid=grid,
        in_specs=in_specs,
        out_specs=out_specs,
        compiler_params=pltpu.CompilerParams(
            # independent batch tiles -> shard grid across both v7x TensorCores
            dimension_semantics=("parallel",),
            # ~2.2 MB weights + tile buffers; 32 MiB is ample and stays well
            # under v7x's 64 MiB physical VMEM per TensorCore.
            vmem_limit_bytes=32 << 20,
        ),
    )(*inputs)

    if Bp != B:
        z, u, s, kl_z, kl_u = (a[:B] for a in (z, u, s, kl_z, kl_u))
        probs_flat, nll_flat = probs_flat[:B], nll_flat[:B]

    probs_x = probs_flat.reshape(img_shape)
    neg_logpx_z = nll_flat.reshape(img_shape)
    # NOTE: s kept as (B, s_dim); the reference repo appends (1,1) spatial dims.
    return z, u, s, probs_x, kl_z, kl_u, neg_logpx_z


# ---------------------------------------------------------------------------
# Deterministic parameter construction (torch-default-style uniform init),
# pre-packed for the fused kernel: bf16 weights, f32 biases.
# ---------------------------------------------------------------------------
def _init_linear(key, fan_in, fan_out):
    kw, kb = jax.random.split(key)
    bound = 1.0 / math.sqrt(fan_in)
    w = jax.random.uniform(kw, (fan_in, fan_out), jnp.float32, -bound, bound)
    b = jax.random.uniform(kb, (fan_out,), jnp.float32, -bound, bound)
    return w, b


def make_params(key, d_in, hidden, s_dim):
    keys = jax.random.split(key, 9)
    # z encoder
    wz1, bz1 = _init_linear(keys[0], d_in, hidden)
    wz2, bz2 = _init_linear(keys[1], hidden, hidden)
    wz3, bz3 = _init_linear(keys[2], hidden, 2 * s_dim)
    # u encoder
    wu1, bu1 = _init_linear(keys[3], d_in, hidden)
    wu2, bu2 = _init_linear(keys[4], hidden, hidden)
    wu3, bu3 = _init_linear(keys[5], hidden, 2 * s_dim)
    # decoder
    wd1, bd1 = _init_linear(keys[6], s_dim, hidden)
    wd2, bd2 = _init_linear(keys[7], hidden, hidden)
    wd3, bd3 = _init_linear(keys[8], hidden, d_in)

    bf = jnp.bfloat16
    return dict(
        # merged / stacked z+u encoder
        w1_zu=jnp.concatenate([wz1, wu1], axis=1).astype(bf),          # (D, 2H)
        b1_zu=jnp.concatenate([bz1, bu1], axis=0).reshape(1, 2 * hidden),
        w2_zu=jnp.stack([wz2, wu2], axis=0).astype(bf),                # (2, H, H)
        b2_zu=jnp.stack([bz2, bu2], axis=0).reshape(2, 1, hidden),
        w3_zu=jnp.stack([wz3, wu3], axis=0).astype(bf),                # (2, H, 2S)
        b3_zu=jnp.stack([bz3, bu3], axis=0).reshape(2, 1, 2 * s_dim),
        # decoder
        wd1=wd1.astype(bf), bd1=bd1.reshape(1, hidden),
        wd2=wd2.astype(bf), bd2=bd2.reshape(1, hidden),
        wd3=wd3.astype(bf), bd3=bd3.reshape(1, d_in),
    )


# ---------------------------------------------------------------------------
if __name__ == "__main__":
    # Batch chosen so the grid has >1 step (weights stay resident across steps
    # and the batch axis can shard across both v7x TensorCores); feature dims
    # are lane/MXU aligned.
    B, C, H, W = 256, 4, 16, 16
    D = C * H * W                      # 1024
    HIDDEN = 256
    S_DIM = 128                        # e.g. n_caps=16, cap_dim=8

    key = jax.random.PRNGKey(0)
    k_x, k_p, k_ez, k_eu = jax.random.split(key, 4)

    x = jax.random.uniform(k_x, (B, C, H, W), jnp.float32)   # Bernoulli data in [0,1]
    params = make_params(k_p, D, HIDDEN, S_DIM)
    eps_z = jax.random.normal(k_ez, (B, S_DIM), jnp.float32)
    eps_u = jax.random.normal(k_eu, (B, S_DIM), jnp.float32)

    outs = jax.jit(tvae_forward)(params, x, eps_z, eps_u)
    outs = jax.block_until_ready(outs)

    z, u, s, probs_x, kl_z, kl_u, neg_logpx_z = outs
    assert z.shape == (B, S_DIM) and u.shape == (B, S_DIM) and s.shape == (B, S_DIM)
    assert probs_x.shape == (B, C, H, W) and neg_logpx_z.shape == (B, C, H, W)
    assert kl_z.shape == (B, S_DIM) and kl_u.shape == (B, S_DIM)
    assert all(bool(jnp.all(jnp.isfinite(o))) for o in outs)
    assert bool(jnp.all(probs_x > 0.0)) and bool(jnp.all(probs_x < 1.0))
    assert bool(jnp.all(neg_logpx_z >= 0.0))

    # TODO(synk): get_IS_estimate / normalize_weights / plotting utilities are
    # not part of the forward pass and are not implemented here.
    print("KERNEL_OK")
</pallas_src>

<mosaic_0001>
module attributes {stable_mosaic.version = 11 : i64} {
  func.func @_tvae_fused_kernel(%arg0: i32, %arg1: memref<128x1024xf32, #tpu.memory_space<vmem>>, %arg2: memref<128x128xf32, #tpu.memory_space<vmem>>, %arg3: memref<128x128xf32, #tpu.memory_space<vmem>>, %arg4: memref<1024x512xbf16, #tpu.memory_space<vmem>>, %arg5: memref<1x512xf32, #tpu.memory_space<vmem>>, %arg6: memref<2x256x256xbf16, #tpu.memory_space<vmem>>, %arg7: memref<2x1x256xf32, #tpu.memory_space<vmem>>, %arg8: memref<2x256x256xbf16, #tpu.memory_space<vmem>>, %arg9: memref<2x1x256xf32, #tpu.memory_space<vmem>>, %arg10: memref<128x256xbf16, #tpu.memory_space<vmem>>, %arg11: memref<1x256xf32, #tpu.memory_space<vmem>>, %arg12: memref<256x256xbf16, #tpu.memory_space<vmem>>, %arg13: memref<1x256xf32, #tpu.memory_space<vmem>>, %arg14: memref<256x1024xbf16, #tpu.memory_space<vmem>>, %arg15: memref<1x1024xf32, #tpu.memory_space<vmem>>, %arg16: memref<128x128xf32, #tpu.memory_space<vmem>>, %arg17: memref<128x128xf32, #tpu.memory_space<vmem>>, %arg18: memref<128x128xf32, #tpu.memory_space<vmem>>, %arg19: memref<128x1024xf32, #tpu.memory_space<vmem>>, %arg20: memref<128x128xf32, #tpu.memory_space<vmem>>, %arg21: memref<128x128xf32, #tpu.memory_space<vmem>>, %arg22: memref<128x1024xf32, #tpu.memory_space<vmem>>) attributes {dimension_semantics = [#tpu.dimension_semantics<parallel>], iteration_bounds = array<i64: 2>, scalar_prefetch = 0 : i64, scratch_operands = 0 : i64, tpu.core_type = #tpu.core_type<tc>, window_params = [{transform_indices = @transform_0, window_bounds = array<i64: 128, 1024>}, {transform_indices = @transform_1, window_bounds = array<i64: 128, 128>}, {transform_indices = @transform_2, window_bounds = array<i64: 128, 128>}, {pipeline_mode = #tpu.pipeline_mode<synchronous>, transform_indices = @transform_3, window_bounds = array<i64: 1024, 512>}, {pipeline_mode = #tpu.pipeline_mode<synchronous>, transform_indices = @transform_4, window_bounds = array<i64: 1, 512>}, {pipeline_mode = #tpu.pipeline_mode<synchronous>, transform_indices = @transform_5, window_bounds = array<i64: 2, 256, 256>}, {pipeline_mode = #tpu.pipeline_mode<synchronous>, transform_indices = @transform_6, window_bounds = array<i64: 2, 1, 256>}, {pipeline_mode = #tpu.pipeline_mode<synchronous>, transform_indices = @transform_7, window_bounds = array<i64: 2, 256, 256>}, {pipeline_mode = #tpu.pipeline_mode<synchronous>, transform_indices = @transform_8, window_bounds = array<i64: 2, 1, 256>}, {pipeline_mode = #tpu.pipeline_mode<synchronous>, transform_indices = @transform_9, window_bounds = array<i64: 128, 256>}, {pipeline_mode = #tpu.pipeline_mode<synchronous>, transform_indices = @transform_10, window_bounds = array<i64: 1, 256>}, {pipeline_mode = #tpu.pipeline_mode<synchronous>, transform_indices = @transform_11, window_bounds = array<i64: 256, 256>}, {pipeline_mode = #tpu.pipeline_mode<synchronous>, transform_indices = @transform_12, window_bounds = array<i64: 1, 256>}, {pipeline_mode = #tpu.pipeline_mode<synchronous>, transform_indices = @transform_13, window_bounds = array<i64: 256, 1024>}, {pipeline_mode = #tpu.pipeline_mode<synchronous>, transform_indices = @transform_14, window_bounds = array<i64: 1, 1024>}, {transform_indices = @transform_15, window_bounds = array<i64: 128, 128>}, {transform_indices = @transform_16, window_bounds = array<i64: 128, 128>}, {transform_indices = @transform_17, window_bounds = array<i64: 128, 128>}, {transform_indices = @transform_18, window_bounds = array<i64: 128, 1024>}, {transform_indices = @transform_19, window_bounds = array<i64: 128, 128>}, {transform_indices = @transform_20, window_bounds = array<i64: 128, 128>}, {transform_indices = @transform_21, window_bounds = array<i64: 128, 1024>}]} {
    %c0 = arith.constant 0 : index
    %c0_0 = arith.constant 0 : index
    %0 = vector.load %arg1[%c0, %c0_0] : memref<128x1024xf32, #tpu.memory_space<vmem>>, vector<128x1024xf32>
    %1 = arith.truncf %0 : vector<128x1024xf32> to vector<128x1024xbf16>
    %c0_1 = arith.constant 0 : index
    %c0_2 = arith.constant 0 : index
    %2 = vector.load %arg4[%c0_1, %c0_2] : memref<1024x512xbf16, #tpu.memory_space<vmem>>, vector<1024x512xbf16>
    %cst = arith.constant dense<0.000000e+00> : vector<128x512xf32>
    %3 = tpu.matmul %1, %2, %cst {dimension_numbers = #tpu.dot_dimension_numbers<[1], [0], [0], [1], [0, 0, 1, 1], [], []>} : vector<128x1024xbf16>, vector<1024x512xbf16>, vector<128x512xf32> -> vector<128x512xf32>
    %c0_3 = arith.constant 0 : index
    %c0_4 = arith.constant 0 : index
    %4 = vector.load %arg5[%c0_3, %c0_4] : memref<1x512xf32, #tpu.memory_space<vmem>>, vector<1x512xf32>
    %5 = vector.broadcast %4 : vector<1x512xf32> to vector<128x512xf32>
    %6 = arith.addf %3, %5 : vector<128x512xf32>
    %cst_5 = arith.constant 0.000000e+00 : f32
    %7 = vector.broadcast %cst_5 : f32 to vector<128x512xf32>
    %8 = arith.maximumf %6, %7 : vector<128x512xf32>
    %9 = vector.extract_strided_slice %8 {offsets = [0, 0], sizes = [128, 256], strides = [1, 1]} : vector<128x512xf32> to vector<128x256xf32>
    %10 = arith.truncf %9 : vector<128x256xf32> to vector<128x256xbf16>
    %11 = vector.extract_strided_slice %8 {offsets = [0, 256], sizes = [128, 256], strides = [1, 1]} : vector<128x512xf32> to vector<128x256xf32>
    %12 = arith.truncf %11 : vector<128x256xf32> to vector<128x256xbf16>
    %c0_6 = arith.constant 0 : index
    %c0_7 = arith.constant 0 : index
    %c0_8 = arith.constant 0 : index
    %13 = vector.load %arg6[%c0_6, %c0_7, %c0_8] : memref<2x256x256xbf16, #tpu.memory_space<vmem>>, vector<1x256x256xbf16>
    %14 = vector.shape_cast %13 : vector<1x256x256xbf16> to vector<256x256xbf16>
    %cst_9 = arith.constant dense<0.000000e+00> : vector<128x256xf32>
    %15 = tpu.matmul %10, %14, %cst_9 {dimension_numbers = #tpu.dot_dimension_numbers<[1], [0], [0], [1], [0, 0, 1, 1], [], []>} : vector<128x256xbf16>, vector<256x256xbf16>, vector<128x256xf32> -> vector<128x256xf32>
    %c0_10 = arith.constant 0 : index
    %c0_11 = arith.constant 0 : index
    %c0_12 = arith.constant 0 : index
    %16 = vector.load %arg7[%c0_10, %c0_11, %c0_12] : memref<2x1x256xf32, #tpu.memory_space<vmem>>, vector<1x1x256xf32>
    %17 = vector.shape_cast %16 : vector<1x1x256xf32> to vector<1x256xf32>
    %18 = vector.broadcast %17 : vector<1x256xf32> to vector<128x256xf32>
    %19 = arith.addf %15, %18 : vector<128x256xf32>
    %cst_13 = arith.constant 0.000000e+00 : f32
    %20 = vector.broadcast %cst_13 : f32 to vector<128x256xf32>
    %21 = arith.maximumf %19, %20 : vector<128x256xf32>
    %22 = arith.truncf %21 : vector<128x256xf32> to vector<128x256xbf16>
    %c0_14 = arith.constant 0 : index
    %c0_15 = arith.constant 0 : index
    %c0_16 = arith.constant 0 : index
    %23 = vector.load %arg8[%c0_14, %c0_15, %c0_16] : memref<2x256x256xbf16, #tpu.memory_space<vmem>>, vector<1x256x256xbf16>
    %24 = vector.shape_cast %23 : vector<1x256x256xbf16> to vector<256x256xbf16>
    %cst_17 = arith.constant dense<0.000000e+00> : vector<128x256xf32>
    %25 = tpu.matmul %22, %24, %cst_17 {dimension_numbers = #tpu.dot_dimension_numbers<[1], [0], [0], [1], [0, 0, 1, 1], [], []>} : vector<128x256xbf16>, vector<256x256xbf16>, vector<128x256xf32> -> vector<128x256xf32>
    %c0_18 = arith.constant 0 : index
    %c0_19 = arith.constant 0 : index
    %c0_20 = arith.constant 0 : index
    %26 = vector.load %arg9[%c0_18, %c0_19, %c0_20] : memref<2x1x256xf32, #tpu.memory_space<vmem>>, vector<1x1x256xf32>
    %27 = vector.shape_cast %26 : vector<1x1x256xf32> to vector<1x256xf32>
    %28 = vector.broadcast %27 : vector<1x256xf32> to vector<128x256xf32>
    %29 = arith.addf %25, %28 : vector<128x256xf32>
    %30 = vector.extract_strided_slice %29 {offsets = [0, 0], sizes = [128, 128], strides = [1, 1]} : vector<128x256xf32> to vector<128x128xf32>
    %31 = vector.extract_strided_slice %29 {offsets = [0, 128], sizes = [128, 128], strides = [1, 1]} : vector<128x256xf32> to vector<128x128xf32>
    %c1 = arith.constant 1 : index
    %c0_21 = arith.constant 0 : index
    %c0_22 = arith.constant 0 : index
    %32 = vector.load %arg6[%c1, %c0_21, %c0_22] : memref<2x256x256xbf16, #tpu.memory_space<vmem>>, vector<1x256x256xbf16>
    %33 = vector.shape_cast %32 : vector<1x256x256xbf16> to vector<256x256xbf16>
    %cst_23 = arith.constant dense<0.000000e+00> : vector<128x256xf32>
    %34 = tpu.matmul %12, %33, %cst_23 {dimension_numbers = #tpu.dot_dimension_numbers<[1], [0], [0], [1], [0, 0, 1, 1], [], []>} : vector<128x256xbf16>, vector<256x256xbf16>, vector<128x256xf32> -> vector<128x256xf32>
    %c1_24 = arith.constant 1 : index
    %c0_25 = arith.constant 0 : index
    %c0_26 = arith.constant 0 : index
    %35 = vector.load %arg7[%c1_24, %c0_25, %c0_26] : memref<2x1x256xf32, #tpu.memory_space<vmem>>, vector<1x1x256xf32>
    %36 = vector.shape_cast %35 : vector<1x1x256xf32> to vector<1x256xf32>
    %37 = vector.broadcast %36 : vector<1x256xf32> to vector<128x256xf32>
    %38 = arith.addf %34, %37 : vector<128x256xf32>
    %cst_27 = arith.constant 0.000000e+00 : f32
    %39 = vector.broadcast %cst_27 : f32 to vector<128x256xf32>
    %40 = arith.maximumf %38, %39 : vector<128x256xf32>
    %41 = arith.truncf %40 : vector<128x256xf32> to vector<128x256xbf16>
    %c1_28 = arith.constant 1 : index
    %c0_29 = arith.constant 0 : index
    %c0_30 = arith.constant 0 : index
    %42 = vector.load %arg8[%c1_28, %c0_29, %c0_30] : memref<2x256x256xbf16, #tpu.memory_space<vmem>>, vector<1x256x256xbf16>
    %43 = vector.shape_cast %42 : vector<1x256x256xbf16> to vector<256x256xbf16>
    %cst_31 = arith.constant dense<0.000000e+00> : vector<128x256xf32>
    %44 = tpu.matmul %41, %43, %cst_31 {dimension_numbers = #tpu.dot_dimension_numbers<[1], [0], [0], [1], [0, 0, 1, 1], [], []>} : vector<128x256xbf16>, vector<256x256xbf16>, vector<128x256xf32> -> vector<128x256xf32>
    %c1_32 = arith.constant 1 : index
    %c0_33 = arith.constant 0 : index
    %c0_34 = arith.constant 0 : index
    %45 = vector.load %arg9[%c1_32, %c0_33, %c0_34] : memref<2x1x256xf32, #tpu.memory_space<vmem>>, vector<1x1x256xf32>
    %46 = vector.shape_cast %45 : vector<1x1x256xf32> to vector<1x256xf32>
    %47 = vector.broadcast %46 : vector<1x256xf32> to vector<128x256xf32>
    %48 = arith.addf %44, %47 : vector<128x256xf32>
    %49 = vector.extract_strided_slice %48 {offsets = [0, 0], sizes = [128, 128], strides = [1, 1]} : vector<128x256xf32> to vector<128x128xf32>
    %50 = vector.extract_strided_slice %48 {offsets = [0, 128], sizes = [128, 128], strides = [1, 1]} : vector<128x256xf32> to vector<128x128xf32>
    %cst_35 = arith.constant 5.000000e-01 : f32
    %51 = vector.broadcast %cst_35 : f32 to vector<128x128xf32>
    %52 = arith.mulf %51, %31 : vector<128x128xf32>
    %53 = math.exp %52 : vector<128x128xf32>
    %c0_36 = arith.constant 0 : index
    %c0_37 = arith.constant 0 : index
    %54 = vector.load %arg2[%c0_36, %c0_37] : memref<128x128xf32, #tpu.memory_space<vmem>>, vector<128x128xf32>
    %55 = arith.mulf %53, %54 : vector<128x128xf32>
    %56 = arith.addf %30, %55 : vector<128x128xf32>
    %cst_38 = arith.constant 5.000000e-01 : f32
    %57 = vector.broadcast %cst_38 : f32 to vector<128x128xf32>
    %58 = arith.mulf %57, %50 : vector<128x128xf32>
    %59 = math.exp %58 : vector<128x128xf32>
    %c0_39 = arith.constant 0 : index
    %c0_40 = arith.constant 0 : index
    %60 = vector.load %arg3[%c0_39, %c0_40] : memref<128x128xf32, #tpu.memory_space<vmem>>, vector<128x128xf32>
    %61 = arith.mulf %59, %60 : vector<128x128xf32>
    %62 = arith.addf %49, %61 : vector<128x128xf32>
    %c0_41 = arith.constant 0 : index
    %c0_42 = arith.constant 0 : index
    %63 = vector.load %arg16[%c0_41, %c0_42] : memref<128x128xf32, #tpu.memory_space<vmem>>, vector<128x128xf32>
    tpu.vector_store %arg16[%c0_41, %c0_42], %56 {strides = array<i32>} : memref<128x128xf32, #tpu.memory_space<vmem>>, vector<128x128xf32>,
    %c0_43 = arith.constant 0 : index
    %c0_44 = arith.constant 0 : index
    %64 = vector.load %arg17[%c0_43, %c0_44] : memref<128x128xf32, #tpu.memory_space<vmem>>, vector<128x128xf32>
    tpu.vector_store %arg17[%c0_43, %c0_44], %62 {strides = array<i32>} : memref<128x128xf32, #tpu.memory_space<vmem>>, vector<128x128xf32>,
    %cst_45 = arith.constant 1.000000e+00 : f32
    %65 = vector.broadcast %cst_45 : f32 to vector<128x128xf32>
    %66 = arith.addf %65, %31 : vector<128x128xf32>
    %67 = arith.mulf %30, %30 : vector<128x128xf32>
    %68 = arith.subf %66, %67 : vector<128x128xf32>
    %69 = math.exp %31 : vector<128x128xf32>
    %70 = arith.subf %68, %69 : vector<128x128xf32>
    %cst_46 = arith.constant -5.000000e-01 : f32
    %71 = vector.broadcast %cst_46 : f32 to vector<128x128xf32>
    %72 = arith.mulf %71, %70 : vector<128x128xf32>
    %c0_47 = arith.constant 0 : index
    %c0_48 = arith.constant 0 : index
    %73 = vector.load %arg20[%c0_47, %c0_48] : memref<128x128xf32, #tpu.memory_space<vmem>>, vector<128x128xf32>
    tpu.vector_store %arg20[%c0_47, %c0_48], %72 {strides = array<i32>} : memref<128x128xf32, #tpu.memory_space<vmem>>, vector<128x128xf32>,
    %cst_49 = arith.constant 1.000000e+00 : f32
    %74 = vector.broadcast %cst_49 : f32 to vector<128x128xf32>
    %75 = arith.addf %74, %50 : vector<128x128xf32>
    %76 = arith.mulf %49, %49 : vector<128x128xf32>
    %77 = arith.subf %75, %76 : vector<128x128xf32>
    %78 = math.exp %50 : vector<128x128xf32>
    %79 = arith.subf %77, %78 : vector<128x128xf32>
    %cst_50 = arith.constant -5.000000e-01 : f32
    %80 = vector.broadcast %cst_50 : f32 to vector<128x128xf32>
    %81 = arith.mulf %80, %79 : vector<128x128xf32>
    %c0_51 = arith.constant 0 : index
    %c0_52 = arith.constant 0 : index
    %82 = vector.load %arg21[%c0_51, %c0_52] : memref<128x128xf32, #tpu.memory_space<vmem>>, vector<128x128xf32>
    tpu.vector_store %arg21[%c0_51, %c0_52], %81 {strides = array<i32>} : memref<128x128xf32, #tpu.memory_space<vmem>>, vector<128x128xf32>,
    %83 = arith.mulf %62, %62 : vector<128x128xf32>
    %c1_i32 = arith.constant 1 : i32
    %84 = tpu.dynamic_rotate %83 by %c1_i32 dim 1 : vector<128x128xf32>, i32 -> vector<128x128xf32>
    %85 = arith.addf %83, %84 : vector<128x128xf32>
    %c127_i32 = arith.constant 127 : i32
    %86 = tpu.dynamic_rotate %83 by %c127_i32 dim 1 : vector<128x128xf32>, i32 -> vector<128x128xf32>
    %87 = arith.addf %85, %86 : vector<128x128xf32>
    %cst_53 = arith.constant 9.99999997E-7 : f32
    %88 = vector.broadcast %cst_53 : f32 to vector<128x128xf32>
    %89 = arith.addf %87, %88 : vector<128x128xf32>
    %90 = math.rsqrt %89 : vector<128x128xf32>
    %91 = arith.mulf %56, %90 : vector<128x128xf32>
    %c0_54 = arith.constant 0 : index
    %c0_55 = arith.constant 0 : index
    %92 = vector.load %arg18[%c0_54, %c0_55] : memref<128x128xf32, #tpu.memory_space<vmem>>, vector<128x128xf32>
    tpu.vector_store %arg18[%c0_54, %c0_55], %91 {strides = array<i32>} : memref<128x128xf32, #tpu.memory_space<vmem>>, vector<128x128xf32>,
    %93 = arith.truncf %91 : vector<128x128xf32> to vector<128x128xbf16>
    %c0_56 = arith.constant 0 : index
    %c0_57 = arith.constant 0 : index
    %94 = vector.load %arg10[%c0_56, %c0_57] : memref<128x256xbf16, #tpu.memory_space<vmem>>, vector<128x256xbf16>
    %cst_58 = arith.constant dense<0.000000e+00> : vector<128x256xf32>
    %95 = tpu.matmul %93, %94, %cst_58 {dimension_numbers = #tpu.dot_dimension_numbers<[1], [0], [0], [1], [0, 0, 1, 1], [], []>} : vector<128x128xbf16>, vector<128x256xbf16>, vector<128x256xf32> -> vector<128x256xf32>
    %c0_59 = arith.constant 0 : index
    %c0_60 = arith.constant 0 : index
    %96 = vector.load %arg11[%c0_59, %c0_60] : memref<1x256xf32, #tpu.memory_space<vmem>>, vector<1x256xf32>
    %97 = vector.broadcast %96 : vector<1x256xf32> to vector<128x256xf32>
    %98 = arith.addf %95, %97 : vector<128x256xf32>
    %cst_61 = arith.constant 0.000000e+00 : f32
    %99 = vector.broadcast %cst_61 : f32 to vector<128x256xf32>
    %100 = arith.maximumf %98, %99 : vector<128x256xf32>
    %101 = arith.truncf %100 : vector<128x256xf32> to vector<128x256xbf16>
    %c0_62 = arith.constant 0 : index
    %c0_63 = arith.constant 0 : index
    %102 = vector.load %arg12[%c0_62, %c0_63] : memref<256x256xbf16, #tpu.memory_space<vmem>>, vector<256x256xbf16>
    %cst_64 = arith.constant dense<0.000000e+00> : vector<128x256xf32>
    %103 = tpu.matmul %101, %102, %cst_64 {dimension_numbers = #tpu.dot_dimension_numbers<[1], [0], [0], [1], [0, 0, 1, 1], [], []>} : vector<128x256xbf16>, vector<256x256xbf16>, vector<128x256xf32> -> vector<128x256xf32>
    %c0_65 = arith.constant 0 : index
    %c0_66 = arith.constant 0 : index
    %104 = vector.load %arg13[%c0_65, %c0_66] : memref<1x256xf32, #tpu.memory_space<vmem>>, vector<1x256xf32>
    %105 = vector.broadcast %104 : vector<1x256xf32> to vector<128x256xf32>
    %106 = arith.addf %103, %105 : vector<128x256xf32>
    %cst_67 = arith.constant 0.000000e+00 : f32
    %107 = vector.broadcast %cst_67 : f32 to vector<128x256xf32>
    %108 = arith.maximumf %106, %107 : vector<128x256xf32>
    %109 = arith.truncf %108 : vector<128x256xf32> to vector<128x256xbf16>
    %c0_68 = arith.constant 0 : index
    %c0_69 = arith.constant 0 : index
    %110 = vector.load %arg14[%c0_68, %c0_69] : memref<256x1024xbf16, #tpu.memory_space<vmem>>, vector<256x1024xbf16>
    %cst_70 = arith.constant dense<0.000000e+00> : vector<128x1024xf32>
    %111 = tpu.matmul %109, %110, %cst_70 {dimension_numbers = #tpu.dot_dimension_numbers<[1], [0], [0], [1], [0, 0, 1, 1], [], []>} : vector<128x256xbf16>, vector<256x1024xbf16>, vector<128x1024xf32> -> vector<128x1024xf32>
    %c0_71 = arith.constant 0 : index
    %c0_72 = arith.constant 0 : index
    %112 = vector.load %arg15[%c0_71, %c0_72] : memref<1x1024xf32, #tpu.memory_space<vmem>>, vector<1x1024xf32>
    %113 = vector.broadcast %112 : vector<1x1024xf32> to vector<128x1024xf32>
    %114 = arith.addf %111, %113 : vector<128x1024xf32>
    %115 = math.absf %114 : vector<128x1024xf32>
    %cst_73 = arith.constant 0.000000e+00 : f32
    %116 = vector.broadcast %cst_73 : f32 to vector<128x1024xf32>
    %117 = arith.subf %116, %115 : vector<128x1024xf32>
    %118 = math.exp %117 : vector<128x1024xf32>
    %cst_74 = arith.constant 1.000000e+00 : f32
    %119 = vector.broadcast %cst_74 : f32 to vector<128x1024xf32>
    %120 = arith.addf %119, %118 : vector<128x1024xf32>
    %cst_75 = arith.constant 0.000000e+00 : f32
    %121 = vector.broadcast %cst_75 : f32 to vector<128x1024xf32>
    %122 = arith.cmpf oge, %114, %121 : vector<128x1024xf32>
    %cst_76 = arith.constant 1.000000e+00 : f32
    %123 = vector.broadcast %cst_76 : f32 to vector<128x1024xf32>
    %124 = arith.divf %123, %120 : vector<128x1024xf32>
    %125 = arith.divf %118, %120 : vector<128x1024xf32>
    %126 = arith.select %122, %124, %125 : vector<128x1024xi1>, vector<128x1024xf32>
    %c0_77 = arith.constant 0 : index
    %c0_78 = arith.constant 0 : index
    %127 = vector.load %arg19[%c0_77, %c0_78] : memref<128x1024xf32, #tpu.memory_space<vmem>>, vector<128x1024xf32>
    tpu.vector_store %arg19[%c0_77, %c0_78], %126 {strides = array<i32>} : memref<128x1024xf32, #tpu.memory_space<vmem>>, vector<128x1024xf32>,
    %cst_79 = arith.constant 0.000000e+00 : f32
    %128 = vector.broadcast %cst_79 : f32 to vector<128x1024xf32>
    %129 = arith.maximumf %114, %128 : vector<128x1024xf32>
    %130 = arith.mulf %0, %114 : vector<128x1024xf32>
    %131 = arith.subf %129, %130 : vector<128x1024xf32>
    %132 = math.log1p %118 : vector<128x1024xf32>
    %133 = arith.addf %131, %132 : vector<128x1024xf32>
    %c0_80 = arith.constant 0 : index
    %c0_81 = arith.constant 0 : index
    %134 = vector.load %arg22[%c0_80, %c0_81] : memref<128x1024xf32, #tpu.memory_space<vmem>>, vector<128x1024xf32>
    tpu.vector_store %arg22[%c0_80, %c0_81], %133 {strides = array<i32>} : memref<128x1024xf32, #tpu.memory_space<vmem>>, vector<128x1024xf32>,
    return
  }
  func.func @transform_0(%arg0: i32) -> (i32, i32) {
    %c0_i32 = arith.constant 0 : i32
    %c0_i32_0 = arith.constant 0 : i32
    return %arg0, %c0_i32 : i32, i32
  }
  func.func @transform_1(%arg0: i32) -> (i32, i32) {
    %c0_i32 = arith.constant 0 : i32
    %c0_i32_0 = arith.constant 0 : i32
    return %arg0, %c0_i32 : i32, i32
  }
  func.func @transform_2(%arg0: i32) -> (i32, i32) {
    %c0_i32 = arith.constant 0 : i32
    %c0_i32_0 = arith.constant 0 : i32
    return %arg0, %c0_i32 : i32, i32
  }
  func.func @transform_3(%arg0: i32) -> (i32, i32) {
    %c0_i32 = arith.constant 0 : i32
    %c0_i32_0 = arith.constant 0 : i32
    %c0_i32_1 = arith.constant 0 : i32
    return %c0_i32, %c0_i32_0 : i32, i32
  }
  func.func @transform_4(%arg0: i32) -> (i32, i32) {
    %c0_i32 = arith.constant 0 : i32
    %c0_i32_0 = arith.constant 0 : i32
    %c0_i32_1 = arith.constant 0 : i32
    return %c0_i32, %c0_i32_0 : i32, i32
  }
  func.func @transform_5(%arg0: i32) -> (i32, i32, i32) {
    %c0_i32 = arith.constant 0 : i32
    %c0_i32_0 = arith.constant 0 : i32
    %c0_i32_1 = arith.constant 0 : i32
    %c0_i32_2 = arith.constant 0 : i32
    return %c0_i32, %c0_i32_0, %c0_i32_1 : i32, i32, i32
  }
  func.func @transform_6(%arg0: i32) -> (i32, i32, i32) {
    %c0_i32 = arith.constant 0 : i32
    %c0_i32_0 = arith.constant 0 : i32
    %c0_i32_1 = arith.constant 0 : i32
    %c0_i32_2 = arith.constant 0 : i32
    return %c0_i32, %c0_i32_0, %c0_i32_1 : i32, i32, i32
  }
  func.func @transform_7(%arg0: i32) -> (i32, i32, i32) {
    %c0_i32 = arith.constant 0 : i32
    %c0_i32_0 = arith.constant 0 : i32
    %c0_i32_1 = arith.constant 0 : i32
    %c0_i32_2 = arith.constant 0 : i32
    return %c0_i32, %c0_i32_0, %c0_i32_1 : i32, i32, i32
  }
  func.func @transform_8(%arg0: i32) -> (i32, i32, i32) {
    %c0_i32 = arith.constant 0 : i32
    %c0_i32_0 = arith.constant 0 : i32
    %c0_i32_1 = arith.constant 0 : i32
    %c0_i32_2 = arith.constant 0 : i32
    return %c0_i32, %c0_i32_0, %c0_i32_1 : i32, i32, i32
  }
  func.func @transform_9(%arg0: i32) -> (i32, i32) {
    %c0_i32 = arith.constant 0 : i32
    %c0_i32_0 = arith.constant 0 : i32
    %c0_i32_1 = arith.constant 0 : i32
    return %c0_i32, %c0_i32_0 : i32, i32
  }
  func.func @transform_10(%arg0: i32) -> (i32, i32) {
    %c0_i32 = arith.constant 0 : i32
    %c0_i32_0 = arith.constant 0 : i32
    %c0_i32_1 = arith.constant 0 : i32
    return %c0_i32, %c0_i32_0 : i32, i32
  }
  func.func @transform_11(%arg0: i32) -> (i32, i32) {
    %c0_i32 = arith.constant 0 : i32
    %c0_i32_0 = arith.constant 0 : i32
    %c0_i32_1 = arith.constant 0 : i32
    return %c0_i32, %c0_i32_0 : i32, i32
  }
  func.func @transform_12(%arg0: i32) -> (i32, i32) {
    %c0_i32 = arith.constant 0 : i32
    %c0_i32_0 = arith.constant 0 : i32
    %c0_i32_1 = arith.constant 0 : i32
    return %c0_i32, %c0_i32_0 : i32, i32
  }
  func.func @transform_13(%arg0: i32) -> (i32, i32) {
    %c0_i32 = arith.constant 0 : i32
    %c0_i32_0 = arith.constant 0 : i32
    %c0_i32_1 = arith.constant 0 : i32
    return %c0_i32, %c0_i32_0 : i32, i32
  }
  func.func @transform_14(%arg0: i32) -> (i32, i32) {
    %c0_i32 = arith.constant 0 : i32
    %c0_i32_0 = arith.constant 0 : i32
    %c0_i32_1 = arith.constant 0 : i32
    return %c0_i32, %c0_i32_0 : i32, i32
  }
  func.func @transform_15(%arg0: i32) -> (i32, i32) {
    %c0_i32 = arith.constant 0 : i32
    %c0_i32_0 = arith.constant 0 : i32
    return %arg0, %c0_i32 : i32, i32
  }
  func.func @transform_16(%arg0: i32) -> (i32, i32) {
    %c0_i32 = arith.constant 0 : i32
    %c0_i32_0 = arith.constant 0 : i32
    return %arg0, %c0_i32 : i32, i32
  }
  func.func @transform_17(%arg0: i32) -> (i32, i32) {
    %c0_i32 = arith.constant 0 : i32
    %c0_i32_0 = arith.constant 0 : i32
    return %arg0, %c0_i32 : i32, i32
  }
  func.func @transform_18(%arg0: i32) -> (i32, i32) {
    %c0_i32 = arith.constant 0 : i32
    %c0_i32_0 = arith.constant 0 : i32
    return %arg0, %c0_i32 : i32, i32
  }
  func.func @transform_19(%arg0: i32) -> (i32, i32) {
    %c0_i32 = arith.constant 0 : i32
    %c0_i32_0 = arith.constant 0 : i32
    return %arg0, %c0_i32 : i32, i32
  }
  func.func @transform_20(%arg0: i32) -> (i32, i32) {
    %c0_i32 = arith.constant 0 : i32
    %c0_i32_0 = arith.constant 0 : i32
    return %arg0, %c0_i32 : i32, i32
  }
  func.func @transform_21(%arg0: i32) -> (i32, i32) {
    %c0_i32 = arith.constant 0 : i32
    %c0_i32_0 = arith.constant 0 : i32
    return %arg0, %c0_i32 : i32, i32
  }
}

</mosaic_0001>

<llo_original>
// kernel: tvae_forward.1
$region0: #{tvae_forward.1}
  #allocation0 [shape = 'u32[]', space=smem, size = 0x4, offset = 0x4, fixed_abs, tag = 'smem constant byte address 0x4 - core index']
  #allocation1 [shape = 'u32[144,128]{1,0:T(1,128)}', space=vmem, size = 0x12000, scoped, tag = 'internal scratch']
  %s0 = inlined_call_operand.vmem [shape: f32[256,1024], index: 0, kind: input, shape index: {}]
  %s1 = inlined_call_operand.hbm [shape: f32[256,128], index: 1, kind: input, shape index: {}]
  %s2 = inlined_call_operand.hbm [shape: f32[256,128], index: 2, kind: input, shape index: {}]
  %s3 = inlined_call_operand.vmem [shape: bf16[1024,512], index: 3, kind: input, shape index: {}]
  %s4 = inlined_call_operand.hbm [shape: f32[1,512], index: 4, kind: input, shape index: {}]
  %s5 = inlined_call_operand.vmem [shape: bf16[2,256,256], index: 5, kind: input, shape index: {}]
  %s6 = inlined_call_operand.hbm [shape: f32[2,1,256], index: 6, kind: input, shape index: {}]
  %s7 = inlined_call_operand.vmem [shape: bf16[2,256,256], index: 7, kind: input, shape index: {}]
  %s8 = inlined_call_operand.hbm [shape: f32[2,1,256], index: 8, kind: input, shape index: {}]
  %s9 = inlined_call_operand.hbm [shape: bf16[128,256], index: 9, kind: input, shape index: {}]
  %s10 = inlined_call_operand.hbm [shape: f32[1,256], index: 10, kind: input, shape index: {}]
  %s11 = inlined_call_operand.hbm [shape: bf16[256,256], index: 11, kind: input, shape index: {}]
  %s12 = inlined_call_operand.hbm [shape: f32[1,256], index: 12, kind: input, shape index: {}]
  %s13 = inlined_call_operand.vmem [shape: bf16[256,1024], index: 13, kind: input, shape index: {}]
  %s14 = inlined_call_operand.hbm [shape: f32[1,1024], index: 14, kind: input, shape index: {}]
  %s15 = inlined_call_operand.hbm [shape: f32[256,128], index: 15, kind: output, shape index: {0}]
  %s16 = inlined_call_operand.hbm [shape: f32[256,128], index: 16, kind: output, shape index: {1}]
  %s17 = inlined_call_operand.hbm [shape: f32[256,128], index: 17, kind: output, shape index: {2}]
  %s18 = inlined_call_operand.vmem [shape: f32[256,1024], index: 18, kind: output, shape index: {3}]
  %s19 = inlined_call_operand.hbm [shape: f32[256,128], index: 19, kind: output, shape index: {4}]
  %s20 = inlined_call_operand.hbm [shape: f32[256,128], index: 20, kind: output, shape index: {5}]
  %s21 = inlined_call_operand.vmem [shape: f32[256,1024], index: 21, kind: output, shape index: {6}]
  %22 = xla_tuple %s15, %s16, %s17, %s18, %s19, %s20, %s21
  %s23 = sld [smem:[#allocation0]]
  $region181: #{tvae_forward.1} parent=0
    _
  %s25 = ssub.s32 1, %s23
  %s26 = scalar_select 0, %s25, %s23
  $region1: #{tvae_forward.1} parent=0
    #allocation2 [shape = 'u8[131072]{0}', space=vmem, size = 0x20000, scoped, tag = 'input window, operand 1']
    #allocation3 [shape = 's32[2]{0}', space=sflag, size = 0x8, scoped, tag = 'scoped memory for tvae_forward.1']
    #allocation4 [shape = 's32[2]{0}', space=sflag, size = 0x8, scoped, tag = 'scoped memory for tvae_forward.1']
    #allocation5 [shape = 'u8[131072]{0}', space=vmem, size = 0x20000, scoped, tag = 'input window, operand 2']
    #allocation6 [shape = 's32[2]{0}', space=sflag, size = 0x8, scoped, tag = 'scoped memory for tvae_forward.1']
    #allocation7 [shape = 'u8[2048]{0}', space=vmem, size = 0x800, scoped, tag = 'input window, operand 4, single buffered']
    #allocation8 [shape = 'u8[2048]{0}', space=vmem, size = 0x800, scoped, tag = 'input window, operand 6, single buffered']
    #allocation9 [shape = 's32[1]{0}', space=sflag, size = 0x4, scoped, tag = 'scoped memory for tvae_forward.1']
    #allocation10 [shape = 'u8[2048]{0}', space=vmem, size = 0x800, scoped, tag = 'input window, operand 8, single buffered']
    #allocation11 [shape = 'u8[65536]{0}', space=vmem, size = 0x10000, scoped, tag = 'input window, operand 9, single buffered']
    #allocation12 [shape = 's32[1]{0}', space=sflag, size = 0x4, scoped, tag = 'scoped memory for tvae_forward.1']
    #allocation13 [shape = 'u8[1024]{0}', space=vmem, size = 0x400, scoped, tag = 'input window, operand 10, single buffered']
    #allocation14 [shape = 'u8[131072]{0}', space=vmem, size = 0x20000, scoped, tag = 'input window, operand 11, single buffered']
    #allocation15 [shape = 's32[1]{0}', space=sflag, size = 0x4, scoped, tag = 'scoped memory for tvae_forward.1']
    #allocation16 [shape = 'u8[1024]{0}', space=vmem, size = 0x400, scoped, tag = 'input window, operand 12, single buffered']
    #allocation17 [shape = 'u8[4096]{0}', space=vmem, size = 0x1000, scoped, tag = 'input window, operand 14, single buffered']
    #allocation18 [shape = 's32[1]{0}', space=sflag, size = 0x4, scoped, tag = 'scoped memory for tvae_forward.1']
    #allocation19 [shape = 'u8[131072]{0}', space=vmem, size = 0x20000, scoped, tag = 'output window, operand 0']
    #allocation20 [shape = 'u8[131072]{0}', space=vmem, size = 0x20000, scoped, tag = 'output window, operand 1']
    #allocation21 [shape = 's32[2]{0}', space=sflag, size = 0x8, scoped, tag = 'scoped memory for tvae_forward.1']
    #allocation22 [shape = 'u8[131072]{0}', space=vmem, size = 0x20000, scoped, tag = 'output window, operand 2']
    #allocation23 [shape = 'u8[131072]{0}', space=vmem, size = 0x20000, scoped, tag = 'output window, operand 4']
    #allocation24 [shape = 's32[2]{0}', space=sflag, size = 0x8, scoped, tag = 'scoped memory for tvae_forward.1']
    #allocation25 [shape = 'u8[131072]{0}', space=vmem, size = 0x20000, scoped, tag = 'output window, operand 5']
    %27 = vsyncpa [#allocation3], 0
    %s28 = scalar_lea.sflag [#allocation3], 1
    %29 = vsyncpa %s28, 0
    %30 = vsyncpa [#allocation6], 0
    %s31 = scalar_lea.sflag [#allocation6], 1
    %32 = vsyncpa %s31, 0
    %33 = vsyncpa [#allocation9], 0
    %34 = vsyncpa [#allocation12], 0
    %35 = vsyncpa [#allocation15], 0
    %36 = vsyncpa [#allocation18], 0
    %37 = vsyncpa [#allocation4], 0
    %s38 = scalar_lea.sflag [#allocation4], 1
    %39 = vsyncpa %s38, 0
    %40 = vsyncpa [#allocation21], 0
    %s41 = scalar_lea.sflag [#allocation21], 1
    %42 = vsyncpa %s41, 0
    %43 = vsyncpa [#allocation24], 0
    %s44 = scalar_lea.sflag [#allocation24], 1
    %45 = vsyncpa %s44, 0
    loop: start=0, step=1, limit=4
    $region2: #{tvae_forward.1} parent=1 // loop_pre_header
      _
    $region3: #{tvae_forward.1} parent=1 // loop_header
      %s47 = sphi 0, %s51
      %p48 = scmp.ge.s32.totalorder %s47, 4
      %s57 = sphi 0, %s59
      %s60 = sphi 0, %s57
      %s61 = sphi 0, %s60
      %s77 = sphi 0, %s61
      %s83 = sphi 0, %s85
      %s86 = sphi 0, %s83
      %s87 = sphi 0, %s86
      %s103 = sphi 0, %s87
      %s109 = sphi 0, %s111
      %s112 = sphi 0, %s109
      %s113 = sphi 0, %s112
      %s129 = sphi 0, %s113
      %s133 = sphi 0, %s133
      %s135 = sphi 0, %s133
      %s136 = sphi 0, %s135
      %s150 = sphi 0, %s136
      %s154 = sphi 0, %s154
      %s156 = sphi 0, %s154
      %s157 = sphi 0, %s156
      %s171 = sphi 0, %s157
      %s175 = sphi 0, %s175
      %s177 = sphi 0, %s175
      %s178 = sphi 0, %s177
      %s192 = sphi 0, %s178
      %s196 = sphi 0, %s196
      %s198 = sphi 0, %s196
      %s199 = sphi 0, %s198
      %s213 = sphi 0, %s199
      %s217 = sphi 0, %s217
      %s219 = sphi 0, %s217
      %s220 = sphi 0, %s219
      %s234 = sphi 0, %s220
      %s238 = sphi 0, %s238
      %s240 = sphi 0, %s238
      %s241 = sphi 0, %s240
      %s255 = sphi 0, %s241
      %s259 = sphi 0, %s259
      %s261 = sphi 0, %s259
      %s262 = sphi 0, %s261
      %s276 = sphi 0, %s262
      %s280 = sphi 0, %s280
      %s282 = sphi 0, %s280
      %s283 = sphi 0, %s282
      %s297 = sphi 0, %s283
      %s301 = sphi 0, %s301
      %s303 = sphi 0, %s301
      %s304 = sphi 0, %s303
      %s318 = sphi 0, %s304
      %s322 = sphi 0, %s322
      %s324 = sphi 0, %s322
      %s325 = sphi 0, %s324
      %s339 = sphi 0, %s325
      %s343 = sphi 0, %s343
      %s345 = sphi 0, %s343
      %s346 = sphi 0, %s345
      %s360 = sphi 0, %s346
      %s364 = sphi 0, %s364
      %s366 = sphi 0, %s364
      %s367 = sphi 0, %s366
      %s381 = sphi 0, %s367
      %s387 = sphi 0, %s389
      %s390 = sphi 0, %s387
      %s391 = sphi 0, %s390
      %s407 = sphi 0, %s391
      %s413 = sphi 0, %s415
      %s416 = sphi 0, %s413
      %s417 = sphi 0, %s416
      %s433 = sphi 0, %s417
      %s439 = sphi 0, %s441
      %s442 = sphi 0, %s439
      %s443 = sphi 0, %s442
      %s459 = sphi 0, %s443
      %s465 = sphi 0, %s467
      %s468 = sphi 0, %s465
      %s469 = sphi 0, %s468
      %s485 = sphi 0, %s469
      %s491 = sphi 0, %s493
      %s494 = sphi 0, %s491
      %s495 = sphi 0, %s494
      %s511 = sphi 0, %s495
      %s517 = sphi 0, %s519
      %s520 = sphi 0, %s517
      %s521 = sphi 0, %s520
      %s537 = sphi 0, %s521
      %s543 = sphi 0, %s545
      %s546 = sphi 0, %s543
      %s547 = sphi 0, %s546
      %s563 = sphi 0, %s547
    $region4: #{tvae_forward.1} parent=1 // loop_header_branch
      %50 = sbr.rel (%p48) target = $region8
    $region5: #{tvae_forward.1} parent=1 // loop_body
      %s52 = ssub.s32 %s47, 1
      %s53 = ssub.s32 %s47, 2
      %s54 = sadd.s32 %s47, 1
      %s55 = ssub.s32 %s47, %s54
      %p56 = scmp.eq.s32.totalorder %s55, 0
      %s58 = sadd.s32 %s57, 1
      %s59 = scalar_select %p56, %s57, %s58
      %p62 = pneg %p56
      %p63 = scmp.eq.s32.totalorder %s47, 1
      %p64 = por %p62, %p63
      %p65 = scmp.ne.s32.totalorder %s57, %s60
      %p66 = scmp.eq.s32.totalorder %s47, 0
      %p67 = por %p65, %p66
      %p68 = scmp.ne.s32.totalorder %s57, %s60
      %p69 = scmp.eq.s32.totalorder %s52, 1
      %p70 = por %p68, %p69
      %p71 = scmp.ne.s32.totalorder %s60, %s61
      %p72 = scmp.eq.s32.totalorder %s52, 0
      %p73 = por %p71, %p72
      %p74 = scmp.ne.s32.totalorder %s60, %s61
      %p75 = scmp.eq.s32.totalorder %s53, 1
      %p76 = por %p74, %p75
      %p78 = scmp.ne.s32.totalorder %s61, %s77
      %p79 = scmp.eq.s32.totalorder %s53, 0
      %p80 = por %p78, %p79
      %s81 = ssub.s32 %s47, %s54
      %p82 = scmp.eq.s32.totalorder %s81, 0
      %s84 = sadd.s32 %s83, 1
      %s85 = scalar_select %p82, %s83, %s84
      %p88 = pneg %p82
      %p89 = scmp.eq.s32.totalorder %s47, 1
      %p90 = por %p88, %p89
      %p91 = scmp.ne.s32.totalorder %s83, %s86
      %p92 = scmp.eq.s32.totalorder %s47, 0
      %p93 = por %p91, %p92
      %p94 = scmp.ne.s32.totalorder %s83, %s86
      %p95 = scmp.eq.s32.totalorder %s52, 1
      %p96 = por %p94, %p95
      %p97 = scmp.ne.s32.totalorder %s86, %s87
      %p98 = scmp.eq.s32.totalorder %s52, 0
      %p99 = por %p97, %p98
      %p100 = scmp.ne.s32.totalorder %s86, %s87
      %p101 = scmp.eq.s32.totalorder %s53, 1
      %p102 = por %p100, %p101
      %p104 = scmp.ne.s32.totalorder %s87, %s103
      %p105 = scmp.eq.s32.totalorder %s53, 0
      %p106 = por %p104, %p105
      %s107 = ssub.s32 %s47, %s54
      %p108 = scmp.eq.s32.totalorder %s107, 0
      %s110 = sadd.s32 %s109, 1
      %s111 = scalar_select %p108, %s109, %s110
      %p114 = pneg %p108
      %p115 = scmp.eq.s32.totalorder %s47, 1
      %p116 = por %p114, %p115
      %p117 = scmp.ne.s32.totalorder %s109, %s112
      %p118 = scmp.eq.s32.totalorder %s47, 0
      %p119 = por %p117, %p118
      %p120 = scmp.ne.s32.totalorder %s109, %s112
      %p121 = scmp.eq.s32.totalorder %s52, 1
      %p122 = por %p120, %p121
      %p123 = scmp.ne.s32.totalorder %s112, %s113
      %p124 = scmp.eq.s32.totalorder %s52, 0
      %p125 = por %p123, %p124
      %p126 = scmp.ne.s32.totalorder %s112, %s113
      %p127 = scmp.eq.s32.totalorder %s53, 1
      %p128 = por %p126, %p127
      %p130 = scmp.ne.s32.totalorder %s113, %s129
      %p131 = scmp.eq.s32.totalorder %s53, 0
      %p132 = por %p130, %p131
      %s134 = sadd.s32 %s133, 1
      %p137 = scmp.eq.s32.totalorder %s47, 1
      %p138 = scmp.ne.s32.totalorder %s133, %s135
      %p139 = scmp.eq.s32.totalorder %s47, 0
      %p140 = por %p138, %p139
      %p141 = scmp.ne.s32.totalorder %s133, %s135
      %p142 = scmp.eq.s32.totalorder %s52, 1
      %p143 = por %p141, %p142
      %p144 = scmp.ne.s32.totalorder %s135, %s136
      %p145 = scmp.eq.s32.totalorder %s52, 0
      %p146 = por %p144, %p145
      %p147 = scmp.ne.s32.totalorder %s135, %s136
      %p148 = scmp.eq.s32.totalorder %s53, 1
      %p149 = por %p147, %p148
      %p151 = scmp.ne.s32.totalorder %s136, %s150
      %p152 = scmp.eq.s32.totalorder %s53, 0
      %p153 = por %p151, %p152
      %s155 = sadd.s32 %s154, 1
      %p158 = scmp.eq.s32.totalorder %s47, 1
      %p159 = scmp.ne.s32.totalorder %s154, %s156
      %p160 = scmp.eq.s32.totalorder %s47, 0
      %p161 = por %p159, %p160
      %p162 = scmp.ne.s32.totalorder %s154, %s156
      %p163 = scmp.eq.s32.totalorder %s52, 1
      %p164 = por %p162, %p163
      %p165 = scmp.ne.s32.totalorder %s156, %s157
      %p166 = scmp.eq.s32.totalorder %s52, 0
      %p167 = por %p165, %p166
      %p168 = scmp.ne.s32.totalorder %s156, %s157
      %p169 = scmp.eq.s32.totalorder %s53, 1
      %p170 = por %p168, %p169
      %p172 = scmp.ne.s32.totalorder %s157, %s171
      %p173 = scmp.eq.s32.totalorder %s53, 0
      %p174 = por %p172, %p173
      %s176 = sadd.s32 %s175, 1
      %p179 = scmp.eq.s32.totalorder %s47, 1
      %p180 = scmp.ne.s32.totalorder %s175, %s177
      %p181 = scmp.eq.s32.totalorder %s47, 0
      %p182 = por %p180, %p181
      %p183 = scmp.ne.s32.totalorder %s175, %s177
      %p184 = scmp.eq.s32.totalorder %s52, 1
      %p185 = por %p183, %p184
      %p186 = scmp.ne.s32.totalorder %s177, %s178
      %p187 = scmp.eq.s32.totalorder %s52, 0
      %p188 = por %p186, %p187
      %p189 = scmp.ne.s32.totalorder %s177, %s178
      %p190 = scmp.eq.s32.totalorder %s53, 1
      %p191 = por %p189, %p190
      %p193 = scmp.ne.s32.totalorder %s178, %s192
      %p194 = scmp.eq.s32.totalorder %s53, 0
      %p195 = por %p193, %p194
      %s197 = sadd.s32 %s196, 1
      %p200 = scmp.eq.s32.totalorder %s47, 1
      %p201 = scmp.ne.s32.totalorder %s196, %s198
      %p202 = scmp.eq.s32.totalorder %s47, 0
      %p203 = por %p201, %p202
      %p204 = scmp.ne.s32.totalorder %s196, %s198
      %p205 = scmp.eq.s32.totalorder %s52, 1
      %p206 = por %p204, %p205
      %p207 = scmp.ne.s32.totalorder %s198, %s199
      %p208 = scmp.eq.s32.totalorder %s52, 0
      %p209 = por %p207, %p208
      %p210 = scmp.ne.s32.totalorder %s198, %s199
      %p211 = scmp.eq.s32.totalorder %s53, 1
      %p212 = por %p210, %p211
      %p214 = scmp.ne.s32.totalorder %s199, %s213
      %p215 = scmp.eq.s32.totalorder %s53, 0
      %p216 = por %p214, %p215
      %s218 = sadd.s32 %s217, 1
      %p221 = scmp.eq.s32.totalorder %s47, 1
      %p222 = scmp.ne.s32.totalorder %s217, %s219
      %p223 = scmp.eq.s32.totalorder %s47, 0
      %p224 = por %p222, %p223
      %p225 = scmp.ne.s32.totalorder %s217, %s219
      %p226 = scmp.eq.s32.totalorder %s52, 1
      %p227 = por %p225, %p226
      %p228 = scmp.ne.s32.totalorder %s219, %s220
      %p229 = scmp.eq.s32.totalorder %s52, 0
      %p230 = por %p228, %p229
      %p231 = scmp.ne.s32.totalorder %s219, %s220
      %p232 = scmp.eq.s32.totalorder %s53, 1
      %p233 = por %p231, %p232
      %p235 = scmp.ne.s32.totalorder %s220, %s234
      %p236 = scmp.eq.s32.totalorder %s53, 0
      %p237 = por %p235, %p236
      %s239 = sadd.s32 %s238, 1
      %p242 = scmp.eq.s32.totalorder %s47, 1
      %p243 = scmp.ne.s32.totalorder %s238, %s240
      %p244 = scmp.eq.s32.totalorder %s47, 0
      %p245 = por %p243, %p244
      %p246 = scmp.ne.s32.totalorder %s238, %s240
      %p247 = scmp.eq.s32.totalorder %s52, 1
      %p248 = por %p246, %p247
      %p249 = scmp.ne.s32.totalorder %s240, %s241
      %p250 = scmp.eq.s32.totalorder %s52, 0
      %p251 = por %p249, %p250
      %p252 = scmp.ne.s32.totalorder %s240, %s241
      %p253 = scmp.eq.s32.totalorder %s53, 1
      %p254 = por %p252, %p253
      %p256 = scmp.ne.s32.totalorder %s241, %s255
      %p257 = scmp.eq.s32.totalorder %s53, 0
      %p258 = por %p256, %p257
      %s260 = sadd.s32 %s259, 1
      %p263 = scmp.eq.s32.totalorder %s47, 1
      %p264 = scmp.ne.s32.totalorder %s259, %s261
      %p265 = scmp.eq.s32.totalorder %s47, 0
      %p266 = por %p264, %p265
      %p267 = scmp.ne.s32.totalorder %s259, %s261
      %p268 = scmp.eq.s32.totalorder %s52, 1
      %p269 = por %p267, %p268
      %p270 = scmp.ne.s32.totalorder %s261, %s262
      %p271 = scmp.eq.s32.totalorder %s52, 0
      %p272 = por %p270, %p271
      %p273 = scmp.ne.s32.totalorder %s261, %s262
      %p274 = scmp.eq.s32.totalorder %s53, 1
      %p275 = por %p273, %p274
      %p277 = scmp.ne.s32.totalorder %s262, %s276
      %p278 = scmp.eq.s32.totalorder %s53, 0
      %p279 = por %p277, %p278
      %s281 = sadd.s32 %s280, 1
      %p284 = scmp.eq.s32.totalorder %s47, 1
      %p285 = scmp.ne.s32.totalorder %s280, %s282
      %p286 = scmp.eq.s32.totalorder %s47, 0
      %p287 = por %p285, %p286
      %p288 = scmp.ne.s32.totalorder %s280, %s282
      %p289 = scmp.eq.s32.totalorder %s52, 1
      %p290 = por %p288, %p289
      %p291 = scmp.ne.s32.totalorder %s282, %s283
      %p292 = scmp.eq.s32.totalorder %s52, 0
      %p293 = por %p291, %p292
      %p294 = scmp.ne.s32.totalorder %s282, %s283
      %p295 = scmp.eq.s32.totalorder %s53, 1
      %p296 = por %p294, %p295
      %p298 = scmp.ne.s32.totalorder %s283, %s297
      %p299 = scmp.eq.s32.totalorder %s53, 0
      %p300 = por %p298, %p299
      %s302 = sadd.s32 %s301, 1
      %p305 = scmp.eq.s32.totalorder %s47, 1
      %p306 = scmp.ne.s32.totalorder %s301, %s303
      %p307 = scmp.eq.s32.totalorder %s47, 0
      %p308 = por %p306, %p307
      %p309 = scmp.ne.s32.totalorder %s301, %s303
      %p310 = scmp.eq.s32.totalorder %s52, 1
      %p311 = por %p309, %p310
      %p312 = scmp.ne.s32.totalorder %s303, %s304
      %p313 = scmp.eq.s32.totalorder %s52, 0
      %p314 = por %p312, %p313
      %p315 = scmp.ne.s32.totalorder %s303, %s304
      %p316 = scmp.eq.s32.totalorder %s53, 1
      %p317 = por %p315, %p316
      %p319 = scmp.ne.s32.totalorder %s304, %s318
      %p320 = scmp.eq.s32.totalorder %s53, 0
      %p321 = por %p319, %p320
      %s323 = sadd.s32 %s322, 1
      %p326 = scmp.eq.s32.totalorder %s47, 1
      %p327 = scmp.ne.s32.totalorder %s322, %s324
      %p328 = scmp.eq.s32.totalorder %s47, 0
      %p329 = por %p327, %p328
      %p330 = scmp.ne.s32.totalorder %s322, %s324
      %p331 = scmp.eq.s32.totalorder %s52, 1
      %p332 = por %p330, %p331
      %p333 = scmp.ne.s32.totalorder %s324, %s325
      %p334 = scmp.eq.s32.totalorder %s52, 0
      %p335 = por %p333, %p334
      %p336 = scmp.ne.s32.totalorder %s324, %s325
      %p337 = scmp.eq.s32.totalorder %s53, 1
      %p338 = por %p336, %p337
      %p340 = scmp.ne.s32.totalorder %s325, %s339
      %p341 = scmp.eq.s32.totalorder %s53, 0
      %p342 = por %p340, %p341
      %s344 = sadd.s32 %s343, 1
      %p347 = scmp.eq.s32.totalorder %s47, 1
      %p348 = scmp.ne.s32.totalorder %s343, %s345
      %p349 = scmp.eq.s32.totalorder %s47, 0
      %p350 = por %p348, %p349
      %p351 = scmp.ne.s32.totalorder %s343, %s345
      %p352 = scmp.eq.s32.totalorder %s52, 1
      %p353 = por %p351, %p352
      %p354 = scmp.ne.s32.totalorder %s345, %s346
      %p355 = scmp.eq.s32.totalorder %s52, 0
      %p356 = por %p354, %p355
      %p357 = scmp.ne.s32.totalorder %s345, %s346
      %p358 = scmp.eq.s32.totalorder %s53, 1
      %p359 = por %p357, %p358
      %p361 = scmp.ne.s32.totalorder %s346, %s360
      %p362 = scmp.eq.s32.totalorder %s53, 0
      %p363 = por %p361, %p362
      %s365 = sadd.s32 %s364, 1
      %p368 = scmp.eq.s32.totalorder %s47, 1
      %p369 = scmp.ne.s32.totalorder %s364, %s366
      %p370 = scmp.eq.s32.totalorder %s47, 0
      %p371 = por %p369, %p370
      %p372 = scmp.ne.s32.totalorder %s364, %s366
      %p373 = scmp.eq.s32.totalorder %s52, 1
      %p374 = por %p372, %p373
      %p375 = scmp.ne.s32.totalorder %s366, %s367
      %p376 = scmp.eq.s32.totalorder %s52, 0
      %p377 = por %p375, %p376
      %p378 = scmp.ne.s32.totalorder %s366, %s367
      %p379 = scmp.eq.s32.totalorder %s53, 1
      %p380 = por %p378, %p379
      %p382 = scmp.ne.s32.totalorder %s367, %s381
      %p383 = scmp.eq.s32.totalorder %s53, 0
      %p384 = por %p382, %p383
      %s385 = ssub.s32 %s47, %s54
      %p386 = scmp.eq.s32.totalorder %s385, 0
      %s388 = sadd.s32 %s387, 1
      %s389 = scalar_select %p386, %s387, %s388
      %p392 = pneg %p386
      %p393 = scmp.eq.s32.totalorder %s47, 1
      %p394 = por %p392, %p393
      %p395 = scmp.ne.s32.totalorder %s387, %s390
      %p396 = scmp.eq.s32.totalorder %s47, 0
      %p397 = por %p395, %p396
      %p398 = scmp.ne.s32.totalorder %s387, %s390
      %p399 = scmp.eq.s32.totalorder %s52, 1
      %p400 = por %p398, %p399
      %p401 = scmp.ne.s32.totalorder %s390, %s391
      %p402 = scmp.eq.s32.totalorder %s52, 0
      %p403 = por %p401, %p402
      %p404 = scmp.ne.s32.totalorder %s390, %s391
      %p405 = scmp.eq.s32.totalorder %s53, 1
      %p406 = por %p404, %p405
      %p408 = scmp.ne.s32.totalorder %s391, %s407
      %p409 = scmp.eq.s32.totalorder %s53, 0
      %p410 = por %p408, %p409
      %s411 = ssub.s32 %s47, %s54
      %p412 = scmp.eq.s32.totalorder %s411, 0
      %s414 = sadd.s32 %s413, 1
      %s415 = scalar_select %p412, %s413, %s414
      %p418 = pneg %p412
      %p419 = scmp.eq.s32.totalorder %s47, 1
      %p420 = por %p418, %p419
      %p421 = scmp.ne.s32.totalorder %s413, %s416
      %p422 = scmp.eq.s32.totalorder %s47, 0
      %p423 = por %p421, %p422
      %p424 = scmp.ne.s32.totalorder %s413, %s416
      %p425 = scmp.eq.s32.totalorder %s52, 1
      %p426 = por %p424, %p425
      %p427 = scmp.ne.s32.totalorder %s416, %s417
      %p428 = scmp.eq.s32.totalorder %s52, 0
      %p429 = por %p427, %p428
      %p430 = scmp.ne.s32.totalorder %s416, %s417
      %p431 = scmp.eq.s32.totalorder %s53, 1
      %p432 = por %p430, %p431
      %p434 = scmp.ne.s32.totalorder %s417, %s433
      %p435 = scmp.eq.s32.totalorder %s53, 0
      %p436 = por %p434, %p435
      %s437 = ssub.s32 %s47, %s54
      %p438 = scmp.eq.s32.totalorder %s437, 0
      %s440 = sadd.s32 %s439, 1
      %s441 = scalar_select %p438, %s439, %s440
      %p444 = pneg %p438
      %p445 = scmp.eq.s32.totalorder %s47, 1
      %p446 = por %p444, %p445
      %p447 = scmp.ne.s32.totalorder %s439, %s442
      %p448 = scmp.eq.s32.totalorder %s47, 0
      %p449 = por %p447, %p448
      %p450 = scmp.ne.s32.totalorder %s439, %s442
      %p451 = scmp.eq.s32.totalorder %s52, 1
      %p452 = por %p450, %p451
      %p453 = scmp.ne.s32.totalorder %s442, %s443
      %p454 = scmp.eq.s32.totalorder %s52, 0
      %p455 = por %p453, %p454
      %p456 = scmp.ne.s32.totalorder %s442, %s443
      %p457 = scmp.eq.s32.totalorder %s53, 1
      %p458 = por %p456, %p457
      %p460 = scmp.ne.s32.totalorder %s443, %s459
      %p461 = scmp.eq.s32.totalorder %s53, 0
      %p462 = por %p460, %p461
      %s463 = ssub.s32 %s47, %s54
      %p464 = scmp.eq.s32.totalorder %s463, 0
      %s466 = sadd.s32 %s465, 1
      %s467 = scalar_select %p464, %s465, %s466
      %p470 = pneg %p464
      %p471 = scmp.eq.s32.totalorder %s47, 1
      %p472 = por %p470, %p471
      %p473 = scmp.ne.s32.totalorder %s465, %s468
      %p474 = scmp.eq.s32.totalorder %s47, 0
      %p475 = por %p473, %p474
      %p476 = scmp.ne.s32.totalorder %s465, %s468
      %p477 = scmp.eq.s32.totalorder %s52, 1
      %p478 = por %p476, %p477
      %p479 = scmp.ne.s32.totalorder %s468, %s469
      %p480 = scmp.eq.s32.totalorder %s52, 0
      %p481 = por %p479, %p480
      %p482 = scmp.ne.s32.totalorder %s468, %s469
      %p483 = scmp.eq.s32.totalorder %s53, 1
      %p484 = por %p482, %p483
      %p486 = scmp.ne.s32.totalorder %s469, %s485
      %p487 = scmp.eq.s32.totalorder %s53, 0
      %p488 = por %p486, %p487
      %s489 = ssub.s32 %s47, %s54
      %p490 = scmp.eq.s32.totalorder %s489, 0
      %s492 = sadd.s32 %s491, 1
      %s493 = scalar_select %p490, %s491, %s492
      %p496 = pneg %p490
      %p497 = scmp.eq.s32.totalorder %s47, 1
      %p498 = por %p496, %p497
      %p499 = scmp.ne.s32.totalorder %s491, %s494
      %p500 = scmp.eq.s32.totalorder %s47, 0
      %p501 = por %p499, %p500
      %p502 = scmp.ne.s32.totalorder %s491, %s494
      %p503 = scmp.eq.s32.totalorder %s52, 1
      %p504 = por %p502, %p503
      %p505 = scmp.ne.s32.totalorder %s494, %s495
      %p506 = scmp.eq.s32.totalorder %s52, 0
      %p507 = por %p505, %p506
      %p508 = scmp.ne.s32.totalorder %s494, %s495
      %p509 = scmp.eq.s32.totalorder %s53, 1
      %p510 = por %p508, %p509
      %p512 = scmp.ne.s32.totalorder %s495, %s511
      %p513 = scmp.eq.s32.totalorder %s53, 0
      %p514 = por %p512, %p513
      %s515 = ssub.s32 %s47, %s54
      %p516 = scmp.eq.s32.totalorder %s515, 0
      %s518 = sadd.s32 %s517, 1
      %s519 = scalar_select %p516, %s517, %s518
      %p522 = pneg %p516
      %p523 = scmp.eq.s32.totalorder %s47, 1
      %p524 = por %p522, %p523
      %p525 = scmp.ne.s32.totalorder %s517, %s520
      %p526 = scmp.eq.s32.totalorder %s47, 0
      %p527 = por %p525, %p526
      %p528 = scmp.ne.s32.totalorder %s517, %s520
      %p529 = scmp.eq.s32.totalorder %s52, 1
      %p530 = por %p528, %p529
      %p531 = scmp.ne.s32.totalorder %s520, %s521
      %p532 = scmp.eq.s32.totalorder %s52, 0
      %p533 = por %p531, %p532
      %p534 = scmp.ne.s32.totalorder %s520, %s521
      %p535 = scmp.eq.s32.totalorder %s53, 1
      %p536 = por %p534, %p535
      %p538 = scmp.ne.s32.totalorder %s521, %s537
      %p539 = scmp.eq.s32.totalorder %s53, 0
      %p540 = por %p538, %p539
      %s541 = ssub.s32 %s47, %s54
      %p542 = scmp.eq.s32.totalorder %s541, 0
      %s544 = sadd.s32 %s543, 1
      %s545 = scalar_select %p542, %s543, %s544
      %p548 = pneg %p542
      %p549 = scmp.eq.s32.totalorder %s47, 1
      %p550 = por %p548, %p549
      %p551 = scmp.ne.s32.totalorder %s543, %s546
      %p552 = scmp.eq.s32.totalorder %s47, 0
      %p553 = por %p551, %p552
      %p554 = scmp.ne.s32.totalorder %s543, %s546
      %p555 = scmp.eq.s32.totalorder %s52, 1
      %p556 = por %p554, %p555
      %p557 = scmp.ne.s32.totalorder %s546, %s547
      %p558 = scmp.eq.s32.totalorder %s52, 0
      %p559 = por %p557, %p558
      %p560 = scmp.ne.s32.totalorder %s546, %s547
      %p561 = scmp.eq.s32.totalorder %s53, 1
      %p562 = por %p560, %p561
      %p564 = scmp.ne.s32.totalorder %s547, %s563
      %p565 = scmp.eq.s32.totalorder %s53, 0
      %p566 = por %p564, %p565
      %p567 = scmp.le.s32.totalorder 1, %s47
      %p568 = scmp.lt.s32.totalorder %s47, 3
      %p569 = pnand %p567, %p568
      %p570 = pneg %p569
      // Predicated region
      $region9: #{tvae_forward.1} parent=5 // pred_check
        _
      $region10: #{tvae_forward.1} parent=5 // pred_check_branch
        %572 = sbr.rel (%p569) target = $region12
      $region11: #{tvae_forward.1} parent=5 // pred_region
        %s573 = ssub.s32 %s47, 1
        // Predicated region
        $region13: #{tvae_forward.1} parent=11 // pred_check
          %p574 = pneg %p146
        $region14: #{tvae_forward.1} parent=11 // pred_check_branch
          %576 = sbr.rel (%p574) target = $region16
        $region15: #{tvae_forward.1} parent=11 // pred_region
          _
        $region16: #{tvae_forward.1} parent=11 // pred_fallthru
          _
        // Predicated region
        $region17: #{tvae_forward.1} parent=11 // pred_check
          %p577 = pneg %p167
        $region18: #{tvae_forward.1} parent=11 // pred_check_branch
          %579 = sbr.rel (%p577) target = $region20
        $region19: #{tvae_forward.1} parent=11 // pred_region
          %s581 = ssub.s32 64, 64
          %582 = vsyncadd [#allocation6], %s581
          %s584 = sshll.u32 [#allocation7], 4
          %s585 = int_to_ptr.vmem [resolvable:$true] %s584
          %587 = dma.hbm_to_vmem [thread:$0]  %s4, 64, %s585, [#allocation6]
        $region20: #{tvae_forward.1} parent=11 // pred_fallthru
          _
        // Predicated region
        $region21: #{tvae_forward.1} parent=11 // pred_check
          %p588 = pneg %p188
        $region22: #{tvae_forward.1} parent=11 // pred_check_branch
          %590 = sbr.rel (%p588) target = $region24
        $region23: #{tvae_forward.1} parent=11 // pred_region
          _
        $region24: #{tvae_forward.1} parent=11 // pred_fallthru
          _
        // Predicated region
        $region25: #{tvae_forward.1} parent=11 // pred_check
          %p591 = pneg %p209
        $region26: #{tvae_forward.1} parent=11 // pred_check_branch
          %593 = sbr.rel (%p591) target = $region28
        $region27: #{tvae_forward.1} parent=11 // pred_region
          %s595 = ssub.s32 64, 64
          %596 = vsyncadd [#allocation9], %s595
          %s597 = sshll.u32 [#allocation8], 4
          %s598 = int_to_ptr.vmem [resolvable:$true] %s597
          %603 = dma.hbm_to_vmem [thread:$0]  %s6, 64, %s598, [#allocation9], 32, 32, 2
        $region28: #{tvae_forward.1} parent=11 // pred_fallthru
          _
        // Predicated region
        $region29: #{tvae_forward.1} parent=11 // pred_check
          %p604 = pneg %p230
        $region30: #{tvae_forward.1} parent=11 // pred_check_branch
          %606 = sbr.rel (%p604) target = $region32
        $region31: #{tvae_forward.1} parent=11 // pred_region
          _
        $region32: #{tvae_forward.1} parent=11 // pred_fallthru
          _
        // Predicated region
        $region33: #{tvae_forward.1} parent=11 // pred_check
          %p607 = pneg %p251
        $region34: #{tvae_forward.1} parent=11 // pred_check_branch
          %609 = sbr.rel (%p607) target = $region36
        $region35: #{tvae_forward.1} parent=11 // pred_region
          %s611 = ssub.s32 64, 64
          %612 = vsyncadd [#allocation9], %s611
          %s613 = sshll.u32 [#allocation10], 4
          %s614 = int_to_ptr.vmem [resolvable:$true] %s613
          %619 = dma.hbm_to_vmem [thread:$0]  %s8, 64, %s614, [#allocation9], 32, 32, 2
        $region36: #{tvae_forward.1} parent=11 // pred_fallthru
          _
        // Predicated region
        $region37: #{tvae_forward.1} parent=11 // pred_check
          %p620 = pneg %p272
        $region38: #{tvae_forward.1} parent=11 // pred_check_branch
          %622 = sbr.rel (%p620) target = $region40
        $region39: #{tvae_forward.1} parent=11 // pred_region
          %s624 = ssub.s32 2048, 2048
          %625 = vsyncadd [#allocation12], %s624
          %s626 = sshll.u32 [#allocation11], 4
          %s627 = int_to_ptr.vmem [resolvable:$true] %s626
          %632 = dma.hbm_to_vmem [thread:$0]  %s9, 2048, %s627, [#allocation12], 128, 128, 8
        $region40: #{tvae_forward.1} parent=11 // pred_fallthru
          _
        // Predicated region
        $region41: #{tvae_forward.1} parent=11 // pred_check
          %p633 = pneg %p293
        $region42: #{tvae_forward.1} parent=11 // pred_check_branch
          %635 = sbr.rel (%p633) target = $region44
        $region43: #{tvae_forward.1} parent=11 // pred_region
          %s637 = ssub.s32 32, 32
          %638 = vsyncadd [#allocation12], %s637
          %s640 = sshll.u32 [#allocation13], 4
          %s641 = int_to_ptr.vmem [resolvable:$true] %s640
          %643 = dma.hbm_to_vmem [thread:$0]  %s10, 32, %s641, [#allocation12]
        $region44: #{tvae_forward.1} parent=11 // pred_fallthru
          _
        // Predicated region
        $region45: #{tvae_forward.1} parent=11 // pred_check
          %p644 = pneg %p314
        $region46: #{tvae_forward.1} parent=11 // pred_check_branch
          %646 = sbr.rel (%p644) target = $region48
        $region47: #{tvae_forward.1} parent=11 // pred_region
          %s648 = ssub.s32 4096, 4096
          %649 = vsyncadd [#allocation15], %s648
          %s650 = sshll.u32 [#allocation14], 4
          %s651 = int_to_ptr.vmem [resolvable:$true] %s650
          %656 = dma.hbm_to_vmem [thread:$0]  %s11, 4096, %s651, [#allocation15], 128, 128, 8
        $region48: #{tvae_forward.1} parent=11 // pred_fallthru
          _
        // Predicated region
        $region49: #{tvae_forward.1} parent=11 // pred_check
          %p657 = pneg %p335
        $region50: #{tvae_forward.1} parent=11 // pred_check_branch
          %659 = sbr.rel (%p657) target = $region52
        $region51: #{tvae_forward.1} parent=11 // pred_region
          %s661 = ssub.s32 32, 32
          %662 = vsyncadd [#allocation15], %s661
          %s664 = sshll.u32 [#allocation16], 4
          %s665 = int_to_ptr.vmem [resolvable:$true] %s664
          %667 = dma.hbm_to_vmem [thread:$0]  %s12, 32, %s665, [#allocation15]
        $region52: #{tvae_forward.1} parent=11 // pred_fallthru
          _
        // Predicated region
        $region53: #{tvae_forward.1} parent=11 // pred_check
          %p668 = pneg %p356
        $region54: #{tvae_forward.1} parent=11 // pred_check_branch
          %670 = sbr.rel (%p668) target = $region56
        $region55: #{tvae_forward.1} parent=11 // pred_region
          _
        $region56: #{tvae_forward.1} parent=11 // pred_fallthru
          _
        // Predicated region
        $region57: #{tvae_forward.1} parent=11 // pred_check
          %p671 = pneg %p377
        $region58: #{tvae_forward.1} parent=11 // pred_check_branch
          %673 = sbr.rel (%p671) target = $region60
        $region59: #{tvae_forward.1} parent=11 // pred_region
          %s675 = ssub.s32 128, 128
          %676 = vsyncadd [#allocation18], %s675
          %s678 = sshll.u32 [#allocation17], 4
          %s679 = int_to_ptr.vmem [resolvable:$true] %s678
          %681 = dma.hbm_to_vmem [thread:$0]  %s14, 128, %s679, [#allocation18]
        $region60: #{tvae_forward.1} parent=11 // pred_fallthru
          _
      $region12: #{tvae_forward.1} parent=5 // pred_fallthru
        _
      %p682 = scmp.lt.s32.totalorder %s47, 2
      // Predicated region
      $region61: #{tvae_forward.1} parent=5 // pred_check
        %p683 = pneg %p682
      $region62: #{tvae_forward.1} parent=5 // pred_check_branch
        %685 = sbr.rel (%p683) target = $region64
      $region63: #{tvae_forward.1} parent=5 // pred_region
        // Predicated region
        $region65: #{tvae_forward.1} parent=63 // pred_check
          %p686 = pneg %p67
        $region66: #{tvae_forward.1} parent=63 // pred_check_branch
          %688 = sbr.rel (%p686) target = $region68
        $region67: #{tvae_forward.1} parent=63 // pred_region
          %s689 = smul.u32 16, %s47
          %p690 = scmp.lt.s32.totalorder %s689, 31
          %s691 = scalar_select %p690, %s689, 31
          %s692 = smul.addr %s691, 8
          %s693 = smul.addr %s692, 8
          %s694 = scalar_lea.vmem %s0, %s693
          %s695 = smul.u32 16, %s47
        $region68: #{tvae_forward.1} parent=63 // pred_fallthru
          _
        // Predicated region
        $region69: #{tvae_forward.1} parent=63 // pred_check
          %p696 = pneg %p93
        $region70: #{tvae_forward.1} parent=63 // pred_check_branch
          %698 = sbr.rel (%p696) target = $region72
        $region71: #{tvae_forward.1} parent=63 // pred_region
          %s699 = sand.u32 %s83, 1
          %s700 = scalar_lea.sflag [#allocation3], %s699
          %s701 = sand.u32 %s83, 1
          %s702 = smul.addr %s701, 128
          %s703 = scalar_lea.vmem [#allocation2], %s702
          %s704 = smul.u32 16, %s47
          %s706 = ssub.s32 2048, 2048
          %707 = vsyncadd %s700, %s706
          %s708 = smul.addr %s704, 128
          %s709 = scalar_lea.hbm %s1, %s708
          %s710 = sshll.u32 %s703, 4
          %s711 = int_to_ptr.vmem [resolvable:$true] %s710
          %716 = dma.hbm_to_vmem [thread:$0]  %s709, 2048, %s711, %s700, 128, 128, 8
        $region72: #{tvae_forward.1} parent=63 // pred_fallthru
          _
        // Predicated region
        $region73: #{tvae_forward.1} parent=63 // pred_check
          %p717 = pneg %p119
        $region74: #{tvae_forward.1} parent=63 // pred_check_branch
          %719 = sbr.rel (%p717) target = $region76
        $region75: #{tvae_forward.1} parent=63 // pred_region
          %s720 = sand.u32 %s47, 1
          %s721 = scalar_lea.sflag [#allocation6], %s720
          %s722 = sand.u32 %s109, 1
          %s723 = smul.addr %s722, 128
          %s724 = scalar_lea.vmem [#allocation5], %s723
          %s725 = smul.u32 16, %s47
          %s727 = ssub.s32 2048, 2048
          %728 = vsyncadd %s721, %s727
          %s729 = smul.addr %s725, 128
          %s730 = scalar_lea.hbm %s2, %s729
          %s731 = sshll.u32 %s724, 4
          %s732 = int_to_ptr.vmem [resolvable:$true] %s731
          %737 = dma.hbm_to_vmem [thread:$0]  %s730, 2048, %s732, %s721, 128, 128, 8
        $region76: #{tvae_forward.1} parent=63 // pred_fallthru
          _
      $region64: #{tvae_forward.1} parent=5 // pred_fallthru
        _
      %p738 = scmp.le.s32.totalorder 1, %s47
      %p739 = scmp.lt.s32.totalorder %s47, 3
      %p740 = pnand %p738, %p739
      %p741 = pneg %p740
      // Predicated region
      $region77: #{tvae_forward.1} parent=5 // pred_check
        _
      $region78: #{tvae_forward.1} parent=5 // pred_check_branch
        %743 = sbr.rel (%p740) target = $region80
      $region79: #{tvae_forward.1} parent=5 // pred_region
        %s744 = ssub.s32 %s47, 1
        %s745 = sand.u32 %s86, 1
        %s746 = scalar_lea.sflag [#allocation3], %s745
        %s747 = sand.u32 %s86, 1
        %s748 = smul.addr %s747, 128
        %s749 = scalar_lea.vmem [#allocation2], %s748
        // Predicated region
        $region81: #{tvae_forward.1} parent=79 // pred_check
          %p750 = pneg %p99
        $region82: #{tvae_forward.1} parent=79 // pred_check_branch
          %752 = sbr.rel (%p750) target = $region84
        $region83: #{tvae_forward.1} parent=79 // pred_region
          %753 = dma.done %s746, 2048
        $region84: #{tvae_forward.1} parent=79 // pred_fallthru
          _
        %s754 = sand.u32 %s52, 1
        %s755 = scalar_lea.sflag [#allocation6], %s754
        %s756 = sand.u32 %s112, 1
        %s757 = smul.addr %s756, 128
        %s758 = scalar_lea.vmem [#allocation5], %s757
        // Predicated region
        $region85: #{tvae_forward.1} parent=79 // pred_check
          %p759 = pneg %p125
        $region86: #{tvae_forward.1} parent=79 // pred_check_branch
          %761 = sbr.rel (%p759) target = $region88
        $region87: #{tvae_forward.1} parent=79 // pred_region
          %762 = dma.done %s755, 2048
        $region88: #{tvae_forward.1} parent=79 // pred_fallthru
          _
        // Predicated region
        $region89: #{tvae_forward.1} parent=79 // pred_check
          %p763 = pneg %p167
        $region90: #{tvae_forward.1} parent=79 // pred_check_branch
          %765 = sbr.rel (%p763) target = $region92
        $region91: #{tvae_forward.1} parent=79 // pred_region
          %766 = dma.done [#allocation6], 64
        $region92: #{tvae_forward.1} parent=79 // pred_fallthru
          _
        // Predicated region
        $region93: #{tvae_forward.1} parent=79 // pred_check
          %p767 = pneg %p209
        $region94: #{tvae_forward.1} parent=79 // pred_check_branch
          %769 = sbr.rel (%p767) target = $region96
        $region95: #{tvae_forward.1} parent=79 // pred_region
          %770 = dma.done [#allocation9], 64
        $region96: #{tvae_forward.1} parent=79 // pred_fallthru
          _
        // Predicated region
        $region97: #{tvae_forward.1} parent=79 // pred_check
          %p771 = pneg %p251
        $region98: #{tvae_forward.1} parent=79 // pred_check_branch
          %773 = sbr.rel (%p771) target = $region100
        $region99: #{tvae_forward.1} parent=79 // pred_region
          %774 = dma.done [#allocation9], 64
        $region100: #{tvae_forward.1} parent=79 // pred_fallthru
          _
        // Predicated region
        $region101: #{tvae_forward.1} parent=79 // pred_check
          %p775 = pneg %p272
        $region102: #{tvae_forward.1} parent=79 // pred_check_branch
          %777 = sbr.rel (%p775) target = $region104
        $region103: #{tvae_forward.1} parent=79 // pred_region
          %778 = dma.done [#allocation12], 2048
        $region104: #{tvae_forward.1} parent=79 // pred_fallthru
          _
        // Predicated region
        $region105: #{tvae_forward.1} parent=79 // pred_check
          %p779 = pneg %p293
        $region106: #{tvae_forward.1} parent=79 // pred_check_branch
          %781 = sbr.rel (%p779) target = $region108
        $region107: #{tvae_forward.1} parent=79 // pred_region
          %782 = dma.done [#allocation12], 32
        $region108: #{tvae_forward.1} parent=79 // pred_fallthru
          _
        // Predicated region
        $region109: #{tvae_forward.1} parent=79 // pred_check
          %p783 = pneg %p314
        $region110: #{tvae_forward.1} parent=79 // pred_check_branch
          %785 = sbr.rel (%p783) target = $region112
        $region111: #{tvae_forward.1} parent=79 // pred_region
          %786 = dma.done [#allocation15], 4096
        $region112: #{tvae_forward.1} parent=79 // pred_fallthru
          _
        // Predicated region
        $region113: #{tvae_forward.1} parent=79 // pred_check
          %p787 = pneg %p335
        $region114: #{tvae_forward.1} parent=79 // pred_check_branch
          %789 = sbr.rel (%p787) target = $region116
        $region115: #{tvae_forward.1} parent=79 // pred_region
          %790 = dma.done [#allocation15], 32
        $region116: #{tvae_forward.1} parent=79 // pred_fallthru
          _
        // Predicated region
        $region117: #{tvae_forward.1} parent=79 // pred_check
          %p791 = pneg %p377
        $region118: #{tvae_forward.1} parent=79 // pred_check_branch
          %793 = sbr.rel (%p791) target = $region120
        $region119: #{tvae_forward.1} parent=79 // pred_region
          %794 = dma.done [#allocation18], 128
        $region120: #{tvae_forward.1} parent=79 // pred_fallthru
          _
        %s795 = smul.u32 16, %s52
        %p796 = scmp.lt.s32.totalorder %s795, 31
        %s797 = scalar_select %p796, %s795, 31
        %s798 = smul.addr %s797, 8
        %s799 = smul.addr %s798, 8
        %s800 = scalar_lea.vmem %s0, %s799
        %p801 = pneg %p73
        %p802 = pneg %p70
        %s803 = sand.u32 %s86, 1
        %s804 = scalar_lea.sflag [#allocation3], %s803
        %s805 = sand.u32 %s86, 1
        %s806 = smul.addr %s805, 128
        %s807 = scalar_lea.vmem [#allocation2], %s806
        %p808 = pneg %p99
        %p809 = pneg %p96
        %s810 = sand.u32 %s52, 1
        %s811 = scalar_lea.sflag [#allocation6], %s810
        %s812 = sand.u32 %s112, 1
        %s813 = smul.addr %s812, 128
        %s814 = scalar_lea.vmem [#allocation5], %s813
        %p815 = pneg %p125
        %p816 = pneg %p122
        %p817 = pneg %p146
        %p818 = pneg %p143
        %p819 = pneg %p167
        %p820 = pneg %p164
        %p821 = pneg %p188
        %p822 = pneg %p185
        %p823 = pneg %p209
        %p824 = pneg %p206
        %p825 = pneg %p230
        %p826 = pneg %p227
        %p827 = pneg %p251
        %p828 = pneg %p248
        %p829 = pneg %p272
        %p830 = pneg %p269
        %p831 = pneg %p293
        %p832 = pneg %p290
        %p833 = pneg %p314
        %p834 = pneg %p311
        %p835 = pneg %p335
        %p836 = pneg %p332
        %p837 = pneg %p356
        %p838 = pneg %p353
        %p839 = pneg %p377
        %p840 = pneg %p374
        %p841 = pneg %p403
        %p842 = pneg %p400
        %s843 = sand.u32 %s390, 1
        %s844 = scalar_lea.sflag [#allocation4], %s843
        %s845 = sand.u32 %s390, 1
        %s846 = smul.addr %s845, 128
        %s847 = scalar_lea.vmem [#allocation19], %s846
        %p848 = pneg %p429
        %p849 = pneg %p426
        %s850 = sand.u32 %s52, 1
        %s851 = scalar_lea.sflag [#allocation21], %s850
        %s852 = sand.u32 %s416, 1
        %s853 = smul.addr %s852, 128
        %s854 = scalar_lea.vmem [#allocation20], %s853
        %p855 = pneg %p455
        %p856 = pneg %p452
        %s857 = sand.u32 %s52, 1
        %s858 = scalar_lea.sflag [#allocation21], %s857
        %s859 = sand.u32 %s442, 1
        %s860 = smul.addr %s859, 128
        %s861 = scalar_lea.vmem [#allocation22], %s860
        %p862 = pneg %p481
        %p863 = pneg %p478
        %s864 = smul.u32 16, %s52
        %p865 = scmp.lt.s32.totalorder %s864, 31
        %s866 = scalar_select %p865, %s864, 31
        %s867 = smul.addr %s866, 8
        %s868 = smul.addr %s867, 8
        %s869 = scalar_lea.vmem %s18, %s868
        %p870 = pneg %p507
        %p871 = pneg %p504
        %s872 = sand.u32 %s52, 1
        %s873 = scalar_lea.sflag [#allocation24], %s872
        %s874 = sand.u32 %s494, 1
        %s875 = smul.addr %s874, 128
        %s876 = scalar_lea.vmem [#allocation23], %s875
        %p877 = pneg %p533
        %p878 = pneg %p530
        %s879 = sand.u32 %s52, 1
        %s880 = scalar_lea.sflag [#allocation24], %s879
        %s881 = sand.u32 %s520, 1
        %s882 = smul.addr %s881, 128
        %s883 = scalar_lea.vmem [#allocation25], %s882
        %p884 = pneg %p559
        %p885 = pneg %p556
        %s886 = smul.u32 16, %s52
        %p887 = scmp.lt.s32.totalorder %s886, 31
        %s888 = scalar_select %p887, %s886, 31
        %s889 = smul.addr %s888, 8
        %s890 = smul.addr %s889, 8
        %s891 = scalar_lea.vmem %s21, %s890
        %s892 = smul.u32 16, %s52
        %p893 = scmp.lt.s32.totalorder %s892, 31
        %s894 = scalar_select %p893, %s892, 31
        %s895 = smul.addr %s894, 8
        %s896 = smul.addr %s895, 8
        %s897 = scalar_lea.vmem %s0, %s896
        %s898 = smul.u32 16, %s52
        %s899 = smul.u32 16, %s52
        %s900 = smul.u32 16, %s52
        %s901 = smul.u32 16, %s52
        %s902 = smul.u32 16, %s52
        %s903 = smul.u32 16, %s52
        %s904 = smul.u32 16, %s52
        %p905 = scmp.lt.s32.totalorder %s904, 31
        %s906 = scalar_select %p905, %s904, 31
        %s907 = smul.addr %s906, 8
        %s908 = smul.addr %s907, 8
        %s909 = scalar_lea.vmem %s18, %s908
        %s910 = smul.u32 16, %s52
        %s911 = smul.u32 16, %s52
        %s912 = smul.u32 16, %s52
        %s913 = smul.u32 16, %s52
        %p914 = scmp.lt.s32.totalorder %s913, 31
        %s915 = scalar_select %p914, %s913, 31
        %s916 = smul.addr %s915, 8
        %s917 = smul.addr %s916, 8
        %s918 = scalar_lea.vmem %s21, %s917
        %s919 = smul.u32 16, %s52
        %v921 = vld [vmem:[%s897] sm:$0xff]
        %v922 = vld [vmem:[%s897 + $0x8] sm:$0xff]
        %v923 = vld [vmem:[%s897 + $0x10] sm:$0xff]
        %v924 = vld [vmem:[%s897 + $0x18] sm:$0xff]
        %v925 = vld [vmem:[%s897 + $0x20] sm:$0xff]
        %v926 = vld [vmem:[%s897 + $0x28] sm:$0xff]
        %v927 = vld [vmem:[%s897 + $0x30] sm:$0xff]
        %v928 = vld [vmem:[%s897 + $0x38] sm:$0xff]
        %v929 = vld [vmem:[%s897 + $0x40] sm:$0xff]
        %v930 = vld [vmem:[%s897 + $0x48] sm:$0xff]
        %v931 = vld [vmem:[%s897 + $0x50] sm:$0xff]
        %v932 = vld [vmem:[%s897 + $0x58] sm:$0xff]
        %v933 = vld [vmem:[%s897 + $0x60] sm:$0xff]
        %v934 = vld [vmem:[%s897 + $0x68] sm:$0xff]
        %v935 = vld [vmem:[%s897 + $0x70] sm:$0xff]
        %v936 = vld [vmem:[%s897 + $0x78] sm:$0xff]
        %v937 = vld [vmem:[%s897 + $0x80] sm:$0xff]
        %v938 = vld [vmem:[%s897 + $0x88] sm:$0xff]
        %v939 = vld [vmem:[%s897 + $0x90] sm:$0xff]
        %v940 = vld [vmem:[%s897 + $0x98] sm:$0xff]
        %v941 = vld [vmem:[%s897 + $0xa0] sm:$0xff]
        %v942 = vld [vmem:[%s897 + $0xa8] sm:$0xff]
        %v943 = vld [vmem:[%s897 + $0xb0] sm:$0xff]
        %v944 = vld [vmem:[%s897 + $0xb8] sm:$0xff]
        %v945 = vld [vmem:[%s897 + $0xc0] sm:$0xff]
        %v946 = vld [vmem:[%s897 + $0xc8] sm:$0xff]
        %v947 = vld [vmem:[%s897 + $0xd0] sm:$0xff]
        %v948 = vld [vmem:[%s897 + $0xd8] sm:$0xff]
        %v949 = vld [vmem:[%s897 + $0xe0] sm:$0xff]
        %v950 = vld [vmem:[%s897 + $0xe8] sm:$0xff]
        %v951 = vld [vmem:[%s897 + $0xf0] sm:$0xff]
        %v952 = vld [vmem:[%s897 + $0xf8] sm:$0xff]
        %v953 = vld [vmem:[%s897 + $0x100] sm:$0xff]
        %v954 = vld [vmem:[%s897 + $0x108] sm:$0xff]
        %v955 = vld [vmem:[%s897 + $0x110] sm:$0xff]
        %v956 = vld [vmem:[%s897 + $0x118] sm:$0xff]
        %v957 = vld [vmem:[%s897 + $0x120] sm:$0xff]
        %v958 = vld [vmem:[%s897 + $0x128] sm:$0xff]
        %v959 = vld [vmem:[%s897 + $0x130] sm:$0xff]
        %v960 = vld [vmem:[%s897 + $0x138] sm:$0xff]
        %v961 = vld [vmem:[%s897 + $0x140] sm:$0xff]
        %v962 = vld [vmem:[%s897 + $0x148] sm:$0xff]
        %v963 = vld [vmem:[%s897 + $0x150] sm:$0xff]
        %v964 = vld [vmem:[%s897 + $0x158] sm:$0xff]
        %v965 = vld [vmem:[%s897 + $0x160] sm:$0xff]
        %v966 = vld [vmem:[%s897 + $0x168] sm:$0xff]
        %v967 = vld [vmem:[%s897 + $0x170] sm:$0xff]
        %v968 = vld [vmem:[%s897 + $0x178] sm:$0xff]
        %v969 = vld [vmem:[%s897 + $0x180] sm:$0xff]
        %v970 = vld [vmem:[%s897 + $0x188] sm:$0xff]
        %v971 = vld [vmem:[%s897 + $0x190] sm:$0xff]
        %v972 = vld [vmem:[%s897 + $0x198] sm:$0xff]
        %v973 = vld [vmem:[%s897 + $0x1a0] sm:$0xff]
        %v974 = vld [vmem:[%s897 + $0x1a8] sm:$0xff]
        %v975 = vld [vmem:[%s897 + $0x1b0] sm:$0xff]
        %v976 = vld [vmem:[%s897 + $0x1b8] sm:$0xff]
        %v977 = vld [vmem:[%s897 + $0x1c0] sm:$0xff]
        %v978 = vld [vmem:[%s897 + $0x1c8] sm:$0xff]
        %v979 = vld [vmem:[%s897 + $0x1d0] sm:$0xff]
        %v980 = vld [vmem:[%s897 + $0x1d8] sm:$0xff]
        %v981 = vld [vmem:[%s897 + $0x1e0] sm:$0xff]
        %v982 = vld [vmem:[%s897 + $0x1e8] sm:$0xff]
        %v983 = vld [vmem:[%s897 + $0x1f0] sm:$0xff]
        %v984 = vld [vmem:[%s897 + $0x1f8] sm:$0xff]
        %v985 = vld [vmem:[%s897 + $0x200] sm:$0xff]
        %v986 = vld [vmem:[%s897 + $0x208] sm:$0xff]
        %v987 = vld [vmem:[%s897 + $0x210] sm:$0xff]
        %v988 = vld [vmem:[%s897 + $0x218] sm:$0xff]
        %v989 = vld [vmem:[%s897 + $0x220] sm:$0xff]
        %v990 = vld [vmem:[%s897 + $0x228] sm:$0xff]
        %v991 = vld [vmem:[%s897 + $0x230] sm:$0xff]
        %v992 = vld [vmem:[%s897 + $0x238] sm:$0xff]
        %v993 = vld [vmem:[%s897 + $0x240] sm:$0xff]
        %v994 = vld [vmem:[%s897 + $0x248] sm:$0xff]
        %v995 = vld [vmem:[%s897 + $0x250] sm:$0xff]
        %v996 = vld [vmem:[%s897 + $0x258] sm:$0xff]
        %v997 = vld [vmem:[%s897 + $0x260] sm:$0xff]
        %v998 = vld [vmem:[%s897 + $0x268] sm:$0xff]
        %v999 = vld [vmem:[%s897 + $0x270] sm:$0xff]
        %v1000 = vld [vmem:[%s897 + $0x278] sm:$0xff]
        %v1001 = vld [vmem:[%s897 + $0x280] sm:$0xff]
        %v1002 = vld [vmem:[%s897 + $0x288] sm:$0xff]
        %v1003 = vld [vmem:[%s897 + $0x290] sm:$0xff]
        %v1004 = vld [vmem:[%s897 + $0x298] sm:$0xff]
        %v1005 = vld [vmem:[%s897 + $0x2a0] sm:$0xff]
        %v1006 = vld [vmem:[%s897 + $0x2a8] sm:$0xff]
        %v1007 = vld [vmem:[%s897 + $0x2b0] sm:$0xff]
        %v1008 = vld [vmem:[%s897 + $0x2b8] sm:$0xff]
        %v1009 = vld [vmem:[%s897 + $0x2c0] sm:$0xff]
        %v1010 = vld [vmem:[%s897 + $0x2c8] sm:$0xff]
        %v1011 = vld [vmem:[%s897 + $0x2d0] sm:$0xff]
        %v1012 = vld [vmem:[%s897 + $0x2d8] sm:$0xff]
        %v1013 = vld [vmem:[%s897 + $0x2e0] sm:$0xff]
        %v1014 = vld [vmem:[%s897 + $0x2e8] sm:$0xff]
        %v1015 = vld [vmem:[%s897 + $0x2f0] sm:$0xff]
        %v1016 = vld [vmem:[%s897 + $0x2f8] sm:$0xff]
        %v1017 = vld [vmem:[%s897 + $0x300] sm:$0xff]
        %v1018 = vld [vmem:[%s897 + $0x308] sm:$0xff]
        %v1019 = vld [vmem:[%s897 + $0x310] sm:$0xff]
        %v1020 = vld [vmem:[%s897 + $0x318] sm:$0xff]
        %v1021 = vld [vmem:[%s897 + $0x320] sm:$0xff]
        %v1022 = vld [vmem:[%s897 + $0x328] sm:$0xff]
        %v1023 = vld [vmem:[%s897 + $0x330] sm:$0xff]
        %v1024 = vld [vmem:[%s897 + $0x338] sm:$0xff]
        %v1025 = vld [vmem:[%s897 + $0x340] sm:$0xff]
        %v1026 = vld [vmem:[%s897 + $0x348] sm:$0xff]
        %v1027 = vld [vmem:[%s897 + $0x350] sm:$0xff]
        %v1028 = vld [vmem:[%s897 + $0x358] sm:$0xff]
        %v1029 = vld [vmem:[%s897 + $0x360] sm:$0xff]
        %v1030 = vld [vmem:[%s897 + $0x368] sm:$0xff]
        %v1031 = vld [vmem:[%s897 + $0x370] sm:$0xff]
        %v1032 = vld [vmem:[%s897 + $0x378] sm:$0xff]
        %v1033 = vld [vmem:[%s897 + $0x380] sm:$0xff]
        %v1034 = vld [vmem:[%s897 + $0x388] sm:$0xff]
        %v1035 = vld [vmem:[%s897 + $0x390] sm:$0xff]
        %v1036 = vld [vmem:[%s897 + $0x398] sm:$0xff]
        %v1037 = vld [vmem:[%s897 + $0x3a0] sm:$0xff]
        %v1038 = vld [vmem:[%s897 + $0x3a8] sm:$0xff]
        %v1039 = vld [vmem:[%s897 + $0x3b0] sm:$0xff]
        %v1040 = vld [vmem:[%s897 + $0x3b8] sm:$0xff]
        %v1041 = vld [vmem:[%s897 + $0x3c0] sm:$0xff]
        %v1042 = vld [vmem:[%s897 + $0x3c8] sm:$0xff]
        %v1043 = vld [vmem:[%s897 + $0x3d0] sm:$0xff]
        %v1044 = vld [vmem:[%s897 + $0x3d8] sm:$0xff]
        %v1045 = vld [vmem:[%s897 + $0x3e0] sm:$0xff]
        %v1046 = vld [vmem:[%s897 + $0x3e8] sm:$0xff]
        %v1047 = vld [vmem:[%s897 + $0x3f0] sm:$0xff]
        %v1048 = vld [vmem:[%s897 + $0x3f8] sm:$0xff]
        %v1049 = vpack.c.bf16 %v929, %v921
        %v1050 = vpack.c.bf16 %v930, %v922
        %v1051 = vpack.c.bf16 %v931, %v923
        %v1052 = vpack.c.bf16 %v932, %v924
        %v1053 = vpack.c.bf16 %v933, %v925
        %v1054 = vpack.c.bf16 %v934, %v926
        %v1055 = vpack.c.bf16 %v935, %v927
        %v1056 = vpack.c.bf16 %v936, %v928
        %v1057 = vpack.c.bf16 %v945, %v937
        %v1058 = vpack.c.bf16 %v946, %v938
        %v1059 = vpack.c.bf16 %v947, %v939
        %v1060 = vpack.c.bf16 %v948, %v940
        %v1061 = vpack.c.bf16 %v949, %v941
        %v1062 = vpack.c.bf16 %v950, %v942
        %v1063 = vpack.c.bf16 %v951, %v943
        %v1064 = vpack.c.bf16 %v952, %v944
        %v1065 = vpack.c.bf16 %v961, %v953
        %v1066 = vpack.c.bf16 %v962, %v954
        %v1067 = vpack.c.bf16 %v963, %v955
        %v1068 = vpack.c.bf16 %v964, %v956
        %v1069 = vpack.c.bf16 %v965, %v957
        %v1070 = vpack.c.bf16 %v966, %v958
        %v1071 = vpack.c.bf16 %v967, %v959
        %v1072 = vpack.c.bf16 %v968, %v960
        %v1073 = vpack.c.bf16 %v977, %v969
        %v1074 = vpack.c.bf16 %v978, %v970
        %v1075 = vpack.c.bf16 %v979, %v971
        %v1076 = vpack.c.bf16 %v980, %v972
        %v1077 = vpack.c.bf16 %v981, %v973
        %v1078 = vpack.c.bf16 %v982, %v974
        %v1079 = vpack.c.bf16 %v983, %v975
        %v1080 = vpack.c.bf16 %v984, %v976
        %v1081 = vpack.c.bf16 %v993, %v985
        %v1082 = vpack.c.bf16 %v994, %v986
        %v1083 = vpack.c.bf16 %v995, %v987
        %v1084 = vpack.c.bf16 %v996, %v988
        %v1085 = vpack.c.bf16 %v997, %v989
        %v1086 = vpack.c.bf16 %v998, %v990
        %v1087 = vpack.c.bf16 %v999, %v991
        %v1088 = vpack.c.bf16 %v1000, %v992
        %v1089 = vpack.c.bf16 %v1009, %v1001
        %v1090 = vpack.c.bf16 %v1010, %v1002
        %v1091 = vpack.c.bf16 %v1011, %v1003
        %v1092 = vpack.c.bf16 %v1012, %v1004
        %v1093 = vpack.c.bf16 %v1013, %v1005
        %v1094 = vpack.c.bf16 %v1014, %v1006
        %v1095 = vpack.c.bf16 %v1015, %v1007
        %v1096 = vpack.c.bf16 %v1016, %v1008
        %v1097 = vpack.c.bf16 %v1025, %v1017
        %v1098 = vpack.c.bf16 %v1026, %v1018
        %v1099 = vpack.c.bf16 %v1027, %v1019
        %v1100 = vpack.c.bf16 %v1028, %v1020
        %v1101 = vpack.c.bf16 %v1029, %v1021
        %v1102 = vpack.c.bf16 %v1030, %v1022
        %v1103 = vpack.c.bf16 %v1031, %v1023
        %v1104 = vpack.c.bf16 %v1032, %v1024
        %v1105 = vpack.c.bf16 %v1041, %v1033
        %v1106 = vpack.c.bf16 %v1042, %v1034
        %v1107 = vpack.c.bf16 %v1043, %v1035
        %v1108 = vpack.c.bf16 %v1044, %v1036
        %v1109 = vpack.c.bf16 %v1045, %v1037
        %v1110 = vpack.c.bf16 %v1046, %v1038
        %v1111 = vpack.c.bf16 %v1047, %v1039
        %v1112 = vpack.c.bf16 %v1048, %v1040
        %v1113 = vld [vmem:[%s3] sm:$0xff]
        %v1114 = vld [vmem:[%s3 + $0x8] sm:$0xff]
        %v1115 = vld [vmem:[%s3 + $0x10] sm:$0xff]
        %v1116 = vld [vmem:[%s3 + $0x18] sm:$0xff]
        %v1117 = vld [vmem:[%s3 + $0x20] sm:$0xff]
        %v1118 = vld [vmem:[%s3 + $0x28] sm:$0xff]
        %v1119 = vld [vmem:[%s3 + $0x30] sm:$0xff]
        %v1120 = vld [vmem:[%s3 + $0x38] sm:$0xff]
        %v1121 = vld [vmem:[%s3 + $0x40] sm:$0xff]
        %v1122 = vld [vmem:[%s3 + $0x48] sm:$0xff]
        %v1123 = vld [vmem:[%s3 + $0x50] sm:$0xff]
        %v1124 = vld [vmem:[%s3 + $0x58] sm:$0xff]
        %v1125 = vld [vmem:[%s3 + $0x60] sm:$0xff]
        %v1126 = vld [vmem:[%s3 + $0x68] sm:$0xff]
        %v1127 = vld [vmem:[%s3 + $0x70] sm:$0xff]
        %v1128 = vld [vmem:[%s3 + $0x78] sm:$0xff]
        %v1129 = vld [vmem:[%s3 + $0x80] sm:$0xff]
        %v1130 = vld [vmem:[%s3 + $0x88] sm:$0xff]
        %v1131 = vld [vmem:[%s3 + $0x90] sm:$0xff]
        %v1132 = vld [vmem:[%s3 + $0x98] sm:$0xff]
        %v1133 = vld [vmem:[%s3 + $0xa0] sm:$0xff]
        %v1134 = vld [vmem:[%s3 + $0xa8] sm:$0xff]
        %v1135 = vld [vmem:[%s3 + $0xb0] sm:$0xff]
        %v1136 = vld [vmem:[%s3 + $0xb8] sm:$0xff]
        %v1137 = vld [vmem:[%s3 + $0xc0] sm:$0xff]
        %v1138 = vld [vmem:[%s3 + $0xc8] sm:$0xff]
        %v1139 = vld [vmem:[%s3 + $0xd0] sm:$0xff]
        %v1140 = vld [vmem:[%s3 + $0xd8] sm:$0xff]
        %v1141 = vld [vmem:[%s3 + $0xe0] sm:$0xff]
        %v1142 = vld [vmem:[%s3 + $0xe8] sm:$0xff]
        %v1143 = vld [vmem:[%s3 + $0xf0] sm:$0xff]
        %v1144 = vld [vmem:[%s3 + $0xf8] sm:$0xff]
        %v1145 = vld [vmem:[%s3 + $0x100] sm:$0xff]
        %v1146 = vld [vmem:[%s3 + $0x108] sm:$0xff]
        %v1147 = vld [vmem:[%s3 + $0x110] sm:$0xff]
        %v1148 = vld [vmem:[%s3 + $0x118] sm:$0xff]
        %v1149 = vld [vmem:[%s3 + $0x120] sm:$0xff]
        %v1150 = vld [vmem:[%s3 + $0x128] sm:$0xff]
        %v1151 = vld [vmem:[%s3 + $0x130] sm:$0xff]
        %v1152 = vld [vmem:[%s3 + $0x138] sm:$0xff]
        %v1153 = vld [vmem:[%s3 + $0x140] sm:$0xff]
        %v1154 = vld [vmem:[%s3 + $0x148] sm:$0xff]
        %v1155 = vld [vmem:[%s3 + $0x150] sm:$0xff]
        %v1156 = vld [vmem:[%s3 + $0x158] sm:$0xff]
        %v1157 = vld [vmem:[%s3 + $0x160] sm:$0xff]
        %v1158 = vld [vmem:[%s3 + $0x168] sm:$0xff]
        %v1159 = vld [vmem:[%s3 + $0x170] sm:$0xff]
        %v1160 = vld [vmem:[%s3 + $0x178] sm:$0xff]
        %v1161 = vld [vmem:[%s3 + $0x180] sm:$0xff]
        %v1162 = vld [vmem:[%s3 + $0x188] sm:$0xff]
        %v1163 = vld [vmem:[%s3 + $0x190] sm:$0xff]
        %v1164 = vld [vmem:[%s3 + $0x198] sm:$0xff]
        %v1165 = vld [vmem:[%s3 + $0x1a0] sm:$0xff]
        %v1166 = vld [vmem:[%s3 + $0x1a8] sm:$0xff]
        %v1167 = vld [vmem:[%s3 + $0x1b0] sm:$0xff]
        %v1168 = vld [vmem:[%s3 + $0x1b8] sm:$0xff]
        %v1169 = vld [vmem:[%s3 + $0x1c0] sm:$0xff]
        %v1170 = vld [vmem:[%s3 + $0x1c8] sm:$0xff]
        %v1171 = vld [vmem:[%s3 + $0x1d0] sm:$0xff]
        %v1172 = vld [vmem:[%s3 + $0x1d8] sm:$0xff]
        %v1173 = vld [vmem:[%s3 + $0x1e0] sm:$0xff]
        %v1174 = vld [vmem:[%s3 + $0x1e8] sm:$0xff]
        %v1175 = vld [vmem:[%s3 + $0x1f0] sm:$0xff]
        %v1176 = vld [vmem:[%s3 + $0x1f8] sm:$0xff]
        %v1177 = vld [vmem:[%s3 + $0x200] sm:$0xff]
        %v1178 = vld [vmem:[%s3 + $0x208] sm:$0xff]
        %v1179 = vld [vmem:[%s3 + $0x210] sm:$0xff]
        %v1180 = vld [vmem:[%s3 + $0x218] sm:$0xff]
        %v1181 = vld [vmem:[%s3 + $0x220] sm:$0xff]
        %v1182 = vld [vmem:[%s3 + $0x228] sm:$0xff]
        %v1183 = vld [vmem:[%s3 + $0x230] sm:$0xff]
        %v1184 = vld [vmem:[%s3 + $0x238] sm:$0xff]
        %v1185 = vld [vmem:[%s3 + $0x240] sm:$0xff]
        %v1186 = vld [vmem:[%s3 + $0x248] sm:$0xff]
        %v1187 = vld [vmem:[%s3 + $0x250] sm:$0xff]
        %v1188 = vld [vmem:[%s3 + $0x258] sm:$0xff]
        %v1189 = vld [vmem:[%s3 + $0x260] sm:$0xff]
        %v1190 = vld [vmem:[%s3 + $0x268] sm:$0xff]
        %v1191 = vld [vmem:[%s3 + $0x270] sm:$0xff]
        %v1192 = vld [vmem:[%s3 + $0x278] sm:$0xff]
        %v1193 = vld [vmem:[%s3 + $0x280] sm:$0xff]
        %v1194 = vld [vmem:[%s3 + $0x288] sm:$0xff]
        %v1195 = vld [vmem:[%s3 + $0x290] sm:$0xff]
        %v1196 = vld [vmem:[%s3 + $0x298] sm:$0xff]
        %v1197 = vld [vmem:[%s3 + $0x2a0] sm:$0xff]
        %v1198 = vld [vmem:[%s3 + $0x2a8] sm:$0xff]
        %v1199 = vld [vmem:[%s3 + $0x2b0] sm:$0xff]
        %v1200 = vld [vmem:[%s3 + $0x2b8] sm:$0xff]
        %v1201 = vld [vmem:[%s3 + $0x2c0] sm:$0xff]
        %v1202 = vld [vmem:[%s3 + $0x2c8] sm:$0xff]
        %v1203 = vld [vmem:[%s3 + $0x2d0] sm:$0xff]
        %v1204 = vld [vmem:[%s3 + $0x2d8] sm:$0xff]
        %v1205 = vld [vmem:[%s3 + $0x2e0] sm:$0xff]
        %v1206 = vld [vmem:[%s3 + $0x2e8] sm:$0xff]
        %v1207 = vld [vmem:[%s3 + $0x2f0] sm:$0xff]
        %v1208 = vld [vmem:[%s3 + $0x2f8] sm:$0xff]
        %v1209 = vld [vmem:[%s3 + $0x300] sm:$0xff]
        %v1210 = vld [vmem:[%s3 + $0x308] sm:$0xff]
        %v1211 = vld [vmem:[%s3 + $0x310] sm:$0xff]
        %v1212 = vld [vmem:[%s3 + $0x318] sm:$0xff]
        %v1213 = vld [vmem:[%s3 + $0x320] sm:$0xff]
        %v1214 = vld [vmem:[%s3 + $0x328] sm:$0xff]
        %v1215 = vld [vmem:[%s3 + $0x330] sm:$0xff]
        %v1216 = vld [vmem:[%s3 + $0x338] sm:$0xff]
        %v1217 = vld [vmem:[%s3 + $0x340] sm:$0xff]
        %v1218 = vld [vmem:[%s3 + $0x348] sm:$0xff]
        %v1219 = vld [vmem:[%s3 + $0x350] sm:$0xff]
        %v1220 = vld [vmem:[%s3 + $0x358] sm:$0xff]
        %v1221 = vld [vmem:[%s3 + $0x360] sm:$0xff]
        %v1222 = vld [vmem:[%s3 + $0x368] sm:$0xff]
        %v1223 = vld [vmem:[%s3 + $0x370] sm:$0xff]
        %v1224 = vld [vmem:[%s3 + $0x378] sm:$0xff]
        %v1225 = vld [vmem:[%s3 + $0x380] sm:$0xff]
        %v1226 = vld [vmem:[%s3 + $0x388] sm:$0xff]
        %v1227 = vld [vmem:[%s3 + $0x390] sm:$0xff]
        %v1228 = vld [vmem:[%s3 + $0x398] sm:$0xff]
        %v1229 = vld [vmem:[%s3 + $0x3a0] sm:$0xff]
        %v1230 = vld [vmem:[%s3 + $0x3a8] sm:$0xff]
        %v1231 = vld [vmem:[%s3 + $0x3b0] sm:$0xff]
        %v1232 = vld [vmem:[%s3 + $0x3b8] sm:$0xff]
        %v1233 = vld [vmem:[%s3 + $0x3c0] sm:$0xff]
        %v1234 = vld [vmem:[%s3 + $0x3c8] sm:$0xff]
        %v1235 = vld [vmem:[%s3 + $0x3d0] sm:$0xff]
        %v1236 = vld [vmem:[%s3 + $0x3d8] sm:$0xff]
        %v1237 = vld [vmem:[%s3 + $0x3e0] sm:$0xff]
        %v1238 = vld [vmem:[%s3 + $0x3e8] sm:$0xff]
        %v1239 = vld [vmem:[%s3 + $0x3f0] sm:$0xff]
        %v1240 = vld [vmem:[%s3 + $0x3f8] sm:$0xff]
        %v1241 = vld [vmem:[%s3 + $0x400] sm:$0xff]
        %v1242 = vld [vmem:[%s3 + $0x408] sm:$0xff]
        %v1243 = vld [vmem:[%s3 + $0x410] sm:$0xff]
        %v1244 = vld [vmem:[%s3 + $0x418] sm:$0xff]
        %v1245 = vld [vmem:[%s3 + $0x420] sm:$0xff]
        %v1246 = vld [vmem:[%s3 + $0x428] sm:$0xff]
        %v1247 = vld [vmem:[%s3 + $0x430] sm:$0xff]
        %v1248 = vld [vmem:[%s3 + $0x438] sm:$0xff]
        %v1249 = vld [vmem:[%s3 + $0x440] sm:$0xff]
        %v1250 = vld [vmem:[%s3 + $0x448] sm:$0xff]
        %v1251 = vld [vmem:[%s3 + $0x450] sm:$0xff]
        %v1252 = vld [vmem:[%s3 + $0x458] sm:$0xff]
        %v1253 = vld [vmem:[%s3 + $0x460] sm:$0xff]
        %v1254 = vld [vmem:[%s3 + $0x468] sm:$0xff]
        %v1255 = vld [vmem:[%s3 + $0x470] sm:$0xff]
        %v1256 = vld [vmem:[%s3 + $0x478] sm:$0xff]
        %v1257 = vld [vmem:[%s3 + $0x480] sm:$0xff]
        %v1258 = vld [vmem:[%s3 + $0x488] sm:$0xff]
        %v1259 = vld [vmem:[%s3 + $0x490] sm:$0xff]
        %v1260 = vld [vmem:[%s3 + $0x498] sm:$0xff]
        %v1261 = vld [vmem:[%s3 + $0x4a0] sm:$0xff]
        %v1262 = vld [vmem:[%s3 + $0x4a8] sm:$0xff]
        %v1263 = vld [vmem:[%s3 + $0x4b0] sm:$0xff]
        %v1264 = vld [vmem:[%s3 + $0x4b8] sm:$0xff]
        %v1265 = vld [vmem:[%s3 + $0x4c0] sm:$0xff]
        %v1266 = vld [vmem:[%s3 + $0x4c8] sm:$0xff]
        %v1267 = vld [vmem:[%s3 + $0x4d0] sm:$0xff]
        %v1268 = vld [vmem:[%s3 + $0x4d8] sm:$0xff]
        %v1269 = vld [vmem:[%s3 + $0x4e0] sm:$0xff]
        %v1270 = vld [vmem:[%s3 + $0x4e8] sm:$0xff]
        %v1271 = vld [vmem:[%s3 + $0x4f0] sm:$0xff]
        %v1272 = vld [vmem:[%s3 + $0x4f8] sm:$0xff]
        %v1273 = vld [vmem:[%s3 + $0x500] sm:$0xff]
        %v1274 = vld [vmem:[%s3 + $0x508] sm:$0xff]
        %v1275 = vld [vmem:[%s3 + $0x510] sm:$0xff]
        %v1276 = vld [vmem:[%s3 + $0x518] sm:$0xff]
        %v1277 = vld [vmem:[%s3 + $0x520] sm:$0xff]
        %v1278 = vld [vmem:[%s3 + $0x528] sm:$0xff]
        %v1279 = vld [vmem:[%s3 + $0x530] sm:$0xff]
        %v1280 = vld [vmem:[%s3 + $0x538] sm:$0xff]
        %v1281 = vld [vmem:[%s3 + $0x540] sm:$0xff]
        %v1282 = vld [vmem:[%s3 + $0x548] sm:$0xff]
        %v1283 = vld [vmem:[%s3 + $0x550] sm:$0xff]
        %v1284 = vld [vmem:[%s3 + $0x558] sm:$0xff]
        %v1285 = vld [vmem:[%s3 + $0x560] sm:$0xff]
        %v1286 = vld [vmem:[%s3 + $0x568] sm:$0xff]
        %v1287 = vld [vmem:[%s3 + $0x570] sm:$0xff]
        %v1288 = vld [vmem:[%s3 + $0x578] sm:$0xff]
        %v1289 = vld [vmem:[%s3 + $0x580] sm:$0xff]
        %v1290 = vld [vmem:[%s3 + $0x588] sm:$0xff]
        %v1291 = vld [vmem:[%s3 + $0x590] sm:$0xff]
        %v1292 = vld [vmem:[%s3 + $0x598] sm:$0xff]
        %v1293 = vld [vmem:[%s3 + $0x5a0] sm:$0xff]
        %v1294 = vld [vmem:[%s3 + $0x5a8] sm:$0xff]
        %v1295 = vld [vmem:[%s3 + $0x5b0] sm:$0xff]
        %v1296 = vld [vmem:[%s3 + $0x5b8] sm:$0xff]
        %v1297 = vld [vmem:[%s3 + $0x5c0] sm:$0xff]
        %v1298 = vld [vmem:[%s3 + $0x5c8] sm:$0xff]
        %v1299 = vld [vmem:[%s3 + $0x5d0] sm:$0xff]
        %v1300 = vld [vmem:[%s3 + $0x5d8] sm:$0xff]
        %v1301 = vld [vmem:[%s3 + $0x5e0] sm:$0xff]
        %v1302 = vld [vmem:[%s3 + $0x5e8] sm:$0xff]
        %v1303 = vld [vmem:[%s3 + $0x5f0] sm:$0xff]
        %v1304 = vld [vmem:[%s3 + $0x5f8] sm:$0xff]
        %v1305 = vld [vmem:[%s3 + $0x600] sm:$0xff]
        %v1306 = vld [vmem:[%s3 + $0x608] sm:$0xff]
        %v1307 = vld [vmem:[%s3 + $0x610] sm:$0xff]
        %v1308 = vld [vmem:[%s3 + $0x618] sm:$0xff]
        %v1309 = vld [vmem:[%s3 + $0x620] sm:$0xff]
        %v1310 = vld [vmem:[%s3 + $0x628] sm:$0xff]
        %v1311 = vld [vmem:[%s3 + $0x630] sm:$0xff]
        %v1312 = vld [vmem:[%s3 + $0x638] sm:$0xff]
        %v1313 = vld [vmem:[%s3 + $0x640] sm:$0xff]
        %v1314 = vld [vmem:[%s3 + $0x648] sm:$0xff]
        %v1315 = vld [vmem:[%s3 + $0x650] sm:$0xff]
        %v1316 = vld [vmem:[%s3 + $0x658] sm:$0xff]
        %v1317 = vld [vmem:[%s3 + $0x660] sm:$0xff]
        %v1318 = vld [vmem:[%s3 + $0x668] sm:$0xff]
        %v1319 = vld [vmem:[%s3 + $0x670] sm:$0xff]
        %v1320 = vld [vmem:[%s3 + $0x678] sm:$0xff]
        %v1321 = vld [vmem:[%s3 + $0x680] sm:$0xff]
        %v1322 = vld [vmem:[%s3 + $0x688] sm:$0xff]
        %v1323 = vld [vmem:[%s3 + $0x690] sm:$0xff]
        %v1324 = vld [vmem:[%s3 + $0x698] sm:$0xff]
        %v1325 = vld [vmem:[%s3 + $0x6a0] sm:$0xff]
        %v1326 = vld [vmem:[%s3 + $0x6a8] sm:$0xff]
        %v1327 = vld [vmem:[%s3 + $0x6b0] sm:$0xff]
        %v1328 = vld [vmem:[%s3 + $0x6b8] sm:$0xff]
        %v1329 = vld [vmem:[%s3 + $0x6c0] sm:$0xff]
        %v1330 = vld [vmem:[%s3 + $0x6c8] sm:$0xff]
        %v1331 = vld [vmem:[%s3 + $0x6d0] sm:$0xff]
        %v1332 = vld [vmem:[%s3 + $0x6d8] sm:$0xff]
        %v1333 = vld [vmem:[%s3 + $0x6e0] sm:$0xff]
        %v1334 = vld [vmem:[%s3 + $0x6e8] sm:$0xff]
        %v1335 = vld [vmem:[%s3 + $0x6f0] sm:$0xff]
        %v1336 = vld [vmem:[%s3 + $0x6f8] sm:$0xff]
        %v1337 = vld [vmem:[%s3 + $0x700] sm:$0xff]
        %v1338 = vld [vmem:[%s3 + $0x708] sm:$0xff]
        %v1339 = vld [vmem:[%s3 + $0x710] sm:$0xff]
        %v1340 = vld [vmem:[%s3 + $0x718] sm:$0xff]
        %v1341 = vld [vmem:[%s3 + $0x720] sm:$0xff]
        %v1342 = vld [vmem:[%s3 + $0x728] sm:$0xff]
        %v1343 = vld [vmem:[%s3 + $0x730] sm:$0xff]
        %v1344 = vld [vmem:[%s3 + $0x738] sm:$0xff]
        %v1345 = vld [vmem:[%s3 + $0x740] sm:$0xff]
        %v1346 = vld [vmem:[%s3 + $0x748] sm:$0xff]
        %v1347 = vld [vmem:[%s3 + $0x750] sm:$0xff]
        %v1348 = vld [vmem:[%s3 + $0x758] sm:$0xff]
        %v1349 = vld [vmem:[%s3 + $0x760] sm:$0xff]
        %v1350 = vld [vmem:[%s3 + $0x768] sm:$0xff]
        %v1351 = vld [vmem:[%s3 + $0x770] sm:$0xff]
        %v1352 = vld [vmem:[%s3 + $0x778] sm:$0xff]
        %v1353 = vld [vmem:[%s3 + $0x780] sm:$0xff]
        %v1354 = vld [vmem:[%s3 + $0x788] sm:$0xff]
        %v1355 = vld [vmem:[%s3 + $0x790] sm:$0xff]
        %v1356 = vld [vmem:[%s3 + $0x798] sm:$0xff]
        %v1357 = vld [vmem:[%s3 + $0x7a0] sm:$0xff]
        %v1358 = vld [vmem:[%s3 + $0x7a8] sm:$0xff]
        %v1359 = vld [vmem:[%s3 + $0x7b0] sm:$0xff]
        %v1360 = vld [vmem:[%s3 + $0x7b8] sm:$0xff]
        %v1361 = vld [vmem:[%s3 + $0x7c0] sm:$0xff]
        %v1362 = vld [vmem:[%s3 + $0x7c8] sm:$0xff]
        %v1363 = vld [vmem:[%s3 + $0x7d0] sm:$0xff]
        %v1364 = vld [vmem:[%s3 + $0x7d8] sm:$0xff]
        %v1365 = vld [vmem:[%s3 + $0x7e0] sm:$0xff]
        %v1366 = vld [vmem:[%s3 + $0x7e8] sm:$0xff]
        %v1367 = vld [vmem:[%s3 + $0x7f0] sm:$0xff]
        %v1368 = vld [vmem:[%s3 + $0x7f8] sm:$0xff]
        %v1369 = vld [vmem:[#allocation7] sm:$0xf]
        %v1371 = vlaneseq
        %v1372 = vshrl.u32 %v1371, 7
        %v1373 = vsub.s32 0, %v1372
        %v1374 = vrot.slane %v1369, %v1373
        %v1375 = vlaneseq
        %v1376 = vshrl.u32 %v1375, 7
        %v1377 = vsub.s32 1, %v1376
        %v1378 = vrot.slane %v1369, %v1377
        %v1379 = vlaneseq
        %v1380 = vshrl.u32 %v1379, 7
        %v1381 = vsub.s32 2, %v1380
        %v1382 = vrot.slane %v1369, %v1381
        %v1383 = vlaneseq
        %v1384 = vshrl.u32 %v1383, 7
        %v1385 = vsub.s32 3, %v1384
        %v1386 = vrot.slane %v1369, %v1385
        %v1647 = vunpack.c.l.b16 %v1113
        %v1648 = vunpack.c.h.b16 %v1113
        %v1649 = vunpack.c.l.b16 %v1114
        %v1650 = vunpack.c.h.b16 %v1114
        %v1651 = vunpack.c.l.b16 %v1115
        %v1652 = vunpack.c.h.b16 %v1115
        %v1653 = vunpack.c.l.b16 %v1116
        %v1654 = vunpack.c.h.b16 %v1116
        %v1655 = vunpack.c.l.b16 %v1117
        %v1656 = vunpack.c.h.b16 %v1117
        %v1657 = vunpack.c.l.b16 %v1118
        %v1658 = vunpack.c.h.b16 %v1118
        %v1659 = vunpack.c.l.b16 %v1119
        %v1660 = vunpack.c.h.b16 %v1119
        %v1661 = vunpack.c.l.b16 %v1120
        %v1662 = vunpack.c.h.b16 %v1120
        %v1663 = vunpack.c.l.b16 %v1121
        %v1664 = vunpack.c.h.b16 %v1121
        %v1665 = vunpack.c.l.b16 %v1122
        %v1666 = vunpack.c.h.b16 %v1122
        %v1667 = vunpack.c.l.b16 %v1123
        %v1668 = vunpack.c.h.b16 %v1123
        %v1669 = vunpack.c.l.b16 %v1124
        %v1670 = vunpack.c.h.b16 %v1124
        %v1671 = vunpack.c.l.b16 %v1125
        %v1672 = vunpack.c.h.b16 %v1125
        %v1673 = vunpack.c.l.b16 %v1126
        %v1674 = vunpack.c.h.b16 %v1126
        %v1675 = vunpack.c.l.b16 %v1127
        %v1676 = vunpack.c.h.b16 %v1127
        %v1677 = vunpack.c.l.b16 %v1128
        %v1678 = vunpack.c.h.b16 %v1128
        %v1679 = vunpack.c.l.b16 %v1129
        %v1680 = vunpack.c.h.b16 %v1129
        %v1681 = vunpack.c.l.b16 %v1130
        %v1682 = vunpack.c.h.b16 %v1130
        %v1683 = vunpack.c.l.b16 %v1131
        %v1684 = vunpack.c.h.b16 %v1131
        %v1685 = vunpack.c.l.b16 %v1132
        %v1686 = vunpack.c.h.b16 %v1132
        %v1687 = vunpack.c.l.b16 %v1133
        %v1688 = vunpack.c.h.b16 %v1133
        %v1689 = vunpack.c.l.b16 %v1134
        %v1690 = vunpack.c.h.b16 %v1134
        %v1691 = vunpack.c.l.b16 %v1135
        %v1692 = vunpack.c.h.b16 %v1135
        %v1693 = vunpack.c.l.b16 %v1136
        %v1694 = vunpack.c.h.b16 %v1136
        %v1695 = vunpack.c.l.b16 %v1137
        %v1696 = vunpack.c.h.b16 %v1137
        %v1697 = vunpack.c.l.b16 %v1138
        %v1698 = vunpack.c.h.b16 %v1138
        %v1699 = vunpack.c.l.b16 %v1139
        %v1700 = vunpack.c.h.b16 %v1139
        %v1701 = vunpack.c.l.b16 %v1140
        %v1702 = vunpack.c.h.b16 %v1140
        %v1703 = vunpack.c.l.b16 %v1141
        %v1704 = vunpack.c.h.b16 %v1141
        %v1705 = vunpack.c.l.b16 %v1142
        %v1706 = vunpack.c.h.b16 %v1142
        %v1707 = vunpack.c.l.b16 %v1143
        %v1708 = vunpack.c.h.b16 %v1143
        %v1709 = vunpack.c.l.b16 %v1144
        %v1710 = vunpack.c.h.b16 %v1144
        %v1711 = vunpack.c.l.b16 %v1145
        %v1712 = vunpack.c.h.b16 %v1145
        %v1713 = vunpack.c.l.b16 %v1146
        %v1714 = vunpack.c.h.b16 %v1146
        %v1715 = vunpack.c.l.b16 %v1147
        %v1716 = vunpack.c.h.b16 %v1147
        %v1717 = vunpack.c.l.b16 %v1148
        %v1718 = vunpack.c.h.b16 %v1148
        %v1719 = vunpack.c.l.b16 %v1149
        %v1720 = vunpack.c.h.b16 %v1149
        %v1721 = vunpack.c.l.b16 %v1150
        %v1722 = vunpack.c.h.b16 %v1150
        %v1723 = vunpack.c.l.b16 %v1151
        %v1724 = vunpack.c.h.b16 %v1151
        %v1725 = vunpack.c.l.b16 %v1152
        %v1726 = vunpack.c.h.b16 %v1152
        %v1727 = vunpack.c.l.b16 %v1153
        %v1728 = vunpack.c.h.b16 %v1153
        %v1729 = vunpack.c.l.b16 %v1154
        %v1730 = vunpack.c.h.b16 %v1154
        %v1731 = vunpack.c.l.b16 %v1155
        %v1732 = vunpack.c.h.b16 %v1155
        %v1733 = vunpack.c.l.b16 %v1156
        %v1734 = vunpack.c.h.b16 %v1156
        %v1735 = vunpack.c.l.b16 %v1157
        %v1736 = vunpack.c.h.b16 %v1157
        %v1737 = vunpack.c.l.b16 %v1158
        %v1738 = vunpack.c.h.b16 %v1158
        %v1739 = vunpack.c.l.b16 %v1159
        %v1740 = vunpack.c.h.b16 %v1159
        %v1741 = vunpack.c.l.b16 %v1160
        %v1742 = vunpack.c.h.b16 %v1160
        %v1743 = vunpack.c.l.b16 %v1161
        %v1744 = vunpack.c.h.b16 %v1161
        %v1745 = vunpack.c.l.b16 %v1162
        %v1746 = vunpack.c.h.b16 %v1162
        %v1747 = vunpack.c.l.b16 %v1163
        %v1748 = vunpack.c.h.b16 %v1163
        %v1749 = vunpack.c.l.b16 %v1164
        %v1750 = vunpack.c.h.b16 %v1164
        %v1751 = vunpack.c.l.b16 %v1165
        %v1752 = vunpack.c.h.b16 %v1165
        %v1753 = vunpack.c.l.b16 %v1166
        %v1754 = vunpack.c.h.b16 %v1166
        %v1755 = vunpack.c.l.b16 %v1167
        %v1756 = vunpack.c.h.b16 %v1167
        %v1757 = vunpack.c.l.b16 %v1168
        %v1758 = vunpack.c.h.b16 %v1168
        %v1759 = vunpack.c.l.b16 %v1169
        %v1760 = vunpack.c.h.b16 %v1169
        %v1761 = vunpack.c.l.b16 %v1170
        %v1762 = vunpack.c.h.b16 %v1170
        %v1763 = vunpack.c.l.b16 %v1171
        %v1764 = vunpack.c.h.b16 %v1171
        %v1765 = vunpack.c.l.b16 %v1172
        %v1766 = vunpack.c.h.b16 %v1172
        %v1767 = vunpack.c.l.b16 %v1173
        %v1768 = vunpack.c.h.b16 %v1173
        %v1769 = vunpack.c.l.b16 %v1174
        %v1770 = vunpack.c.h.b16 %v1174
        %v1771 = vunpack.c.l.b16 %v1175
        %v1772 = vunpack.c.h.b16 %v1175
        %v1773 = vunpack.c.l.b16 %v1176
        %v1774 = vunpack.c.h.b16 %v1176
        %v1775 = vunpack.c.l.b16 %v1177
        %v1776 = vunpack.c.h.b16 %v1177
        %v1777 = vunpack.c.l.b16 %v1178
        %v1778 = vunpack.c.h.b16 %v1178
        %v1779 = vunpack.c.l.b16 %v1179
        %v1780 = vunpack.c.h.b16 %v1179
        %v1781 = vunpack.c.l.b16 %v1180
        %v1782 = vunpack.c.h.b16 %v1180
        %v1783 = vunpack.c.l.b16 %v1181
        %v1784 = vunpack.c.h.b16 %v1181
        %v1785 = vunpack.c.l.b16 %v1182
        %v1786 = vunpack.c.h.b16 %v1182
        %v1787 = vunpack.c.l.b16 %v1183
        %v1788 = vunpack.c.h.b16 %v1183
        %v1789 = vunpack.c.l.b16 %v1184
        %v1790 = vunpack.c.h.b16 %v1184
        %v1791 = vunpack.c.l.b16 %v1185
        %v1792 = vunpack.c.h.b16 %v1185
        %v1793 = vunpack.c.l.b16 %v1186
        %v1794 = vunpack.c.h.b16 %v1186
        %v1795 = vunpack.c.l.b16 %v1187
        %v1796 = vunpack.c.h.b16 %v1187
        %v1797 = vunpack.c.l.b16 %v1188
        %v1798 = vunpack.c.h.b16 %v1188
        %v1799 = vunpack.c.l.b16 %v1189
        %v1800 = vunpack.c.h.b16 %v1189
        %v1801 = vunpack.c.l.b16 %v1190
        %v1802 = vunpack.c.h.b16 %v1190
        %v1803 = vunpack.c.l.b16 %v1191
        %v1804 = vunpack.c.h.b16 %v1191
        %v1805 = vunpack.c.l.b16 %v1192
        %v1806 = vunpack.c.h.b16 %v1192
        %v1807 = vunpack.c.l.b16 %v1193
        %v1808 = vunpack.c.h.b16 %v1193
        %v1809 = vunpack.c.l.b16 %v1194
        %v1810 = vunpack.c.h.b16 %v1194
        %v1811 = vunpack.c.l.b16 %v1195
        %v1812 = vunpack.c.h.b16 %v1195
        %v1813 = vunpack.c.l.b16 %v1196
        %v1814 = vunpack.c.h.b16 %v1196
        %v1815 = vunpack.c.l.b16 %v1197
        %v1816 = vunpack.c.h.b16 %v1197
        %v1817 = vunpack.c.l.b16 %v1198
        %v1818 = vunpack.c.h.b16 %v1198
        %v1819 = vunpack.c.l.b16 %v1199
        %v1820 = vunpack.c.h.b16 %v1199
        %v1821 = vunpack.c.l.b16 %v1200
        %v1822 = vunpack.c.h.b16 %v1200
        %v1823 = vunpack.c.l.b16 %v1201
        %v1824 = vunpack.c.h.b16 %v1201
        %v1825 = vunpack.c.l.b16 %v1202
        %v1826 = vunpack.c.h.b16 %v1202
        %v1827 = vunpack.c.l.b16 %v1203
        %v1828 = vunpack.c.h.b16 %v1203
        %v1829 = vunpack.c.l.b16 %v1204
        %v1830 = vunpack.c.h.b16 %v1204
        %v1831 = vunpack.c.l.b16 %v1205
        %v1832 = vunpack.c.h.b16 %v1205
        %v1833 = vunpack.c.l.b16 %v1206
        %v1834 = vunpack.c.h.b16 %v1206
        %v1835 = vunpack.c.l.b16 %v1207
        %v1836 = vunpack.c.h.b16 %v1207
        %v1837 = vunpack.c.l.b16 %v1208
        %v1838 = vunpack.c.h.b16 %v1208
        %v1839 = vunpack.c.l.b16 %v1209
        %v1840 = vunpack.c.h.b16 %v1209
        %v1841 = vunpack.c.l.b16 %v1210
        %v1842 = vunpack.c.h.b16 %v1210
        %v1843 = vunpack.c.l.b16 %v1211
        %v1844 = vunpack.c.h.b16 %v1211
        %v1845 = vunpack.c.l.b16 %v1212
        %v1846 = vunpack.c.h.b16 %v1212
        %v1847 = vunpack.c.l.b16 %v1213
        %v1848 = vunpack.c.h.b16 %v1213
        %v1849 = vunpack.c.l.b16 %v1214
        %v1850 = vunpack.c.h.b16 %v1214
        %v1851 = vunpack.c.l.b16 %v1215
        %v1852 = vunpack.c.h.b16 %v1215
        %v1853 = vunpack.c.l.b16 %v1216
        %v1854 = vunpack.c.h.b16 %v1216
        %v1855 = vunpack.c.l.b16 %v1217
        %v1856 = vunpack.c.h.b16 %v1217
        %v1857 = vunpack.c.l.b16 %v1218
        %v1858 = vunpack.c.h.b16 %v1218
        %v1859 = vunpack.c.l.b16 %v1219
        %v1860 = vunpack.c.h.b16 %v1219
        %v1861 = vunpack.c.l.b16 %v1220
        %v1862 = vunpack.c.h.b16 %v1220
        %v1863 = vunpack.c.l.b16 %v1221
        %v1864 = vunpack.c.h.b16 %v1221
        %v1865 = vunpack.c.l.b16 %v1222
        %v1866 = vunpack.c.h.b16 %v1222
        %v1867 = vunpack.c.l.b16 %v1223
        %v1868 = vunpack.c.h.b16 %v1223
        %v1869 = vunpack.c.l.b16 %v1224
        %v1870 = vunpack.c.h.b16 %v1224
        %v1871 = vunpack.c.l.b16 %v1225
        %v1872 = vunpack.c.h.b16 %v1225
        %v1873 = vunpack.c.l.b16 %v1226
        %v1874 = vunpack.c.h.b16 %v1226
        %v1875 = vunpack.c.l.b16 %v1227
        %v1876 = vunpack.c.h.b16 %v1227
        %v1877 = vunpack.c.l.b16 %v1228
        %v1878 = vunpack.c.h.b16 %v1228
        %v1879 = vunpack.c.l.b16 %v1229
        %v1880 = vunpack.c.h.b16 %v1229
        %v1881 = vunpack.c.l.b16 %v1230
        %v1882 = vunpack.c.h.b16 %v1230
        %v1883 = vunpack.c.l.b16 %v1231
        %v1884 = vunpack.c.h.b16 %v1231
        %v1885 = vunpack.c.l.b16 %v1232
        %v1886 = vunpack.c.h.b16 %v1232
        %v1887 = vunpack.c.l.b16 %v1233
        %v1888 = vunpack.c.h.b16 %v1233
        %v1889 = vunpack.c.l.b16 %v1234
        %v1890 = vunpack.c.h.b16 %v1234
        %v1891 = vunpack.c.l.b16 %v1235
        %v1892 = vunpack.c.h.b16 %v1235
        %v1893 = vunpack.c.l.b16 %v1236
        %v1894 = vunpack.c.h.b16 %v1236
        %v1895 = vunpack.c.l.b16 %v1237
        %v1896 = vunpack.c.h.b16 %v1237
        %v1897 = vunpack.c.l.b16 %v1238
        %v1898 = vunpack.c.h.b16 %v1238
        %v1899 = vunpack.c.l.b16 %v1239
        %v1900 = vunpack.c.h.b16 %v1239
        %v1901 = vunpack.c.l.b16 %v1240
        %v1902 = vunpack.c.h.b16 %v1240
        %v1903 = vunpack.c.l.b16 %v1241
        %v1904 = vunpack.c.h.b16 %v1241
        %v1905 = vunpack.c.l.b16 %v1242
        %v1906 = vunpack.c.h.b16 %v1242
        %v1907 = vunpack.c.l.b16 %v1243
        %v1908 = vunpack.c.h.b16 %v1243
        %v1909 = vunpack.c.l.b16 %v1244
        %v1910 = vunpack.c.h.b16 %v1244
        %v1911 = vunpack.c.l.b16 %v1245
        %v1912 = vunpack.c.h.b16 %v1245
        %v1913 = vunpack.c.l.b16 %v1246
        %v1914 = vunpack.c.h.b16 %v1246
        %v1915 = vunpack.c.l.b16 %v1247
        %v1916 = vunpack.c.h.b16 %v1247
        %v1917 = vunpack.c.l.b16 %v1248
        %v1918 = vunpack.c.h.b16 %v1248
        %v1919 = vunpack.c.l.b16 %v1249
        %v1920 = vunpack.c.h.b16 %v1249
        %v1921 = vunpack.c.l.b16 %v1250
        %v1922 = vunpack.c.h.b16 %v1250
        %v1923 = vunpack.c.l.b16 %v1251
        %v1924 = vunpack.c.h.b16 %v1251
        %v1925 = vunpack.c.l.b16 %v1252
        %v1926 = vunpack.c.h.b16 %v1252
        %v1927 = vunpack.c.l.b16 %v1253
        %v1928 = vunpack.c.h.b16 %v1253
        %v1929 = vunpack.c.l.b16 %v1254
        %v1930 = vunpack.c.h.b16 %v1254
        %v1931 = vunpack.c.l.b16 %v1255
        %v1932 = vunpack.c.h.b16 %v1255
        %v1933 = vunpack.c.l.b16 %v1256
        %v1934 = vunpack.c.h.b16 %v1256
        %v1935 = vunpack.c.l.b16 %v1257
        %v1936 = vunpack.c.h.b16 %v1257
        %v1937 = vunpack.c.l.b16 %v1258
        %v1938 = vunpack.c.h.b16 %v1258
        %v1939 = vunpack.c.l.b16 %v1259
        %v1940 = vunpack.c.h.b16 %v1259
        %v1941 = vunpack.c.l.b16 %v1260
        %v1942 = vunpack.c.h.b16 %v1260
        %v1943 = vunpack.c.l.b16 %v1261
        %v1944 = vunpack.c.h.b16 %v1261
        %v1945 = vunpack.c.l.b16 %v1262
        %v1946 = vunpack.c.h.b16 %v1262
        %v1947 = vunpack.c.l.b16 %v1263
        %v1948 = vunpack.c.h.b16 %v1263
        %v1949 = vunpack.c.l.b16 %v1264
        %v1950 = vunpack.c.h.b16 %v1264
        %v1951 = vunpack.c.l.b16 %v1265
        %v1952 = vunpack.c.h.b16 %v1265
        %v1953 = vunpack.c.l.b16 %v1266
        %v1954 = vunpack.c.h.b16 %v1266
        %v1955 = vunpack.c.l.b16 %v1267
        %v1956 = vunpack.c.h.b16 %v1267
        %v1957 = vunpack.c.l.b16 %v1268
        %v1958 = vunpack.c.h.b16 %v1268
        %v1959 = vunpack.c.l.b16 %v1269
        %v1960 = vunpack.c.h.b16 %v1269
        %v1961 = vunpack.c.l.b16 %v1270
        %v1962 = vunpack.c.h.b16 %v1270
        %v1963 = vunpack.c.l.b16 %v1271
        %v1964 = vunpack.c.h.b16 %v1271
        %v1965 = vunpack.c.l.b16 %v1272
        %v1966 = vunpack.c.h.b16 %v1272
        %v1967 = vunpack.c.l.b16 %v1273
        %v1968 = vunpack.c.h.b16 %v1273
        %v1969 = vunpack.c.l.b16 %v1274
        %v1970 = vunpack.c.h.b16 %v1274
        %v1971 = vunpack.c.l.b16 %v1275
        %v1972 = vunpack.c.h.b16 %v1275
        %v1973 = vunpack.c.l.b16 %v1276
        %v1974 = vunpack.c.h.b16 %v1276
        %v1975 = vunpack.c.l.b16 %v1277
        %v1976 = vunpack.c.h.b16 %v1277
        %v1977 = vunpack.c.l.b16 %v1278
        %v1978 = vunpack.c.h.b16 %v1278
        %v1979 = vunpack.c.l.b16 %v1279
        %v1980 = vunpack.c.h.b16 %v1279
        %v1981 = vunpack.c.l.b16 %v1280
        %v1982 = vunpack.c.h.b16 %v1280
        %v1983 = vunpack.c.l.b16 %v1281
        %v1984 = vunpack.c.h.b16 %v1281
        %v1985 = vunpack.c.l.b16 %v1282
        %v1986 = vunpack.c.h.b16 %v1282
        %v1987 = vunpack.c.l.b16 %v1283
        %v1988 = vunpack.c.h.b16 %v1283
        %v1989 = vunpack.c.l.b16 %v1284
        %v1990 = vunpack.c.h.b16 %v1284
        %v1991 = vunpack.c.l.b16 %v1285
        %v1992 = vunpack.c.h.b16 %v1285
        %v1993 = vunpack.c.l.b16 %v1286
        %v1994 = vunpack.c.h.b16 %v1286
        %v1995 = vunpack.c.l.b16 %v1287
        %v1996 = vunpack.c.h.b16 %v1287
        %v1997 = vunpack.c.l.b16 %v1288
        %v1998 = vunpack.c.h.b16 %v1288
        %v1999 = vunpack.c.l.b16 %v1289
        %v2000 = vunpack.c.h.b16 %v1289
        %v2001 = vunpack.c.l.b16 %v1290
        %v2002 = vunpack.c.h.b16 %v1290
        %v2003 = vunpack.c.l.b16 %v1291
        %v2004 = vunpack.c.h.b16 %v1291
        %v2005 = vunpack.c.l.b16 %v1292
        %v2006 = vunpack.c.h.b16 %v1292
        %v2007 = vunpack.c.l.b16 %v1293
        %v2008 = vunpack.c.h.b16 %v1293
        %v2009 = vunpack.c.l.b16 %v1294
        %v2010 = vunpack.c.h.b16 %v1294
        %v2011 = vunpack.c.l.b16 %v1295
        %v2012 = vunpack.c.h.b16 %v1295
        %v2013 = vunpack.c.l.b16 %v1296
        %v2014 = vunpack.c.h.b16 %v1296
        %v2015 = vunpack.c.l.b16 %v1297
        %v2016 = vunpack.c.h.b16 %v1297
        %v2017 = vunpack.c.l.b16 %v1298
        %v2018 = vunpack.c.h.b16 %v1298
        %v2019 = vunpack.c.l.b16 %v1299
        %v2020 = vunpack.c.h.b16 %v1299
        %v2021 = vunpack.c.l.b16 %v1300
        %v2022 = vunpack.c.h.b16 %v1300
        %v2023 = vunpack.c.l.b16 %v1301
        %v2024 = vunpack.c.h.b16 %v1301
        %v2025 = vunpack.c.l.b16 %v1302
        %v2026 = vunpack.c.h.b16 %v1302
        %v2027 = vunpack.c.l.b16 %v1303
        %v2028 = vunpack.c.h.b16 %v1303
        %v2029 = vunpack.c.l.b16 %v1304
        %v2030 = vunpack.c.h.b16 %v1304
        %v2031 = vunpack.c.l.b16 %v1305
        %v2032 = vunpack.c.h.b16 %v1305
        %v2033 = vunpack.c.l.b16 %v1306
        %v2034 = vunpack.c.h.b16 %v1306
        %v2035 = vunpack.c.l.b16 %v1307
        %v2036 = vunpack.c.h.b16 %v1307
        %v2037 = vunpack.c.l.b16 %v1308
        %v2038 = vunpack.c.h.b16 %v1308
        %v2039 = vunpack.c.l.b16 %v1309
        %v2040 = vunpack.c.h.b16 %v1309
        %v2041 = vunpack.c.l.b16 %v1310
        %v2042 = vunpack.c.h.b16 %v1310
        %v2043 = vunpack.c.l.b16 %v1311
        %v2044 = vunpack.c.h.b16 %v1311
        %v2045 = vunpack.c.l.b16 %v1312
        %v2046 = vunpack.c.h.b16 %v1312
        %v2047 = vunpack.c.l.b16 %v1313
        %v2048 = vunpack.c.h.b16 %v1313
        %v2049 = vunpack.c.l.b16 %v1314
        %v2050 = vunpack.c.h.b16 %v1314
        %v2051 = vunpack.c.l.b16 %v1315
        %v2052 = vunpack.c.h.b16 %v1315
        %v2053 = vunpack.c.l.b16 %v1316
        %v2054 = vunpack.c.h.b16 %v1316
        %v2055 = vunpack.c.l.b16 %v1317
        %v2056 = vunpack.c.h.b16 %v1317
        %v2057 = vunpack.c.l.b16 %v1318
        %v2058 = vunpack.c.h.b16 %v1318
        %v2059 = vunpack.c.l.b16 %v1319
        %v2060 = vunpack.c.h.b16 %v1319
        %v2061 = vunpack.c.l.b16 %v1320
        %v2062 = vunpack.c.h.b16 %v1320
        %v2063 = vunpack.c.l.b16 %v1321
        %v2064 = vunpack.c.h.b16 %v1321
        %v2065 = vunpack.c.l.b16 %v1322
        %v2066 = vunpack.c.h.b16 %v1322
        %v2067 = vunpack.c.l.b16 %v1323
        %v2068 = vunpack.c.h.b16 %v1323
        %v2069 = vunpack.c.l.b16 %v1324
        %v2070 = vunpack.c.h.b16 %v1324
        %v2071 = vunpack.c.l.b16 %v1325
        %v2072 = vunpack.c.h.b16 %v1325
        %v2073 = vunpack.c.l.b16 %v1326
        %v2074 = vunpack.c.h.b16 %v1326
        %v2075 = vunpack.c.l.b16 %v1327
        %v2076 = vunpack.c.h.b16 %v1327
        %v2077 = vunpack.c.l.b16 %v1328
        %v2078 = vunpack.c.h.b16 %v1328
        %v2079 = vunpack.c.l.b16 %v1329
        %v2080 = vunpack.c.h.b16 %v1329
        %v2081 = vunpack.c.l.b16 %v1330
        %v2082 = vunpack.c.h.b16 %v1330
        %v2083 = vunpack.c.l.b16 %v1331
        %v2084 = vunpack.c.h.b16 %v1331
        %v2085 = vunpack.c.l.b16 %v1332
        %v2086 = vunpack.c.h.b16 %v1332
        %v2087 = vunpack.c.l.b16 %v1333
        %v2088 = vunpack.c.h.b16 %v1333
        %v2089 = vunpack.c.l.b16 %v1334
        %v2090 = vunpack.c.h.b16 %v1334
        %v2091 = vunpack.c.l.b16 %v1335
        %v2092 = vunpack.c.h.b16 %v1335
        %v2093 = vunpack.c.l.b16 %v1336
        %v2094 = vunpack.c.h.b16 %v1336
        %v2095 = vunpack.c.l.b16 %v1337
        %v2096 = vunpack.c.h.b16 %v1337
        %v2097 = vunpack.c.l.b16 %v1338
        %v2098 = vunpack.c.h.b16 %v1338
        %v2099 = vunpack.c.l.b16 %v1339
        %v2100 = vunpack.c.h.b16 %v1339
        %v2101 = vunpack.c.l.b16 %v1340
        %v2102 = vunpack.c.h.b16 %v1340
        %v2103 = vunpack.c.l.b16 %v1341
        %v2104 = vunpack.c.h.b16 %v1341
        %v2105 = vunpack.c.l.b16 %v1342
        %v2106 = vunpack.c.h.b16 %v1342
        %v2107 = vunpack.c.l.b16 %v1343
        %v2108 = vunpack.c.h.b16 %v1343
        %v2109 = vunpack.c.l.b16 %v1344
        %v2110 = vunpack.c.h.b16 %v1344
        %v2111 = vunpack.c.l.b16 %v1345
        %v2112 = vunpack.c.h.b16 %v1345
        %v2113 = vunpack.c.l.b16 %v1346
        %v2114 = vunpack.c.h.b16 %v1346
        %v2115 = vunpack.c.l.b16 %v1347
        %v2116 = vunpack.c.h.b16 %v1347
        %v2117 = vunpack.c.l.b16 %v1348
        %v2118 = vunpack.c.h.b16 %v1348
        %v2119 = vunpack.c.l.b16 %v1349
        %v2120 = vunpack.c.h.b16 %v1349
        %v2121 = vunpack.c.l.b16 %v1350
        %v2122 = vunpack.c.h.b16 %v1350
        %v2123 = vunpack.c.l.b16 %v1351
        %v2124 = vunpack.c.h.b16 %v1351
        %v2125 = vunpack.c.l.b16 %v1352
        %v2126 = vunpack.c.h.b16 %v1352
        %v2127 = vunpack.c.l.b16 %v1353
        %v2128 = vunpack.c.h.b16 %v1353
        %v2129 = vunpack.c.l.b16 %v1354
        %v2130 = vunpack.c.h.b16 %v1354
        %v2131 = vunpack.c.l.b16 %v1355
        %v2132 = vunpack.c.h.b16 %v1355
        %v2133 = vunpack.c.l.b16 %v1356
        %v2134 = vunpack.c.h.b16 %v1356
        %v2135 = vunpack.c.l.b16 %v1357
        %v2136 = vunpack.c.h.b16 %v1357
        %v2137 = vunpack.c.l.b16 %v1358
        %v2138 = vunpack.c.h.b16 %v1358
        %v2139 = vunpack.c.l.b16 %v1359
        %v2140 = vunpack.c.h.b16 %v1359
        %v2141 = vunpack.c.l.b16 %v1360
        %v2142 = vunpack.c.h.b16 %v1360
        %v2143 = vunpack.c.l.b16 %v1361
        %v2144 = vunpack.c.h.b16 %v1361
        %v2145 = vunpack.c.l.b16 %v1362
        %v2146 = vunpack.c.h.b16 %v1362
        %v2147 = vunpack.c.l.b16 %v1363
        %v2148 = vunpack.c.h.b16 %v1363
        %v2149 = vunpack.c.l.b16 %v1364
        %v2150 = vunpack.c.h.b16 %v1364
        %v2151 = vunpack.c.l.b16 %v1365
        %v2152 = vunpack.c.h.b16 %v1365
        %v2153 = vunpack.c.l.b16 %v1366
        %v2154 = vunpack.c.h.b16 %v1366
        %v2155 = vunpack.c.l.b16 %v1367
        %v2156 = vunpack.c.h.b16 %v1367
        %v2157 = vunpack.c.l.b16 %v1368
        %v2158 = vunpack.c.h.b16 %v1368
        %v2159 = vpack.c.b16 %v1651, %v1647
        %v2160 = vpack.c.b16 %v1652, %v1648
        %v2161 = vpack.c.b16 %v1653, %v1649
        %v2162 = vpack.c.b16 %v1654, %v1650
        %v2163 = vpack.c.b16 %v1659, %v1655
        %v2164 = vpack.c.b16 %v1660, %v1656
        %v2165 = vpack.c.b16 %v1661, %v1657
        %v2166 = vpack.c.b16 %v1662, %v1658
        %v2167 = vpack.c.b16 %v1667, %v1663
        %v2168 = vpack.c.b16 %v1668, %v1664
        %v2169 = vpack.c.b16 %v1669, %v1665
        %v2170 = vpack.c.b16 %v1670, %v1666
        %v2171 = vpack.c.b16 %v1675, %v1671
        %v2172 = vpack.c.b16 %v1676, %v1672
        %v2173 = vpack.c.b16 %v1677, %v1673
        %v2174 = vpack.c.b16 %v1678, %v1674
        %v2175 = vpack.c.b16 %v1683, %v1679
        %v2176 = vpack.c.b16 %v1684, %v1680
        %v2177 = vpack.c.b16 %v1685, %v1681
        %v2178 = vpack.c.b16 %v1686, %v1682
        %v2179 = vpack.c.b16 %v1691, %v1687
        %v2180 = vpack.c.b16 %v1692, %v1688
        %v2181 = vpack.c.b16 %v1693, %v1689
        %v2182 = vpack.c.b16 %v1694, %v1690
        %v2183 = vpack.c.b16 %v1699, %v1695
        %v2184 = vpack.c.b16 %v1700, %v1696
        %v2185 = vpack.c.b16 %v1701, %v1697
        %v2186 = vpack.c.b16 %v1702, %v1698
        %v2187 = vpack.c.b16 %v1707, %v1703
        %v2188 = vpack.c.b16 %v1708, %v1704
        %v2189 = vpack.c.b16 %v1709, %v1705
        %v2190 = vpack.c.b16 %v1710, %v1706
        %v2191 = vpack.c.b16 %v1715, %v1711
        %v2192 = vpack.c.b16 %v1716, %v1712
        %v2193 = vpack.c.b16 %v1717, %v1713
        %v2194 = vpack.c.b16 %v1718, %v1714
        %v2195 = vpack.c.b16 %v1723, %v1719
        %v2196 = vpack.c.b16 %v1724, %v1720
        %v2197 = vpack.c.b16 %v1725, %v1721
        %v2198 = vpack.c.b16 %v1726, %v1722
        %v2199 = vpack.c.b16 %v1731, %v1727
        %v2200 = vpack.c.b16 %v1732, %v1728
        %v2201 = vpack.c.b16 %v1733, %v1729
        %v2202 = vpack.c.b16 %v1734, %v1730
        %v2203 = vpack.c.b16 %v1739, %v1735
        %v2204 = vpack.c.b16 %v1740, %v1736
        %v2205 = vpack.c.b16 %v1741, %v1737
        %v2206 = vpack.c.b16 %v1742, %v1738
        %v2207 = vpack.c.b16 %v1747, %v1743
        %v2208 = vpack.c.b16 %v1748, %v1744
        %v2209 = vpack.c.b16 %v1749, %v1745
        %v2210 = vpack.c.b16 %v1750, %v1746
        %v2211 = vpack.c.b16 %v1755, %v1751
        %v2212 = vpack.c.b16 %v1756, %v1752
        %v2213 = vpack.c.b16 %v1757, %v1753
        %v2214 = vpack.c.b16 %v1758, %v1754
        %v2215 = vpack.c.b16 %v1763, %v1759
        %v2216 = vpack.c.b16 %v1764, %v1760
        %v2217 = vpack.c.b16 %v1765, %v1761
        %v2218 = vpack.c.b16 %v1766, %v1762
        %v2219 = vpack.c.b16 %v1771, %v1767
        %v2220 = vpack.c.b16 %v1772, %v1768
        %v2221 = vpack.c.b16 %v1773, %v1769
        %v2222 = vpack.c.b16 %v1774, %v1770
        %v2223 = vpack.c.b16 %v1779, %v1775
        %v2224 = vpack.c.b16 %v1780, %v1776
        %v2225 = vpack.c.b16 %v1781, %v1777
        %v2226 = vpack.c.b16 %v1782, %v1778
        %v2227 = vpack.c.b16 %v1787, %v1783
        %v2228 = vpack.c.b16 %v1788, %v1784
        %v2229 = vpack.c.b16 %v1789, %v1785
        %v2230 = vpack.c.b16 %v1790, %v1786
        %v2231 = vpack.c.b16 %v1795, %v1791
        %v2232 = vpack.c.b16 %v1796, %v1792
        %v2233 = vpack.c.b16 %v1797, %v1793
        %v2234 = vpack.c.b16 %v1798, %v1794
        %v2235 = vpack.c.b16 %v1803, %v1799
        %v2236 = vpack.c.b16 %v1804, %v1800
        %v2237 = vpack.c.b16 %v1805, %v1801
        %v2238 = vpack.c.b16 %v1806, %v1802
        %v2239 = vpack.c.b16 %v1811, %v1807
        %v2240 = vpack.c.b16 %v1812, %v1808
        %v2241 = vpack.c.b16 %v1813, %v1809
        %v2242 = vpack.c.b16 %v1814, %v1810
        %v2243 = vpack.c.b16 %v1819, %v1815
        %v2244 = vpack.c.b16 %v1820, %v1816
        %v2245 = vpack.c.b16 %v1821, %v1817
        %v2246 = vpack.c.b16 %v1822, %v1818
        %v2247 = vpack.c.b16 %v1827, %v1823
        %v2248 = vpack.c.b16 %v1828, %v1824
        %v2249 = vpack.c.b16 %v1829, %v1825
        %v2250 = vpack.c.b16 %v1830, %v1826
        %v2251 = vpack.c.b16 %v1835, %v1831
        %v2252 = vpack.c.b16 %v1836, %v1832
        %v2253 = vpack.c.b16 %v1837, %v1833
        %v2254 = vpack.c.b16 %v1838, %v1834
        %v2255 = vpack.c.b16 %v1843, %v1839
        %v2256 = vpack.c.b16 %v1844, %v1840
        %v2257 = vpack.c.b16 %v1845, %v1841
        %v2258 = vpack.c.b16 %v1846, %v1842
        %v2259 = vpack.c.b16 %v1851, %v1847
        %v2260 = vpack.c.b16 %v1852, %v1848
        %v2261 = vpack.c.b16 %v1853, %v1849
        %v2262 = vpack.c.b16 %v1854, %v1850
        %v2263 = vpack.c.b16 %v1859, %v1855
        %v2264 = vpack.c.b16 %v1860, %v1856
        %v2265 = vpack.c.b16 %v1861, %v1857
        %v2266 = vpack.c.b16 %v1862, %v1858
        %v2267 = vpack.c.b16 %v1867, %v1863
        %v2268 = vpack.c.b16 %v1868, %v1864
        %v2269 = vpack.c.b16 %v1869, %v1865
        %v2270 = vpack.c.b16 %v1870, %v1866
        %v2271 = vpack.c.b16 %v1875, %v1871
        %v2272 = vpack.c.b16 %v1876, %v1872
        %v2273 = vpack.c.b16 %v1877, %v1873
        %v2274 = vpack.c.b16 %v1878, %v1874
        %v2275 = vpack.c.b16 %v1883, %v1879
        %v2276 = vpack.c.b16 %v1884, %v1880
        %v2277 = vpack.c.b16 %v1885, %v1881
        %v2278 = vpack.c.b16 %v1886, %v1882
        %v2279 = vpack.c.b16 %v1891, %v1887
        %v2280 = vpack.c.b16 %v1892, %v1888
        %v2281 = vpack.c.b16 %v1893, %v1889
        %v2282 = vpack.c.b16 %v1894, %v1890
        %v2283 = vpack.c.b16 %v1899, %v1895
        %v2284 = vpack.c.b16 %v1900, %v1896
        %v2285 = vpack.c.b16 %v1901, %v1897
        %v2286 = vpack.c.b16 %v1902, %v1898
        %v2287 = vpack.c.b16 %v1907, %v1903
        %v2288 = vpack.c.b16 %v1908, %v1904
        %v2289 = vpack.c.b16 %v1909, %v1905
        %v2290 = vpack.c.b16 %v1910, %v1906
        %v2291 = vpack.c.b16 %v1915, %v1911
        %v2292 = vpack.c.b16 %v1916, %v1912
        %v2293 = vpack.c.b16 %v1917, %v1913
        %v2294 = vpack.c.b16 %v1918, %v1914
        %v2295 = vpack.c.b16 %v1923, %v1919
        %v2296 = vpack.c.b16 %v1924, %v1920
        %v2297 = vpack.c.b16 %v1925, %v1921
        %v2298 = vpack.c.b16 %v1926, %v1922
        %v2299 = vpack.c.b16 %v1931, %v1927
        %v2300 = vpack.c.b16 %v1932, %v1928
        %v2301 = vpack.c.b16 %v1933, %v1929
        %v2302 = vpack.c.b16 %v1934, %v1930
        %v2303 = vpack.c.b16 %v1939, %v1935
        %v2304 = vpack.c.b16 %v1940, %v1936
        %v2305 = vpack.c.b16 %v1941, %v1937
        %v2306 = vpack.c.b16 %v1942, %v1938
        %v2307 = vpack.c.b16 %v1947, %v1943
        %v2308 = vpack.c.b16 %v1948, %v1944
        %v2309 = vpack.c.b16 %v1949, %v1945
        %v2310 = vpack.c.b16 %v1950, %v1946
        %v2311 = vpack.c.b16 %v1955, %v1951
        %v2312 = vpack.c.b16 %v1956, %v1952
        %v2313 = vpack.c.b16 %v1957, %v1953
        %v2314 = vpack.c.b16 %v1958, %v1954
        %v2315 = vpack.c.b16 %v1963, %v1959
        %v2316 = vpack.c.b16 %v1964, %v1960
        %v2317 = vpack.c.b16 %v1965, %v1961
        %v2318 = vpack.c.b16 %v1966, %v1962
        %v2319 = vpack.c.b16 %v1971, %v1967
        %v2320 = vpack.c.b16 %v1972, %v1968
        %v2321 = vpack.c.b16 %v1973, %v1969
        %v2322 = vpack.c.b16 %v1974, %v1970
        %v2323 = vpack.c.b16 %v1979, %v1975
        %v2324 = vpack.c.b16 %v1980, %v1976
        %v2325 = vpack.c.b16 %v1981, %v1977
        %v2326 = vpack.c.b16 %v1982, %v1978
        %v2327 = vpack.c.b16 %v1987, %v1983
        %v2328 = vpack.c.b16 %v1988, %v1984
        %v2329 = vpack.c.b16 %v1989, %v1985
        %v2330 = vpack.c.b16 %v1990, %v1986
        %v2331 = vpack.c.b16 %v1995, %v1991
        %v2332 = vpack.c.b16 %v1996, %v1992
        %v2333 = vpack.c.b16 %v1997, %v1993
        %v2334 = vpack.c.b16 %v1998, %v1994
        %v2335 = vpack.c.b16 %v2003, %v1999
        %v2336 = vpack.c.b16 %v2004, %v2000
        %v2337 = vpack.c.b16 %v2005, %v2001
        %v2338 = vpack.c.b16 %v2006, %v2002
        %v2339 = vpack.c.b16 %v2011, %v2007
        %v2340 = vpack.c.b16 %v2012, %v2008
        %v2341 = vpack.c.b16 %v2013, %v2009
        %v2342 = vpack.c.b16 %v2014, %v2010
        %v2343 = vpack.c.b16 %v2019, %v2015
        %v2344 = vpack.c.b16 %v2020, %v2016
        %v2345 = vpack.c.b16 %v2021, %v2017
        %v2346 = vpack.c.b16 %v2022, %v2018
        %v2347 = vpack.c.b16 %v2027, %v2023
        %v2348 = vpack.c.b16 %v2028, %v2024
        %v2349 = vpack.c.b16 %v2029, %v2025
        %v2350 = vpack.c.b16 %v2030, %v2026
        %v2351 = vpack.c.b16 %v2035, %v2031
        %v2352 = vpack.c.b16 %v2036, %v2032
        %v2353 = vpack.c.b16 %v2037, %v2033
        %v2354 = vpack.c.b16 %v2038, %v2034
        %v2355 = vpack.c.b16 %v2043, %v2039
        %v2356 = vpack.c.b16 %v2044, %v2040
        %v2357 = vpack.c.b16 %v2045, %v2041
        %v2358 = vpack.c.b16 %v2046, %v2042
        %v2359 = vpack.c.b16 %v2051, %v2047
        %v2360 = vpack.c.b16 %v2052, %v2048
        %v2361 = vpack.c.b16 %v2053, %v2049
        %v2362 = vpack.c.b16 %v2054, %v2050
        %v2363 = vpack.c.b16 %v2059, %v2055
        %v2364 = vpack.c.b16 %v2060, %v2056
        %v2365 = vpack.c.b16 %v2061, %v2057
        %v2366 = vpack.c.b16 %v2062, %v2058
        %v2367 = vpack.c.b16 %v2067, %v2063
        %v2368 = vpack.c.b16 %v2068, %v2064
        %v2369 = vpack.c.b16 %v2069, %v2065
        %v2370 = vpack.c.b16 %v2070, %v2066
        %v2371 = vpack.c.b16 %v2075, %v2071
        %v2372 = vpack.c.b16 %v2076, %v2072
        %v2373 = vpack.c.b16 %v2077, %v2073
        %v2374 = vpack.c.b16 %v2078, %v2074
        %v2375 = vpack.c.b16 %v2083, %v2079
        %v2376 = vpack.c.b16 %v2084, %v2080
        %v2377 = vpack.c.b16 %v2085, %v2081
        %v2378 = vpack.c.b16 %v2086, %v2082
        %v2379 = vpack.c.b16 %v2091, %v2087
        %v2380 = vpack.c.b16 %v2092, %v2088
        %v2381 = vpack.c.b16 %v2093, %v2089
        %v2382 = vpack.c.b16 %v2094, %v2090
        %v2383 = vpack.c.b16 %v2099, %v2095
        %v2384 = vpack.c.b16 %v2100, %v2096
        %v2385 = vpack.c.b16 %v2101, %v2097
        %v2386 = vpack.c.b16 %v2102, %v2098
        %v2387 = vpack.c.b16 %v2107, %v2103
        %v2388 = vpack.c.b16 %v2108, %v2104
        %v2389 = vpack.c.b16 %v2109, %v2105
        %v2390 = vpack.c.b16 %v2110, %v2106
        %v2391 = vpack.c.b16 %v2115, %v2111
        %v2392 = vpack.c.b16 %v2116, %v2112
        %v2393 = vpack.c.b16 %v2117, %v2113
        %v2394 = vpack.c.b16 %v2118, %v2114
        %v2395 = vpack.c.b16 %v2123, %v2119
        %v2396 = vpack.c.b16 %v2124, %v2120
        %v2397 = vpack.c.b16 %v2125, %v2121
        %v2398 = vpack.c.b16 %v2126, %v2122
        %v2399 = vpack.c.b16 %v2131, %v2127
        %v2400 = vpack.c.b16 %v2132, %v2128
        %v2401 = vpack.c.b16 %v2133, %v2129
        %v2402 = vpack.c.b16 %v2134, %v2130
        %v2403 = vpack.c.b16 %v2139, %v2135
        %v2404 = vpack.c.b16 %v2140, %v2136
        %v2405 = vpack.c.b16 %v2141, %v2137
        %v2406 = vpack.c.b16 %v2142, %v2138
        %v2407 = vpack.c.b16 %v2147, %v2143
        %v2408 = vpack.c.b16 %v2148, %v2144
        %v2409 = vpack.c.b16 %v2149, %v2145
        %v2410 = vpack.c.b16 %v2150, %v2146
        %v2411 = vpack.c.b16 %v2155, %v2151
        %v2412 = vpack.c.b16 %v2156, %v2152
        %v2413 = vpack.c.b16 %v2157, %v2153
        %v2414 = vpack.c.b16 %v2158, %v2154
        %2671 = vmatprep.subr.bf16.mxu0 %v2160
        %2672 = vmatpush1.bf16.msra.mxu0 %v2159
        %2673 = vmatprep.subr.bf16.mxu0 %v2164
        %2674 = vmatpush1.bf16.msra.mxu0 %v2163
        %2675 = vmatprep.subr.bf16.mxu0 %v2168
        %2676 = vmatpush1.bf16.msra.mxu0 %v2167
        %2677 = vmatprep.subr.bf16.mxu0 %v2172
        %2678 = vmatpush1.bf16.msra.mxu0 %v2171
        %2679 = vmatprep.subr.bf16.mxu0 %v2176
        %2680 = vmatpush1.bf16.msra.mxu0 %v2175
        %2681 = vmatprep.subr.bf16.mxu0 %v2180
        %2682 = vmatpush1.bf16.msra.mxu0 %v2179
        %2683 = vmatprep.subr.bf16.mxu0 %v2184
        %2684 = vmatpush1.bf16.msra.mxu0 %v2183
        %2685 = vmatprep.subr.bf16.mxu0 %v2188
        %2686 = vmatpush1.bf16.msra.mxu0 %v2187
        %2687 = vmatprep.subr.bf16.mxu0 %v2192
        %2688 = vmatpush1.bf16.msra.mxu0 %v2191
        %2689 = vmatprep.subr.bf16.mxu0 %v2196
        %2690 = vmatpush1.bf16.msra.mxu0 %v2195
        %2691 = vmatprep.subr.bf16.mxu0 %v2200
        %2692 = vmatpush1.bf16.msra.mxu0 %v2199
        %2693 = vmatprep.subr.bf16.mxu0 %v2204
        %2694 = vmatpush1.bf16.msra.mxu0 %v2203
        %2695 = vmatprep.subr.bf16.mxu0 %v2208
        %2696 = vmatpush1.bf16.msra.mxu0 %v2207
        %2697 = vmatprep.subr.bf16.mxu0 %v2212
        %2698 = vmatpush1.bf16.msra.mxu0 %v2211
        %2699 = vmatprep.subr.bf16.mxu0 %v2216
        %2700 = vmatpush1.bf16.msra.mxu0 %v2215
        %2701 = vmatprep.subr.bf16.mxu0 %v2220
        %2702 = vmatpush1.bf16.msra.mxu0 %v2219
        %2703 = vmatprep.mubr.bf16.mxu0 %v1050
        %2704 = vmatmul.mubr.bf16.gmra.mrb[0].mxu0 %v1049
        %v2705 = vpop.f32.mrb[0].mxu0
        %v2706 = vadd.f32 %v1374, %v2705
        %v2707 = vpop.f32.mrb[0].mxu0
        %v2708 = vadd.f32 %v1378, %v2707
        %v2709 = vpop.f32.mrb[0].mxu0
        %v2710 = vadd.f32 %v1374, %v2709
        %v2711 = vpop.f32.mrb[0].mxu0
        %v2712 = vadd.f32 %v1378, %v2711
        %2713 = vmatprep.mubr.bf16.mxu0 %v1058
        %2714 = vmatmul.mubr.bf16.gmra.mrb[0].mxu0 %v1057
        %v2715 = vpop.f32.mrb[0].mxu0
        %v2716 = vadd.f32 %v1374, %v2715
        %v2717 = vpop.f32.mrb[0].mxu0
        %v2718 = vadd.f32 %v1378, %v2717
        %v2719 = vpop.f32.mrb[0].mxu0
        %v2720 = vadd.f32 %v1374, %v2719
        %v2721 = vpop.f32.mrb[0].mxu0
        %v2722 = vadd.f32 %v1378, %v2721
        %2723 = vmatprep.mubr.bf16.mxu0 %v1066
        %2724 = vmatmul.mubr.bf16.gmra.mrb[0].mxu0 %v1065
        %v2725 = vpop.f32.mrb[0].mxu0
        %v2726 = vadd.f32 %v1374, %v2725
        %v2727 = vpop.f32.mrb[0].mxu0
        %v2728 = vadd.f32 %v1378, %v2727
        %v2729 = vpop.f32.mrb[0].mxu0
        %v2730 = vadd.f32 %v1374, %v2729
        %v2731 = vpop.f32.mrb[0].mxu0
        %v2732 = vadd.f32 %v1378, %v2731
        %2733 = vmatprep.mubr.bf16.mxu0 %v1074
        %2734 = vmatmul.mubr.bf16.gmra.mrb[0].mxu0 %v1073
        %v2735 = vpop.f32.mrb[0].mxu0
        %v2736 = vadd.f32 %v1374, %v2735
        %v2737 = vpop.f32.mrb[0].mxu0
        %v2738 = vadd.f32 %v1378, %v2737
        %v2739 = vpop.f32.mrb[0].mxu0
        %v2740 = vadd.f32 %v1374, %v2739
        %v2741 = vpop.f32.mrb[0].mxu0
        %v2742 = vadd.f32 %v1378, %v2741
        %2743 = vmatprep.mubr.bf16.mxu0 %v1082
        %2744 = vmatmul.mubr.bf16.gmra.mrb[0].mxu0 %v1081
        %v2745 = vpop.f32.mrb[0].mxu0
        %v2746 = vadd.f32 %v1374, %v2745
        %v2747 = vpop.f32.mrb[0].mxu0
        %v2748 = vadd.f32 %v1378, %v2747
        %v2749 = vpop.f32.mrb[0].mxu0
        %v2750 = vadd.f32 %v1374, %v2749
        %v2751 = vpop.f32.mrb[0].mxu0
        %v2752 = vadd.f32 %v1378, %v2751
        %2753 = vmatprep.mubr.bf16.mxu0 %v1090
        %2754 = vmatmul.mubr.bf16.gmra.mrb[0].mxu0 %v1089
        %v2755 = vpop.f32.mrb[0].mxu0
        %v2756 = vadd.f32 %v1374, %v2755
        %v2757 = vpop.f32.mrb[0].mxu0
        %v2758 = vadd.f32 %v1378, %v2757
        %v2759 = vpop.f32.mrb[0].mxu0
        %v2760 = vadd.f32 %v1374, %v2759
        %v2761 = vpop.f32.mrb[0].mxu0
        %v2762 = vadd.f32 %v1378, %v2761
        %2763 = vmatprep.mubr.bf16.mxu0 %v1098
        %2764 = vmatmul.mubr.bf16.gmra.mrb[0].mxu0 %v1097
        %v2765 = vpop.f32.mrb[0].mxu0
        %v2766 = vadd.f32 %v1374, %v2765
        %v2767 = vpop.f32.mrb[0].mxu0
        %v2768 = vadd.f32 %v1378, %v2767
        %v2769 = vpop.f32.mrb[0].mxu0
        %v2770 = vadd.f32 %v1374, %v2769
        %v2771 = vpop.f32.mrb[0].mxu0
        %v2772 = vadd.f32 %v1378, %v2771
        %2773 = vmatprep.mubr.bf16.mxu0 %v1106
        %2774 = vmatmul.mubr.bf16.gmra.mrb[0].mxu0 %v1105
        %v2775 = vpop.f32.mrb[0].mxu0
        %v2776 = vadd.f32 %v1374, %v2775
        %v2777 = vpop.f32.mrb[0].mxu0
        %v2778 = vadd.f32 %v1378, %v2777
        %v2779 = vpop.f32.mrb[0].mxu0
        %v2780 = vadd.f32 %v1374, %v2779
        %v2781 = vpop.f32.mrb[0].mxu0
        %v2782 = vadd.f32 %v1378, %v2781
        %2783 = vdwg.mxu0
        %2784 = vmatprep.subr.bf16.mxu0 %v2224
        %2785 = vmatpush1.bf16.msra.mxu0 %v2223
        %2786 = vmatprep.subr.bf16.mxu0 %v2228
        %2787 = vmatpush1.bf16.msra.mxu0 %v2227
        %2788 = vmatprep.subr.bf16.mxu0 %v2232
        %2789 = vmatpush1.bf16.msra.mxu0 %v2231
        %2790 = vmatprep.subr.bf16.mxu0 %v2236
        %2791 = vmatpush1.bf16.msra.mxu0 %v2235
        %2792 = vmatprep.subr.bf16.mxu0 %v2240
        %2793 = vmatpush1.bf16.msra.mxu0 %v2239
        %2794 = vmatprep.subr.bf16.mxu0 %v2244
        %2795 = vmatpush1.bf16.msra.mxu0 %v2243
        %2796 = vmatprep.subr.bf16.mxu0 %v2248
        %2797 = vmatpush1.bf16.msra.mxu0 %v2247
        %2798 = vmatprep.subr.bf16.mxu0 %v2252
        %2799 = vmatpush1.bf16.msra.mxu0 %v2251
        %2800 = vmatprep.subr.bf16.mxu0 %v2256
        %2801 = vmatpush1.bf16.msra.mxu0 %v2255
        %2802 = vmatprep.subr.bf16.mxu0 %v2260
        %2803 = vmatpush1.bf16.msra.mxu0 %v2259
        %2804 = vmatprep.subr.bf16.mxu0 %v2264
        %2805 = vmatpush1.bf16.msra.mxu0 %v2263
        %2806 = vmatprep.subr.bf16.mxu0 %v2268
        %2807 = vmatpush1.bf16.msra.mxu0 %v2267
        %2808 = vmatprep.subr.bf16.mxu0 %v2272
        %2809 = vmatpush1.bf16.msra.mxu0 %v2271
        %2810 = vmatprep.subr.bf16.mxu0 %v2276
        %2811 = vmatpush1.bf16.msra.mxu0 %v2275
        %2812 = vmatprep.subr.bf16.mxu0 %v2280
        %2813 = vmatpush1.bf16.msra.mxu0 %v2279
        %2814 = vmatprep.subr.bf16.mxu0 %v2284
        %2815 = vmatpush1.bf16.msra.mxu0 %v2283
        %2816 = vmatprep.mubr.bf16.mxu0 %v1052
        %2817 = vmatmul.mubr.bf16.gmra.mrb[0].mxu0 %v1051
        %v2818 = vpop.f32.mrb[0].mxu0
        %v2819 = vadd.f32 %v2706, %v2818
        %v2820 = vpop.f32.mrb[0].mxu0
        %v2821 = vadd.f32 %v2708, %v2820
        %v2822 = vpop.f32.mrb[0].mxu0
        %v2823 = vadd.f32 %v2710, %v2822
        %v2824 = vpop.f32.mrb[0].mxu0
        %v2825 = vadd.f32 %v2712, %v2824
        %2826 = vmatprep.mubr.bf16.mxu0 %v1060
        %2827 = vmatmul.mubr.bf16.gmra.mrb[0].mxu0 %v1059
        %v2828 = vpop.f32.mrb[0].mxu0
        %v2829 = vadd.f32 %v2716, %v2828
        %v2830 = vpop.f32.mrb[0].mxu0
        %v2831 = vadd.f32 %v2718, %v2830
        %v2832 = vpop.f32.mrb[0].mxu0
        %v2833 = vadd.f32 %v2720, %v2832
        %v2834 = vpop.f32.mrb[0].mxu0
        %v2835 = vadd.f32 %v2722, %v2834
        %2836 = vmatprep.mubr.bf16.mxu0 %v1068
        %2837 = vmatmul.mubr.bf16.gmra.mrb[0].mxu0 %v1067
        %v2838 = vpop.f32.mrb[0].mxu0
        %v2839 = vadd.f32 %v2726, %v2838
        %v2840 = vpop.f32.mrb[0].mxu0
        %v2841 = vadd.f32 %v2728, %v2840
        %v2842 = vpop.f32.mrb[0].mxu0
        %v2843 = vadd.f32 %v2730, %v2842
        %v2844 = vpop.f32.mrb[0].mxu0
        %v2845 = vadd.f32 %v2732, %v2844
        %2846 = vmatprep.mubr.bf16.mxu0 %v1076
        %2847 = vmatmul.mubr.bf16.gmra.mrb[0].mxu0 %v1075
        %v2848 = vpop.f32.mrb[0].mxu0
        %v2849 = vadd.f32 %v2736, %v2848
        %v2850 = vpop.f32.mrb[0].mxu0
        %v2851 = vadd.f32 %v2738, %v2850
        %v2852 = vpop.f32.mrb[0].mxu0
        %v2853 = vadd.f32 %v2740, %v2852
        %v2854 = vpop.f32.mrb[0].mxu0
        %v2855 = vadd.f32 %v2742, %v2854
        %2856 = vmatprep.mubr.bf16.mxu0 %v1084
        %2857 = vmatmul.mubr.bf16.gmra.mrb[0].mxu0 %v1083
        %v2858 = vpop.f32.mrb[0].mxu0
        %v2859 = vadd.f32 %v2746, %v2858
        %v2860 = vpop.f32.mrb[0].mxu0
        %v2861 = vadd.f32 %v2748, %v2860
        %v2862 = vpop.f32.mrb[0].mxu0
        %v2863 = vadd.f32 %v2750, %v2862
        %v2864 = vpop.f32.mrb[0].mxu0
        %v2865 = vadd.f32 %v2752, %v2864
        %2866 = vmatprep.mubr.bf16.mxu0 %v1092
        %2867 = vmatmul.mubr.bf16.gmra.mrb[0].mxu0 %v1091
        %v2868 = vpop.f32.mrb[0].mxu0
        %v2869 = vadd.f32 %v2756, %v2868
        %v2870 = vpop.f32.mrb[0].mxu0
        %v2871 = vadd.f32 %v2758, %v2870
        %v2872 = vpop.f32.mrb[0].mxu0
        %v2873 = vadd.f32 %v2760, %v2872
        %v2874 = vpop.f32.mrb[0].mxu0
        %v2875 = vadd.f32 %v2762, %v2874
        %2876 = vmatprep.mubr.bf16.mxu0 %v1100
        %2877 = vmatmul.mubr.bf16.gmra.mrb[0].mxu0 %v1099
        %v2878 = vpop.f32.mrb[0].mxu0
        %v2879 = vadd.f32 %v2766, %v2878
        %v2880 = vpop.f32.mrb[0].mxu0
        %v2881 = vadd.f32 %v2768, %v2880
        %v2882 = vpop.f32.mrb[0].mxu0
        %v2883 = vadd.f32 %v2770, %v2882
        %v2884 = vpop.f32.mrb[0].mxu0
        %v2885 = vadd.f32 %v2772, %v2884
        %2886 = vmatprep.mubr.bf16.mxu0 %v1108
        %2887 = vmatmul.mubr.bf16.gmra.mrb[0].mxu0 %v1107
        %v2888 = vpop.f32.mrb[0].mxu0
        %v2889 = vadd.f32 %v2776, %v2888
        %v2890 = vpop.f32.mrb[0].mxu0
        %v2891 = vadd.f32 %v2778, %v2890
        %v2892 = vpop.f32.mrb[0].mxu0
        %v2893 = vadd.f32 %v2780, %v2892
        %v2894 = vpop.f32.mrb[0].mxu0
        %v2895 = vadd.f32 %v2782, %v2894
        %2896 = vdwg.mxu0
        %2897 = vmatprep.subr.bf16.mxu0 %v2288
        %2898 = vmatpush1.bf16.msra.mxu0 %v2287
        %2899 = vmatprep.subr.bf16.mxu0 %v2292
        %2900 = vmatpush1.bf16.msra.mxu0 %v2291
        %2901 = vmatprep.subr.bf16.mxu0 %v2296
        %2902 = vmatpush1.bf16.msra.mxu0 %v2295
        %2903 = vmatprep.subr.bf16.mxu0 %v2300
        %2904 = vmatpush1.bf16.msra.mxu0 %v2299
        %2905 = vmatprep.subr.bf16.mxu0 %v2304
        %2906 = vmatpush1.bf16.msra.mxu0 %v2303
        %2907 = vmatprep.subr.bf16.mxu0 %v2308
        %2908 = vmatpush1.bf16.msra.mxu0 %v2307
        %2909 = vmatprep.subr.bf16.mxu0 %v2312
        %2910 = vmatpush1.bf16.msra.mxu0 %v2311
        %2911 = vmatprep.subr.bf16.mxu0 %v2316
        %2912 = vmatpush1.bf16.msra.mxu0 %v2315
        %2913 = vmatprep.subr.bf16.mxu0 %v2320
        %2914 = vmatpush1.bf16.msra.mxu0 %v2319
        %2915 = vmatprep.subr.bf16.mxu0 %v2324
        %2916 = vmatpush1.bf16.msra.mxu0 %v2323
        %2917 = vmatprep.subr.bf16.mxu0 %v2328
        %2918 = vmatpush1.bf16.msra.mxu0 %v2327
        %2919 = vmatprep.subr.bf16.mxu0 %v2332
        %2920 = vmatpush1.bf16.msra.mxu0 %v2331
        %2921 = vmatprep.subr.bf16.mxu0 %v2336
        %2922 = vmatpush1.bf16.msra.mxu0 %v2335
        %2923 = vmatprep.subr.bf16.mxu0 %v2340
        %2924 = vmatpush1.bf16.msra.mxu0 %v2339
        %2925 = vmatprep.subr.bf16.mxu0 %v2344
        %2926 = vmatpush1.bf16.msra.mxu0 %v2343
        %2927 = vmatprep.subr.bf16.mxu0 %v2348
        %2928 = vmatpush1.bf16.msra.mxu0 %v2347
        %2929 = vmatprep.mubr.bf16.mxu0 %v1054
        %2930 = vmatmul.mubr.bf16.gmra.mrb[0].mxu0 %v1053
        %v2931 = vpop.f32.mrb[0].mxu0
        %v2932 = vadd.f32 %v2819, %v2931
        %v2933 = vpop.f32.mrb[0].mxu0
        %v2934 = vadd.f32 %v2821, %v2933
        %v2935 = vpop.f32.mrb[0].mxu0
        %v2936 = vadd.f32 %v2823, %v2935
        %v2937 = vpop.f32.mrb[0].mxu0
        %v2938 = vadd.f32 %v2825, %v2937
        %2939 = vmatprep.mubr.bf16.mxu0 %v1062
        %2940 = vmatmul.mubr.bf16.gmra.mrb[0].mxu0 %v1061
        %v2941 = vpop.f32.mrb[0].mxu0
        %v2942 = vadd.f32 %v2829, %v2941
        %v2943 = vpop.f32.mrb[0].mxu0
        %v2944 = vadd.f32 %v2831, %v2943
        %v2945 = vpop.f32.mrb[0].mxu0
        %v2946 = vadd.f32 %v2833, %v2945
        %v2947 = vpop.f32.mrb[0].mxu0
        %v2948 = vadd.f32 %v2835, %v2947
        %2949 = vmatprep.mubr.bf16.mxu0 %v1070
        %2950 = vmatmul.mubr.bf16.gmra.mrb[0].mxu0 %v1069
        %v2951 = vpop.f32.mrb[0].mxu0
        %v2952 = vadd.f32 %v2839, %v2951
        %v2953 = vpop.f32.mrb[0].mxu0
        %v2954 = vadd.f32 %v2841, %v2953
        %v2955 = vpop.f32.mrb[0].mxu0
        %v2956 = vadd.f32 %v2843, %v2955
        %v2957 = vpop.f32.mrb[0].mxu0
        %v2958 = vadd.f32 %v2845, %v2957
        %2959 = vmatprep.mubr.bf16.mxu0 %v1078
        %2960 = vmatmul.mubr.bf16.gmra.mrb[0].mxu0 %v1077
        %v2961 = vpop.f32.mrb[0].mxu0
        %v2962 = vadd.f32 %v2849, %v2961
        %v2963 = vpop.f32.mrb[0].mxu0
        %v2964 = vadd.f32 %v2851, %v2963
        %v2965 = vpop.f32.mrb[0].mxu0
        %v2966 = vadd.f32 %v2853, %v2965
        %v2967 = vpop.f32.mrb[0].mxu0
        %v2968 = vadd.f32 %v2855, %v2967
        %2969 = vmatprep.mubr.bf16.mxu0 %v1086
        %2970 = vmatmul.mubr.bf16.gmra.mrb[0].mxu0 %v1085
        %v2971 = vpop.f32.mrb[0].mxu0
        %v2972 = vadd.f32 %v2859, %v2971
        %v2973 = vpop.f32.mrb[0].mxu0
        %v2974 = vadd.f32 %v2861, %v2973
        %v2975 = vpop.f32.mrb[0].mxu0
        %v2976 = vadd.f32 %v2863, %v2975
        %v2977 = vpop.f32.mrb[0].mxu0
        %v2978 = vadd.f32 %v2865, %v2977
        %2979 = vmatprep.mubr.bf16.mxu0 %v1094
        %2980 = vmatmul.mubr.bf16.gmra.mrb[0].mxu0 %v1093
        %v2981 = vpop.f32.mrb[0].mxu0
        %v2982 = vadd.f32 %v2869, %v2981
        %v2983 = vpop.f32.mrb[0].mxu0
        %v2984 = vadd.f32 %v2871, %v2983
        %v2985 = vpop.f32.mrb[0].mxu0
        %v2986 = vadd.f32 %v2873, %v2985
        %v2987 = vpop.f32.mrb[0].mxu0
        %v2988 = vadd.f32 %v2875, %v2987
        %2989 = vmatprep.mubr.bf16.mxu0 %v1102
        %2990 = vmatmul.mubr.bf16.gmra.mrb[0].mxu0 %v1101
        %v2991 = vpop.f32.mrb[0].mxu0
        %v2992 = vadd.f32 %v2879, %v2991
        %v2993 = vpop.f32.mrb[0].mxu0
        %v2994 = vadd.f32 %v2881, %v2993
        %v2995 = vpop.f32.mrb[0].mxu0
        %v2996 = vadd.f32 %v2883, %v2995
        %v2997 = vpop.f32.mrb[0].mxu0
        %v2998 = vadd.f32 %v2885, %v2997
        %2999 = vmatprep.mubr.bf16.mxu0 %v1110
        %3000 = vmatmul.mubr.bf16.gmra.mrb[0].mxu0 %v1109
        %v3001 = vpop.f32.mrb[0].mxu0
        %v3002 = vadd.f32 %v2889, %v3001
        %v3003 = vpop.f32.mrb[0].mxu0
        %v3004 = vadd.f32 %v2891, %v3003
        %v3005 = vpop.f32.mrb[0].mxu0
        %v3006 = vadd.f32 %v2893, %v3005
        %v3007 = vpop.f32.mrb[0].mxu0
        %v3008 = vadd.f32 %v2895, %v3007
        %3009 = vdwg.mxu0
        %3010 = vmatprep.subr.bf16.mxu0 %v2352
        %3011 = vmatpush1.bf16.msra.mxu0 %v2351
        %3012 = vmatprep.subr.bf16.mxu0 %v2356
        %3013 = vmatpush1.bf16.msra.mxu0 %v2355
        %3014 = vmatprep.subr.bf16.mxu0 %v2360
        %3015 = vmatpush1.bf16.msra.mxu0 %v2359
        %3016 = vmatprep.subr.bf16.mxu0 %v2364
        %3017 = vmatpush1.bf16.msra.mxu0 %v2363
        %3018 = vmatprep.subr.bf16.mxu0 %v2368
        %3019 = vmatpush1.bf16.msra.mxu0 %v2367
        %3020 = vmatprep.subr.bf16.mxu0 %v2372
        %3021 = vmatpush1.bf16.msra.mxu0 %v2371
        %3022 = vmatprep.subr.bf16.mxu0 %v2376
        %3023 = vmatpush1.bf16.msra.mxu0 %v2375
        %3024 = vmatprep.subr.bf16.mxu0 %v2380
        %3025 = vmatpush1.bf16.msra.mxu0 %v2379
        %3026 = vmatprep.subr.bf16.mxu0 %v2384
        %3027 = vmatpush1.bf16.msra.mxu0 %v2383
        %3028 = vmatprep.subr.bf16.mxu0 %v2388
        %3029 = vmatpush1.bf16.msra.mxu0 %v2387
        %3030 = vmatprep.subr.bf16.mxu0 %v2392
        %3031 = vmatpush1.bf16.msra.mxu0 %v2391
        %3032 = vmatprep.subr.bf16.mxu0 %v2396
        %3033 = vmatpush1.bf16.msra.mxu0 %v2395
        %3034 = vmatprep.subr.bf16.mxu0 %v2400
        %3035 = vmatpush1.bf16.msra.mxu0 %v2399
        %3036 = vmatprep.subr.bf16.mxu0 %v2404
        %3037 = vmatpush1.bf16.msra.mxu0 %v2403
        %3038 = vmatprep.subr.bf16.mxu0 %v2408
        %3039 = vmatpush1.bf16.msra.mxu0 %v2407
        %3040 = vmatprep.subr.bf16.mxu0 %v2412
        %3041 = vmatpush1.bf16.msra.mxu0 %v2411
        %3042 = vmatprep.mubr.bf16.mxu0 %v1056
        %3043 = vmatmul.mubr.bf16.gmra.mrb[0].mxu0 %v1055
        %v3044 = vpop.f32.mrb[0].mxu0
        %v3045 = vadd.f32 %v2932, %v3044
        %v3046 = vpop.f32.mrb[0].mxu0
        %v3047 = vadd.f32 %v2934, %v3046
        %v3048 = vpop.f32.mrb[0].mxu0
        %v3049 = vadd.f32 %v2936, %v3048
        %v3050 = vpop.f32.mrb[0].mxu0
        %v3051 = vadd.f32 %v2938, %v3050
        %3052 = vmatprep.mubr.bf16.mxu0 %v1064
        %3053 = vmatmul.mubr.bf16.gmra.mrb[0].mxu0 %v1063
        %v3054 = vpop.f32.mrb[0].mxu0
        %v3055 = vadd.f32 %v2942, %v3054
        %v3056 = vpop.f32.mrb[0].mxu0
        %v3057 = vadd.f32 %v2944, %v3056
        %v3058 = vpop.f32.mrb[0].mxu0
        %v3059 = vadd.f32 %v2946, %v3058
        %v3060 = vpop.f32.mrb[0].mxu0
        %v3061 = vadd.f32 %v2948, %v3060
        %3062 = vmatprep.mubr.bf16.mxu0 %v1072
        %3063 = vmatmul.mubr.bf16.gmra.mrb[0].mxu0 %v1071
        %v3064 = vpop.f32.mrb[0].mxu0
        %v3065 = vadd.f32 %v2952, %v3064
        %v3066 = vpop.f32.mrb[0].mxu0
        %v3067 = vadd.f32 %v2954, %v3066
        %v3068 = vpop.f32.mrb[0].mxu0
        %v3069 = vadd.f32 %v2956, %v3068
        %v3070 = vpop.f32.mrb[0].mxu0
        %v3071 = vadd.f32 %v2958, %v3070
        %3072 = vmatprep.mubr.bf16.mxu0 %v1080
        %3073 = vmatmul.mubr.bf16.gmra.mrb[0].mxu0 %v1079
        %v3074 = vpop.f32.mrb[0].mxu0
        %v3075 = vadd.f32 %v2962, %v3074
        %v3076 = vpop.f32.mrb[0].mxu0
        %v3077 = vadd.f32 %v2964, %v3076
        %v3078 = vpop.f32.mrb[0].mxu0
        %v3079 = vadd.f32 %v2966, %v3078
        %v3080 = vpop.f32.mrb[0].mxu0
        %v3081 = vadd.f32 %v2968, %v3080
        %3082 = vmatprep.mubr.bf16.mxu0 %v1088
        %3083 = vmatmul.mubr.bf16.gmra.mrb[0].mxu0 %v1087
        %v3084 = vpop.f32.mrb[0].mxu0
        %v3085 = vadd.f32 %v2972, %v3084
        %v3086 = vpop.f32.mrb[0].mxu0
        %v3087 = vadd.f32 %v2974, %v3086
        %v3088 = vpop.f32.mrb[0].mxu0
        %v3089 = vadd.f32 %v2976, %v3088
        %v3090 = vpop.f32.mrb[0].mxu0
        %v3091 = vadd.f32 %v2978, %v3090
        %3092 = vmatprep.mubr.bf16.mxu0 %v1096
        %3093 = vmatmul.mubr.bf16.gmra.mrb[0].mxu0 %v1095
        %v3094 = vpop.f32.mrb[0].mxu0
        %v3095 = vadd.f32 %v2982, %v3094
        %v3096 = vpop.f32.mrb[0].mxu0
        %v3097 = vadd.f32 %v2984, %v3096
        %v3098 = vpop.f32.mrb[0].mxu0
        %v3099 = vadd.f32 %v2986, %v3098
        %v3100 = vpop.f32.mrb[0].mxu0
        %v3101 = vadd.f32 %v2988, %v3100
        %3102 = vmatprep.mubr.bf16.mxu0 %v1104
        %3103 = vmatmul.mubr.bf16.gmra.mrb[0].mxu0 %v1103
        %v3104 = vpop.f32.mrb[0].mxu0
        %v3105 = vadd.f32 %v2992, %v3104
        %v3106 = vpop.f32.mrb[0].mxu0
        %v3107 = vadd.f32 %v2994, %v3106
        %v3108 = vpop.f32.mrb[0].mxu0
        %v3109 = vadd.f32 %v2996, %v3108
        %v3110 = vpop.f32.mrb[0].mxu0
        %v3111 = vadd.f32 %v2998, %v3110
        %3112 = vmatprep.mubr.bf16.mxu0 %v1112
        %3113 = vmatmul.mubr.bf16.gmra.mrb[0].mxu0 %v1111
        %v3114 = vpop.f32.mrb[0].mxu0
        %v3115 = vadd.f32 %v3002, %v3114
        %v3116 = vpop.f32.mrb[0].mxu0
        %v3117 = vadd.f32 %v3004, %v3116
        %v3118 = vpop.f32.mrb[0].mxu0
        %v3119 = vadd.f32 %v3006, %v3118
        %v3120 = vpop.f32.mrb[0].mxu0
        %v3121 = vadd.f32 %v3008, %v3120
        %3122 = vdwg.mxu0
        %3123 = vmatprep.subr.bf16.mxu0 %v2162
        %3124 = vmatpush1.bf16.msra.mxu0 %v2161
        %3125 = vmatprep.subr.bf16.mxu0 %v2166
        %3126 = vmatpush1.bf16.msra.mxu0 %v2165
        %3127 = vmatprep.subr.bf16.mxu0 %v2170
        %3128 = vmatpush1.bf16.msra.mxu0 %v2169
        %3129 = vmatprep.subr.bf16.mxu0 %v2174
        %3130 = vmatpush1.bf16.msra.mxu0 %v2173
        %3131 = vmatprep.subr.bf16.mxu0 %v2178
        %3132 = vmatpush1.bf16.msra.mxu0 %v2177
        %3133 = vmatprep.subr.bf16.mxu0 %v2182
        %3134 = vmatpush1.bf16.msra.mxu0 %v2181
        %3135 = vmatprep.subr.bf16.mxu0 %v2186
        %3136 = vmatpush1.bf16.msra.mxu0 %v2185
        %3137 = vmatprep.subr.bf16.mxu0 %v2190
        %3138 = vmatpush1.bf16.msra.mxu0 %v2189
        %3139 = vmatprep.subr.bf16.mxu0 %v2194
        %3140 = vmatpush1.bf16.msra.mxu0 %v2193
        %3141 = vmatprep.subr.bf16.mxu0 %v2198
        %3142 = vmatpush1.bf16.msra.mxu0 %v2197
        %3143 = vmatprep.subr.bf16.mxu0 %v2202
        %3144 = vmatpush1.bf16.msra.mxu0 %v2201
        %3145 = vmatprep.subr.bf16.mxu0 %v2206
        %3146 = vmatpush1.bf16.msra.mxu0 %v2205
        %3147 = vmatprep.subr.bf16.mxu0 %v2210
        %3148 = vmatpush1.bf16.msra.mxu0 %v2209
        %3149 = vmatprep.subr.bf16.mxu0 %v2214
        %3150 = vmatpush1.bf16.msra.mxu0 %v2213
        %3151 = vmatprep.subr.bf16.mxu0 %v2218
        %3152 = vmatpush1.bf16.msra.mxu0 %v2217
        %3153 = vmatprep.subr.bf16.mxu0 %v2222
        %3154 = vmatpush1.bf16.msra.mxu0 %v2221
        %3155 = vmatprep.mubr.bf16.mxu0 %v1050
        %3156 = vmatmul.mubr.bf16.gmra.mrb[0].mxu0 %v1049
        %v3157 = vpop.f32.mrb[0].mxu0
        %v3158 = vadd.f32 %v1382, %v3157
        %v3159 = vpop.f32.mrb[0].mxu0
        %v3160 = vadd.f32 %v1386, %v3159
        %v3161 = vpop.f32.mrb[0].mxu0
        %v3162 = vadd.f32 %v1382, %v3161
        %v3163 = vpop.f32.mrb[0].mxu0
        %v3164 = vadd.f32 %v1386, %v3163
        %3165 = vmatprep.mubr.bf16.mxu0 %v1058
        %3166 = vmatmul.mubr.bf16.gmra.mrb[0].mxu0 %v1057
        %v3167 = vpop.f32.mrb[0].mxu0
        %v3168 = vadd.f32 %v1382, %v3167
        %v3169 = vpop.f32.mrb[0].mxu0
        %v3170 = vadd.f32 %v1386, %v3169
        %v3171 = vpop.f32.mrb[0].mxu0
        %v3172 = vadd.f32 %v1382, %v3171
        %v3173 = vpop.f32.mrb[0].mxu0
        %v3174 = vadd.f32 %v1386, %v3173
        %3175 = vmatprep.mubr.bf16.mxu0 %v1066
        %3176 = vmatmul.mubr.bf16.gmra.mrb[0].mxu0 %v1065
        %v3177 = vpop.f32.mrb[0].mxu0
        %v3178 = vadd.f32 %v1382, %v3177
        %v3179 = vpop.f32.mrb[0].mxu0
        %v3180 = vadd.f32 %v1386, %v3179
        %v3181 = vpop.f32.mrb[0].mxu0
        %v3182 = vadd.f32 %v1382, %v3181
        %v3183 = vpop.f32.mrb[0].mxu0
        %v3184 = vadd.f32 %v1386, %v3183
        %3185 = vmatprep.mubr.bf16.mxu0 %v1074
        %3186 = vmatmul.mubr.bf16.gmra.mrb[0].mxu0 %v1073
        %v3187 = vpop.f32.mrb[0].mxu0
        %v3188 = vadd.f32 %v1382, %v3187
        %v3189 = vpop.f32.mrb[0].mxu0
        %v3190 = vadd.f32 %v1386, %v3189
        %v3191 = vpop.f32.mrb[0].mxu0
        %v3192 = vadd.f32 %v1382, %v3191
        %v3193 = vpop.f32.mrb[0].mxu0
        %v3194 = vadd.f32 %v1386, %v3193
        %3195 = vmatprep.mubr.bf16.mxu0 %v1082
        %3196 = vmatmul.mubr.bf16.gmra.mrb[0].mxu0 %v1081
        %v3197 = vpop.f32.mrb[0].mxu0
        %v3198 = vadd.f32 %v1382, %v3197
        %v3199 = vpop.f32.mrb[0].mxu0
        %v3200 = vadd.f32 %v1386, %v3199
        %v3201 = vpop.f32.mrb[0].mxu0
        %v3202 = vadd.f32 %v1382, %v3201
        %v3203 = vpop.f32.mrb[0].mxu0
        %v3204 = vadd.f32 %v1386, %v3203
        %3205 = vmatprep.mubr.bf16.mxu0 %v1090
        %3206 = vmatmul.mubr.bf16.gmra.mrb[0].mxu0 %v1089
        %v3207 = vpop.f32.mrb[0].mxu0
        %v3208 = vadd.f32 %v1382, %v3207
        %v3209 = vpop.f32.mrb[0].mxu0
        %v3210 = vadd.f32 %v1386, %v3209
        %v3211 = vpop.f32.mrb[0].mxu0
        %v3212 = vadd.f32 %v1382, %v3211
        %v3213 = vpop.f32.mrb[0].mxu0
        %v3214 = vadd.f32 %v1386, %v3213
        %3215 = vmatprep.mubr.bf16.mxu0 %v1098
        %3216 = vmatmul.mubr.bf16.gmra.mrb[0].mxu0 %v1097
        %v3217 = vpop.f32.mrb[0].mxu0
        %v3218 = vadd.f32 %v1382, %v3217
        %v3219 = vpop.f32.mrb[0].mxu0
        %v3220 = vadd.f32 %v1386, %v3219
        %v3221 = vpop.f32.mrb[0].mxu0
        %v3222 = vadd.f32 %v1382, %v3221
        %v3223 = vpop.f32.mrb[0].mxu0
        %v3224 = vadd.f32 %v1386, %v3223
        %3225 = vmatprep.mubr.bf16.mxu0 %v1106
        %3226 = vmatmul.mubr.bf16.gmra.mrb[0].mxu0 %v1105
        %v3227 = vpop.f32.mrb[0].mxu0
        %v3228 = vadd.f32 %v1382, %v3227
        %v3229 = vpop.f32.mrb[0].mxu0
        %v3230 = vadd.f32 %v1386, %v3229
        %v3231 = vpop.f32.mrb[0].mxu0
        %v3232 = vadd.f32 %v1382, %v3231
        %v3233 = vpop.f32.mrb[0].mxu0
        %v3234 = vadd.f32 %v1386, %v3233
        %3235 = vdwg.mxu0
        %3236 = vmatprep.subr.bf16.mxu0 %v2226
        %3237 = vmatpush1.bf16.msra.mxu0 %v2225
        %3238 = vmatprep.subr.bf16.mxu0 %v2230
        %3239 = vmatpush1.bf16.msra.mxu0 %v2229
        %3240 = vmatprep.subr.bf16.mxu0 %v2234
        %3241 = vmatpush1.bf16.msra.mxu0 %v2233
        %3242 = vmatprep.subr.bf16.mxu0 %v2238
        %3243 = vmatpush1.bf16.msra.mxu0 %v2237
        %3244 = vmatprep.subr.bf16.mxu0 %v2242
        %3245 = vmatpush1.bf16.msra.mxu0 %v2241
        %3246 = vmatprep.subr.bf16.mxu0 %v2246
        %3247 = vmatpush1.bf16.msra.mxu0 %v2245
        %3248 = vmatprep.subr.bf16.mxu0 %v2250
        %3249 = vmatpush1.bf16.msra.mxu0 %v2249
        %3250 = vmatprep.subr.bf16.mxu0 %v2254
        %3251 = vmatpush1.bf16.msra.mxu0 %v2253
        %3252 = vmatprep.subr.bf16.mxu0 %v2258
        %3253 = vmatpush1.bf16.msra.mxu0 %v2257
        %3254 = vmatprep.subr.bf16.mxu0 %v2262
        %3255 = vmatpush1.bf16.msra.mxu0 %v2261
        %3256 = vmatprep.subr.bf16.mxu0 %v2266
        %3257 = vmatpush1.bf16.msra.mxu0 %v2265
        %3258 = vmatprep.subr.bf16.mxu0 %v2270
        %3259 = vmatpush1.bf16.msra.mxu0 %v2269
        %3260 = vmatprep.subr.bf16.mxu0 %v2274
        %3261 = vmatpush1.bf16.msra.mxu0 %v2273
        %3262 = vmatprep.subr.bf16.mxu0 %v2278
        %3263 = vmatpush1.bf16.msra.mxu0 %v2277
        %3264 = vmatprep.subr.bf16.mxu0 %v2282
        %3265 = vmatpush1.bf16.msra.mxu0 %v2281
        %3266 = vmatprep.subr.bf16.mxu0 %v2286
        %3267 = vmatpush1.bf16.msra.mxu0 %v2285
        %3268 = vmatprep.mubr.bf16.mxu0 %v1052
        %3269 = vmatmul.mubr.bf16.gmra.mrb[0].mxu0 %v1051
        %v3270 = vpop.f32.mrb[0].mxu0
        %v3271 = vadd.f32 %v3158, %v3270
        %v3272 = vpop.f32.mrb[0].mxu0
        %v3273 = vadd.f32 %v3160, %v3272
        %v3274 = vpop.f32.mrb[0].mxu0
        %v3275 = vadd.f32 %v3162, %v3274
        %v3276 = vpop.f32.mrb[0].mxu0
        %v3277 = vadd.f32 %v3164, %v3276
        %3278 = vmatprep.mubr.bf16.mxu0 %v1060
        %3279 = vmatmul.mubr.bf16.gmra.mrb[0].mxu0 %v1059
        %v3280 = vpop.f32.mrb[0].mxu0
        %v3281 = vadd.f32 %v3168, %v3280
        %v3282 = vpop.f32.mrb[0].mxu0
        %v3283 = vadd.f32 %v3170, %v3282
        %v3284 = vpop.f32.mrb[0].mxu0
        %v3285 = vadd.f32 %v3172, %v3284
        %v3286 = vpop.f32.mrb[0].mxu0
        %v3287 = vadd.f32 %v3174, %v3286
        %3288 = vmatprep.mubr.bf16.mxu0 %v1068
        %3289 = vmatmul.mubr.bf16.gmra.mrb[0].mxu0 %v1067
        %v3290 = vpop.f32.mrb[0].mxu0
        %v3291 = vadd.f32 %v3178, %v3290
        %v3292 = vpop.f32.mrb[0].mxu0
        %v3293 = vadd.f32 %v3180, %v3292
        %v3294 = vpop.f32.mrb[0].mxu0
        %v3295 = vadd.f32 %v3182, %v3294
        %v3296 = vpop.f32.mrb[0].mxu0
        %v3297 = vadd.f32 %v3184, %v3296
        %3298 = vmatprep.mubr.bf16.mxu0 %v1076
        %3299 = vmatmul.mubr.bf16.gmra.mrb[0].mxu0 %v1075
        %v3300 = vpop.f32.mrb[0].mxu0
        %v3301 = vadd.f32 %v3188, %v3300
        %v3302 = vpop.f32.mrb[0].mxu0
        %v3303 = vadd.f32 %v3190, %v3302
        %v3304 = vpop.f32.mrb[0].mxu0
        %v3305 = vadd.f32 %v3192, %v3304
        %v3306 = vpop.f32.mrb[0].mxu0
        %v3307 = vadd.f32 %v3194, %v3306
        %3308 = vmatprep.mubr.bf16.mxu0 %v1084
        %3309 = vmatmul.mubr.bf16.gmra.mrb[0].mxu0 %v1083
        %v3310 = vpop.f32.mrb[0].mxu0
        %v3311 = vadd.f32 %v3198, %v3310
        %v3312 = vpop.f32.mrb[0].mxu0
        %v3313 = vadd.f32 %v3200, %v3312
        %v3314 = vpop.f32.mrb[0].mxu0
        %v3315 = vadd.f32 %v3202, %v3314
        %v3316 = vpop.f32.mrb[0].mxu0
        %v3317 = vadd.f32 %v3204, %v3316
        %3318 = vmatprep.mubr.bf16.mxu0 %v1092
        %3319 = vmatmul.mubr.bf16.gmra.mrb[0].mxu0 %v1091
        %v3320 = vpop.f32.mrb[0].mxu0
        %v3321 = vadd.f32 %v3208, %v3320
        %v3322 = vpop.f32.mrb[0].mxu0
        %v3323 = vadd.f32 %v3210, %v3322
        %v3324 = vpop.f32.mrb[0].mxu0
        %v3325 = vadd.f32 %v3212, %v3324
        %v3326 = vpop.f32.mrb[0].mxu0
        %v3327 = vadd.f32 %v3214, %v3326
        %3328 = vmatprep.mubr.bf16.mxu0 %v1100
        %3329 = vmatmul.mubr.bf16.gmra.mrb[0].mxu0 %v1099
        %v3330 = vpop.f32.mrb[0].mxu0
        %v3331 = vadd.f32 %v3218, %v3330
        %v3332 = vpop.f32.mrb[0].mxu0
        %v3333 = vadd.f32 %v3220, %v3332
        %v3334 = vpop.f32.mrb[0].mxu0
        %v3335 = vadd.f32 %v3222, %v3334
        %v3336 = vpop.f32.mrb[0].mxu0
        %v3337 = vadd.f32 %v3224, %v3336
        %3338 = vmatprep.mubr.bf16.mxu0 %v1108
        %3339 = vmatmul.mubr.bf16.gmra.mrb[0].mxu0 %v1107
        %v3340 = vpop.f32.mrb[0].mxu0
        %v3341 = vadd.f32 %v3228, %v3340
        %v3342 = vpop.f32.mrb[0].mxu0
        %v3343 = vadd.f32 %v3230, %v3342
        %v3344 = vpop.f32.mrb[0].mxu0
        %v3345 = vadd.f32 %v3232, %v3344
        %v3346 = vpop.f32.mrb[0].mxu0
        %v3347 = vadd.f32 %v3234, %v3346
        %3348 = vdwg.mxu0
        %3349 = vmatprep.subr.bf16.mxu0 %v2290
        %3350 = vmatpush1.bf16.msra.mxu0 %v2289
        %3351 = vmatprep.subr.bf16.mxu0 %v2294
        %3352 = vmatpush1.bf16.msra.mxu0 %v2293
        %3353 = vmatprep.subr.bf16.mxu0 %v2298
        %3354 = vmatpush1.bf16.msra.mxu0 %v2297
        %3355 = vmatprep.subr.bf16.mxu0 %v2302
        %3356 = vmatpush1.bf16.msra.mxu0 %v2301
        %3357 = vmatprep.subr.bf16.mxu0 %v2306
        %3358 = vmatpush1.bf16.msra.mxu0 %v2305
        %3359 = vmatprep.subr.bf16.mxu0 %v2310
        %3360 = vmatpush1.bf16.msra.mxu0 %v2309
        %3361 = vmatprep.subr.bf16.mxu0 %v2314
        %3362 = vmatpush1.bf16.msra.mxu0 %v2313
        %3363 = vmatprep.subr.bf16.mxu0 %v2318
        %3364 = vmatpush1.bf16.msra.mxu0 %v2317
        %3365 = vmatprep.subr.bf16.mxu0 %v2322
        %3366 = vmatpush1.bf16.msra.mxu0 %v2321
        %3367 = vmatprep.subr.bf16.mxu0 %v2326
        %3368 = vmatpush1.bf16.msra.mxu0 %v2325
        %3369 = vmatprep.subr.bf16.mxu0 %v2330
        %3370 = vmatpush1.bf16.msra.mxu0 %v2329
        %3371 = vmatprep.subr.bf16.mxu0 %v2334
        %3372 = vmatpush1.bf16.msra.mxu0 %v2333
        %3373 = vmatprep.subr.bf16.mxu0 %v2338
        %3374 = vmatpush1.bf16.msra.mxu0 %v2337
        %3375 = vmatprep.subr.bf16.mxu0 %v2342
        %3376 = vmatpush1.bf16.msra.mxu0 %v2341
        %3377 = vmatprep.subr.bf16.mxu0 %v2346
        %3378 = vmatpush1.bf16.msra.mxu0 %v2345
        %3379 = vmatprep.subr.bf16.mxu0 %v2350
        %3380 = vmatpush1.bf16.msra.mxu0 %v2349
        %3381 = vmatprep.mubr.bf16.mxu0 %v1054
        %3382 = vmatmul.mubr.bf16.gmra.mrb[0].mxu0 %v1053
        %v3383 = vpop.f32.mrb[0].mxu0
        %v3384 = vadd.f32 %v3271, %v3383
        %v3385 = vpop.f32.mrb[0].mxu0
        %v3386 = vadd.f32 %v3273, %v3385
        %v3387 = vpop.f32.mrb[0].mxu0
        %v3388 = vadd.f32 %v3275, %v3387
        %v3389 = vpop.f32.mrb[0].mxu0
        %v3390 = vadd.f32 %v3277, %v3389
        %3391 = vmatprep.mubr.bf16.mxu0 %v1062
        %3392 = vmatmul.mubr.bf16.gmra.mrb[0].mxu0 %v1061
        %v3393 = vpop.f32.mrb[0].mxu0
        %v3394 = vadd.f32 %v3281, %v3393
        %v3395 = vpop.f32.mrb[0].mxu0
        %v3396 = vadd.f32 %v3283, %v3395
        %v3397 = vpop.f32.mrb[0].mxu0
        %v3398 = vadd.f32 %v3285, %v3397
        %v3399 = vpop.f32.mrb[0].mxu0
        %v3400 = vadd.f32 %v3287, %v3399
        %3401 = vmatprep.mubr.bf16.mxu0 %v1070
        %3402 = vmatmul.mubr.bf16.gmra.mrb[0].mxu0 %v1069
        %v3403 = vpop.f32.mrb[0].mxu0
        %v3404 = vadd.f32 %v3291, %v3403
        %v3405 = vpop.f32.mrb[0].mxu0
        %v3406 = vadd.f32 %v3293, %v3405
        %v3407 = vpop.f32.mrb[0].mxu0
        %v3408 = vadd.f32 %v3295, %v3407
        %v3409 = vpop.f32.mrb[0].mxu0
        %v3410 = vadd.f32 %v3297, %v3409
        %3411 = vmatprep.mubr.bf16.mxu0 %v1078
        %3412 = vmatmul.mubr.bf16.gmra.mrb[0].mxu0 %v1077
        %v3413 = vpop.f32.mrb[0].mxu0
        %v3414 = vadd.f32 %v3301, %v3413
        %v3415 = vpop.f32.mrb[0].mxu0
        %v3416 = vadd.f32 %v3303, %v3415
        %v3417 = vpop.f32.mrb[0].mxu0
        %v3418 = vadd.f32 %v3305, %v3417
        %v3419 = vpop.f32.mrb[0].mxu0
        %v3420 = vadd.f32 %v3307, %v3419
        %3421 = vmatprep.mubr.bf16.mxu0 %v1086
        %3422 = vmatmul.mubr.bf16.gmra.mrb[0].mxu0 %v1085
        %v3423 = vpop.f32.mrb[0].mxu0
        %v3424 = vadd.f32 %v3311, %v3423
        %v3425 = vpop.f32.mrb[0].mxu0
        %v3426 = vadd.f32 %v3313, %v3425
        %v3427 = vpop.f32.mrb[0].mxu0
        %v3428 = vadd.f32 %v3315, %v3427
        %v3429 = vpop.f32.mrb[0].mxu0
        %v3430 = vadd.f32 %v3317, %v3429
        %3431 = vmatprep.mubr.bf16.mxu0 %v1094
        %3432 = vmatmul.mubr.bf16.gmra.mrb[0].mxu0 %v1093
        %v3433 = vpop.f32.mrb[0].mxu0
        %v3434 = vadd.f32 %v3321, %v3433
        %v3435 = vpop.f32.mrb[0].mxu0
        %v3436 = vadd.f32 %v3323, %v3435
        %v3437 = vpop.f32.mrb[0].mxu0
        %v3438 = vadd.f32 %v3325, %v3437
        %v3439 = vpop.f32.mrb[0].mxu0
        %v3440 = vadd.f32 %v3327, %v3439
        %3441 = vmatprep.mubr.bf16.mxu0 %v1102
        %3442 = vmatmul.mubr.bf16.gmra.mrb[0].mxu0 %v1101
        %v3443 = vpop.f32.mrb[0].mxu0
        %v3444 = vadd.f32 %v3331, %v3443
        %v3445 = vpop.f32.mrb[0].mxu0
        %v3446 = vadd.f32 %v3333, %v3445
        %v3447 = vpop.f32.mrb[0].mxu0
        %v3448 = vadd.f32 %v3335, %v3447
        %v3449 = vpop.f32.mrb[0].mxu0
        %v3450 = vadd.f32 %v3337, %v3449
        %3451 = vmatprep.mubr.bf16.mxu0 %v1110
        %3452 = vmatmul.mubr.bf16.gmra.mrb[0].mxu0 %v1109
        %v3453 = vpop.f32.mrb[0].mxu0
        %v3454 = vadd.f32 %v3341, %v3453
        %v3455 = vpop.f32.mrb[0].mxu0
        %v3456 = vadd.f32 %v3343, %v3455
        %v3457 = vpop.f32.mrb[0].mxu0
        %v3458 = vadd.f32 %v3345, %v3457
        %v3459 = vpop.f32.mrb[0].mxu0
        %v3460 = vadd.f32 %v3347, %v3459
        %3461 = vdwg.mxu0
        %3462 = vmatprep.subr.bf16.mxu0 %v2354
        %3463 = vmatpush1.bf16.msra.mxu0 %v2353
        %3464 = vmatprep.subr.bf16.mxu0 %v2358
        %3465 = vmatpush1.bf16.msra.mxu0 %v2357
        %3466 = vmatprep.subr.bf16.mxu0 %v2362
        %3467 = vmatpush1.bf16.msra.mxu0 %v2361
        %3468 = vmatprep.subr.bf16.mxu0 %v2366
        %3469 = vmatpush1.bf16.msra.mxu0 %v2365
        %3470 = vmatprep.subr.bf16.mxu0 %v2370
        %3471 = vmatpush1.bf16.msra.mxu0 %v2369
        %3472 = vmatprep.subr.bf16.mxu0 %v2374
        %3473 = vmatpush1.bf16.msra.mxu0 %v2373
        %3474 = vmatprep.subr.bf16.mxu0 %v2378
        %3475 = vmatpush1.bf16.msra.mxu0 %v2377
        %3476 = vmatprep.subr.bf16.mxu0 %v2382
        %3477 = vmatpush1.bf16.msra.mxu0 %v2381
        %3478 = vmatprep.subr.bf16.mxu0 %v2386
        %3479 = vmatpush1.bf16.msra.mxu0 %v2385
        %3480 = vmatprep.subr.bf16.mxu0 %v2390
        %3481 = vmatpush1.bf16.msra.mxu0 %v2389
        %3482 = vmatprep.subr.bf16.mxu0 %v2394
        %3483 = vmatpush1.bf16.msra.mxu0 %v2393
        %3484 = vmatprep.subr.bf16.mxu0 %v2398
        %3485 = vmatpush1.bf16.msra.mxu0 %v2397
        %3486 = vmatprep.subr.bf16.mxu0 %v2402
        %3487 = vmatpush1.bf16.msra.mxu0 %v2401
        %3488 = vmatprep.subr.bf16.mxu0 %v2406
        %3489 = vmatpush1.bf16.msra.mxu0 %v2405
        %3490 = vmatprep.subr.bf16.mxu0 %v2410
        %3491 = vmatpush1.bf16.msra.mxu0 %v2409
        %3492 = vmatprep.subr.bf16.mxu0 %v2414
        %3493 = vmatpush1.bf16.msra.mxu0 %v2413
        %3494 = vmatprep.mubr.bf16.mxu0 %v1056
        %3495 = vmatmul.mubr.bf16.gmra.mrb[0].mxu0 %v1055
        %v3496 = vpop.f32.mrb[0].mxu0
        %v3497 = vadd.f32 %v3384, %v3496
        %v3498 = vpop.f32.mrb[0].mxu0
        %v3499 = vadd.f32 %v3386, %v3498
        %v3500 = vpop.f32.mrb[0].mxu0
        %v3501 = vadd.f32 %v3388, %v3500
        %v3502 = vpop.f32.mrb[0].mxu0
        %v3503 = vadd.f32 %v3390, %v3502
        %3504 = vmatprep.mubr.bf16.mxu0 %v1064
        %3505 = vmatmul.mubr.bf16.gmra.mrb[0].mxu0 %v1063
        %v3506 = vpop.f32.mrb[0].mxu0
        %v3507 = vadd.f32 %v3394, %v3506
        %v3508 = vpop.f32.mrb[0].mxu0
        %v3509 = vadd.f32 %v3396, %v3508
        %v3510 = vpop.f32.mrb[0].mxu0
        %v3511 = vadd.f32 %v3398, %v3510
        %v3512 = vpop.f32.mrb[0].mxu0
        %v3513 = vadd.f32 %v3400, %v3512
        %3514 = vmatprep.mubr.bf16.mxu0 %v1072
        %3515 = vmatmul.mubr.bf16.gmra.mrb[0].mxu0 %v1071
        %v3516 = vpop.f32.mrb[0].mxu0
        %v3517 = vadd.f32 %v3404, %v3516
        %v3518 = vpop.f32.mrb[0].mxu0
        %v3519 = vadd.f32 %v3406, %v3518
        %v3520 = vpop.f32.mrb[0].mxu0
        %v3521 = vadd.f32 %v3408, %v3520
        %v3522 = vpop.f32.mrb[0].mxu0
        %v3523 = vadd.f32 %v3410, %v3522
        %3524 = vmatprep.mubr.bf16.mxu0 %v1080
        %3525 = vmatmul.mubr.bf16.gmra.mrb[0].mxu0 %v1079
        %v3526 = vpop.f32.mrb[0].mxu0
        %v3527 = vadd.f32 %v3414, %v3526
        %v3528 = vpop.f32.mrb[0].mxu0
        %v3529 = vadd.f32 %v3416, %v3528
        %v3530 = vpop.f32.mrb[0].mxu0
        %v3531 = vadd.f32 %v3418, %v3530
        %v3532 = vpop.f32.mrb[0].mxu0
        %v3533 = vadd.f32 %v3420, %v3532
        %3534 = vmatprep.mubr.bf16.mxu0 %v1088
        %3535 = vmatmul.mubr.bf16.gmra.mrb[0].mxu0 %v1087
        %v3536 = vpop.f32.mrb[0].mxu0
        %v3537 = vadd.f32 %v3424, %v3536
        %v3538 = vpop.f32.mrb[0].mxu0
        %v3539 = vadd.f32 %v3426, %v3538
        %v3540 = vpop.f32.mrb[0].mxu0
        %v3541 = vadd.f32 %v3428, %v3540
        %v3542 = vpop.f32.mrb[0].mxu0
        %v3543 = vadd.f32 %v3430, %v3542
        %3544 = vmatprep.mubr.bf16.mxu0 %v1096
        %3545 = vmatmul.mubr.bf16.gmra.mrb[0].mxu0 %v1095
        %v3546 = vpop.f32.mrb[0].mxu0
        %v3547 = vadd.f32 %v3434, %v3546
        %v3548 = vpop.f32.mrb[0].mxu0
        %v3549 = vadd.f32 %v3436, %v3548
        %v3550 = vpop.f32.mrb[0].mxu0
        %v3551 = vadd.f32 %v3438, %v3550
        %v3552 = vpop.f32.mrb[0].mxu0
        %v3553 = vadd.f32 %v3440, %v3552
        %3554 = vmatprep.mubr.bf16.mxu0 %v1104
        %3555 = vmatmul.mubr.bf16.gmra.mrb[0].mxu0 %v1103
        %v3556 = vpop.f32.mrb[0].mxu0
        %v3557 = vadd.f32 %v3444, %v3556
        %v3558 = vpop.f32.mrb[0].mxu0
        %v3559 = vadd.f32 %v3446, %v3558
        %v3560 = vpop.f32.mrb[0].mxu0
        %v3561 = vadd.f32 %v3448, %v3560
        %v3562 = vpop.f32.mrb[0].mxu0
        %v3563 = vadd.f32 %v3450, %v3562
        %3564 = vmatprep.mubr.bf16.mxu0 %v1112
        %3565 = vmatmul.mubr.bf16.gmra.mrb[0].mxu0 %v1111
        %v3566 = vpop.f32.mrb[0].mxu0
        %v3567 = vadd.f32 %v3454, %v3566
        %v3568 = vpop.f32.mrb[0].mxu0
        %v3569 = vadd.f32 %v3456, %v3568
        %v3570 = vpop.f32.mrb[0].mxu0
        %v3571 = vadd.f32 %v3458, %v3570
        %v3572 = vpop.f32.mrb[0].mxu0
        %v3573 = vadd.f32 %v3460, %v3572
        %3574 = vdwg.mxu0
        %v3575 = vmax.f32 %v3045, 0.0
        %v3576 = vmax.f32 %v3047, 0.0
        %v3577 = vmax.f32 %v3497, 0.0
        %v3578 = vmax.f32 %v3499, 0.0
        %v3579 = vmax.f32 %v3049, 0.0
        %v3580 = vmax.f32 %v3051, 0.0
        %v3581 = vmax.f32 %v3501, 0.0
        %v3582 = vmax.f32 %v3503, 0.0
        %v3583 = vmax.f32 %v3055, 0.0
        %v3584 = vmax.f32 %v3057, 0.0
        %v3585 = vmax.f32 %v3507, 0.0
        %v3586 = vmax.f32 %v3509, 0.0
        %v3587 = vmax.f32 %v3059, 0.0
        %v3588 = vmax.f32 %v3061, 0.0
        %v3589 = vmax.f32 %v3511, 0.0
        %v3590 = vmax.f32 %v3513, 0.0
        %v3591 = vmax.f32 %v3065, 0.0
        %v3592 = vmax.f32 %v3067, 0.0
        %v3593 = vmax.f32 %v3517, 0.0
        %v3594 = vmax.f32 %v3519, 0.0
        %v3595 = vmax.f32 %v3069, 0.0
        %v3596 = vmax.f32 %v3071, 0.0
        %v3597 = vmax.f32 %v3521, 0.0
        %v3598 = vmax.f32 %v3523, 0.0
        %v3599 = vmax.f32 %v3075, 0.0
        %v3600 = vmax.f32 %v3077, 0.0
        %v3601 = vmax.f32 %v3527, 0.0
        %v3602 = vmax.f32 %v3529, 0.0
        %v3603 = vmax.f32 %v3079, 0.0
        %v3604 = vmax.f32 %v3081, 0.0
        %v3605 = vmax.f32 %v3531, 0.0
        %v3606 = vmax.f32 %v3533, 0.0
        %v3607 = vmax.f32 %v3085, 0.0
        %v3608 = vmax.f32 %v3087, 0.0
        %v3609 = vmax.f32 %v3537, 0.0
        %v3610 = vmax.f32 %v3539, 0.0
        %v3611 = vmax.f32 %v3089, 0.0
        %v3612 = vmax.f32 %v3091, 0.0
        %v3613 = vmax.f32 %v3541, 0.0
        %v3614 = vmax.f32 %v3543, 0.0
        %v3615 = vmax.f32 %v3095, 0.0
        %v3616 = vmax.f32 %v3097, 0.0
        %v3617 = vmax.f32 %v3547, 0.0
        %v3618 = vmax.f32 %v3549, 0.0
        %v3619 = vmax.f32 %v3099, 0.0
        %v3620 = vmax.f32 %v3101, 0.0
        %v3621 = vmax.f32 %v3551, 0.0
        %v3622 = vmax.f32 %v3553, 0.0
        %v3623 = vmax.f32 %v3105, 0.0
        %v3624 = vmax.f32 %v3107, 0.0
        %v3625 = vmax.f32 %v3557, 0.0
        %v3626 = vmax.f32 %v3559, 0.0
        %v3627 = vmax.f32 %v3109, 0.0
        %v3628 = vmax.f32 %v3111, 0.0
        %v3629 = vmax.f32 %v3561, 0.0
        %v3630 = vmax.f32 %v3563, 0.0
        %v3631 = vmax.f32 %v3115, 0.0
        %v3632 = vmax.f32 %v3117, 0.0
        %v3633 = vmax.f32 %v3567, 0.0
        %v3634 = vmax.f32 %v3569, 0.0
        %v3635 = vmax.f32 %v3119, 0.0
        %v3636 = vmax.f32 %v3121, 0.0
        %v3637 = vmax.f32 %v3571, 0.0
        %v3638 = vmax.f32 %v3573, 0.0
        %v3639 = vpack.c.bf16 %v3579, %v3575
        %v3640 = vpack.c.bf16 %v3580, %v3576
        %v3641 = vpack.c.bf16 %v3587, %v3583
        %v3642 = vpack.c.bf16 %v3588, %v3584
        %v3643 = vpack.c.bf16 %v3595, %v3591
        %v3644 = vpack.c.bf16 %v3596, %v3592
        %v3645 = vpack.c.bf16 %v3603, %v3599
        %v3646 = vpack.c.bf16 %v3604, %v3600
        %v3647 = vpack.c.bf16 %v3611, %v3607
        %v3648 = vpack.c.bf16 %v3612, %v3608
        %v3649 = vpack.c.bf16 %v3619, %v3615
        %v3650 = vpack.c.bf16 %v3620, %v3616
        %v3651 = vpack.c.bf16 %v3627, %v3623
        %v3652 = vpack.c.bf16 %v3628, %v3624
        %v3653 = vpack.c.bf16 %v3635, %v3631
        %v3654 = vpack.c.bf16 %v3636, %v3632
        %v3655 = vpack.c.bf16 %v3581, %v3577
        %v3656 = vpack.c.bf16 %v3582, %v3578
        %v3657 = vpack.c.bf16 %v3589, %v3585
        %v3658 = vpack.c.bf16 %v3590, %v3586
        %v3659 = vpack.c.bf16 %v3597, %v3593
        %v3660 = vpack.c.bf16 %v3598, %v3594
        %v3661 = vpack.c.bf16 %v3605, %v3601
        %v3662 = vpack.c.bf16 %v3606, %v3602
        %v3663 = vpack.c.bf16 %v3613, %v3609
        %v3664 = vpack.c.bf16 %v3614, %v3610
        %v3665 = vpack.c.bf16 %v3621, %v3617
        %v3666 = vpack.c.bf16 %v3622, %v3618
        %v3667 = vpack.c.bf16 %v3629, %v3625
        %v3668 = vpack.c.bf16 %v3630, %v3626
        %v3669 = vpack.c.bf16 %v3637, %v3633
        %v3670 = vpack.c.bf16 %v3638, %v3634
        %v3671 = vld [vmem:[%s5] sm:$0xff]
        %v3672 = vld [vmem:[%s5 + $0x8] sm:$0xff]
        %v3673 = vld [vmem:[%s5 + $0x10] sm:$0xff]
        %v3674 = vld [vmem:[%s5 + $0x18] sm:$0xff]
        %v3675 = vld [vmem:[%s5 + $0x20] sm:$0xff]
        %v3676 = vld [vmem:[%s5 + $0x28] sm:$0xff]
        %v3677 = vld [vmem:[%s5 + $0x30] sm:$0xff]
        %v3678 = vld [vmem:[%s5 + $0x38] sm:$0xff]
        %v3679 = vld [vmem:[%s5 + $0x40] sm:$0xff]
        %v3680 = vld [vmem:[%s5 + $0x48] sm:$0xff]
        %v3681 = vld [vmem:[%s5 + $0x50] sm:$0xff]
        %v3682 = vld [vmem:[%s5 + $0x58] sm:$0xff]
        %v3683 = vld [vmem:[%s5 + $0x60] sm:$0xff]
        %v3684 = vld [vmem:[%s5 + $0x68] sm:$0xff]
        %v3685 = vld [vmem:[%s5 + $0x70] sm:$0xff]
        %v3686 = vld [vmem:[%s5 + $0x78] sm:$0xff]
        %v3687 = vld [vmem:[%s5 + $0x80] sm:$0xff]
        %v3688 = vld [vmem:[%s5 + $0x88] sm:$0xff]
        %v3689 = vld [vmem:[%s5 + $0x90] sm:$0xff]
        %v3690 = vld [vmem:[%s5 + $0x98] sm:$0xff]
        %v3691 = vld [vmem:[%s5 + $0xa0] sm:$0xff]
        %v3692 = vld [vmem:[%s5 + $0xa8] sm:$0xff]
        %v3693 = vld [vmem:[%s5 + $0xb0] sm:$0xff]
        %v3694 = vld [vmem:[%s5 + $0xb8] sm:$0xff]
        %v3695 = vld [vmem:[%s5 + $0xc0] sm:$0xff]
        %v3696 = vld [vmem:[%s5 + $0xc8] sm:$0xff]
        %v3697 = vld [vmem:[%s5 + $0xd0] sm:$0xff]
        %v3698 = vld [vmem:[%s5 + $0xd8] sm:$0xff]
        %v3699 = vld [vmem:[%s5 + $0xe0] sm:$0xff]
        %v3700 = vld [vmem:[%s5 + $0xe8] sm:$0xff]
        %v3701 = vld [vmem:[%s5 + $0xf0] sm:$0xff]
        %v3702 = vld [vmem:[%s5 + $0xf8] sm:$0xff]
        %v3703 = vld [vmem:[#allocation8] sm:$0x3]
        %v3705 = vlaneseq
        %v3706 = vshrl.u32 %v3705, 7
        %v3707 = vsub.s32 0, %v3706
        %v3708 = vrot.slane %v3703, %v3707
        %v3709 = vlaneseq
        %v3710 = vshrl.u32 %v3709, 7
        %v3711 = vsub.s32 1, %v3710
        %v3712 = vrot.slane %v3703, %v3711
        %v3747 = vunpack.c.l.b16 %v3671
        %v3748 = vunpack.c.h.b16 %v3671
        %v3749 = vunpack.c.l.b16 %v3672
        %v3750 = vunpack.c.h.b16 %v3672
        %v3751 = vunpack.c.l.b16 %v3673
        %v3752 = vunpack.c.h.b16 %v3673
        %v3753 = vunpack.c.l.b16 %v3674
        %v3754 = vunpack.c.h.b16 %v3674
        %v3755 = vunpack.c.l.b16 %v3675
        %v3756 = vunpack.c.h.b16 %v3675
        %v3757 = vunpack.c.l.b16 %v3676
        %v3758 = vunpack.c.h.b16 %v3676
        %v3759 = vunpack.c.l.b16 %v3677
        %v3760 = vunpack.c.h.b16 %v3677
        %v3761 = vunpack.c.l.b16 %v3678
        %v3762 = vunpack.c.h.b16 %v3678
        %v3763 = vunpack.c.l.b16 %v3679
        %v3764 = vunpack.c.h.b16 %v3679
        %v3765 = vunpack.c.l.b16 %v3680
        %v3766 = vunpack.c.h.b16 %v3680
        %v3767 = vunpack.c.l.b16 %v3681
        %v3768 = vunpack.c.h.b16 %v3681
        %v3769 = vunpack.c.l.b16 %v3682
        %v3770 = vunpack.c.h.b16 %v3682
        %v3771 = vunpack.c.l.b16 %v3683
        %v3772 = vunpack.c.h.b16 %v3683
        %v3773 = vunpack.c.l.b16 %v3684
        %v3774 = vunpack.c.h.b16 %v3684
        %v3775 = vunpack.c.l.b16 %v3685
        %v3776 = vunpack.c.h.b16 %v3685
        %v3777 = vunpack.c.l.b16 %v3686
        %v3778 = vunpack.c.h.b16 %v3686
        %v3779 = vunpack.c.l.b16 %v3687
        %v3780 = vunpack.c.h.b16 %v3687
        %v3781 = vunpack.c.l.b16 %v3688
        %v3782 = vunpack.c.h.b16 %v3688
        %v3783 = vunpack.c.l.b16 %v3689
        %v3784 = vunpack.c.h.b16 %v3689
        %v3785 = vunpack.c.l.b16 %v3690
        %v3786 = vunpack.c.h.b16 %v3690
        %v3787 = vunpack.c.l.b16 %v3691
        %v3788 = vunpack.c.h.b16 %v3691
        %v3789 = vunpack.c.l.b16 %v3692
        %v3790 = vunpack.c.h.b16 %v3692
        %v3791 = vunpack.c.l.b16 %v3693
        %v3792 = vunpack.c.h.b16 %v3693
        %v3793 = vunpack.c.l.b16 %v3694
        %v3794 = vunpack.c.h.b16 %v3694
        %v3795 = vunpack.c.l.b16 %v3695
        %v3796 = vunpack.c.h.b16 %v3695
        %v3797 = vunpack.c.l.b16 %v3696
        %v3798 = vunpack.c.h.b16 %v3696
        %v3799 = vunpack.c.l.b16 %v3697
        %v3800 = vunpack.c.h.b16 %v3697
        %v3801 = vunpack.c.l.b16 %v3698
        %v3802 = vunpack.c.h.b16 %v3698
        %v3803 = vunpack.c.l.b16 %v3699
        %v3804 = vunpack.c.h.b16 %v3699
        %v3805 = vunpack.c.l.b16 %v3700
        %v3806 = vunpack.c.h.b16 %v3700
        %v3807 = vunpack.c.l.b16 %v3701
        %v3808 = vunpack.c.h.b16 %v3701
        %v3809 = vunpack.c.l.b16 %v3702
        %v3810 = vunpack.c.h.b16 %v3702
        %v3811 = vpack.c.b16 %v3749, %v3747
        %v3812 = vpack.c.b16 %v3750, %v3748
        %v3813 = vpack.c.b16 %v3753, %v3751
        %v3814 = vpack.c.b16 %v3754, %v3752
        %v3815 = vpack.c.b16 %v3757, %v3755
        %v3816 = vpack.c.b16 %v3758, %v3756
        %v3817 = vpack.c.b16 %v3761, %v3759
        %v3818 = vpack.c.b16 %v3762, %v3760
        %v3819 = vpack.c.b16 %v3765, %v3763
        %v3820 = vpack.c.b16 %v3766, %v3764
        %v3821 = vpack.c.b16 %v3769, %v3767
        %v3822 = vpack.c.b16 %v3770, %v3768
        %v3823 = vpack.c.b16 %v3773, %v3771
        %v3824 = vpack.c.b16 %v3774, %v3772
        %v3825 = vpack.c.b16 %v3777, %v3775
        %v3826 = vpack.c.b16 %v3778, %v3776
        %v3827 = vpack.c.b16 %v3781, %v3779
        %v3828 = vpack.c.b16 %v3782, %v3780
        %v3829 = vpack.c.b16 %v3785, %v3783
        %v3830 = vpack.c.b16 %v3786, %v3784
        %v3831 = vpack.c.b16 %v3789, %v3787
        %v3832 = vpack.c.b16 %v3790, %v3788
        %v3833 = vpack.c.b16 %v3793, %v3791
        %v3834 = vpack.c.b16 %v3794, %v3792
        %v3835 = vpack.c.b16 %v3797, %v3795
        %v3836 = vpack.c.b16 %v3798, %v3796
        %v3837 = vpack.c.b16 %v3801, %v3799
        %v3838 = vpack.c.b16 %v3802, %v3800
        %v3839 = vpack.c.b16 %v3805, %v3803
        %v3840 = vpack.c.b16 %v3806, %v3804
        %v3841 = vpack.c.b16 %v3809, %v3807
        %v3842 = vpack.c.b16 %v3810, %v3808
        %3875 = vmatprep.subr.bf16.mxu0 %v3812
        %3876 = vmatpush1.bf16.msra.mxu0 %v3811
        %3877 = vmatprep.subr.bf16.mxu0 %v3814
        %3878 = vmatpush1.bf16.msra.mxu0 %v3813
        %3879 = vmatprep.subr.bf16.mxu0 %v3816
        %3880 = vmatpush1.bf16.msra.mxu0 %v3815
        %3881 = vmatprep.subr.bf16.mxu0 %v3818
        %3882 = vmatpush1.bf16.msra.mxu0 %v3817
        %3883 = vmatprep.subr.bf16.mxu0 %v3820
        %3884 = vmatpush1.bf16.msra.mxu0 %v3819
        %3885 = vmatprep.subr.bf16.mxu0 %v3822
        %3886 = vmatpush1.bf16.msra.mxu0 %v3821
        %3887 = vmatprep.subr.bf16.mxu0 %v3824
        %3888 = vmatpush1.bf16.msra.mxu0 %v3823
        %3889 = vmatprep.subr.bf16.mxu0 %v3826
        %3890 = vmatpush1.bf16.msra.mxu0 %v3825
        %3891 = vmatprep.subr.bf16.mxu0 %v3828
        %3892 = vmatpush1.bf16.msra.mxu0 %v3827
        %3893 = vmatprep.subr.bf16.mxu0 %v3830
        %3894 = vmatpush1.bf16.msra.mxu0 %v3829
        %3895 = vmatprep.subr.bf16.mxu0 %v3832
        %3896 = vmatpush1.bf16.msra.mxu0 %v3831
        %3897 = vmatprep.subr.bf16.mxu0 %v3834
        %3898 = vmatpush1.bf16.msra.mxu0 %v3833
        %3899 = vmatprep.subr.bf16.mxu0 %v3836
        %3900 = vmatpush1.bf16.msra.mxu0 %v3835
        %3901 = vmatprep.subr.bf16.mxu0 %v3838
        %3902 = vmatpush1.bf16.msra.mxu0 %v3837
        %3903 = vmatprep.subr.bf16.mxu0 %v3840
        %3904 = vmatpush1.bf16.msra.mxu0 %v3839
        %3905 = vmatprep.subr.bf16.mxu0 %v3842
        %3906 = vmatpush1.bf16.msra.mxu0 %v3841
        %3907 = vmatprep.mubr.bf16.mxu0 %v3640
        %3908 = vmatmul.mubr.bf16.gmra.mrb[0].mxu0 %v3639
        %v3909 = vpop.f32.mrb[0].mxu0
        %v3910 = vadd.f32 %v3708, %v3909
        %v3911 = vpop.f32.mrb[0].mxu0
        %v3912 = vadd.f32 %v3712, %v3911
        %v3913 = vpop.f32.mrb[0].mxu0
        %v3914 = vadd.f32 %v3708, %v3913
        %v3915 = vpop.f32.mrb[0].mxu0
        %v3916 = vadd.f32 %v3712, %v3915
        %3917 = vmatprep.mubr.bf16.mxu0 %v3642
        %3918 = vmatmul.mubr.bf16.gmra.mrb[0].mxu0 %v3641
        %v3919 = vpop.f32.mrb[0].mxu0
        %v3920 = vadd.f32 %v3708, %v3919
        %v3921 = vpop.f32.mrb[0].mxu0
        %v3922 = vadd.f32 %v3712, %v3921
        %v3923 = vpop.f32.mrb[0].mxu0
        %v3924 = vadd.f32 %v3708, %v3923
        %v3925 = vpop.f32.mrb[0].mxu0
        %v3926 = vadd.f32 %v3712, %v3925
        %3927 = vmatprep.mubr.bf16.mxu0 %v3644
        %3928 = vmatmul.mubr.bf16.gmra.mrb[0].mxu0 %v3643
        %v3929 = vpop.f32.mrb[0].mxu0
        %v3930 = vadd.f32 %v3708, %v3929
        %v3931 = vpop.f32.mrb[0].mxu0
        %v3932 = vadd.f32 %v3712, %v3931
        %v3933 = vpop.f32.mrb[0].mxu0
        %v3934 = vadd.f32 %v3708, %v3933
        %v3935 = vpop.f32.mrb[0].mxu0
        %v3936 = vadd.f32 %v3712, %v3935
        %3937 = vmatprep.mubr.bf16.mxu0 %v3646
        %3938 = vmatmul.mubr.bf16.gmra.mrb[0].mxu0 %v3645
        %v3939 = vpop.f32.mrb[0].mxu0
        %v3940 = vadd.f32 %v3708, %v3939
        %v3941 = vpop.f32.mrb[0].mxu0
        %v3942 = vadd.f32 %v3712, %v3941
        %v3943 = vpop.f32.mrb[0].mxu0
        %v3944 = vadd.f32 %v3708, %v3943
        %v3945 = vpop.f32.mrb[0].mxu0
        %v3946 = vadd.f32 %v3712, %v3945
        %3947 = vmatprep.mubr.bf16.mxu0 %v3648
        %3948 = vmatmul.mubr.bf16.gmra.mrb[0].mxu0 %v3647
        %v3949 = vpop.f32.mrb[0].mxu0
        %v3950 = vadd.f32 %v3708, %v3949
        %v3951 = vpop.f32.mrb[0].mxu0
        %v3952 = vadd.f32 %v3712, %v3951
        %v3953 = vpop.f32.mrb[0].mxu0
        %v3954 = vadd.f32 %v3708, %v3953
        %v3955 = vpop.f32.mrb[0].mxu0
        %v3956 = vadd.f32 %v3712, %v3955
        %3957 = vmatprep.mubr.bf16.mxu0 %v3650
        %3958 = vmatmul.mubr.bf16.gmra.mrb[0].mxu0 %v3649
        %v3959 = vpop.f32.mrb[0].mxu0
        %v3960 = vadd.f32 %v3708, %v3959
        %v3961 = vpop.f32.mrb[0].mxu0
        %v3962 = vadd.f32 %v3712, %v3961
        %v3963 = vpop.f32.mrb[0].mxu0
        %v3964 = vadd.f32 %v3708, %v3963
        %v3965 = vpop.f32.mrb[0].mxu0
        %v3966 = vadd.f32 %v3712, %v3965
        %3967 = vmatprep.mubr.bf16.mxu0 %v3652
        %3968 = vmatmul.mubr.bf16.gmra.mrb[0].mxu0 %v3651
        %v3969 = vpop.f32.mrb[0].mxu0
        %v3970 = vadd.f32 %v3708, %v3969
        %v3971 = vpop.f32.mrb[0].mxu0
        %v3972 = vadd.f32 %v3712, %v3971
        %v3973 = vpop.f32.mrb[0].mxu0
        %v3974 = vadd.f32 %v3708, %v3973
        %v3975 = vpop.f32.mrb[0].mxu0
        %v3976 = vadd.f32 %v3712, %v3975
        %3977 = vmatprep.mubr.bf16.mxu0 %v3654
        %3978 = vmatmul.mubr.bf16.gmra.mrb[0].mxu0 %v3653
        %v3979 = vpop.f32.mrb[0].mxu0
        %v3980 = vadd.f32 %v3708, %v3979
        %v3981 = vpop.f32.mrb[0].mxu0
        %v3982 = vadd.f32 %v3712, %v3981
        %v3983 = vpop.f32.mrb[0].mxu0
        %v3984 = vadd.f32 %v3708, %v3983
        %v3985 = vpop.f32.mrb[0].mxu0
        %v3986 = vadd.f32 %v3712, %v3985
        %3987 = vdwg.mxu0
        %v3988 = vmax.f32 %v3910, 0.0
        %v3989 = vmax.f32 %v3912, 0.0
        %v3990 = vmax.f32 %v3914, 0.0
        %v3991 = vmax.f32 %v3916, 0.0
        %v3992 = vmax.f32 %v3920, 0.0
        %v3993 = vmax.f32 %v3922, 0.0
        %v3994 = vmax.f32 %v3924, 0.0
        %v3995 = vmax.f32 %v3926, 0.0
        %v3996 = vmax.f32 %v3930, 0.0
        %v3997 = vmax.f32 %v3932, 0.0
        %v3998 = vmax.f32 %v3934, 0.0
        %v3999 = vmax.f32 %v3936, 0.0
        %v4000 = vmax.f32 %v3940, 0.0
        %v4001 = vmax.f32 %v3942, 0.0
        %v4002 = vmax.f32 %v3944, 0.0
        %v4003 = vmax.f32 %v3946, 0.0
        %v4004 = vmax.f32 %v3950, 0.0
        %v4005 = vmax.f32 %v3952, 0.0
        %v4006 = vmax.f32 %v3954, 0.0
        %v4007 = vmax.f32 %v3956, 0.0
        %v4008 = vmax.f32 %v3960, 0.0
        %v4009 = vmax.f32 %v3962, 0.0
        %v4010 = vmax.f32 %v3964, 0.0
        %v4011 = vmax.f32 %v3966, 0.0
        %v4012 = vmax.f32 %v3970, 0.0
        %v4013 = vmax.f32 %v3972, 0.0
        %v4014 = vmax.f32 %v3974, 0.0
        %v4015 = vmax.f32 %v3976, 0.0
        %v4016 = vmax.f32 %v3980, 0.0
        %v4017 = vmax.f32 %v3982, 0.0
        %v4018 = vmax.f32 %v3984, 0.0
        %v4019 = vmax.f32 %v3986, 0.0
        %v4020 = vpack.c.bf16 %v3990, %v3988
        %v4021 = vpack.c.bf16 %v3991, %v3989
        %v4022 = vpack.c.bf16 %v3994, %v3992
        %v4023 = vpack.c.bf16 %v3995, %v3993
        %v4024 = vpack.c.bf16 %v3998, %v3996
        %v4025 = vpack.c.bf16 %v3999, %v3997
        %v4026 = vpack.c.bf16 %v4002, %v4000
        %v4027 = vpack.c.bf16 %v4003, %v4001
        %v4028 = vpack.c.bf16 %v4006, %v4004
        %v4029 = vpack.c.bf16 %v4007, %v4005
        %v4030 = vpack.c.bf16 %v4010, %v4008
        %v4031 = vpack.c.bf16 %v4011, %v4009
        %v4032 = vpack.c.bf16 %v4014, %v4012
        %v4033 = vpack.c.bf16 %v4015, %v4013
        %v4034 = vpack.c.bf16 %v4018, %v4016
        %v4035 = vpack.c.bf16 %v4019, %v4017
        %v4036 = vld [vmem:[%s7] sm:$0xff]
        %v4037 = vld [vmem:[%s7 + $0x8] sm:$0xff]
        %v4038 = vld [vmem:[%s7 + $0x10] sm:$0xff]
        %v4039 = vld [vmem:[%s7 + $0x18] sm:$0xff]
        %v4040 = vld [vmem:[%s7 + $0x20] sm:$0xff]
        %v4041 = vld [vmem:[%s7 + $0x28] sm:$0xff]
        %v4042 = vld [vmem:[%s7 + $0x30] sm:$0xff]
        %v4043 = vld [vmem:[%s7 + $0x38] sm:$0xff]
        %v4044 = vld [vmem:[%s7 + $0x40] sm:$0xff]
        %v4045 = vld [vmem:[%s7 + $0x48] sm:$0xff]
        %v4046 = vld [vmem:[%s7 + $0x50] sm:$0xff]
        %v4047 = vld [vmem:[%s7 + $0x58] sm:$0xff]
        %v4048 = vld [vmem:[%s7 + $0x60] sm:$0xff]
        %v4049 = vld [vmem:[%s7 + $0x68] sm:$0xff]
        %v4050 = vld [vmem:[%s7 + $0x70] sm:$0xff]
        %v4051 = vld [vmem:[%s7 + $0x78] sm:$0xff]
        %v4052 = vld [vmem:[%s7 + $0x80] sm:$0xff]
        %v4053 = vld [vmem:[%s7 + $0x88] sm:$0xff]
        %v4054 = vld [vmem:[%s7 + $0x90] sm:$0xff]
        %v4055 = vld [vmem:[%s7 + $0x98] sm:$0xff]
        %v4056 = vld [vmem:[%s7 + $0xa0] sm:$0xff]
        %v4057 = vld [vmem:[%s7 + $0xa8] sm:$0xff]
        %v4058 = vld [vmem:[%s7 + $0xb0] sm:$0xff]
        %v4059 = vld [vmem:[%s7 + $0xb8] sm:$0xff]
        %v4060 = vld [vmem:[%s7 + $0xc0] sm:$0xff]
        %v4061 = vld [vmem:[%s7 + $0xc8] sm:$0xff]
        %v4062 = vld [vmem:[%s7 + $0xd0] sm:$0xff]
        %v4063 = vld [vmem:[%s7 + $0xd8] sm:$0xff]
        %v4064 = vld [vmem:[%s7 + $0xe0] sm:$0xff]
        %v4065 = vld [vmem:[%s7 + $0xe8] sm:$0xff]
        %v4066 = vld [vmem:[%s7 + $0xf0] sm:$0xff]
        %v4067 = vld [vmem:[%s7 + $0xf8] sm:$0xff]
        %v4068 = vld [vmem:[#allocation10] sm:$0x3]
        %v4070 = vlaneseq
        %v4071 = vshrl.u32 %v4070, 7
        %v4072 = vsub.s32 0, %v4071
        %v4073 = vrot.slane %v4068, %v4072
        %v4074 = vlaneseq
        %v4075 = vshrl.u32 %v4074, 7
        %v4076 = vsub.s32 1, %v4075
        %v4077 = vrot.slane %v4068, %v4076
        %v4112 = vunpack.c.l.b16 %v4036
        %v4113 = vunpack.c.h.b16 %v4036
        %v4114 = vunpack.c.l.b16 %v4037
        %v4115 = vunpack.c.h.b16 %v4037
        %v4116 = vunpack.c.l.b16 %v4038
        %v4117 = vunpack.c.h.b16 %v4038
        %v4118 = vunpack.c.l.b16 %v4039
        %v4119 = vunpack.c.h.b16 %v4039
        %v4120 = vunpack.c.l.b16 %v4040
        %v4121 = vunpack.c.h.b16 %v4040
        %v4122 = vunpack.c.l.b16 %v4041
        %v4123 = vunpack.c.h.b16 %v4041
        %v4124 = vunpack.c.l.b16 %v4042
        %v4125 = vunpack.c.h.b16 %v4042
        %v4126 = vunpack.c.l.b16 %v4043
        %v4127 = vunpack.c.h.b16 %v4043
        %v4128 = vunpack.c.l.b16 %v4044
        %v4129 = vunpack.c.h.b16 %v4044
        %v4130 = vunpack.c.l.b16 %v4045
        %v4131 = vunpack.c.h.b16 %v4045
        %v4132 = vunpack.c.l.b16 %v4046
        %v4133 = vunpack.c.h.b16 %v4046
        %v4134 = vunpack.c.l.b16 %v4047
        %v4135 = vunpack.c.h.b16 %v4047
        %v4136 = vunpack.c.l.b16 %v4048
        %v4137 = vunpack.c.h.b16 %v4048
        %v4138 = vunpack.c.l.b16 %v4049
        %v4139 = vunpack.c.h.b16 %v4049
        %v4140 = vunpack.c.l.b16 %v4050
        %v4141 = vunpack.c.h.b16 %v4050
        %v4142 = vunpack.c.l.b16 %v4051
        %v4143 = vunpack.c.h.b16 %v4051
        %v4144 = vunpack.c.l.b16 %v4052
        %v4145 = vunpack.c.h.b16 %v4052
        %v4146 = vunpack.c.l.b16 %v4053
        %v4147 = vunpack.c.h.b16 %v4053
        %v4148 = vunpack.c.l.b16 %v4054
        %v4149 = vunpack.c.h.b16 %v4054
        %v4150 = vunpack.c.l.b16 %v4055
        %v4151 = vunpack.c.h.b16 %v4055
        %v4152 = vunpack.c.l.b16 %v4056
        %v4153 = vunpack.c.h.b16 %v4056
        %v4154 = vunpack.c.l.b16 %v4057
        %v4155 = vunpack.c.h.b16 %v4057
        %v4156 = vunpack.c.l.b16 %v4058
        %v4157 = vunpack.c.h.b16 %v4058
        %v4158 = vunpack.c.l.b16 %v4059
        %v4159 = vunpack.c.h.b16 %v4059
        %v4160 = vunpack.c.l.b16 %v4060
        %v4161 = vunpack.c.h.b16 %v4060
        %v4162 = vunpack.c.l.b16 %v4061
        %v4163 = vunpack.c.h.b16 %v4061
        %v4164 = vunpack.c.l.b16 %v4062
        %v4165 = vunpack.c.h.b16 %v4062
        %v4166 = vunpack.c.l.b16 %v4063
        %v4167 = vunpack.c.h.b16 %v4063
        %v4168 = vunpack.c.l.b16 %v4064
        %v4169 = vunpack.c.h.b16 %v4064
        %v4170 = vunpack.c.l.b16 %v4065
        %v4171 = vunpack.c.h.b16 %v4065
        %v4172 = vunpack.c.l.b16 %v4066
        %v4173 = vunpack.c.h.b16 %v4066
        %v4174 = vunpack.c.l.b16 %v4067
        %v4175 = vunpack.c.h.b16 %v4067
        %v4176 = vpack.c.b16 %v4114, %v4112
        %v4177 = vpack.c.b16 %v4115, %v4113
        %v4178 = vpack.c.b16 %v4118, %v4116
        %v4179 = vpack.c.b16 %v4119, %v4117
        %v4180 = vpack.c.b16 %v4122, %v4120
        %v4181 = vpack.c.b16 %v4123, %v4121
        %v4182 = vpack.c.b16 %v4126, %v4124
        %v4183 = vpack.c.b16 %v4127, %v4125
        %v4184 = vpack.c.b16 %v4130, %v4128
        %v4185 = vpack.c.b16 %v4131, %v4129
        %v4186 = vpack.c.b16 %v4134, %v4132
        %v4187 = vpack.c.b16 %v4135, %v4133
        %v4188 = vpack.c.b16 %v4138, %v4136
        %v4189 = vpack.c.b16 %v4139, %v4137
        %v4190 = vpack.c.b16 %v4142, %v4140
        %v4191 = vpack.c.b16 %v4143, %v4141
        %v4192 = vpack.c.b16 %v4146, %v4144
        %v4193 = vpack.c.b16 %v4147, %v4145
        %v4194 = vpack.c.b16 %v4150, %v4148
        %v4195 = vpack.c.b16 %v4151, %v4149
        %v4196 = vpack.c.b16 %v4154, %v4152
        %v4197 = vpack.c.b16 %v4155, %v4153
        %v4198 = vpack.c.b16 %v4158, %v4156
        %v4199 = vpack.c.b16 %v4159, %v4157
        %v4200 = vpack.c.b16 %v4162, %v4160
        %v4201 = vpack.c.b16 %v4163, %v4161
        %v4202 = vpack.c.b16 %v4166, %v4164
        %v4203 = vpack.c.b16 %v4167, %v4165
        %v4204 = vpack.c.b16 %v4170, %v4168
        %v4205 = vpack.c.b16 %v4171, %v4169
        %v4206 = vpack.c.b16 %v4174, %v4172
        %v4207 = vpack.c.b16 %v4175, %v4173
        %4240 = vmatprep.subr.bf16.mxu0 %v4177
        %4241 = vmatpush1.bf16.msra.mxu0 %v4176
        %4242 = vmatprep.subr.bf16.mxu0 %v4179
        %4243 = vmatpush1.bf16.msra.mxu0 %v4178
        %4244 = vmatprep.subr.bf16.mxu0 %v4181
        %4245 = vmatpush1.bf16.msra.mxu0 %v4180
        %4246 = vmatprep.subr.bf16.mxu0 %v4183
        %4247 = vmatpush1.bf16.msra.mxu0 %v4182
        %4248 = vmatprep.subr.bf16.mxu0 %v4185
        %4249 = vmatpush1.bf16.msra.mxu0 %v4184
        %4250 = vmatprep.subr.bf16.mxu0 %v4187
        %4251 = vmatpush1.bf16.msra.mxu0 %v4186
        %4252 = vmatprep.subr.bf16.mxu0 %v4189
        %4253 = vmatpush1.bf16.msra.mxu0 %v4188
        %4254 = vmatprep.subr.bf16.mxu0 %v4191
        %4255 = vmatpush1.bf16.msra.mxu0 %v4190
        %4256 = vmatprep.subr.bf16.mxu0 %v4193
        %4257 = vmatpush1.bf16.msra.mxu0 %v4192
        %4258 = vmatprep.subr.bf16.mxu0 %v4195
        %4259 = vmatpush1.bf16.msra.mxu0 %v4194
        %4260 = vmatprep.subr.bf16.mxu0 %v4197
        %4261 = vmatpush1.bf16.msra.mxu0 %v4196
        %4262 = vmatprep.subr.bf16.mxu0 %v4199
        %4263 = vmatpush1.bf16.msra.mxu0 %v4198
        %4264 = vmatprep.subr.bf16.mxu0 %v4201
        %4265 = vmatpush1.bf16.msra.mxu0 %v4200
        %4266 = vmatprep.subr.bf16.mxu0 %v4203
        %4267 = vmatpush1.bf16.msra.mxu0 %v4202
        %4268 = vmatprep.subr.bf16.mxu0 %v4205
        %4269 = vmatpush1.bf16.msra.mxu0 %v4204
        %4270 = vmatprep.subr.bf16.mxu0 %v4207
        %4271 = vmatpush1.bf16.msra.mxu0 %v4206
        %4272 = vmatprep.mubr.bf16.mxu0 %v4021
        %4273 = vmatmul.mubr.bf16.gmra.mrb[0].mxu0 %v4020
        %v4274 = vpop.f32.mrb[0].mxu0
        %v4275 = vadd.f32 %v4073, %v4274
        %v4276 = vpop.f32.mrb[0].mxu0
        %v4277 = vadd.f32 %v4077, %v4276
        %v4278 = vpop.f32.mrb[0].mxu0
        %v4279 = vadd.f32 %v4073, %v4278
        %v4280 = vpop.f32.mrb[0].mxu0
        %v4281 = vadd.f32 %v4077, %v4280
        %4282 = vmatprep.mubr.bf16.mxu0 %v4023
        %4283 = vmatmul.mubr.bf16.gmra.mrb[0].mxu0 %v4022
        %v4284 = vpop.f32.mrb[0].mxu0
        %v4285 = vadd.f32 %v4073, %v4284
        %v4286 = vpop.f32.mrb[0].mxu0
        %v4287 = vadd.f32 %v4077, %v4286
        %v4288 = vpop.f32.mrb[0].mxu0
        %v4289 = vadd.f32 %v4073, %v4288
        %v4290 = vpop.f32.mrb[0].mxu0
        %v4291 = vadd.f32 %v4077, %v4290
        %4292 = vmatprep.mubr.bf16.mxu0 %v4025
        %4293 = vmatmul.mubr.bf16.gmra.mrb[0].mxu0 %v4024
        %v4294 = vpop.f32.mrb[0].mxu0
        %v4295 = vadd.f32 %v4073, %v4294
        %v4296 = vpop.f32.mrb[0].mxu0
        %v4297 = vadd.f32 %v4077, %v4296
        %v4298 = vpop.f32.mrb[0].mxu0
        %v4299 = vadd.f32 %v4073, %v4298
        %v4300 = vpop.f32.mrb[0].mxu0
        %v4301 = vadd.f32 %v4077, %v4300
        %4302 = vmatprep.mubr.bf16.mxu0 %v4027
        %4303 = vmatmul.mubr.bf16.gmra.mrb[0].mxu0 %v4026
        %v4304 = vpop.f32.mrb[0].mxu0
        %v4305 = vadd.f32 %v4073, %v4304
        %v4306 = vpop.f32.mrb[0].mxu0
        %v4307 = vadd.f32 %v4077, %v4306
        %v4308 = vpop.f32.mrb[0].mxu0
        %v4309 = vadd.f32 %v4073, %v4308
        %v4310 = vpop.f32.mrb[0].mxu0
        %v4311 = vadd.f32 %v4077, %v4310
        %4312 = vmatprep.mubr.bf16.mxu0 %v4029
        %4313 = vmatmul.mubr.bf16.gmra.mrb[0].mxu0 %v4028
        %v4314 = vpop.f32.mrb[0].mxu0
        %v4315 = vadd.f32 %v4073, %v4314
        %v4316 = vpop.f32.mrb[0].mxu0
        %v4317 = vadd.f32 %v4077, %v4316
        %v4318 = vpop.f32.mrb[0].mxu0
        %v4319 = vadd.f32 %v4073, %v4318
        %v4320 = vpop.f32.mrb[0].mxu0
        %v4321 = vadd.f32 %v4077, %v4320
        %4322 = vmatprep.mubr.bf16.mxu0 %v4031
        %4323 = vmatmul.mubr.bf16.gmra.mrb[0].mxu0 %v4030
        %v4324 = vpop.f32.mrb[0].mxu0
        %v4325 = vadd.f32 %v4073, %v4324
        %v4326 = vpop.f32.mrb[0].mxu0
        %v4327 = vadd.f32 %v4077, %v4326
        %v4328 = vpop.f32.mrb[0].mxu0
        %v4329 = vadd.f32 %v4073, %v4328
        %v4330 = vpop.f32.mrb[0].mxu0
        %v4331 = vadd.f32 %v4077, %v4330
        %4332 = vmatprep.mubr.bf16.mxu0 %v4033
        %4333 = vmatmul.mubr.bf16.gmra.mrb[0].mxu0 %v4032
        %v4334 = vpop.f32.mrb[0].mxu0
        %v4335 = vadd.f32 %v4073, %v4334
        %v4336 = vpop.f32.mrb[0].mxu0
        %v4337 = vadd.f32 %v4077, %v4336
        %v4338 = vpop.f32.mrb[0].mxu0
        %v4339 = vadd.f32 %v4073, %v4338
        %v4340 = vpop.f32.mrb[0].mxu0
        %v4341 = vadd.f32 %v4077, %v4340
        %4342 = vmatprep.mubr.bf16.mxu0 %v4035
        %4343 = vmatmul.mubr.bf16.gmra.mrb[0].mxu0 %v4034
        %v4344 = vpop.f32.mrb[0].mxu0
        %v4345 = vadd.f32 %v4073, %v4344
        %v4346 = vpop.f32.mrb[0].mxu0
        %v4347 = vadd.f32 %v4077, %v4346
        %v4348 = vpop.f32.mrb[0].mxu0
        %v4349 = vadd.f32 %v4073, %v4348
        %v4350 = vpop.f32.mrb[0].mxu0
        %v4351 = vadd.f32 %v4077, %v4350
        %4352 = vdwg.mxu0
        %s4353 = scalar_lea.vmem %s5, 256
        %v4354 = vld [vmem:[%s4353] sm:$0xff]
        %v4355 = vld [vmem:[%s4353 + $0x8] sm:$0xff]
        %v4356 = vld [vmem:[%s4353 + $0x10] sm:$0xff]
        %v4357 = vld [vmem:[%s4353 + $0x18] sm:$0xff]
        %v4358 = vld [vmem:[%s4353 + $0x20] sm:$0xff]
        %v4359 = vld [vmem:[%s4353 + $0x28] sm:$0xff]
        %v4360 = vld [vmem:[%s4353 + $0x30] sm:$0xff]
        %v4361 = vld [vmem:[%s4353 + $0x38] sm:$0xff]
        %v4362 = vld [vmem:[%s4353 + $0x40] sm:$0xff]
        %v4363 = vld [vmem:[%s4353 + $0x48] sm:$0xff]
        %v4364 = vld [vmem:[%s4353 + $0x50] sm:$0xff]
        %v4365 = vld [vmem:[%s4353 + $0x58] sm:$0xff]
        %v4366 = vld [vmem:[%s4353 + $0x60] sm:$0xff]
        %v4367 = vld [vmem:[%s4353 + $0x68] sm:$0xff]
        %v4368 = vld [vmem:[%s4353 + $0x70] sm:$0xff]
        %v4369 = vld [vmem:[%s4353 + $0x78] sm:$0xff]
        %v4370 = vld [vmem:[%s4353 + $0x80] sm:$0xff]
        %v4371 = vld [vmem:[%s4353 + $0x88] sm:$0xff]
        %v4372 = vld [vmem:[%s4353 + $0x90] sm:$0xff]
        %v4373 = vld [vmem:[%s4353 + $0x98] sm:$0xff]
        %v4374 = vld [vmem:[%s4353 + $0xa0] sm:$0xff]
        %v4375 = vld [vmem:[%s4353 + $0xa8] sm:$0xff]
        %v4376 = vld [vmem:[%s4353 + $0xb0] sm:$0xff]
        %v4377 = vld [vmem:[%s4353 + $0xb8] sm:$0xff]
        %v4378 = vld [vmem:[%s4353 + $0xc0] sm:$0xff]
        %v4379 = vld [vmem:[%s4353 + $0xc8] sm:$0xff]
        %v4380 = vld [vmem:[%s4353 + $0xd0] sm:$0xff]
        %v4381 = vld [vmem:[%s4353 + $0xd8] sm:$0xff]
        %v4382 = vld [vmem:[%s4353 + $0xe0] sm:$0xff]
        %v4383 = vld [vmem:[%s4353 + $0xe8] sm:$0xff]
        %v4384 = vld [vmem:[%s4353 + $0xf0] sm:$0xff]
        %v4385 = vld [vmem:[%s4353 + $0xf8] sm:$0xff]
        %s4386 = scalar_lea.vmem [#allocation8], 2
        %v4387 = vld [vmem:[%s4386] sm:$0x3]
        %v4389 = vlaneseq
        %v4390 = vshrl.u32 %v4389, 7
        %v4391 = vsub.s32 0, %v4390
        %v4392 = vrot.slane %v4387, %v4391
        %v4393 = vlaneseq
        %v4394 = vshrl.u32 %v4393, 7
        %v4395 = vsub.s32 1, %v4394
        %v4396 = vrot.slane %v4387, %v4395
        %v4431 = vunpack.c.l.b16 %v4354
        %v4432 = vunpack.c.h.b16 %v4354
        %v4433 = vunpack.c.l.b16 %v4355
        %v4434 = vunpack.c.h.b16 %v4355
        %v4435 = vunpack.c.l.b16 %v4356
        %v4436 = vunpack.c.h.b16 %v4356
        %v4437 = vunpack.c.l.b16 %v4357
        %v4438 = vunpack.c.h.b16 %v4357
        %v4439 = vunpack.c.l.b16 %v4358
        %v4440 = vunpack.c.h.b16 %v4358
        %v4441 = vunpack.c.l.b16 %v4359
        %v4442 = vunpack.c.h.b16 %v4359
        %v4443 = vunpack.c.l.b16 %v4360
        %v4444 = vunpack.c.h.b16 %v4360
        %v4445 = vunpack.c.l.b16 %v4361
        %v4446 = vunpack.c.h.b16 %v4361
        %v4447 = vunpack.c.l.b16 %v4362
        %v4448 = vunpack.c.h.b16 %v4362
        %v4449 = vunpack.c.l.b16 %v4363
        %v4450 = vunpack.c.h.b16 %v4363
        %v4451 = vunpack.c.l.b16 %v4364
        %v4452 = vunpack.c.h.b16 %v4364
        %v4453 = vunpack.c.l.b16 %v4365
        %v4454 = vunpack.c.h.b16 %v4365
        %v4455 = vunpack.c.l.b16 %v4366
        %v4456 = vunpack.c.h.b16 %v4366
        %v4457 = vunpack.c.l.b16 %v4367
        %v4458 = vunpack.c.h.b16 %v4367
        %v4459 = vunpack.c.l.b16 %v4368
        %v4460 = vunpack.c.h.b16 %v4368
        %v4461 = vunpack.c.l.b16 %v4369
        %v4462 = vunpack.c.h.b16 %v4369
        %v4463 = vunpack.c.l.b16 %v4370
        %v4464 = vunpack.c.h.b16 %v4370
        %v4465 = vunpack.c.l.b16 %v4371
        %v4466 = vunpack.c.h.b16 %v4371
        %v4467 = vunpack.c.l.b16 %v4372
        %v4468 = vunpack.c.h.b16 %v4372
        %v4469 = vunpack.c.l.b16 %v4373
        %v4470 = vunpack.c.h.b16 %v4373
        %v4471 = vunpack.c.l.b16 %v4374
        %v4472 = vunpack.c.h.b16 %v4374
        %v4473 = vunpack.c.l.b16 %v4375
        %v4474 = vunpack.c.h.b16 %v4375
        %v4475 = vunpack.c.l.b16 %v4376
        %v4476 = vunpack.c.h.b16 %v4376
        %v4477 = vunpack.c.l.b16 %v4377
        %v4478 = vunpack.c.h.b16 %v4377
        %v4479 = vunpack.c.l.b16 %v4378
        %v4480 = vunpack.c.h.b16 %v4378
        %v4481 = vunpack.c.l.b16 %v4379
        %v4482 = vunpack.c.h.b16 %v4379
        %v4483 = vunpack.c.l.b16 %v4380
        %v4484 = vunpack.c.h.b16 %v4380
        %v4485 = vunpack.c.l.b16 %v4381
        %v4486 = vunpack.c.h.b16 %v4381
        %v4487 = vunpack.c.l.b16 %v4382
        %v4488 = vunpack.c.h.b16 %v4382
        %v4489 = vunpack.c.l.b16 %v4383
        %v4490 = vunpack.c.h.b16 %v4383
        %v4491 = vunpack.c.l.b16 %v4384
        %v4492 = vunpack.c.h.b16 %v4384
        %v4493 = vunpack.c.l.b16 %v4385
        %v4494 = vunpack.c.h.b16 %v4385
        %v4495 = vpack.c.b16 %v4433, %v4431
        %v4496 = vpack.c.b16 %v4434, %v4432
        %v4497 = vpack.c.b16 %v4437, %v4435
        %v4498 = vpack.c.b16 %v4438, %v4436
        %v4499 = vpack.c.b16 %v4441, %v4439
        %v4500 = vpack.c.b16 %v4442, %v4440
        %v4501 = vpack.c.b16 %v4445, %v4443
        %v4502 = vpack.c.b16 %v4446, %v4444
        %v4503 = vpack.c.b16 %v4449, %v4447
        %v4504 = vpack.c.b16 %v4450, %v4448
        %v4505 = vpack.c.b16 %v4453, %v4451
        %v4506 = vpack.c.b16 %v4454, %v4452
        %v4507 = vpack.c.b16 %v4457, %v4455
        %v4508 = vpack.c.b16 %v4458, %v4456
        %v4509 = vpack.c.b16 %v4461, %v4459
        %v4510 = vpack.c.b16 %v4462, %v4460
        %v4511 = vpack.c.b16 %v4465, %v4463
        %v4512 = vpack.c.b16 %v4466, %v4464
        %v4513 = vpack.c.b16 %v4469, %v4467
        %v4514 = vpack.c.b16 %v4470, %v4468
        %v4515 = vpack.c.b16 %v4473, %v4471
        %v4516 = vpack.c.b16 %v4474, %v4472
        %v4517 = vpack.c.b16 %v4477, %v4475
        %v4518 = vpack.c.b16 %v4478, %v4476
        %v4519 = vpack.c.b16 %v4481, %v4479
        %v4520 = vpack.c.b16 %v4482, %v4480
        %v4521 = vpack.c.b16 %v4485, %v4483
        %v4522 = vpack.c.b16 %v4486, %v4484
        %v4523 = vpack.c.b16 %v4489, %v4487
        %v4524 = vpack.c.b16 %v4490, %v4488
        %v4525 = vpack.c.b16 %v4493, %v4491
        %v4526 = vpack.c.b16 %v4494, %v4492
        %4559 = vmatprep.subr.bf16.mxu0 %v4496
        %4560 = vmatpush1.bf16.msra.mxu0 %v4495
        %4561 = vmatprep.subr.bf16.mxu0 %v4498
        %4562 = vmatpush1.bf16.msra.mxu0 %v4497
        %4563 = vmatprep.subr.bf16.mxu0 %v4500
        %4564 = vmatpush1.bf16.msra.mxu0 %v4499
        %4565 = vmatprep.subr.bf16.mxu0 %v4502
        %4566 = vmatpush1.bf16.msra.mxu0 %v4501
        %4567 = vmatprep.subr.bf16.mxu0 %v4504
        %4568 = vmatpush1.bf16.msra.mxu0 %v4503
        %4569 = vmatprep.subr.bf16.mxu0 %v4506
        %4570 = vmatpush1.bf16.msra.mxu0 %v4505
        %4571 = vmatprep.subr.bf16.mxu0 %v4508
        %4572 = vmatpush1.bf16.msra.mxu0 %v4507
        %4573 = vmatprep.subr.bf16.mxu0 %v4510
        %4574 = vmatpush1.bf16.msra.mxu0 %v4509
        %4575 = vmatprep.subr.bf16.mxu0 %v4512
        %4576 = vmatpush1.bf16.msra.mxu0 %v4511
        %4577 = vmatprep.subr.bf16.mxu0 %v4514
        %4578 = vmatpush1.bf16.msra.mxu0 %v4513
        %4579 = vmatprep.subr.bf16.mxu0 %v4516
        %4580 = vmatpush1.bf16.msra.mxu0 %v4515
        %4581 = vmatprep.subr.bf16.mxu0 %v4518
        %4582 = vmatpush1.bf16.msra.mxu0 %v4517
        %4583 = vmatprep.subr.bf16.mxu0 %v4520
        %4584 = vmatpush1.bf16.msra.mxu0 %v4519
        %4585 = vmatprep.subr.bf16.mxu0 %v4522
        %4586 = vmatpush1.bf16.msra.mxu0 %v4521
        %4587 = vmatprep.subr.bf16.mxu0 %v4524
        %4588 = vmatpush1.bf16.msra.mxu0 %v4523
        %4589 = vmatprep.subr.bf16.mxu0 %v4526
        %4590 = vmatpush1.bf16.msra.mxu0 %v4525
        %4591 = vmatprep.mubr.bf16.mxu0 %v3656
        %4592 = vmatmul.mubr.bf16.gmra.mrb[0].mxu0 %v3655
        %v4593 = vpop.f32.mrb[0].mxu0
        %v4594 = vadd.f32 %v4392, %v4593
        %v4595 = vpop.f32.mrb[0].mxu0
        %v4596 = vadd.f32 %v4396, %v4595
        %v4597 = vpop.f32.mrb[0].mxu0
        %v4598 = vadd.f32 %v4392, %v4597
        %v4599 = vpop.f32.mrb[0].mxu0
        %v4600 = vadd.f32 %v4396, %v4599
        %4601 = vmatprep.mubr.bf16.mxu0 %v3658
        %4602 = vmatmul.mubr.bf16.gmra.mrb[0].mxu0 %v3657
        %v4603 = vpop.f32.mrb[0].mxu0
        %v4604 = vadd.f32 %v4392, %v4603
        %v4605 = vpop.f32.mrb[0].mxu0
        %v4606 = vadd.f32 %v4396, %v4605
        %v4607 = vpop.f32.mrb[0].mxu0
        %v4608 = vadd.f32 %v4392, %v4607
        %v4609 = vpop.f32.mrb[0].mxu0
        %v4610 = vadd.f32 %v4396, %v4609
        %4611 = vmatprep.mubr.bf16.mxu0 %v3660
        %4612 = vmatmul.mubr.bf16.gmra.mrb[0].mxu0 %v3659
        %v4613 = vpop.f32.mrb[0].mxu0
        %v4614 = vadd.f32 %v4392, %v4613
        %v4615 = vpop.f32.mrb[0].mxu0
        %v4616 = vadd.f32 %v4396, %v4615
        %v4617 = vpop.f32.mrb[0].mxu0
        %v4618 = vadd.f32 %v4392, %v4617
        %v4619 = vpop.f32.mrb[0].mxu0
        %v4620 = vadd.f32 %v4396, %v4619
        %4621 = vmatprep.mubr.bf16.mxu0 %v3662
        %4622 = vmatmul.mubr.bf16.gmra.mrb[0].mxu0 %v3661
        %v4623 = vpop.f32.mrb[0].mxu0
        %v4624 = vadd.f32 %v4392, %v4623
        %v4625 = vpop.f32.mrb[0].mxu0
        %v4626 = vadd.f32 %v4396, %v4625
        %v4627 = vpop.f32.mrb[0].mxu0
        %v4628 = vadd.f32 %v4392, %v4627
        %v4629 = vpop.f32.mrb[0].mxu0
        %v4630 = vadd.f32 %v4396, %v4629
        %4631 = vmatprep.mubr.bf16.mxu0 %v3664
        %4632 = vmatmul.mubr.bf16.gmra.mrb[0].mxu0 %v3663
        %v4633 = vpop.f32.mrb[0].mxu0
        %v4634 = vadd.f32 %v4392, %v4633
        %v4635 = vpop.f32.mrb[0].mxu0
        %v4636 = vadd.f32 %v4396, %v4635
        %v4637 = vpop.f32.mrb[0].mxu0
        %v4638 = vadd.f32 %v4392, %v4637
        %v4639 = vpop.f32.mrb[0].mxu0
        %v4640 = vadd.f32 %v4396, %v4639
        %4641 = vmatprep.mubr.bf16.mxu0 %v3666
        %4642 = vmatmul.mubr.bf16.gmra.mrb[0].mxu0 %v3665
        %v4643 = vpop.f32.mrb[0].mxu0
        %v4644 = vadd.f32 %v4392, %v4643
        %v4645 = vpop.f32.mrb[0].mxu0
        %v4646 = vadd.f32 %v4396, %v4645
        %v4647 = vpop.f32.mrb[0].mxu0
        %v4648 = vadd.f32 %v4392, %v4647
        %v4649 = vpop.f32.mrb[0].mxu0
        %v4650 = vadd.f32 %v4396, %v4649
        %4651 = vmatprep.mubr.bf16.mxu0 %v3668
        %4652 = vmatmul.mubr.bf16.gmra.mrb[0].mxu0 %v3667
        %v4653 = vpop.f32.mrb[0].mxu0
        %v4654 = vadd.f32 %v4392, %v4653
        %v4655 = vpop.f32.mrb[0].mxu0
        %v4656 = vadd.f32 %v4396, %v4655
        %v4657 = vpop.f32.mrb[0].mxu0
        %v4658 = vadd.f32 %v4392, %v4657
        %v4659 = vpop.f32.mrb[0].mxu0
        %v4660 = vadd.f32 %v4396, %v4659
        %4661 = vmatprep.mubr.bf16.mxu0 %v3670
        %4662 = vmatmul.mubr.bf16.gmra.mrb[0].mxu0 %v3669
        %v4663 = vpop.f32.mrb[0].mxu0
        %v4664 = vadd.f32 %v4392, %v4663
        %v4665 = vpop.f32.mrb[0].mxu0
        %v4666 = vadd.f32 %v4396, %v4665
        %v4667 = vpop.f32.mrb[0].mxu0
        %v4668 = vadd.f32 %v4392, %v4667
        %v4669 = vpop.f32.mrb[0].mxu0
        %v4670 = vadd.f32 %v4396, %v4669
        %4671 = vdwg.mxu0
        %v4672 = vmax.f32 %v4594, 0.0
        %v4673 = vmax.f32 %v4596, 0.0
        %v4674 = vmax.f32 %v4598, 0.0
        %v4675 = vmax.f32 %v4600, 0.0
        %v4676 = vmax.f32 %v4604, 0.0
        %v4677 = vmax.f32 %v4606, 0.0
        %v4678 = vmax.f32 %v4608, 0.0
        %v4679 = vmax.f32 %v4610, 0.0
        %v4680 = vmax.f32 %v4614, 0.0
        %v4681 = vmax.f32 %v4616, 0.0
        %v4682 = vmax.f32 %v4618, 0.0
        %v4683 = vmax.f32 %v4620, 0.0
        %v4684 = vmax.f32 %v4624, 0.0
        %v4685 = vmax.f32 %v4626, 0.0
        %v4686 = vmax.f32 %v4628, 0.0
        %v4687 = vmax.f32 %v4630, 0.0
        %v4688 = vmax.f32 %v4634, 0.0
        %v4689 = vmax.f32 %v4636, 0.0
        %v4690 = vmax.f32 %v4638, 0.0
        %v4691 = vmax.f32 %v4640, 0.0
        %v4692 = vmax.f32 %v4644, 0.0
        %v4693 = vmax.f32 %v4646, 0.0
        %v4694 = vmax.f32 %v4648, 0.0
        %v4695 = vmax.f32 %v4650, 0.0
        %v4696 = vmax.f32 %v4654, 0.0
        %v4697 = vmax.f32 %v4656, 0.0
        %v4698 = vmax.f32 %v4658, 0.0
        %v4699 = vmax.f32 %v4660, 0.0
        %v4700 = vmax.f32 %v4664, 0.0
        %v4701 = vmax.f32 %v4666, 0.0
        %v4702 = vmax.f32 %v4668, 0.0
        %v4703 = vmax.f32 %v4670, 0.0
        %v4704 = vpack.c.bf16 %v4674, %v4672
        %v4705 = vpack.c.bf16 %v4675, %v4673
        %v4706 = vpack.c.bf16 %v4678, %v4676
        %v4707 = vpack.c.bf16 %v4679, %v4677
        %v4708 = vpack.c.bf16 %v4682, %v4680
        %v4709 = vpack.c.bf16 %v4683, %v4681
        %v4710 = vpack.c.bf16 %v4686, %v4684
        %v4711 = vpack.c.bf16 %v4687, %v4685
        %v4712 = vpack.c.bf16 %v4690, %v4688
        %v4713 = vpack.c.bf16 %v4691, %v4689
        %v4714 = vpack.c.bf16 %v4694, %v4692
        %v4715 = vpack.c.bf16 %v4695, %v4693
        %v4716 = vpack.c.bf16 %v4698, %v4696
        %v4717 = vpack.c.bf16 %v4699, %v4697
        %v4718 = vpack.c.bf16 %v4702, %v4700
        %v4719 = vpack.c.bf16 %v4703, %v4701
        %s4720 = scalar_lea.vmem %s7, 256
        %v4721 = vld [vmem:[%s4720] sm:$0xff]
        %v4722 = vld [vmem:[%s4720 + $0x8] sm:$0xff]
        %v4723 = vld [vmem:[%s4720 + $0x10] sm:$0xff]
        %v4724 = vld [vmem:[%s4720 + $0x18] sm:$0xff]
        %v4725 = vld [vmem:[%s4720 + $0x20] sm:$0xff]
        %v4726 = vld [vmem:[%s4720 + $0x28] sm:$0xff]
        %v4727 = vld [vmem:[%s4720 + $0x30] sm:$0xff]
        %v4728 = vld [vmem:[%s4720 + $0x38] sm:$0xff]
        %v4729 = vld [vmem:[%s4720 + $0x40] sm:$0xff]
        %v4730 = vld [vmem:[%s4720 + $0x48] sm:$0xff]
        %v4731 = vld [vmem:[%s4720 + $0x50] sm:$0xff]
        %v4732 = vld [vmem:[%s4720 + $0x58] sm:$0xff]
        %v4733 = vld [vmem:[%s4720 + $0x60] sm:$0xff]
        %v4734 = vld [vmem:[%s4720 + $0x68] sm:$0xff]
        %v4735 = vld [vmem:[%s4720 + $0x70] sm:$0xff]
        %v4736 = vld [vmem:[%s4720 + $0x78] sm:$0xff]
        %v4737 = vld [vmem:[%s4720 + $0x80] sm:$0xff]
        %v4738 = vld [vmem:[%s4720 + $0x88] sm:$0xff]
        %v4739 = vld [vmem:[%s4720 + $0x90] sm:$0xff]
        %v4740 = vld [vmem:[%s4720 + $0x98] sm:$0xff]
        %v4741 = vld [vmem:[%s4720 + $0xa0] sm:$0xff]
        %v4742 = vld [vmem:[%s4720 + $0xa8] sm:$0xff]
        %v4743 = vld [vmem:[%s4720 + $0xb0] sm:$0xff]
        %v4744 = vld [vmem:[%s4720 + $0xb8] sm:$0xff]
        %v4745 = vld [vmem:[%s4720 + $0xc0] sm:$0xff]
        %v4746 = vld [vmem:[%s4720 + $0xc8] sm:$0xff]
        %v4747 = vld [vmem:[%s4720 + $0xd0] sm:$0xff]
        %v4748 = vld [vmem:[%s4720 + $0xd8] sm:$0xff]
        %v4749 = vld [vmem:[%s4720 + $0xe0] sm:$0xff]
        %v4750 = vld [vmem:[%s4720 + $0xe8] sm:$0xff]
        %v4751 = vld [vmem:[%s4720 + $0xf0] sm:$0xff]
        %v4752 = vld [vmem:[%s4720 + $0xf8] sm:$0xff]
        %s4753 = scalar_lea.vmem [#allocation10], 2
        %v4754 = vld [vmem:[%s4753] sm:$0x3]
        %v4756 = vlaneseq
        %v4757 = vshrl.u32 %v4756, 7
        %v4758 = vsub.s32 0, %v4757
        %v4759 = vrot.slane %v4754, %v4758
        %v4760 = vlaneseq
        %v4761 = vshrl.u32 %v4760, 7
        %v4762 = vsub.s32 1, %v4761
        %v4763 = vrot.slane %v4754, %v4762
        %v4798 = vunpack.c.l.b16 %v4721
        %v4799 = vunpack.c.h.b16 %v4721
        %v4800 = vunpack.c.l.b16 %v4722
        %v4801 = vunpack.c.h.b16 %v4722
        %v4802 = vunpack.c.l.b16 %v4723
        %v4803 = vunpack.c.h.b16 %v4723
        %v4804 = vunpack.c.l.b16 %v4724
        %v4805 = vunpack.c.h.b16 %v4724
        %v4806 = vunpack.c.l.b16 %v4725
        %v4807 = vunpack.c.h.b16 %v4725
        %v4808 = vunpack.c.l.b16 %v4726
        %v4809 = vunpack.c.h.b16 %v4726
        %v4810 = vunpack.c.l.b16 %v4727
        %v4811 = vunpack.c.h.b16 %v4727
        %v4812 = vunpack.c.l.b16 %v4728
        %v4813 = vunpack.c.h.b16 %v4728
        %v4814 = vunpack.c.l.b16 %v4729
        %v4815 = vunpack.c.h.b16 %v4729
        %v4816 = vunpack.c.l.b16 %v4730
        %v4817 = vunpack.c.h.b16 %v4730
        %v4818 = vunpack.c.l.b16 %v4731
        %v4819 = vunpack.c.h.b16 %v4731
        %v4820 = vunpack.c.l.b16 %v4732
        %v4821 = vunpack.c.h.b16 %v4732
        %v4822 = vunpack.c.l.b16 %v4733
        %v4823 = vunpack.c.h.b16 %v4733
        %v4824 = vunpack.c.l.b16 %v4734
        %v4825 = vunpack.c.h.b16 %v4734
        %v4826 = vunpack.c.l.b16 %v4735
        %v4827 = vunpack.c.h.b16 %v4735
        %v4828 = vunpack.c.l.b16 %v4736
        %v4829 = vunpack.c.h.b16 %v4736
        %v4830 = vunpack.c.l.b16 %v4737
        %v4831 = vunpack.c.h.b16 %v4737
        %v4832 = vunpack.c.l.b16 %v4738
        %v4833 = vunpack.c.h.b16 %v4738
        %v4834 = vunpack.c.l.b16 %v4739
        %v4835 = vunpack.c.h.b16 %v4739
        %v4836 = vunpack.c.l.b16 %v4740
        %v4837 = vunpack.c.h.b16 %v4740
        %v4838 = vunpack.c.l.b16 %v4741
        %v4839 = vunpack.c.h.b16 %v4741
        %v4840 = vunpack.c.l.b16 %v4742
        %v4841 = vunpack.c.h.b16 %v4742
        %v4842 = vunpack.c.l.b16 %v4743
        %v4843 = vunpack.c.h.b16 %v4743
        %v4844 = vunpack.c.l.b16 %v4744
        %v4845 = vunpack.c.h.b16 %v4744
        %v4846 = vunpack.c.l.b16 %v4745
        %v4847 = vunpack.c.h.b16 %v4745
        %v4848 = vunpack.c.l.b16 %v4746
        %v4849 = vunpack.c.h.b16 %v4746
        %v4850 = vunpack.c.l.b16 %v4747
        %v4851 = vunpack.c.h.b16 %v4747
        %v4852 = vunpack.c.l.b16 %v4748
        %v4853 = vunpack.c.h.b16 %v4748
        %v4854 = vunpack.c.l.b16 %v4749
        %v4855 = vunpack.c.h.b16 %v4749
        %v4856 = vunpack.c.l.b16 %v4750
        %v4857 = vunpack.c.h.b16 %v4750
        %v4858 = vunpack.c.l.b16 %v4751
        %v4859 = vunpack.c.h.b16 %v4751
        %v4860 = vunpack.c.l.b16 %v4752
        %v4861 = vunpack.c.h.b16 %v4752
        %v4862 = vpack.c.b16 %v4800, %v4798
        %v4863 = vpack.c.b16 %v4801, %v4799
        %v4864 = vpack.c.b16 %v4804, %v4802
        %v4865 = vpack.c.b16 %v4805, %v4803
        %v4866 = vpack.c.b16 %v4808, %v4806
        %v4867 = vpack.c.b16 %v4809, %v4807
        %v4868 = vpack.c.b16 %v4812, %v4810
        %v4869 = vpack.c.b16 %v4813, %v4811
        %v4870 = vpack.c.b16 %v4816, %v4814
        %v4871 = vpack.c.b16 %v4817, %v4815
        %v4872 = vpack.c.b16 %v4820, %v4818
        %v4873 = vpack.c.b16 %v4821, %v4819
        %v4874 = vpack.c.b16 %v4824, %v4822
        %v4875 = vpack.c.b16 %v4825, %v4823
        %v4876 = vpack.c.b16 %v4828, %v4826
        %v4877 = vpack.c.b16 %v4829, %v4827
        %v4878 = vpack.c.b16 %v4832, %v4830
        %v4879 = vpack.c.b16 %v4833, %v4831
        %v4880 = vpack.c.b16 %v4836, %v4834
        %v4881 = vpack.c.b16 %v4837, %v4835
        %v4882 = vpack.c.b16 %v4840, %v4838
        %v4883 = vpack.c.b16 %v4841, %v4839
        %v4884 = vpack.c.b16 %v4844, %v4842
        %v4885 = vpack.c.b16 %v4845, %v4843
        %v4886 = vpack.c.b16 %v4848, %v4846
        %v4887 = vpack.c.b16 %v4849, %v4847
        %v4888 = vpack.c.b16 %v4852, %v4850
        %v4889 = vpack.c.b16 %v4853, %v4851
        %v4890 = vpack.c.b16 %v4856, %v4854
        %v4891 = vpack.c.b16 %v4857, %v4855
        %v4892 = vpack.c.b16 %v4860, %v4858
        %v4893 = vpack.c.b16 %v4861, %v4859
        %4926 = vmatprep.subr.bf16.mxu0 %v4863
        %4927 = vmatpush1.bf16.msra.mxu0 %v4862
        %4928 = vmatprep.subr.bf16.mxu0 %v4865
        %4929 = vmatpush1.bf16.msra.mxu0 %v4864
        %4930 = vmatprep.subr.bf16.mxu0 %v4867
        %4931 = vmatpush1.bf16.msra.mxu0 %v4866
        %4932 = vmatprep.subr.bf16.mxu0 %v4869
        %4933 = vmatpush1.bf16.msra.mxu0 %v4868
        %4934 = vmatprep.subr.bf16.mxu0 %v4871
        %4935 = vmatpush1.bf16.msra.mxu0 %v4870
        %4936 = vmatprep.subr.bf16.mxu0 %v4873
        %4937 = vmatpush1.bf16.msra.mxu0 %v4872
        %4938 = vmatprep.subr.bf16.mxu0 %v4875
        %4939 = vmatpush1.bf16.msra.mxu0 %v4874
        %4940 = vmatprep.subr.bf16.mxu0 %v4877
        %4941 = vmatpush1.bf16.msra.mxu0 %v4876
        %4942 = vmatprep.subr.bf16.mxu0 %v4879
        %4943 = vmatpush1.bf16.msra.mxu0 %v4878
        %4944 = vmatprep.subr.bf16.mxu0 %v4881
        %4945 = vmatpush1.bf16.msra.mxu0 %v4880
        %4946 = vmatprep.subr.bf16.mxu0 %v4883
        %4947 = vmatpush1.bf16.msra.mxu0 %v4882
        %4948 = vmatprep.subr.bf16.mxu0 %v4885
        %4949 = vmatpush1.bf16.msra.mxu0 %v4884
        %4950 = vmatprep.subr.bf16.mxu0 %v4887
        %4951 = vmatpush1.bf16.msra.mxu0 %v4886
        %4952 = vmatprep.subr.bf16.mxu0 %v4889
        %4953 = vmatpush1.bf16.msra.mxu0 %v4888
        %4954 = vmatprep.subr.bf16.mxu0 %v4891
        %4955 = vmatpush1.bf16.msra.mxu0 %v4890
        %4956 = vmatprep.subr.bf16.mxu0 %v4893
        %4957 = vmatpush1.bf16.msra.mxu0 %v4892
        %4958 = vmatprep.mubr.bf16.mxu0 %v4705
        %4959 = vmatmul.mubr.bf16.gmra.mrb[0].mxu0 %v4704
        %v4960 = vpop.f32.mrb[0].mxu0
        %v4961 = vadd.f32 %v4759, %v4960
        %v4962 = vpop.f32.mrb[0].mxu0
        %v4963 = vadd.f32 %v4763, %v4962
        %v4964 = vpop.f32.mrb[0].mxu0
        %v4965 = vadd.f32 %v4759, %v4964
        %v4966 = vpop.f32.mrb[0].mxu0
        %v4967 = vadd.f32 %v4763, %v4966
        %4968 = vmatprep.mubr.bf16.mxu0 %v4707
        %4969 = vmatmul.mubr.bf16.gmra.mrb[0].mxu0 %v4706
        %v4970 = vpop.f32.mrb[0].mxu0
        %v4971 = vadd.f32 %v4759, %v4970
        %v4972 = vpop.f32.mrb[0].mxu0
        %v4973 = vadd.f32 %v4763, %v4972
        %v4974 = vpop.f32.mrb[0].mxu0
        %v4975 = vadd.f32 %v4759, %v4974
        %v4976 = vpop.f32.mrb[0].mxu0
        %v4977 = vadd.f32 %v4763, %v4976
        %4978 = vmatprep.mubr.bf16.mxu0 %v4709
        %4979 = vmatmul.mubr.bf16.gmra.mrb[0].mxu0 %v4708
        %v4980 = vpop.f32.mrb[0].mxu0
        %v4981 = vadd.f32 %v4759, %v4980
        %v4982 = vpop.f32.mrb[0].mxu0
        %v4983 = vadd.f32 %v4763, %v4982
        %v4984 = vpop.f32.mrb[0].mxu0
        %v4985 = vadd.f32 %v4759, %v4984
        %v4986 = vpop.f32.mrb[0].mxu0
        %v4987 = vadd.f32 %v4763, %v4986
        %4988 = vmatprep.mubr.bf16.mxu0 %v4711
        %4989 = vmatmul.mubr.bf16.gmra.mrb[0].mxu0 %v4710
        %v4990 = vpop.f32.mrb[0].mxu0
        %v4991 = vadd.f32 %v4759, %v4990
        %v4992 = vpop.f32.mrb[0].mxu0
        %v4993 = vadd.f32 %v4763, %v4992
        %v4994 = vpop.f32.mrb[0].mxu0
        %v4995 = vadd.f32 %v4759, %v4994
        %v4996 = vpop.f32.mrb[0].mxu0
        %v4997 = vadd.f32 %v4763, %v4996
        %4998 = vmatprep.mubr.bf16.mxu0 %v4713
        %4999 = vmatmul.mubr.bf16.gmra.mrb[0].mxu0 %v4712
        %v5000 = vpop.f32.mrb[0].mxu0
        %v5001 = vadd.f32 %v4759, %v5000
        %v5002 = vpop.f32.mrb[0].mxu0
        %v5003 = vadd.f32 %v4763, %v5002
        %v5004 = vpop.f32.mrb[0].mxu0
        %v5005 = vadd.f32 %v4759, %v5004
        %v5006 = vpop.f32.mrb[0].mxu0
        %v5007 = vadd.f32 %v4763, %v5006
        %5008 = vmatprep.mubr.bf16.mxu0 %v4715
        %5009 = vmatmul.mubr.bf16.gmra.mrb[0].mxu0 %v4714
        %v5010 = vpop.f32.mrb[0].mxu0
        %v5011 = vadd.f32 %v4759, %v5010
        %v5012 = vpop.f32.mrb[0].mxu0
        %v5013 = vadd.f32 %v4763, %v5012
        %v5014 = vpop.f32.mrb[0].mxu0
        %v5015 = vadd.f32 %v4759, %v5014
        %v5016 = vpop.f32.mrb[0].mxu0
        %v5017 = vadd.f32 %v4763, %v5016
        %5018 = vmatprep.mubr.bf16.mxu0 %v4717
        %5019 = vmatmul.mubr.bf16.gmra.mrb[0].mxu0 %v4716
        %v5020 = vpop.f32.mrb[0].mxu0
        %v5021 = vadd.f32 %v4759, %v5020
        %v5022 = vpop.f32.mrb[0].mxu0
        %v5023 = vadd.f32 %v4763, %v5022
        %v5024 = vpop.f32.mrb[0].mxu0
        %v5025 = vadd.f32 %v4759, %v5024
        %v5026 = vpop.f32.mrb[0].mxu0
        %v5027 = vadd.f32 %v4763, %v5026
        %5028 = vmatprep.mubr.bf16.mxu0 %v4719
        %5029 = vmatmul.mubr.bf16.gmra.mrb[0].mxu0 %v4718
        %v5030 = vpop.f32.mrb[0].mxu0
        %v5031 = vadd.f32 %v4759, %v5030
        %v5032 = vpop.f32.mrb[0].mxu0
        %v5033 = vadd.f32 %v4763, %v5032
        %v5034 = vpop.f32.mrb[0].mxu0
        %v5035 = vadd.f32 %v4759, %v5034
        %v5036 = vpop.f32.mrb[0].mxu0
        %v5037 = vadd.f32 %v4763, %v5036
        %5038 = vdwg.mxu0
        %v5039 = vmul.f32 %v4277, 0.5
        %v5040 = vmul.f32 %v4281, 0.5
        %v5041 = vmul.f32 %v4287, 0.5
        %v5042 = vmul.f32 %v4291, 0.5
        %v5043 = vmul.f32 %v4297, 0.5
        %v5044 = vmul.f32 %v4301, 0.5
        %v5045 = vmul.f32 %v4307, 0.5
        %v5046 = vmul.f32 %v4311, 0.5
        %v5047 = vmul.f32 %v4317, 0.5
        %v5048 = vmul.f32 %v4321, 0.5
        %v5049 = vmul.f32 %v4327, 0.5
        %v5050 = vmul.f32 %v4331, 0.5
        %v5051 = vmul.f32 %v4337, 0.5
        %v5052 = vmul.f32 %v4341, 0.5
        %v5053 = vmul.f32 %v4347, 0.5
        %v5054 = vmul.f32 %v4351, 0.5
        %v5055 = vmul.f32 %v5039, 1.442695
        %v5056 = vpow.pop %v5055
        %v5057 = vmul.f32 %v5040, 1.442695
        %v5058 = vpow.pop %v5057
        %v5059 = vmul.f32 %v5041, 1.442695
        %v5060 = vpow.pop %v5059
        %v5061 = vmul.f32 %v5042, 1.442695
        %v5062 = vpow.pop %v5061
        %v5063 = vmul.f32 %v5043, 1.442695
        %v5064 = vpow.pop %v5063
        %v5065 = vmul.f32 %v5044, 1.442695
        %v5066 = vpow.pop %v5065
        %v5067 = vmul.f32 %v5045, 1.442695
        %v5068 = vpow.pop %v5067
        %v5069 = vmul.f32 %v5046, 1.442695
        %v5070 = vpow.pop %v5069
        %v5071 = vmul.f32 %v5047, 1.442695
        %v5072 = vpow.pop %v5071
        %v5073 = vmul.f32 %v5048, 1.442695
        %v5074 = vpow.pop %v5073
        %v5075 = vmul.f32 %v5049, 1.442695
        %v5076 = vpow.pop %v5075
        %v5077 = vmul.f32 %v5050, 1.442695
        %v5078 = vpow.pop %v5077
        %v5079 = vmul.f32 %v5051, 1.442695
        %v5080 = vpow.pop %v5079
        %v5081 = vmul.f32 %v5052, 1.442695
        %v5082 = vpow.pop %v5081
        %v5083 = vmul.f32 %v5053, 1.442695
        %v5084 = vpow.pop %v5083
        %v5085 = vmul.f32 %v5054, 1.442695
        %v5086 = vpow.pop %v5085
        %v5087 = vld [vmem:[%s749] sm:$0xff]
        %v5088 = vld [vmem:[%s749 + $0x8] sm:$0xff]
        %v5089 = vld [vmem:[%s749 + $0x10] sm:$0xff]
        %v5090 = vld [vmem:[%s749 + $0x18] sm:$0xff]
        %v5091 = vld [vmem:[%s749 + $0x20] sm:$0xff]
        %v5092 = vld [vmem:[%s749 + $0x28] sm:$0xff]
        %v5093 = vld [vmem:[%s749 + $0x30] sm:$0xff]
        %v5094 = vld [vmem:[%s749 + $0x38] sm:$0xff]
        %v5095 = vld [vmem:[%s749 + $0x40] sm:$0xff]
        %v5096 = vld [vmem:[%s749 + $0x48] sm:$0xff]
        %v5097 = vld [vmem:[%s749 + $0x50] sm:$0xff]
        %v5098 = vld [vmem:[%s749 + $0x58] sm:$0xff]
        %v5099 = vld [vmem:[%s749 + $0x60] sm:$0xff]
        %v5100 = vld [vmem:[%s749 + $0x68] sm:$0xff]
        %v5101 = vld [vmem:[%s749 + $0x70] sm:$0xff]
        %v5102 = vld [vmem:[%s749 + $0x78] sm:$0xff]
        %v5103 = vmul.f32 %v5056, %v5087
        %v5104 = vmul.f32 %v5058, %v5088
        %v5105 = vmul.f32 %v5060, %v5089
        %v5106 = vmul.f32 %v5062, %v5090
        %v5107 = vmul.f32 %v5064, %v5091
        %v5108 = vmul.f32 %v5066, %v5092
        %v5109 = vmul.f32 %v5068, %v5093
        %v5110 = vmul.f32 %v5070, %v5094
        %v5111 = vmul.f32 %v5072, %v5095
        %v5112 = vmul.f32 %v5074, %v5096
        %v5113 = vmul.f32 %v5076, %v5097
        %v5114 = vmul.f32 %v5078, %v5098
        %v5115 = vmul.f32 %v5080, %v5099
        %v5116 = vmul.f32 %v5082, %v5100
        %v5117 = vmul.f32 %v5084, %v5101
        %v5118 = vmul.f32 %v5086, %v5102
        %v5119 = vadd.f32 %v4275, %v5103
        %v5120 = vadd.f32 %v4279, %v5104
        %v5121 = vadd.f32 %v4285, %v5105
        %v5122 = vadd.f32 %v4289, %v5106
        %v5123 = vadd.f32 %v4295, %v5107
        %v5124 = vadd.f32 %v4299, %v5108
        %v5125 = vadd.f32 %v4305, %v5109
        %v5126 = vadd.f32 %v4309, %v5110
        %v5127 = vadd.f32 %v4315, %v5111
        %v5128 = vadd.f32 %v4319, %v5112
        %v5129 = vadd.f32 %v4325, %v5113
        %v5130 = vadd.f32 %v4329, %v5114
        %v5131 = vadd.f32 %v4335, %v5115
        %v5132 = vadd.f32 %v4339, %v5116
        %v5133 = vadd.f32 %v4345, %v5117
        %v5134 = vadd.f32 %v4349, %v5118
        %v5135 = vmul.f32 %v4963, 0.5
        %v5136 = vmul.f32 %v4967, 0.5
        %v5137 = vmul.f32 %v4973, 0.5
        %v5138 = vmul.f32 %v4977, 0.5
        %v5139 = vmul.f32 %v4983, 0.5
        %v5140 = vmul.f32 %v4987, 0.5
        %v5141 = vmul.f32 %v4993, 0.5
        %v5142 = vmul.f32 %v4997, 0.5
        %v5143 = vmul.f32 %v5003, 0.5
        %v5144 = vmul.f32 %v5007, 0.5
        %v5145 = vmul.f32 %v5013, 0.5
        %v5146 = vmul.f32 %v5017, 0.5
        %v5147 = vmul.f32 %v5023, 0.5
        %v5148 = vmul.f32 %v5027, 0.5
        %v5149 = vmul.f32 %v5033, 0.5
        %v5150 = vmul.f32 %v5037, 0.5
        %v5151 = vmul.f32 %v5135, 1.442695
        %v5152 = vpow.pop %v5151
        %v5153 = vmul.f32 %v5136, 1.442695
        %v5154 = vpow.pop %v5153
        %v5155 = vmul.f32 %v5137, 1.442695
        %v5156 = vpow.pop %v5155
        %v5157 = vmul.f32 %v5138, 1.442695
        %v5158 = vpow.pop %v5157
        %v5159 = vmul.f32 %v5139, 1.442695
        %v5160 = vpow.pop %v5159
        %v5161 = vmul.f32 %v5140, 1.442695
        %v5162 = vpow.pop %v5161
        %v5163 = vmul.f32 %v5141, 1.442695
        %v5164 = vpow.pop %v5163
        %v5165 = vmul.f32 %v5142, 1.442695
        %v5166 = vpow.pop %v5165
        %v5167 = vmul.f32 %v5143, 1.442695
        %v5168 = vpow.pop %v5167
        %v5169 = vmul.f32 %v5144, 1.442695
        %v5170 = vpow.pop %v5169
        %v5171 = vmul.f32 %v5145, 1.442695
        %v5172 = vpow.pop %v5171
        %v5173 = vmul.f32 %v5146, 1.442695
        %v5174 = vpow.pop %v5173
        %v5175 = vmul.f32 %v5147, 1.442695
        %v5176 = vpow.pop %v5175
        %v5177 = vmul.f32 %v5148, 1.442695
        %v5178 = vpow.pop %v5177
        %v5179 = vmul.f32 %v5149, 1.442695
        %v5180 = vpow.pop %v5179
        %v5181 = vmul.f32 %v5150, 1.442695
        %v5182 = vpow.pop %v5181
        %v5183 = vld [vmem:[%s758] sm:$0xff]
        %v5184 = vld [vmem:[%s758 + $0x8] sm:$0xff]
        %v5185 = vld [vmem:[%s758 + $0x10] sm:$0xff]
        %v5186 = vld [vmem:[%s758 + $0x18] sm:$0xff]
        %v5187 = vld [vmem:[%s758 + $0x20] sm:$0xff]
        %v5188 = vld [vmem:[%s758 + $0x28] sm:$0xff]
        %v5189 = vld [vmem:[%s758 + $0x30] sm:$0xff]
        %v5190 = vld [vmem:[%s758 + $0x38] sm:$0xff]
        %v5191 = vld [vmem:[%s758 + $0x40] sm:$0xff]
        %v5192 = vld [vmem:[%s758 + $0x48] sm:$0xff]
        %v5193 = vld [vmem:[%s758 + $0x50] sm:$0xff]
        %v5194 = vld [vmem:[%s758 + $0x58] sm:$0xff]
        %v5195 = vld [vmem:[%s758 + $0x60] sm:$0xff]
        %v5196 = vld [vmem:[%s758 + $0x68] sm:$0xff]
        %v5197 = vld [vmem:[%s758 + $0x70] sm:$0xff]
        %v5198 = vld [vmem:[%s758 + $0x78] sm:$0xff]
        %v5199 = vmul.f32 %v5152, %v5183
        %v5200 = vmul.f32 %v5154, %v5184
        %v5201 = vmul.f32 %v5156, %v5185
        %v5202 = vmul.f32 %v5158, %v5186
        %v5203 = vmul.f32 %v5160, %v5187
        %v5204 = vmul.f32 %v5162, %v5188
        %v5205 = vmul.f32 %v5164, %v5189
        %v5206 = vmul.f32 %v5166, %v5190
        %v5207 = vmul.f32 %v5168, %v5191
        %v5208 = vmul.f32 %v5170, %v5192
        %v5209 = vmul.f32 %v5172, %v5193
        %v5210 = vmul.f32 %v5174, %v5194
        %v5211 = vmul.f32 %v5176, %v5195
        %v5212 = vmul.f32 %v5178, %v5196
        %v5213 = vmul.f32 %v5180, %v5197
        %v5214 = vmul.f32 %v5182, %v5198
        %v5215 = vadd.f32 %v4961, %v5199
        %v5216 = vadd.f32 %v4965, %v5200
        %v5217 = vadd.f32 %v4971, %v5201
        %v5218 = vadd.f32 %v4975, %v5202
        %v5219 = vadd.f32 %v4981, %v5203
        %v5220 = vadd.f32 %v4985, %v5204
        %v5221 = vadd.f32 %v4991, %v5205
        %v5222 = vadd.f32 %v4995, %v5206
        %v5223 = vadd.f32 %v5001, %v5207
        %v5224 = vadd.f32 %v5005, %v5208
        %v5225 = vadd.f32 %v5011, %v5209
        %v5226 = vadd.f32 %v5015, %v5210
        %v5227 = vadd.f32 %v5021, %v5211
        %v5228 = vadd.f32 %v5025, %v5212
        %v5229 = vadd.f32 %v5031, %v5213
        %v5230 = vadd.f32 %v5035, %v5214
        %5231 = vst [vmem:[%s847] sm:$0xff] %v5119
        %5232 = vst [vmem:[%s847 + $0x8] sm:$0xff] %v5120
        %5233 = vst [vmem:[%s847 + $0x10] sm:$0xff] %v5121
        %5234 = vst [vmem:[%s847 + $0x18] sm:$0xff] %v5122
        %5235 = vst [vmem:[%s847 + $0x20] sm:$0xff] %v5123
        %5236 = vst [vmem:[%s847 + $0x28] sm:$0xff] %v5124
        %5237 = vst [vmem:[%s847 + $0x30] sm:$0xff] %v5125
        %5238 = vst [vmem:[%s847 + $0x38] sm:$0xff] %v5126
        %5239 = vst [vmem:[%s847 + $0x40] sm:$0xff] %v5127
        %5240 = vst [vmem:[%s847 + $0x48] sm:$0xff] %v5128
        %5241 = vst [vmem:[%s847 + $0x50] sm:$0xff] %v5129
        %5242 = vst [vmem:[%s847 + $0x58] sm:$0xff] %v5130
        %5243 = vst [vmem:[%s847 + $0x60] sm:$0xff] %v5131
        %5244 = vst [vmem:[%s847 + $0x68] sm:$0xff] %v5132
        %5245 = vst [vmem:[%s847 + $0x70] sm:$0xff] %v5133
        %5246 = vst [vmem:[%s847 + $0x78] sm:$0xff] %v5134
        %5247 = vst [vmem:[%s854] sm:$0xff] %v5215
        %5248 = vst [vmem:[%s854 + $0x8] sm:$0xff] %v5216
        %5249 = vst [vmem:[%s854 + $0x10] sm:$0xff] %v5217
        %5250 = vst [vmem:[%s854 + $0x18] sm:$0xff] %v5218
        %5251 = vst [vmem:[%s854 + $0x20] sm:$0xff] %v5219
        %5252 = vst [vmem:[%s854 + $0x28] sm:$0xff] %v5220
        %5253 = vst [vmem:[%s854 + $0x30] sm:$0xff] %v5221
        %5254 = vst [vmem:[%s854 + $0x38] sm:$0xff] %v5222
        %5255 = vst [vmem:[%s854 + $0x40] sm:$0xff] %v5223
        %5256 = vst [vmem:[%s854 + $0x48] sm:$0xff] %v5224
        %5257 = vst [vmem:[%s854 + $0x50] sm:$0xff] %v5225
        %5258 = vst [vmem:[%s854 + $0x58] sm:$0xff] %v5226
        %5259 = vst [vmem:[%s854 + $0x60] sm:$0xff] %v5227
        %5260 = vst [vmem:[%s854 + $0x68] sm:$0xff] %v5228
        %5261 = vst [vmem:[%s854 + $0x70] sm:$0xff] %v5229
        %5262 = vst [vmem:[%s854 + $0x78] sm:$0xff] %v5230
        %v5263 = vadd.f32 %v4277, 1.0
        %v5264 = vadd.f32 %v4281, 1.0
        %v5265 = vadd.f32 %v4287, 1.0
        %v5266 = vadd.f32 %v4291, 1.0
        %v5267 = vadd.f32 %v4297, 1.0
        %v5268 = vadd.f32 %v4301, 1.0
        %v5269 = vadd.f32 %v4307, 1.0
        %v5270 = vadd.f32 %v4311, 1.0
        %v5271 = vadd.f32 %v4317, 1.0
        %v5272 = vadd.f32 %v4321, 1.0
        %v5273 = vadd.f32 %v4327, 1.0
        %v5274 = vadd.f32 %v4331, 1.0
        %v5275 = vadd.f32 %v4337, 1.0
        %v5276 = vadd.f32 %v4341, 1.0
        %v5277 = vadd.f32 %v4347, 1.0
        %v5278 = vadd.f32 %v4351, 1.0
        %v5279 = vmul.f32 %v4275, %v4275
        %v5280 = vmul.f32 %v4279, %v4279
        %v5281 = vmul.f32 %v4285, %v4285
        %v5282 = vmul.f32 %v4289, %v4289
        %v5283 = vmul.f32 %v4295, %v4295
        %v5284 = vmul.f32 %v4299, %v4299
        %v5285 = vmul.f32 %v4305, %v4305
        %v5286 = vmul.f32 %v4309, %v4309
        %v5287 = vmul.f32 %v4315, %v4315
        %v5288 = vmul.f32 %v4319, %v4319
        %v5289 = vmul.f32 %v4325, %v4325
        %v5290 = vmul.f32 %v4329, %v4329
        %v5291 = vmul.f32 %v4335, %v4335
        %v5292 = vmul.f32 %v4339, %v4339
        %v5293 = vmul.f32 %v4345, %v4345
        %v5294 = vmul.f32 %v4349, %v4349
        %v5295 = vsub.f32 %v5263, %v5279
        %v5296 = vsub.f32 %v5264, %v5280
        %v5297 = vsub.f32 %v5265, %v5281
        %v5298 = vsub.f32 %v5266, %v5282
        %v5299 = vsub.f32 %v5267, %v5283
        %v5300 = vsub.f32 %v5268, %v5284
        %v5301 = vsub.f32 %v5269, %v5285
        %v5302 = vsub.f32 %v5270, %v5286
        %v5303 = vsub.f32 %v5271, %v5287
        %v5304 = vsub.f32 %v5272, %v5288
        %v5305 = vsub.f32 %v5273, %v5289
        %v5306 = vsub.f32 %v5274, %v5290
        %v5307 = vsub.f32 %v5275, %v5291
        %v5308 = vsub.f32 %v5276, %v5292
        %v5309 = vsub.f32 %v5277, %v5293
        %v5310 = vsub.f32 %v5278, %v5294
        %v5311 = vmul.f32 %v4277, 1.442695
        %v5312 = vpow.pop %v5311
        %v5313 = vmul.f32 %v4281, 1.442695
        %v5314 = vpow.pop %v5313
        %v5315 = vmul.f32 %v4287, 1.442695
        %v5316 = vpow.pop %v5315
        %v5317 = vmul.f32 %v4291, 1.442695
        %v5318 = vpow.pop %v5317
        %v5319 = vmul.f32 %v4297, 1.442695
        %v5320 = vpow.pop %v5319
        %v5321 = vmul.f32 %v4301, 1.442695
        %v5322 = vpow.pop %v5321
        %v5323 = vmul.f32 %v4307, 1.442695
        %v5324 = vpow.pop %v5323
        %v5325 = vmul.f32 %v4311, 1.442695
        %v5326 = vpow.pop %v5325
        %v5327 = vmul.f32 %v4317, 1.442695
        %v5328 = vpow.pop %v5327
        %v5329 = vmul.f32 %v4321, 1.442695
        %v5330 = vpow.pop %v5329
        %v5331 = vmul.f32 %v4327, 1.442695
        %v5332 = vpow.pop %v5331
        %v5333 = vmul.f32 %v4331, 1.442695
        %v5334 = vpow.pop %v5333
        %v5335 = vmul.f32 %v4337, 1.442695
        %v5336 = vpow.pop %v5335
        %v5337 = vmul.f32 %v4341, 1.442695
        %v5338 = vpow.pop %v5337
        %v5339 = vmul.f32 %v4347, 1.442695
        %v5340 = vpow.pop %v5339
        %v5341 = vmul.f32 %v4351, 1.442695
        %v5342 = vpow.pop %v5341
        %v5343 = vsub.f32 %v5295, %v5312
        %v5344 = vsub.f32 %v5296, %v5314
        %v5345 = vsub.f32 %v5297, %v5316
        %v5346 = vsub.f32 %v5298, %v5318
        %v5347 = vsub.f32 %v5299, %v5320
        %v5348 = vsub.f32 %v5300, %v5322
        %v5349 = vsub.f32 %v5301, %v5324
        %v5350 = vsub.f32 %v5302, %v5326
        %v5351 = vsub.f32 %v5303, %v5328
        %v5352 = vsub.f32 %v5304, %v5330
        %v5353 = vsub.f32 %v5305, %v5332
        %v5354 = vsub.f32 %v5306, %v5334
        %v5355 = vsub.f32 %v5307, %v5336
        %v5356 = vsub.f32 %v5308, %v5338
        %v5357 = vsub.f32 %v5309, %v5340
        %v5358 = vsub.f32 %v5310, %v5342
        %v5359 = vmul.f32 %v5343, -0.5
        %v5360 = vmul.f32 %v5344, -0.5
        %v5361 = vmul.f32 %v5345, -0.5
        %v5362 = vmul.f32 %v5346, -0.5
        %v5363 = vmul.f32 %v5347, -0.5
        %v5364 = vmul.f32 %v5348, -0.5
        %v5365 = vmul.f32 %v5349, -0.5
        %v5366 = vmul.f32 %v5350, -0.5
        %v5367 = vmul.f32 %v5351, -0.5
        %v5368 = vmul.f32 %v5352, -0.5
        %v5369 = vmul.f32 %v5353, -0.5
        %v5370 = vmul.f32 %v5354, -0.5
        %v5371 = vmul.f32 %v5355, -0.5
        %v5372 = vmul.f32 %v5356, -0.5
        %v5373 = vmul.f32 %v5357, -0.5
        %v5374 = vmul.f32 %v5358, -0.5
        %5375 = vst [vmem:[%s876] sm:$0xff] %v5359
        %5376 = vst [vmem:[%s876 + $0x8] sm:$0xff] %v5360
        %5377 = vst [vmem:[%s876 + $0x10] sm:$0xff] %v5361
        %5378 = vst [vmem:[%s876 + $0x18] sm:$0xff] %v5362
        %5379 = vst [vmem:[%s876 + $0x20] sm:$0xff] %v5363
        %5380 = vst [vmem:[%s876 + $0x28] sm:$0xff] %v5364
        %5381 = vst [vmem:[%s876 + $0x30] sm:$0xff] %v5365
        %5382 = vst [vmem:[%s876 + $0x38] sm:$0xff] %v5366
        %5383 = vst [vmem:[%s876 + $0x40] sm:$0xff] %v5367
        %5384 = vst [vmem:[%s876 + $0x48] sm:$0xff] %v5368
        %5385 = vst [vmem:[%s876 + $0x50] sm:$0xff] %v5369
        %5386 = vst [vmem:[%s876 + $0x58] sm:$0xff] %v5370
        %5387 = vst [vmem:[%s876 + $0x60] sm:$0xff] %v5371
        %5388 = vst [vmem:[%s876 + $0x68] sm:$0xff] %v5372
        %5389 = vst [vmem:[%s876 + $0x70] sm:$0xff] %v5373
        %5390 = vst [vmem:[%s876 + $0x78] sm:$0xff] %v5374
        %v5391 = vadd.f32 %v4963, 1.0
        %v5392 = vadd.f32 %v4967, 1.0
        %v5393 = vadd.f32 %v4973, 1.0
        %v5394 = vadd.f32 %v4977, 1.0
        %v5395 = vadd.f32 %v4983, 1.0
        %v5396 = vadd.f32 %v4987, 1.0
        %v5397 = vadd.f32 %v4993, 1.0
        %v5398 = vadd.f32 %v4997, 1.0
        %v5399 = vadd.f32 %v5003, 1.0
        %v5400 = vadd.f32 %v5007, 1.0
        %v5401 = vadd.f32 %v5013, 1.0
        %v5402 = vadd.f32 %v5017, 1.0
        %v5403 = vadd.f32 %v5023, 1.0
        %v5404 = vadd.f32 %v5027, 1.0
        %v5405 = vadd.f32 %v5033, 1.0
        %v5406 = vadd.f32 %v5037, 1.0
        %v5407 = vmul.f32 %v4961, %v4961
        %v5408 = vmul.f32 %v4965, %v4965
        %v5409 = vmul.f32 %v4971, %v4971
        %v5410 = vmul.f32 %v4975, %v4975
        %v5411 = vmul.f32 %v4981, %v4981
        %v5412 = vmul.f32 %v4985, %v4985
        %v5413 = vmul.f32 %v4991, %v4991
        %v5414 = vmul.f32 %v4995, %v4995
        %v5415 = vmul.f32 %v5001, %v5001
        %v5416 = vmul.f32 %v5005, %v5005
        %v5417 = vmul.f32 %v5011, %v5011
        %v5418 = vmul.f32 %v5015, %v5015
        %v5419 = vmul.f32 %v5021, %v5021
        %v5420 = vmul.f32 %v5025, %v5025
        %v5421 = vmul.f32 %v5031, %v5031
        %v5422 = vmul.f32 %v5035, %v5035
        %v5423 = vsub.f32 %v5391, %v5407
        %v5424 = vsub.f32 %v5392, %v5408
        %v5425 = vsub.f32 %v5393, %v5409
        %v5426 = vsub.f32 %v5394, %v5410
        %v5427 = vsub.f32 %v5395, %v5411
        %v5428 = vsub.f32 %v5396, %v5412
        %v5429 = vsub.f32 %v5397, %v5413
        %v5430 = vsub.f32 %v5398, %v5414
        %v5431 = vsub.f32 %v5399, %v5415
        %v5432 = vsub.f32 %v5400, %v5416
        %v5433 = vsub.f32 %v5401, %v5417
        %v5434 = vsub.f32 %v5402, %v5418
        %v5435 = vsub.f32 %v5403, %v5419
        %v5436 = vsub.f32 %v5404, %v5420
        %v5437 = vsub.f32 %v5405, %v5421
        %v5438 = vsub.f32 %v5406, %v5422
        %v5439 = vmul.f32 %v4963, 1.442695
        %v5440 = vpow.pop %v5439
        %v5441 = vmul.f32 %v4967, 1.442695
        %v5442 = vpow.pop %v5441
        %v5443 = vmul.f32 %v4973, 1.442695
        %v5444 = vpow.pop %v5443
        %v5445 = vmul.f32 %v4977, 1.442695
        %v5446 = vpow.pop %v5445
        %v5447 = vmul.f32 %v4983, 1.442695
        %v5448 = vpow.pop %v5447
        %v5449 = vmul.f32 %v4987, 1.442695
        %v5450 = vpow.pop %v5449
        %v5451 = vmul.f32 %v4993, 1.442695
        %v5452 = vpow.pop %v5451
        %v5453 = vmul.f32 %v4997, 1.442695
        %v5454 = vpow.pop %v5453
        %v5455 = vmul.f32 %v5003, 1.442695
        %v5456 = vpow.pop %v5455
        %v5457 = vmul.f32 %v5007, 1.442695
        %v5458 = vpow.pop %v5457
        %v5459 = vmul.f32 %v5013, 1.442695
        %v5460 = vpow.pop %v5459
        %v5461 = vmul.f32 %v5017, 1.442695
        %v5462 = vpow.pop %v5461
        %v5463 = vmul.f32 %v5023, 1.442695
        %v5464 = vpow.pop %v5463
        %v5465 = vmul.f32 %v5027, 1.442695
        %v5466 = vpow.pop %v5465
        %v5467 = vmul.f32 %v5033, 1.442695
        %v5468 = vpow.pop %v5467
        %v5469 = vmul.f32 %v5037, 1.442695
        %v5470 = vpow.pop %v5469
        %v5471 = vsub.f32 %v5423, %v5440
        %v5472 = vsub.f32 %v5424, %v5442
        %v5473 = vsub.f32 %v5425, %v5444
        %v5474 = vsub.f32 %v5426, %v5446
        %v5475 = vsub.f32 %v5427, %v5448
        %v5476 = vsub.f32 %v5428, %v5450
        %v5477 = vsub.f32 %v5429, %v5452
        %v5478 = vsub.f32 %v5430, %v5454
        %v5479 = vsub.f32 %v5431, %v5456
        %v5480 = vsub.f32 %v5432, %v5458
        %v5481 = vsub.f32 %v5433, %v5460
        %v5482 = vsub.f32 %v5434, %v5462
        %v5483 = vsub.f32 %v5435, %v5464
        %v5484 = vsub.f32 %v5436, %v5466
        %v5485 = vsub.f32 %v5437, %v5468
        %v5486 = vsub.f32 %v5438, %v5470
        %v5487 = vmul.f32 %v5471, -0.5
        %v5488 = vmul.f32 %v5472, -0.5
        %v5489 = vmul.f32 %v5473, -0.5
        %v5490 = vmul.f32 %v5474, -0.5
        %v5491 = vmul.f32 %v5475, -0.5
        %v5492 = vmul.f32 %v5476, -0.5
        %v5493 = vmul.f32 %v5477, -0.5
        %v5494 = vmul.f32 %v5478, -0.5
        %v5495 = vmul.f32 %v5479, -0.5
        %v5496 = vmul.f32 %v5480, -0.5
        %v5497 = vmul.f32 %v5481, -0.5
        %v5498 = vmul.f32 %v5482, -0.5
        %v5499 = vmul.f32 %v5483, -0.5
        %v5500 = vmul.f32 %v5484, -0.5
        %v5501 = vmul.f32 %v5485, -0.5
        %v5502 = vmul.f32 %v5486, -0.5
        %5503 = vst [vmem:[%s883] sm:$0xff] %v5487
        %5504 = vst [vmem:[%s883 + $0x8] sm:$0xff] %v5488
        %5505 = vst [vmem:[%s883 + $0x10] sm:$0xff] %v5489
        %5506 = vst [vmem:[%s883 + $0x18] sm:$0xff] %v5490
        %5507 = vst [vmem:[%s883 + $0x20] sm:$0xff] %v5491
        %5508 = vst [vmem:[%s883 + $0x28] sm:$0xff] %v5492
        %5509 = vst [vmem:[%s883 + $0x30] sm:$0xff] %v5493
        %5510 = vst [vmem:[%s883 + $0x38] sm:$0xff] %v5494
        %5511 = vst [vmem:[%s883 + $0x40] sm:$0xff] %v5495
        %5512 = vst [vmem:[%s883 + $0x48] sm:$0xff] %v5496
        %5513 = vst [vmem:[%s883 + $0x50] sm:$0xff] %v5497
        %5514 = vst [vmem:[%s883 + $0x58] sm:$0xff] %v5498
        %5515 = vst [vmem:[%s883 + $0x60] sm:$0xff] %v5499
        %5516 = vst [vmem:[%s883 + $0x68] sm:$0xff] %v5500
        %5517 = vst [vmem:[%s883 + $0x70] sm:$0xff] %v5501
        %5518 = vst [vmem:[%s883 + $0x78] sm:$0xff] %v5502
        %v5519 = vmul.f32 %v5215, %v5215
        %v5520 = vmul.f32 %v5216, %v5216
        %v5521 = vmul.f32 %v5217, %v5217
        %v5522 = vmul.f32 %v5218, %v5218
        %v5523 = vmul.f32 %v5219, %v5219
        %v5524 = vmul.f32 %v5220, %v5220
        %v5525 = vmul.f32 %v5221, %v5221
        %v5526 = vmul.f32 %v5222, %v5222
        %v5527 = vmul.f32 %v5223, %v5223
        %v5528 = vmul.f32 %v5224, %v5224
        %v5529 = vmul.f32 %v5225, %v5225
        %v5530 = vmul.f32 %v5226, %v5226
        %v5531 = vmul.f32 %v5227, %v5227
        %v5532 = vmul.f32 %v5228, %v5228
        %v5533 = vmul.f32 %v5229, %v5229
        %v5534 = vmul.f32 %v5230, %v5230
        %5535 = vrot.lane.b32.xlu0 %v5519, 1
        %v5536 = vpop.permute.xlu0 %5535
        %5537 = vrot.lane.b32.xlu0 %v5520, 1
        %v5538 = vpop.permute.xlu0 %5537
        %5539 = vrot.lane.b32.xlu0 %v5521, 1
        %v5540 = vpop.permute.xlu0 %5539
        %5541 = vrot.lane.b32.xlu0 %v5522, 1
        %v5542 = vpop.permute.xlu0 %5541
        %5543 = vrot.lane.b32.xlu0 %v5523, 1
        %v5544 = vpop.permute.xlu0 %5543
        %5545 = vrot.lane.b32.xlu0 %v5524, 1
        %v5546 = vpop.permute.xlu0 %5545
        %5547 = vrot.lane.b32.xlu0 %v5525, 1
        %v5548 = vpop.permute.xlu0 %5547
        %5549 = vrot.lane.b32.xlu0 %v5526, 1
        %v5550 = vpop.permute.xlu0 %5549
        %5551 = vrot.lane.b32.xlu0 %v5527, 1
        %v5552 = vpop.permute.xlu0 %5551
        %5553 = vrot.lane.b32.xlu0 %v5528, 1
        %v5554 = vpop.permute.xlu0 %5553
        %5555 = vrot.lane.b32.xlu0 %v5529, 1
        %v5556 = vpop.permute.xlu0 %5555
        %5557 = vrot.lane.b32.xlu0 %v5530, 1
        %v5558 = vpop.permute.xlu0 %5557
        %5559 = vrot.lane.b32.xlu0 %v5531, 1
        %v5560 = vpop.permute.xlu0 %5559
        %5561 = vrot.lane.b32.xlu0 %v5532, 1
        %v5562 = vpop.permute.xlu0 %5561
        %5563 = vrot.lane.b32.xlu0 %v5533, 1
        %v5564 = vpop.permute.xlu0 %5563
        %5565 = vrot.lane.b32.xlu0 %v5534, 1
        %v5566 = vpop.permute.xlu0 %5565
        %v5567 = vadd.f32 %v5519, %v5536
        %v5568 = vadd.f32 %v5520, %v5538
        %v5569 = vadd.f32 %v5521, %v5540
        %v5570 = vadd.f32 %v5522, %v5542
        %v5571 = vadd.f32 %v5523, %v5544
        %v5572 = vadd.f32 %v5524, %v5546
        %v5573 = vadd.f32 %v5525, %v5548
        %v5574 = vadd.f32 %v5526, %v5550
        %v5575 = vadd.f32 %v5527, %v5552
        %v5576 = vadd.f32 %v5528, %v5554
        %v5577 = vadd.f32 %v5529, %v5556
        %v5578 = vadd.f32 %v5530, %v5558
        %v5579 = vadd.f32 %v5531, %v5560
        %v5580 = vadd.f32 %v5532, %v5562
        %v5581 = vadd.f32 %v5533, %v5564
        %v5582 = vadd.f32 %v5534, %v5566
        %5583 = vrot.lane.b32.xlu0 %v5519, 127
        %v5584 = vpop.permute.xlu0 %5583
        %5585 = vrot.lane.b32.xlu0 %v5520, 127
        %v5586 = vpop.permute.xlu0 %5585
        %5587 = vrot.lane.b32.xlu0 %v5521, 127
        %v5588 = vpop.permute.xlu0 %5587
        %5589 = vrot.lane.b32.xlu0 %v5522, 127
        %v5590 = vpop.permute.xlu0 %5589
        %5591 = vrot.lane.b32.xlu0 %v5523, 127
        %v5592 = vpop.permute.xlu0 %5591
        %5593 = vrot.lane.b32.xlu0 %v5524, 127
        %v5594 = vpop.permute.xlu0 %5593
        %5595 = vrot.lane.b32.xlu0 %v5525, 127
        %v5596 = vpop.permute.xlu0 %5595
        %5597 = vrot.lane.b32.xlu0 %v5526, 127
        %v5598 = vpop.permute.xlu0 %5597
        %5599 = vrot.lane.b32.xlu0 %v5527, 127
        %v5600 = vpop.permute.xlu0 %5599
        %5601 = vrot.lane.b32.xlu0 %v5528, 127
        %v5602 = vpop.permute.xlu0 %5601
        %5603 = vrot.lane.b32.xlu0 %v5529, 127
        %v5604 = vpop.permute.xlu0 %5603
        %5605 = vrot.lane.b32.xlu0 %v5530, 127
        %v5606 = vpop.permute.xlu0 %5605
        %5607 = vrot.lane.b32.xlu0 %v5531, 127
        %v5608 = vpop.permute.xlu0 %5607
        %5609 = vrot.lane.b32.xlu0 %v5532, 127
        %v5610 = vpop.permute.xlu0 %5609
        %5611 = vrot.lane.b32.xlu0 %v5533, 127
        %v5612 = vpop.permute.xlu0 %5611
        %5613 = vrot.lane.b32.xlu0 %v5534, 127
        %v5614 = vpop.permute.xlu0 %5613
        %v5615 = vadd.f32 %v5567, %v5584
        %v5616 = vadd.f32 %v5568, %v5586
        %v5617 = vadd.f32 %v5569, %v5588
        %v5618 = vadd.f32 %v5570, %v5590
        %v5619 = vadd.f32 %v5571, %v5592
        %v5620 = vadd.f32 %v5572, %v5594
        %v5621 = vadd.f32 %v5573, %v5596
        %v5622 = vadd.f32 %v5574, %v5598
        %v5623 = vadd.f32 %v5575, %v5600
        %v5624 = vadd.f32 %v5576, %v5602
        %v5625 = vadd.f32 %v5577, %v5604
        %v5626 = vadd.f32 %v5578, %v5606
        %v5627 = vadd.f32 %v5579, %v5608
        %v5628 = vadd.f32 %v5580, %v5610
        %v5629 = vadd.f32 %v5581, %v5612
        %v5630 = vadd.f32 %v5582, %v5614
        %v5631 = vadd.f32 %v5615, 1e-06
        %v5632 = vadd.f32 %v5616, 1e-06
        %v5633 = vadd.f32 %v5617, 1e-06
        %v5634 = vadd.f32 %v5618, 1e-06
        %v5635 = vadd.f32 %v5619, 1e-06
        %v5636 = vadd.f32 %v5620, 1e-06
        %v5637 = vadd.f32 %v5621, 1e-06
        %v5638 = vadd.f32 %v5622, 1e-06
        %v5639 = vadd.f32 %v5623, 1e-06
        %v5640 = vadd.f32 %v5624, 1e-06
        %v5641 = vadd.f32 %v5625, 1e-06
        %v5642 = vadd.f32 %v5626, 1e-06
        %v5643 = vadd.f32 %v5627, 1e-06
        %v5644 = vadd.f32 %v5628, 1e-06
        %v5645 = vadd.f32 %v5629, 1e-06
        %v5646 = vadd.f32 %v5630, 1e-06
        %v5647 = vrsqrt.pop %v5631
        %v5648 = vrsqrt.pop %v5632
        %v5649 = vrsqrt.pop %v5633
        %v5650 = vrsqrt.pop %v5634
        %v5651 = vrsqrt.pop %v5635
        %v5652 = vrsqrt.pop %v5636
        %v5653 = vrsqrt.pop %v5637
        %v5654 = vrsqrt.pop %v5638
        %v5655 = vrsqrt.pop %v5639
        %v5656 = vrsqrt.pop %v5640
        %v5657 = vrsqrt.pop %v5641
        %v5658 = vrsqrt.pop %v5642
        %v5659 = vrsqrt.pop %v5643
        %v5660 = vrsqrt.pop %v5644
        %v5661 = vrsqrt.pop %v5645
        %v5662 = vrsqrt.pop %v5646
        %v5663 = vmul.f32 %v5119, %v5647
        %v5664 = vmul.f32 %v5120, %v5648
        %v5665 = vmul.f32 %v5121, %v5649
        %v5666 = vmul.f32 %v5122, %v5650
        %v5667 = vmul.f32 %v5123, %v5651
        %v5668 = vmul.f32 %v5124, %v5652
        %v5669 = vmul.f32 %v5125, %v5653
        %v5670 = vmul.f32 %v5126, %v5654
        %v5671 = vmul.f32 %v5127, %v5655
        %v5672 = vmul.f32 %v5128, %v5656
        %v5673 = vmul.f32 %v5129, %v5657
        %v5674 = vmul.f32 %v5130, %v5658
        %v5675 = vmul.f32 %v5131, %v5659
        %v5676 = vmul.f32 %v5132, %v5660
        %v5677 = vmul.f32 %v5133, %v5661
        %v5678 = vmul.f32 %v5134, %v5662
        %5679 = vst [vmem:[%s861] sm:$0xff] %v5663
        %5680 = vst [vmem:[%s861 + $0x8] sm:$0xff] %v5664
        %5681 = vst [vmem:[%s861 + $0x10] sm:$0xff] %v5665
        %5682 = vst [vmem:[%s861 + $0x18] sm:$0xff] %v5666
        %5683 = vst [vmem:[%s861 + $0x20] sm:$0xff] %v5667
        %5684 = vst [vmem:[%s861 + $0x28] sm:$0xff] %v5668
        %5685 = vst [vmem:[%s861 + $0x30] sm:$0xff] %v5669
        %5686 = vst [vmem:[%s861 + $0x38] sm:$0xff] %v5670
        %5687 = vst [vmem:[%s861 + $0x40] sm:$0xff] %v5671
        %5688 = vst [vmem:[%s861 + $0x48] sm:$0xff] %v5672
        %5689 = vst [vmem:[%s861 + $0x50] sm:$0xff] %v5673
        %5690 = vst [vmem:[%s861 + $0x58] sm:$0xff] %v5674
        %5691 = vst [vmem:[%s861 + $0x60] sm:$0xff] %v5675
        %5692 = vst [vmem:[%s861 + $0x68] sm:$0xff] %v5676
        %5693 = vst [vmem:[%s861 + $0x70] sm:$0xff] %v5677
        %5694 = vst [vmem:[%s861 + $0x78] sm:$0xff] %v5678
        %v5695 = vpack.c.bf16 %v5664, %v5663
        %v5696 = vpack.c.bf16 %v5666, %v5665
        %v5697 = vpack.c.bf16 %v5668, %v5667
        %v5698 = vpack.c.bf16 %v5670, %v5669
        %v5699 = vpack.c.bf16 %v5672, %v5671
        %v5700 = vpack.c.bf16 %v5674, %v5673
        %v5701 = vpack.c.bf16 %v5676, %v5675
        %v5702 = vpack.c.bf16 %v5678, %v5677
        %v5703 = vld [vmem:[#allocation11] sm:$0xff]
        %v5704 = vld [vmem:[#allocation11 + $0x8] sm:$0xff]
        %v5705 = vld [vmem:[#allocation11 + $0x10] sm:$0xff]
        %v5706 = vld [vmem:[#allocation11 + $0x18] sm:$0xff]
        %v5707 = vld [vmem:[#allocation11 + $0x20] sm:$0xff]
        %v5708 = vld [vmem:[#allocation11 + $0x28] sm:$0xff]
        %v5709 = vld [vmem:[#allocation11 + $0x30] sm:$0xff]
        %v5710 = vld [vmem:[#allocation11 + $0x38] sm:$0xff]
        %v5711 = vld [vmem:[#allocation11 + $0x40] sm:$0xff]
        %v5712 = vld [vmem:[#allocation11 + $0x48] sm:$0xff]
        %v5713 = vld [vmem:[#allocation11 + $0x50] sm:$0xff]
        %v5714 = vld [vmem:[#allocation11 + $0x58] sm:$0xff]
        %v5715 = vld [vmem:[#allocation11 + $0x60] sm:$0xff]
        %v5716 = vld [vmem:[#allocation11 + $0x68] sm:$0xff]
        %v5717 = vld [vmem:[#allocation11 + $0x70] sm:$0xff]
        %v5718 = vld [vmem:[#allocation11 + $0x78] sm:$0xff]
        %v5719 = vld [vmem:[#allocation13] sm:$0x3]
        %v5721 = vlaneseq
        %v5722 = vshrl.u32 %v5721, 7
        %v5723 = vsub.s32 0, %v5722
        %v5724 = vrot.slane %v5719, %v5723
        %v5725 = vlaneseq
        %v5726 = vshrl.u32 %v5725, 7
        %v5727 = vsub.s32 1, %v5726
        %v5728 = vrot.slane %v5719, %v5727
        %v5747 = vunpack.c.l.b16 %v5703
        %v5748 = vunpack.c.h.b16 %v5703
        %v5749 = vunpack.c.l.b16 %v5704
        %v5750 = vunpack.c.h.b16 %v5704
        %v5751 = vunpack.c.l.b16 %v5705
        %v5752 = vunpack.c.h.b16 %v5705
        %v5753 = vunpack.c.l.b16 %v5706
        %v5754 = vunpack.c.h.b16 %v5706
        %v5755 = vunpack.c.l.b16 %v5707
        %v5756 = vunpack.c.h.b16 %v5707
        %v5757 = vunpack.c.l.b16 %v5708
        %v5758 = vunpack.c.h.b16 %v5708
        %v5759 = vunpack.c.l.b16 %v5709
        %v5760 = vunpack.c.h.b16 %v5709
        %v5761 = vunpack.c.l.b16 %v5710
        %v5762 = vunpack.c.h.b16 %v5710
        %v5763 = vunpack.c.l.b16 %v5711
        %v5764 = vunpack.c.h.b16 %v5711
        %v5765 = vunpack.c.l.b16 %v5712
        %v5766 = vunpack.c.h.b16 %v5712
        %v5767 = vunpack.c.l.b16 %v5713
        %v5768 = vunpack.c.h.b16 %v5713
        %v5769 = vunpack.c.l.b16 %v5714
        %v5770 = vunpack.c.h.b16 %v5714
        %v5771 = vunpack.c.l.b16 %v5715
        %v5772 = vunpack.c.h.b16 %v5715
        %v5773 = vunpack.c.l.b16 %v5716
        %v5774 = vunpack.c.h.b16 %v5716
        %v5775 = vunpack.c.l.b16 %v5717
        %v5776 = vunpack.c.h.b16 %v5717
        %v5777 = vunpack.c.l.b16 %v5718
        %v5778 = vunpack.c.h.b16 %v5718
        %v5779 = vpack.c.b16 %v5749, %v5747
        %v5780 = vpack.c.b16 %v5750, %v5748
        %v5781 = vpack.c.b16 %v5753, %v5751
        %v5782 = vpack.c.b16 %v5754, %v5752
        %v5783 = vpack.c.b16 %v5757, %v5755
        %v5784 = vpack.c.b16 %v5758, %v5756
        %v5785 = vpack.c.b16 %v5761, %v5759
        %v5786 = vpack.c.b16 %v5762, %v5760
        %v5787 = vpack.c.b16 %v5765, %v5763
        %v5788 = vpack.c.b16 %v5766, %v5764
        %v5789 = vpack.c.b16 %v5769, %v5767
        %v5790 = vpack.c.b16 %v5770, %v5768
        %v5791 = vpack.c.b16 %v5773, %v5771
        %v5792 = vpack.c.b16 %v5774, %v5772
        %v5793 = vpack.c.b16 %v5777, %v5775
        %v5794 = vpack.c.b16 %v5778, %v5776
        %5811 = vmatprep.subr.bf16.mxu0 %v5780
        %5812 = vmatpush1.bf16.msra.mxu0 %v5779
        %5813 = vmatprep.subr.bf16.mxu0 %v5782
        %5814 = vmatpush1.bf16.msra.mxu0 %v5781
        %5815 = vmatprep.subr.bf16.mxu0 %v5784
        %5816 = vmatpush1.bf16.msra.mxu0 %v5783
        %5817 = vmatprep.subr.bf16.mxu0 %v5786
        %5818 = vmatpush1.bf16.msra.mxu0 %v5785
        %5819 = vmatprep.subr.bf16.mxu0 %v5788
        %5820 = vmatpush1.bf16.msra.mxu0 %v5787
        %5821 = vmatprep.subr.bf16.mxu0 %v5790
        %5822 = vmatpush1.bf16.msra.mxu0 %v5789
        %5823 = vmatprep.subr.bf16.mxu0 %v5792
        %5824 = vmatpush1.bf16.msra.mxu0 %v5791
        %5825 = vmatprep.subr.bf16.mxu0 %v5794
        %5826 = vmatpush1.bf16.msra.mxu0 %v5793
        %5827 = vmatprep.subr.bf16.mxu0 0
        %5828 = vmatpush1.bf16.msra.mxu0 0
        %5829 = vmatprep.subr.bf16.mxu0 0
        %5830 = vmatpush1.bf16.msra.mxu0 0
        %5831 = vmatprep.subr.bf16.mxu0 0
        %5832 = vmatpush1.bf16.msra.mxu0 0
        %5833 = vmatprep.subr.bf16.mxu0 0
        %5834 = vmatpush1.bf16.msra.mxu0 0
        %5835 = vmatprep.subr.bf16.mxu0 0
        %5836 = vmatpush1.bf16.msra.mxu0 0
        %5837 = vmatprep.subr.bf16.mxu0 0
        %5838 = vmatpush1.bf16.msra.mxu0 0
        %5839 = vmatprep.subr.bf16.mxu0 0
        %5840 = vmatpush1.bf16.msra.mxu0 0
        %5841 = vmatprep.subr.bf16.mxu0 0
        %5842 = vmatpush1.bf16.msra.mxu0 0
        %5843 = vmatprep.mubr.bf16.mxu0 0
        %5844 = vmatmul.mubr.bf16.gmra.mrb[0].mxu0 %v5695
        %v5845 = vpop.f32.mrb[0].mxu0
        %v5846 = vadd.f32 %v5724, %v5845
        %v5847 = vpop.f32.mrb[0].mxu0
        %v5848 = vadd.f32 %v5728, %v5847
        %v5849 = vpop.f32.mrb[0].mxu0
        %v5850 = vadd.f32 %v5724, %v5849
        %v5851 = vpop.f32.mrb[0].mxu0
        %v5852 = vadd.f32 %v5728, %v5851
        %5853 = vmatprep.mubr.bf16.mxu0 0
        %5854 = vmatmul.mubr.bf16.gmra.mrb[0].mxu0 %v5696
        %v5855 = vpop.f32.mrb[0].mxu0
        %v5856 = vadd.f32 %v5724, %v5855
        %v5857 = vpop.f32.mrb[0].mxu0
        %v5858 = vadd.f32 %v5728, %v5857
        %v5859 = vpop.f32.mrb[0].mxu0
        %v5860 = vadd.f32 %v5724, %v5859
        %v5861 = vpop.f32.mrb[0].mxu0
        %v5862 = vadd.f32 %v5728, %v5861
        %5863 = vmatprep.mubr.bf16.mxu0 0
        %5864 = vmatmul.mubr.bf16.gmra.mrb[0].mxu0 %v5697
        %v5865 = vpop.f32.mrb[0].mxu0
        %v5866 = vadd.f32 %v5724, %v5865
        %v5867 = vpop.f32.mrb[0].mxu0
        %v5868 = vadd.f32 %v5728, %v5867
        %v5869 = vpop.f32.mrb[0].mxu0
        %v5870 = vadd.f32 %v5724, %v5869
        %v5871 = vpop.f32.mrb[0].mxu0
        %v5872 = vadd.f32 %v5728, %v5871
        %5873 = vmatprep.mubr.bf16.mxu0 0
        %5874 = vmatmul.mubr.bf16.gmra.mrb[0].mxu0 %v5698
        %v5875 = vpop.f32.mrb[0].mxu0
        %v5876 = vadd.f32 %v5724, %v5875
        %v5877 = vpop.f32.mrb[0].mxu0
        %v5878 = vadd.f32 %v5728, %v5877
        %v5879 = vpop.f32.mrb[0].mxu0
        %v5880 = vadd.f32 %v5724, %v5879
        %v5881 = vpop.f32.mrb[0].mxu0
        %v5882 = vadd.f32 %v5728, %v5881
        %5883 = vmatprep.mubr.bf16.mxu0 0
        %5884 = vmatmul.mubr.bf16.gmra.mrb[0].mxu0 %v5699
        %v5885 = vpop.f32.mrb[0].mxu0
        %v5886 = vadd.f32 %v5724, %v5885
        %v5887 = vpop.f32.mrb[0].mxu0
        %v5888 = vadd.f32 %v5728, %v5887
        %v5889 = vpop.f32.mrb[0].mxu0
        %v5890 = vadd.f32 %v5724, %v5889
        %v5891 = vpop.f32.mrb[0].mxu0
        %v5892 = vadd.f32 %v5728, %v5891
        %5893 = vmatprep.mubr.bf16.mxu0 0
        %5894 = vmatmul.mubr.bf16.gmra.mrb[0].mxu0 %v5700
        %v5895 = vpop.f32.mrb[0].mxu0
        %v5896 = vadd.f32 %v5724, %v5895
        %v5897 = vpop.f32.mrb[0].mxu0
        %v5898 = vadd.f32 %v5728, %v5897
        %v5899 = vpop.f32.mrb[0].mxu0
        %v5900 = vadd.f32 %v5724, %v5899
        %v5901 = vpop.f32.mrb[0].mxu0
        %v5902 = vadd.f32 %v5728, %v5901
        %5903 = vmatprep.mubr.bf16.mxu0 0
        %5904 = vmatmul.mubr.bf16.gmra.mrb[0].mxu0 %v5701
        %v5905 = vpop.f32.mrb[0].mxu0
        %v5906 = vadd.f32 %v5724, %v5905
        %v5907 = vpop.f32.mrb[0].mxu0
        %v5908 = vadd.f32 %v5728, %v5907
        %v5909 = vpop.f32.mrb[0].mxu0
        %v5910 = vadd.f32 %v5724, %v5909
        %v5911 = vpop.f32.mrb[0].mxu0
        %v5912 = vadd.f32 %v5728, %v5911
        %5913 = vmatprep.mubr.bf16.mxu0 0
        %5914 = vmatmul.mubr.bf16.gmra.mrb[0].mxu0 %v5702
        %v5915 = vpop.f32.mrb[0].mxu0
        %v5916 = vadd.f32 %v5724, %v5915
        %v5917 = vpop.f32.mrb[0].mxu0
        %v5918 = vadd.f32 %v5728, %v5917
        %v5919 = vpop.f32.mrb[0].mxu0
        %v5920 = vadd.f32 %v5724, %v5919
        %v5921 = vpop.f32.mrb[0].mxu0
        %v5922 = vadd.f32 %v5728, %v5921
        %5923 = vdwg.mxu0
        %v5924 = vmax.f32 %v5846, 0.0
        %v5925 = vmax.f32 %v5848, 0.0
        %v5926 = vmax.f32 %v5850, 0.0
        %v5927 = vmax.f32 %v5852, 0.0
        %v5928 = vmax.f32 %v5856, 0.0
        %v5929 = vmax.f32 %v5858, 0.0
        %v5930 = vmax.f32 %v5860, 0.0
        %v5931 = vmax.f32 %v5862, 0.0
        %v5932 = vmax.f32 %v5866, 0.0
        %v5933 = vmax.f32 %v5868, 0.0
        %v5934 = vmax.f32 %v5870, 0.0
        %v5935 = vmax.f32 %v5872, 0.0
        %v5936 = vmax.f32 %v5876, 0.0
        %v5937 = vmax.f32 %v5878, 0.0
        %v5938 = vmax.f32 %v5880, 0.0
        %v5939 = vmax.f32 %v5882, 0.0
        %v5940 = vmax.f32 %v5886, 0.0
        %v5941 = vmax.f32 %v5888, 0.0
        %v5942 = vmax.f32 %v5890, 0.0
        %v5943 = vmax.f32 %v5892, 0.0
        %v5944 = vmax.f32 %v5896, 0.0
        %v5945 = vmax.f32 %v5898, 0.0
        %v5946 = vmax.f32 %v5900, 0.0
        %v5947 = vmax.f32 %v5902, 0.0
        %v5948 = vmax.f32 %v5906, 0.0
        %v5949 = vmax.f32 %v5908, 0.0
        %v5950 = vmax.f32 %v5910, 0.0
        %v5951 = vmax.f32 %v5912, 0.0
        %v5952 = vmax.f32 %v5916, 0.0
        %v5953 = vmax.f32 %v5918, 0.0
        %v5954 = vmax.f32 %v5920, 0.0
        %v5955 = vmax.f32 %v5922, 0.0
        %v5956 = vpack.c.bf16 %v5926, %v5924
        %v5957 = vpack.c.bf16 %v5927, %v5925
        %v5958 = vpack.c.bf16 %v5930, %v5928
        %v5959 = vpack.c.bf16 %v5931, %v5929
        %v5960 = vpack.c.bf16 %v5934, %v5932
        %v5961 = vpack.c.bf16 %v5935, %v5933
        %v5962 = vpack.c.bf16 %v5938, %v5936
        %v5963 = vpack.c.bf16 %v5939, %v5937
        %v5964 = vpack.c.bf16 %v5942, %v5940
        %v5965 = vpack.c.bf16 %v5943, %v5941
        %v5966 = vpack.c.bf16 %v5946, %v5944
        %v5967 = vpack.c.bf16 %v5947, %v5945
        %v5968 = vpack.c.bf16 %v5950, %v5948
        %v5969 = vpack.c.bf16 %v5951, %v5949
        %v5970 = vpack.c.bf16 %v5954, %v5952
        %v5971 = vpack.c.bf16 %v5955, %v5953
        %v5972 = vld [vmem:[#allocation14] sm:$0xff]
        %v5973 = vld [vmem:[#allocation14 + $0x8] sm:$0xff]
        %v5974 = vld [vmem:[#allocation14 + $0x10] sm:$0xff]
        %v5975 = vld [vmem:[#allocation14 + $0x18] sm:$0xff]
        %v5976 = vld [vmem:[#allocation14 + $0x20] sm:$0xff]
        %v5977 = vld [vmem:[#allocation14 + $0x28] sm:$0xff]
        %v5978 = vld [vmem:[#allocation14 + $0x30] sm:$0xff]
        %v5979 = vld [vmem:[#allocation14 + $0x38] sm:$0xff]
        %v5980 = vld [vmem:[#allocation14 + $0x40] sm:$0xff]
        %v5981 = vld [vmem:[#allocation14 + $0x48] sm:$0xff]
        %v5982 = vld [vmem:[#allocation14 + $0x50] sm:$0xff]
        %v5983 = vld [vmem:[#allocation14 + $0x58] sm:$0xff]
        %v5984 = vld [vmem:[#allocation14 + $0x60] sm:$0xff]
        %v5985 = vld [vmem:[#allocation14 + $0x68] sm:$0xff]
        %v5986 = vld [vmem:[#allocation14 + $0x70] sm:$0xff]
        %v5987 = vld [vmem:[#allocation14 + $0x78] sm:$0xff]
        %v5988 = vld [vmem:[#allocation14 + $0x80] sm:$0xff]
        %v5989 = vld [vmem:[#allocation14 + $0x88] sm:$0xff]
        %v5990 = vld [vmem:[#allocation14 + $0x90] sm:$0xff]
        %v5991 = vld [vmem:[#allocation14 + $0x98] sm:$0xff]
        %v5992 = vld [vmem:[#allocation14 + $0xa0] sm:$0xff]
        %v5993 = vld [vmem:[#allocation14 + $0xa8] sm:$0xff]
        %v5994 = vld [vmem:[#allocation14 + $0xb0] sm:$0xff]
        %v5995 = vld [vmem:[#allocation14 + $0xb8] sm:$0xff]
        %v5996 = vld [vmem:[#allocation14 + $0xc0] sm:$0xff]
        %v5997 = vld [vmem:[#allocation14 + $0xc8] sm:$0xff]
        %v5998 = vld [vmem:[#allocation14 + $0xd0] sm:$0xff]
        %v5999 = vld [vmem:[#allocation14 + $0xd8] sm:$0xff]
        %v6000 = vld [vmem:[#allocation14 + $0xe0] sm:$0xff]
        %v6001 = vld [vmem:[#allocation14 + $0xe8] sm:$0xff]
        %v6002 = vld [vmem:[#allocation14 + $0xf0] sm:$0xff]
        %v6003 = vld [vmem:[#allocation14 + $0xf8] sm:$0xff]
        %v6004 = vld [vmem:[#allocation16] sm:$0x3]
        %v6006 = vlaneseq
        %v6007 = vshrl.u32 %v6006, 7
        %v6008 = vsub.s32 0, %v6007
        %v6009 = vrot.slane %v6004, %v6008
        %v6010 = vlaneseq
        %v6011 = vshrl.u32 %v6010, 7
        %v6012 = vsub.s32 1, %v6011
        %v6013 = vrot.slane %v6004, %v6012
        %v6048 = vunpack.c.l.b16 %v5972
        %v6049 = vunpack.c.h.b16 %v5972
        %v6050 = vunpack.c.l.b16 %v5973
        %v6051 = vunpack.c.h.b16 %v5973
        %v6052 = vunpack.c.l.b16 %v5974
        %v6053 = vunpack.c.h.b16 %v5974
        %v6054 = vunpack.c.l.b16 %v5975
        %v6055 = vunpack.c.h.b16 %v5975
        %v6056 = vunpack.c.l.b16 %v5976
        %v6057 = vunpack.c.h.b16 %v5976
        %v6058 = vunpack.c.l.b16 %v5977
        %v6059 = vunpack.c.h.b16 %v5977
        %v6060 = vunpack.c.l.b16 %v5978
        %v6061 = vunpack.c.h.b16 %v5978
        %v6062 = vunpack.c.l.b16 %v5979
        %v6063 = vunpack.c.h.b16 %v5979
        %v6064 = vunpack.c.l.b16 %v5980
        %v6065 = vunpack.c.h.b16 %v5980
        %v6066 = vunpack.c.l.b16 %v5981
        %v6067 = vunpack.c.h.b16 %v5981
        %v6068 = vunpack.c.l.b16 %v5982
        %v6069 = vunpack.c.h.b16 %v5982
        %v6070 = vunpack.c.l.b16 %v5983
        %v6071 = vunpack.c.h.b16 %v5983
        %v6072 = vunpack.c.l.b16 %v5984
        %v6073 = vunpack.c.h.b16 %v5984
        %v6074 = vunpack.c.l.b16 %v5985
        %v6075 = vunpack.c.h.b16 %v5985
        %v6076 = vunpack.c.l.b16 %v5986
        %v6077 = vunpack.c.h.b16 %v5986
        %v6078 = vunpack.c.l.b16 %v5987
        %v6079 = vunpack.c.h.b16 %v5987
        %v6080 = vunpack.c.l.b16 %v5988
        %v6081 = vunpack.c.h.b16 %v5988
        %v6082 = vunpack.c.l.b16 %v5989
        %v6083 = vunpack.c.h.b16 %v5989
        %v6084 = vunpack.c.l.b16 %v5990
        %v6085 = vunpack.c.h.b16 %v5990
        %v6086 = vunpack.c.l.b16 %v5991
        %v6087 = vunpack.c.h.b16 %v5991
        %v6088 = vunpack.c.l.b16 %v5992
        %v6089 = vunpack.c.h.b16 %v5992
        %v6090 = vunpack.c.l.b16 %v5993
        %v6091 = vunpack.c.h.b16 %v5993
        %v6092 = vunpack.c.l.b16 %v5994
        %v6093 = vunpack.c.h.b16 %v5994
        %v6094 = vunpack.c.l.b16 %v5995
        %v6095 = vunpack.c.h.b16 %v5995
        %v6096 = vunpack.c.l.b16 %v5996
        %v6097 = vunpack.c.h.b16 %v5996
        %v6098 = vunpack.c.l.b16 %v5997
        %v6099 = vunpack.c.h.b16 %v5997
        %v6100 = vunpack.c.l.b16 %v5998
        %v6101 = vunpack.c.h.b16 %v5998
        %v6102 = vunpack.c.l.b16 %v5999
        %v6103 = vunpack.c.h.b16 %v5999
        %v6104 = vunpack.c.l.b16 %v6000
        %v6105 = vunpack.c.h.b16 %v6000
        %v6106 = vunpack.c.l.b16 %v6001
        %v6107 = vunpack.c.h.b16 %v6001
        %v6108 = vunpack.c.l.b16 %v6002
        %v6109 = vunpack.c.h.b16 %v6002
        %v6110 = vunpack.c.l.b16 %v6003
        %v6111 = vunpack.c.h.b16 %v6003
        %v6112 = vpack.c.b16 %v6050, %v6048
        %v6113 = vpack.c.b16 %v6051, %v6049
        %v6114 = vpack.c.b16 %v6054, %v6052
        %v6115 = vpack.c.b16 %v6055, %v6053
        %v6116 = vpack.c.b16 %v6058, %v6056
        %v6117 = vpack.c.b16 %v6059, %v6057
        %v6118 = vpack.c.b16 %v6062, %v6060
        %v6119 = vpack.c.b16 %v6063, %v6061
        %v6120 = vpack.c.b16 %v6066, %v6064
        %v6121 = vpack.c.b16 %v6067, %v6065
        %v6122 = vpack.c.b16 %v6070, %v6068
        %v6123 = vpack.c.b16 %v6071, %v6069
        %v6124 = vpack.c.b16 %v6074, %v6072
        %v6125 = vpack.c.b16 %v6075, %v6073
        %v6126 = vpack.c.b16 %v6078, %v6076
        %v6127 = vpack.c.b16 %v6079, %v6077
        %v6128 = vpack.c.b16 %v6082, %v6080
        %v6129 = vpack.c.b16 %v6083, %v6081
        %v6130 = vpack.c.b16 %v6086, %v6084
        %v6131 = vpack.c.b16 %v6087, %v6085
        %v6132 = vpack.c.b16 %v6090, %v6088
        %v6133 = vpack.c.b16 %v6091, %v6089
        %v6134 = vpack.c.b16 %v6094, %v6092
        %v6135 = vpack.c.b16 %v6095, %v6093
        %v6136 = vpack.c.b16 %v6098, %v6096
        %v6137 = vpack.c.b16 %v6099, %v6097
        %v6138 = vpack.c.b16 %v6102, %v6100
        %v6139 = vpack.c.b16 %v6103, %v6101
        %v6140 = vpack.c.b16 %v6106, %v6104
        %v6141 = vpack.c.b16 %v6107, %v6105
        %v6142 = vpack.c.b16 %v6110, %v6108
        %v6143 = vpack.c.b16 %v6111, %v6109
        %6176 = vmatprep.subr.bf16.mxu0 %v6113
        %6177 = vmatpush1.bf16.msra.mxu0 %v6112
        %6178 = vmatprep.subr.bf16.mxu0 %v6115
        %6179 = vmatpush1.bf16.msra.mxu0 %v6114
        %6180 = vmatprep.subr.bf16.mxu0 %v6117
        %6181 = vmatpush1.bf16.msra.mxu0 %v6116
        %6182 = vmatprep.subr.bf16.mxu0 %v6119
        %6183 = vmatpush1.bf16.msra.mxu0 %v6118
        %6184 = vmatprep.subr.bf16.mxu0 %v6121
        %6185 = vmatpush1.bf16.msra.mxu0 %v6120
        %6186 = vmatprep.subr.bf16.mxu0 %v6123
        %6187 = vmatpush1.bf16.msra.mxu0 %v6122
        %6188 = vmatprep.subr.bf16.mxu0 %v6125
        %6189 = vmatpush1.bf16.msra.mxu0 %v6124
        %6190 = vmatprep.subr.bf16.mxu0 %v6127
        %6191 = vmatpush1.bf16.msra.mxu0 %v6126
        %6192 = vmatprep.subr.bf16.mxu0 %v6129
        %6193 = vmatpush1.bf16.msra.mxu0 %v6128
        %6194 = vmatprep.subr.bf16.mxu0 %v6131
        %6195 = vmatpush1.bf16.msra.mxu0 %v6130
        %6196 = vmatprep.subr.bf16.mxu0 %v6133
        %6197 = vmatpush1.bf16.msra.mxu0 %v6132
        %6198 = vmatprep.subr.bf16.mxu0 %v6135
        %6199 = vmatpush1.bf16.msra.mxu0 %v6134
        %6200 = vmatprep.subr.bf16.mxu0 %v6137
        %6201 = vmatpush1.bf16.msra.mxu0 %v6136
        %6202 = vmatprep.subr.bf16.mxu0 %v6139
        %6203 = vmatpush1.bf16.msra.mxu0 %v6138
        %6204 = vmatprep.subr.bf16.mxu0 %v6141
        %6205 = vmatpush1.bf16.msra.mxu0 %v6140
        %6206 = vmatprep.subr.bf16.mxu0 %v6143
        %6207 = vmatpush1.bf16.msra.mxu0 %v6142
        %6208 = vmatprep.mubr.bf16.mxu0 %v5957
        %6209 = vmatmul.mubr.bf16.gmra.mrb[0].mxu0 %v5956
        %v6210 = vpop.f32.mrb[0].mxu0
        %v6211 = vadd.f32 %v6009, %v6210
        %v6212 = vpop.f32.mrb[0].mxu0
        %v6213 = vadd.f32 %v6013, %v6212
        %v6214 = vpop.f32.mrb[0].mxu0
        %v6215 = vadd.f32 %v6009, %v6214
        %v6216 = vpop.f32.mrb[0].mxu0
        %v6217 = vadd.f32 %v6013, %v6216
        %6218 = vmatprep.mubr.bf16.mxu0 %v5959
        %6219 = vmatmul.mubr.bf16.gmra.mrb[0].mxu0 %v5958
        %v6220 = vpop.f32.mrb[0].mxu0
        %v6221 = vadd.f32 %v6009, %v6220
        %v6222 = vpop.f32.mrb[0].mxu0
        %v6223 = vadd.f32 %v6013, %v6222
        %v6224 = vpop.f32.mrb[0].mxu0
        %v6225 = vadd.f32 %v6009, %v6224
        %v6226 = vpop.f32.mrb[0].mxu0
        %v6227 = vadd.f32 %v6013, %v6226
        %6228 = vmatprep.mubr.bf16.mxu0 %v5961
        %6229 = vmatmul.mubr.bf16.gmra.mrb[0].mxu0 %v5960
        %v6230 = vpop.f32.mrb[0].mxu0
        %v6231 = vadd.f32 %v6009, %v6230
        %v6232 = vpop.f32.mrb[0].mxu0
        %v6233 = vadd.f32 %v6013, %v6232
        %v6234 = vpop.f32.mrb[0].mxu0
        %v6235 = vadd.f32 %v6009, %v6234
        %v6236 = vpop.f32.mrb[0].mxu0
        %v6237 = vadd.f32 %v6013, %v6236
        %6238 = vmatprep.mubr.bf16.mxu0 %v5963
        %6239 = vmatmul.mubr.bf16.gmra.mrb[0].mxu0 %v5962
        %v6240 = vpop.f32.mrb[0].mxu0
        %v6241 = vadd.f32 %v6009, %v6240
        %v6242 = vpop.f32.mrb[0].mxu0
        %v6243 = vadd.f32 %v6013, %v6242
        %v6244 = vpop.f32.mrb[0].mxu0
        %v6245 = vadd.f32 %v6009, %v6244
        %v6246 = vpop.f32.mrb[0].mxu0
        %v6247 = vadd.f32 %v6013, %v6246
        %6248 = vmatprep.mubr.bf16.mxu0 %v5965
        %6249 = vmatmul.mubr.bf16.gmra.mrb[0].mxu0 %v5964
        %v6250 = vpop.f32.mrb[0].mxu0
        %v6251 = vadd.f32 %v6009, %v6250
        %v6252 = vpop.f32.mrb[0].mxu0
        %v6253 = vadd.f32 %v6013, %v6252
        %v6254 = vpop.f32.mrb[0].mxu0
        %v6255 = vadd.f32 %v6009, %v6254
        %v6256 = vpop.f32.mrb[0].mxu0
        %v6257 = vadd.f32 %v6013, %v6256
        %6258 = vmatprep.mubr.bf16.mxu0 %v5967
        %6259 = vmatmul.mubr.bf16.gmra.mrb[0].mxu0 %v5966
        %v6260 = vpop.f32.mrb[0].mxu0
        %v6261 = vadd.f32 %v6009, %v6260
        %v6262 = vpop.f32.mrb[0].mxu0
        %v6263 = vadd.f32 %v6013, %v6262
        %v6264 = vpop.f32.mrb[0].mxu0
        %v6265 = vadd.f32 %v6009, %v6264
        %v6266 = vpop.f32.mrb[0].mxu0
        %v6267 = vadd.f32 %v6013, %v6266
        %6268 = vmatprep.mubr.bf16.mxu0 %v5969
        %6269 = vmatmul.mubr.bf16.gmra.mrb[0].mxu0 %v5968
        %v6270 = vpop.f32.mrb[0].mxu0
        %v6271 = vadd.f32 %v6009, %v6270
        %v6272 = vpop.f32.mrb[0].mxu0
        %v6273 = vadd.f32 %v6013, %v6272
        %v6274 = vpop.f32.mrb[0].mxu0
        %v6275 = vadd.f32 %v6009, %v6274
        %v6276 = vpop.f32.mrb[0].mxu0
        %v6277 = vadd.f32 %v6013, %v6276
        %6278 = vmatprep.mubr.bf16.mxu0 %v5971
        %6279 = vmatmul.mubr.bf16.gmra.mrb[0].mxu0 %v5970
        %v6280 = vpop.f32.mrb[0].mxu0
        %v6281 = vadd.f32 %v6009, %v6280
        %v6282 = vpop.f32.mrb[0].mxu0
        %v6283 = vadd.f32 %v6013, %v6282
        %v6284 = vpop.f32.mrb[0].mxu0
        %v6285 = vadd.f32 %v6009, %v6284
        %v6286 = vpop.f32.mrb[0].mxu0
        %v6287 = vadd.f32 %v6013, %v6286
        %6288 = vdwg.mxu0
        %v6289 = vmax.f32 %v6211, 0.0
        %v6290 = vmax.f32 %v6213, 0.0
        %v6291 = vmax.f32 %v6215, 0.0
        %v6292 = vmax.f32 %v6217, 0.0
        %v6293 = vmax.f32 %v6221, 0.0
        %v6294 = vmax.f32 %v6223, 0.0
        %v6295 = vmax.f32 %v6225, 0.0
        %v6296 = vmax.f32 %v6227, 0.0
        %v6297 = vmax.f32 %v6231, 0.0
        %v6298 = vmax.f32 %v6233, 0.0
        %v6299 = vmax.f32 %v6235, 0.0
        %v6300 = vmax.f32 %v6237, 0.0
        %v6301 = vmax.f32 %v6241, 0.0
        %v6302 = vmax.f32 %v6243, 0.0
        %v6303 = vmax.f32 %v6245, 0.0
        %v6304 = vmax.f32 %v6247, 0.0
        %v6305 = vmax.f32 %v6251, 0.0
        %v6306 = vmax.f32 %v6253, 0.0
        %v6307 = vmax.f32 %v6255, 0.0
        %v6308 = vmax.f32 %v6257, 0.0
        %v6309 = vmax.f32 %v6261, 0.0
        %v6310 = vmax.f32 %v6263, 0.0
        %v6311 = vmax.f32 %v6265, 0.0
        %v6312 = vmax.f32 %v6267, 0.0
        %v6313 = vmax.f32 %v6271, 0.0
        %v6314 = vmax.f32 %v6273, 0.0
        %v6315 = vmax.f32 %v6275, 0.0
        %v6316 = vmax.f32 %v6277, 0.0
        %v6317 = vmax.f32 %v6281, 0.0
        %v6318 = vmax.f32 %v6283, 0.0
        %v6319 = vmax.f32 %v6285, 0.0
        %v6320 = vmax.f32 %v6287, 0.0
        %v6321 = vpack.c.bf16 %v6291, %v6289
        %v6322 = vpack.c.bf16 %v6292, %v6290
        %v6323 = vpack.c.bf16 %v6295, %v6293
        %v6324 = vpack.c.bf16 %v6296, %v6294
        %v6325 = vpack.c.bf16 %v6299, %v6297
        %v6326 = vpack.c.bf16 %v6300, %v6298
        %v6327 = vpack.c.bf16 %v6303, %v6301
        %v6328 = vpack.c.bf16 %v6304, %v6302
        %v6329 = vpack.c.bf16 %v6307, %v6305
        %v6330 = vpack.c.bf16 %v6308, %v6306
        %v6331 = vpack.c.bf16 %v6311, %v6309
        %v6332 = vpack.c.bf16 %v6312, %v6310
        %v6333 = vpack.c.bf16 %v6315, %v6313
        %v6334 = vpack.c.bf16 %v6316, %v6314
        %v6335 = vpack.c.bf16 %v6319, %v6317
        %v6336 = vpack.c.bf16 %v6320, %v6318
        %v6337 = vld [vmem:[%s13] sm:$0xff]
        %v6338 = vld [vmem:[%s13 + $0x8] sm:$0xff]
        %v6339 = vld [vmem:[%s13 + $0x10] sm:$0xff]
        %v6340 = vld [vmem:[%s13 + $0x18] sm:$0xff]
        %v6341 = vld [vmem:[%s13 + $0x20] sm:$0xff]
        %v6342 = vld [vmem:[%s13 + $0x28] sm:$0xff]
        %v6343 = vld [vmem:[%s13 + $0x30] sm:$0xff]
        %v6344 = vld [vmem:[%s13 + $0x38] sm:$0xff]
        %v6345 = vld [vmem:[%s13 + $0x40] sm:$0xff]
        %v6346 = vld [vmem:[%s13 + $0x48] sm:$0xff]
        %v6347 = vld [vmem:[%s13 + $0x50] sm:$0xff]
        %v6348 = vld [vmem:[%s13 + $0x58] sm:$0xff]
        %v6349 = vld [vmem:[%s13 + $0x60] sm:$0xff]
        %v6350 = vld [vmem:[%s13 + $0x68] sm:$0xff]
        %v6351 = vld [vmem:[%s13 + $0x70] sm:$0xff]
        %v6352 = vld [vmem:[%s13 + $0x78] sm:$0xff]
        %v6353 = vld [vmem:[%s13 + $0x80] sm:$0xff]
        %v6354 = vld [vmem:[%s13 + $0x88] sm:$0xff]
        %v6355 = vld [vmem:[%s13 + $0x90] sm:$0xff]
        %v6356 = vld [vmem:[%s13 + $0x98] sm:$0xff]
        %v6357 = vld [vmem:[%s13 + $0xa0] sm:$0xff]
        %v6358 = vld [vmem:[%s13 + $0xa8] sm:$0xff]
        %v6359 = vld [vmem:[%s13 + $0xb0] sm:$0xff]
        %v6360 = vld [vmem:[%s13 + $0xb8] sm:$0xff]
        %v6361 = vld [vmem:[%s13 + $0xc0] sm:$0xff]
        %v6362 = vld [vmem:[%s13 + $0xc8] sm:$0xff]
        %v6363 = vld [vmem:[%s13 + $0xd0] sm:$0xff]
        %v6364 = vld [vmem:[%s13 + $0xd8] sm:$0xff]
        %v6365 = vld [vmem:[%s13 + $0xe0] sm:$0xff]
        %v6366 = vld [vmem:[%s13 + $0xe8] sm:$0xff]
        %v6367 = vld [vmem:[%s13 + $0xf0] sm:$0xff]
        %v6368 = vld [vmem:[%s13 + $0xf8] sm:$0xff]
        %v6369 = vld [vmem:[%s13 + $0x100] sm:$0xff]
        %v6370 = vld [vmem:[%s13 + $0x108] sm:$0xff]
        %v6371 = vld [vmem:[%s13 + $0x110] sm:$0xff]
        %v6372 = vld [vmem:[%s13 + $0x118] sm:$0xff]
        %v6373 = vld [vmem:[%s13 + $0x120] sm:$0xff]
        %v6374 = vld [vmem:[%s13 + $0x128] sm:$0xff]
        %v6375 = vld [vmem:[%s13 + $0x130] sm:$0xff]
        %v6376 = vld [vmem:[%s13 + $0x138] sm:$0xff]
        %v6377 = vld [vmem:[%s13 + $0x140] sm:$0xff]
        %v6378 = vld [vmem:[%s13 + $0x148] sm:$0xff]
        %v6379 = vld [vmem:[%s13 + $0x150] sm:$0xff]
        %v6380 = vld [vmem:[%s13 + $0x158] sm:$0xff]
        %v6381 = vld [vmem:[%s13 + $0x160] sm:$0xff]
        %v6382 = vld [vmem:[%s13 + $0x168] sm:$0xff]
        %v6383 = vld [vmem:[%s13 + $0x170] sm:$0xff]
        %v6384 = vld [vmem:[%s13 + $0x178] sm:$0xff]
        %v6385 = vld [vmem:[%s13 + $0x180] sm:$0xff]
        %v6386 = vld [vmem:[%s13 + $0x188] sm:$0xff]
        %v6387 = vld [vmem:[%s13 + $0x190] sm:$0xff]
        %v6388 = vld [vmem:[%s13 + $0x198] sm:$0xff]
        %v6389 = vld [vmem:[%s13 + $0x1a0] sm:$0xff]
        %v6390 = vld [vmem:[%s13 + $0x1a8] sm:$0xff]
        %v6391 = vld [vmem:[%s13 + $0x1b0] sm:$0xff]
        %v6392 = vld [vmem:[%s13 + $0x1b8] sm:$0xff]
        %v6393 = vld [vmem:[%s13 + $0x1c0] sm:$0xff]
        %v6394 = vld [vmem:[%s13 + $0x1c8] sm:$0xff]
        %v6395 = vld [vmem:[%s13 + $0x1d0] sm:$0xff]
        %v6396 = vld [vmem:[%s13 + $0x1d8] sm:$0xff]
        %v6397 = vld [vmem:[%s13 + $0x1e0] sm:$0xff]
        %v6398 = vld [vmem:[%s13 + $0x1e8] sm:$0xff]
        %v6399 = vld [vmem:[%s13 + $0x1f0] sm:$0xff]
        %v6400 = vld [vmem:[%s13 + $0x1f8] sm:$0xff]
        %v6401 = vld [vmem:[%s13 + $0x200] sm:$0xff]
        %v6402 = vld [vmem:[%s13 + $0x208] sm:$0xff]
        %v6403 = vld [vmem:[%s13 + $0x210] sm:$0xff]
        %v6404 = vld [vmem:[%s13 + $0x218] sm:$0xff]
        %v6405 = vld [vmem:[%s13 + $0x220] sm:$0xff]
        %v6406 = vld [vmem:[%s13 + $0x228] sm:$0xff]
        %v6407 = vld [vmem:[%s13 + $0x230] sm:$0xff]
        %v6408 = vld [vmem:[%s13 + $0x238] sm:$0xff]
        %v6409 = vld [vmem:[%s13 + $0x240] sm:$0xff]
        %v6410 = vld [vmem:[%s13 + $0x248] sm:$0xff]
        %v6411 = vld [vmem:[%s13 + $0x250] sm:$0xff]
        %v6412 = vld [vmem:[%s13 + $0x258] sm:$0xff]
        %v6413 = vld [vmem:[%s13 + $0x260] sm:$0xff]
        %v6414 = vld [vmem:[%s13 + $0x268] sm:$0xff]
        %v6415 = vld [vmem:[%s13 + $0x270] sm:$0xff]
        %v6416 = vld [vmem:[%s13 + $0x278] sm:$0xff]
        %v6417 = vld [vmem:[%s13 + $0x280] sm:$0xff]
        %v6418 = vld [vmem:[%s13 + $0x288] sm:$0xff]
        %v6419 = vld [vmem:[%s13 + $0x290] sm:$0xff]
        %v6420 = vld [vmem:[%s13 + $0x298] sm:$0xff]
        %v6421 = vld [vmem:[%s13 + $0x2a0] sm:$0xff]
        %v6422 = vld [vmem:[%s13 + $0x2a8] sm:$0xff]
        %v6423 = vld [vmem:[%s13 + $0x2b0] sm:$0xff]
        %v6424 = vld [vmem:[%s13 + $0x2b8] sm:$0xff]
        %v6425 = vld [vmem:[%s13 + $0x2c0] sm:$0xff]
        %v6426 = vld [vmem:[%s13 + $0x2c8] sm:$0xff]
        %v6427 = vld [vmem:[%s13 + $0x2d0] sm:$0xff]
        %v6428 = vld [vmem:[%s13 + $0x2d8] sm:$0xff]
        %v6429 = vld [vmem:[%s13 + $0x2e0] sm:$0xff]
        %v6430 = vld [vmem:[%s13 + $0x2e8] sm:$0xff]
        %v6431 = vld [vmem:[%s13 + $0x2f0] sm:$0xff]
        %v6432 = vld [vmem:[%s13 + $0x2f8] sm:$0xff]
        %v6433 = vld [vmem:[%s13 + $0x300] sm:$0xff]
        %v6434 = vld [vmem:[%s13 + $0x308] sm:$0xff]
        %v6435 = vld [vmem:[%s13 + $0x310] sm:$0xff]
        %v6436 = vld [vmem:[%s13 + $0x318] sm:$0xff]
        %v6437 = vld [vmem:[%s13 + $0x320] sm:$0xff]
        %v6438 = vld [vmem:[%s13 + $0x328] sm:$0xff]
        %v6439 = vld [vmem:[%s13 + $0x330] sm:$0xff]
        %v6440 = vld [vmem:[%s13 + $0x338] sm:$0xff]
        %v6441 = vld [vmem:[%s13 + $0x340] sm:$0xff]
        %v6442 = vld [vmem:[%s13 + $0x348] sm:$0xff]
        %v6443 = vld [vmem:[%s13 + $0x350] sm:$0xff]
        %v6444 = vld [vmem:[%s13 + $0x358] sm:$0xff]
        %v6445 = vld [vmem:[%s13 + $0x360] sm:$0xff]
        %v6446 = vld [vmem:[%s13 + $0x368] sm:$0xff]
        %v6447 = vld [vmem:[%s13 + $0x370] sm:$0xff]
        %v6448 = vld [vmem:[%s13 + $0x378] sm:$0xff]
        %v6449 = vld [vmem:[%s13 + $0x380] sm:$0xff]
        %v6450 = vld [vmem:[%s13 + $0x388] sm:$0xff]
        %v6451 = vld [vmem:[%s13 + $0x390] sm:$0xff]
        %v6452 = vld [vmem:[%s13 + $0x398] sm:$0xff]
        %v6453 = vld [vmem:[%s13 + $0x3a0] sm:$0xff]
        %v6454 = vld [vmem:[%s13 + $0x3a8] sm:$0xff]
        %v6455 = vld [vmem:[%s13 + $0x3b0] sm:$0xff]
        %v6456 = vld [vmem:[%s13 + $0x3b8] sm:$0xff]
        %v6457 = vld [vmem:[%s13 + $0x3c0] sm:$0xff]
        %v6458 = vld [vmem:[%s13 + $0x3c8] sm:$0xff]
        %v6459 = vld [vmem:[%s13 + $0x3d0] sm:$0xff]
        %v6460 = vld [vmem:[%s13 + $0x3d8] sm:$0xff]
        %v6461 = vld [vmem:[%s13 + $0x3e0] sm:$0xff]
        %v6462 = vld [vmem:[%s13 + $0x3e8] sm:$0xff]
        %v6463 = vld [vmem:[%s13 + $0x3f0] sm:$0xff]
        %v6464 = vld [vmem:[%s13 + $0x3f8] sm:$0xff]
        %v6465 = vld [vmem:[#allocation17] sm:$0xff]
        %v6467 = vlaneseq
        %v6468 = vshrl.u32 %v6467, 7
        %v6469 = vsub.s32 0, %v6468
        %v6470 = vrot.slane %v6465, %v6469
        %v6471 = vlaneseq
        %v6472 = vshrl.u32 %v6471, 7
        %v6473 = vsub.s32 1, %v6472
        %v6474 = vrot.slane %v6465, %v6473
        %v6475 = vlaneseq
        %v6476 = vshrl.u32 %v6475, 7
        %v6477 = vsub.s32 2, %v6476
        %v6478 = vrot.slane %v6465, %v6477
        %v6479 = vlaneseq
        %v6480 = vshrl.u32 %v6479, 7
        %v6481 = vsub.s32 3, %v6480
        %v6482 = vrot.slane %v6465, %v6481
        %v6483 = vlaneseq
        %v6484 = vshrl.u32 %v6483, 7
        %v6485 = vsub.s32 4, %v6484
        %v6486 = vrot.slane %v6465, %v6485
        %v6487 = vlaneseq
        %v6488 = vshrl.u32 %v6487, 7
        %v6489 = vsub.s32 5, %v6488
        %v6490 = vrot.slane %v6465, %v6489
        %v6491 = vlaneseq
        %v6492 = vshrl.u32 %v6491, 7
        %v6493 = vsub.s32 6, %v6492
        %v6494 = vrot.slane %v6465, %v6493
        %v6495 = vlaneseq
        %v6496 = vshrl.u32 %v6495, 7
        %v6497 = vsub.s32 7, %v6496
        %v6498 = vrot.slane %v6465, %v6497
        %v6635 = vunpack.c.l.b16 %v6337
        %v6636 = vunpack.c.h.b16 %v6337
        %v6637 = vunpack.c.l.b16 %v6338
        %v6638 = vunpack.c.h.b16 %v6338
        %v6639 = vunpack.c.l.b16 %v6339
        %v6640 = vunpack.c.h.b16 %v6339
        %v6641 = vunpack.c.l.b16 %v6340
        %v6642 = vunpack.c.h.b16 %v6340
        %v6643 = vunpack.c.l.b16 %v6341
        %v6644 = vunpack.c.h.b16 %v6341
        %v6645 = vunpack.c.l.b16 %v6342
        %v6646 = vunpack.c.h.b16 %v6342
        %v6647 = vunpack.c.l.b16 %v6343
        %v6648 = vunpack.c.h.b16 %v6343
        %v6649 = vunpack.c.l.b16 %v6344
        %v6650 = vunpack.c.h.b16 %v6344
        %v6651 = vunpack.c.l.b16 %v6345
        %v6652 = vunpack.c.h.b16 %v6345
        %v6653 = vunpack.c.l.b16 %v6346
        %v6654 = vunpack.c.h.b16 %v6346
        %v6655 = vunpack.c.l.b16 %v6347
        %v6656 = vunpack.c.h.b16 %v6347
        %v6657 = vunpack.c.l.b16 %v6348
        %v6658 = vunpack.c.h.b16 %v6348
        %v6659 = vunpack.c.l.b16 %v6349
        %v6660 = vunpack.c.h.b16 %v6349
        %v6661 = vunpack.c.l.b16 %v6350
        %v6662 = vunpack.c.h.b16 %v6350
        %v6663 = vunpack.c.l.b16 %v6351
        %v6664 = vunpack.c.h.b16 %v6351
        %v6665 = vunpack.c.l.b16 %v6352
        %v6666 = vunpack.c.h.b16 %v6352
        %v6667 = vunpack.c.l.b16 %v6353
        %v6668 = vunpack.c.h.b16 %v6353
        %v6669 = vunpack.c.l.b16 %v6354
        %v6670 = vunpack.c.h.b16 %v6354
        %v6671 = vunpack.c.l.b16 %v6355
        %v6672 = vunpack.c.h.b16 %v6355
        %v6673 = vunpack.c.l.b16 %v6356
        %v6674 = vunpack.c.h.b16 %v6356
        %v6675 = vunpack.c.l.b16 %v6357
        %v6676 = vunpack.c.h.b16 %v6357
        %v6677 = vunpack.c.l.b16 %v6358
        %v6678 = vunpack.c.h.b16 %v6358
        %v6679 = vunpack.c.l.b16 %v6359
        %v6680 = vunpack.c.h.b16 %v6359
        %v6681 = vunpack.c.l.b16 %v6360
        %v6682 = vunpack.c.h.b16 %v6360
        %v6683 = vunpack.c.l.b16 %v6361
        %v6684 = vunpack.c.h.b16 %v6361
        %v6685 = vunpack.c.l.b16 %v6362
        %v6686 = vunpack.c.h.b16 %v6362
        %v6687 = vunpack.c.l.b16 %v6363
        %v6688 = vunpack.c.h.b16 %v6363
        %v6689 = vunpack.c.l.b16 %v6364
        %v6690 = vunpack.c.h.b16 %v6364
        %v6691 = vunpack.c.l.b16 %v6365
        %v6692 = vunpack.c.h.b16 %v6365
        %v6693 = vunpack.c.l.b16 %v6366
        %v6694 = vunpack.c.h.b16 %v6366
        %v6695 = vunpack.c.l.b16 %v6367
        %v6696 = vunpack.c.h.b16 %v6367
        %v6697 = vunpack.c.l.b16 %v6368
        %v6698 = vunpack.c.h.b16 %v6368
        %v6699 = vunpack.c.l.b16 %v6369
        %v6700 = vunpack.c.h.b16 %v6369
        %v6701 = vunpack.c.l.b16 %v6370
        %v6702 = vunpack.c.h.b16 %v6370
        %v6703 = vunpack.c.l.b16 %v6371
        %v6704 = vunpack.c.h.b16 %v6371
        %v6705 = vunpack.c.l.b16 %v6372
        %v6706 = vunpack.c.h.b16 %v6372
        %v6707 = vunpack.c.l.b16 %v6373
        %v6708 = vunpack.c.h.b16 %v6373
        %v6709 = vunpack.c.l.b16 %v6374
        %v6710 = vunpack.c.h.b16 %v6374
        %v6711 = vunpack.c.l.b16 %v6375
        %v6712 = vunpack.c.h.b16 %v6375
        %v6713 = vunpack.c.l.b16 %v6376
        %v6714 = vunpack.c.h.b16 %v6376
        %v6715 = vunpack.c.l.b16 %v6377
        %v6716 = vunpack.c.h.b16 %v6377
        %v6717 = vunpack.c.l.b16 %v6378
        %v6718 = vunpack.c.h.b16 %v6378
        %v6719 = vunpack.c.l.b16 %v6379
        %v6720 = vunpack.c.h.b16 %v6379
        %v6721 = vunpack.c.l.b16 %v6380
        %v6722 = vunpack.c.h.b16 %v6380
        %v6723 = vunpack.c.l.b16 %v6381
        %v6724 = vunpack.c.h.b16 %v6381
        %v6725 = vunpack.c.l.b16 %v6382
        %v6726 = vunpack.c.h.b16 %v6382
        %v6727 = vunpack.c.l.b16 %v6383
        %v6728 = vunpack.c.h.b16 %v6383
        %v6729 = vunpack.c.l.b16 %v6384
        %v6730 = vunpack.c.h.b16 %v6384
        %v6731 = vunpack.c.l.b16 %v6385
        %v6732 = vunpack.c.h.b16 %v6385
        %v6733 = vunpack.c.l.b16 %v6386
        %v6734 = vunpack.c.h.b16 %v6386
        %v6735 = vunpack.c.l.b16 %v6387
        %v6736 = vunpack.c.h.b16 %v6387
        %v6737 = vunpack.c.l.b16 %v6388
        %v6738 = vunpack.c.h.b16 %v6388
        %v6739 = vunpack.c.l.b16 %v6389
        %v6740 = vunpack.c.h.b16 %v6389
        %v6741 = vunpack.c.l.b16 %v6390
        %v6742 = vunpack.c.h.b16 %v6390
        %v6743 = vunpack.c.l.b16 %v6391
        %v6744 = vunpack.c.h.b16 %v6391
        %v6745 = vunpack.c.l.b16 %v6392
        %v6746 = vunpack.c.h.b16 %v6392
        %v6747 = vunpack.c.l.b16 %v6393
        %v6748 = vunpack.c.h.b16 %v6393
        %v6749 = vunpack.c.l.b16 %v6394
        %v6750 = vunpack.c.h.b16 %v6394
        %v6751 = vunpack.c.l.b16 %v6395
        %v6752 = vunpack.c.h.b16 %v6395
        %v6753 = vunpack.c.l.b16 %v6396
        %v6754 = vunpack.c.h.b16 %v6396
        %v6755 = vunpack.c.l.b16 %v6397
        %v6756 = vunpack.c.h.b16 %v6397
        %v6757 = vunpack.c.l.b16 %v6398
        %v6758 = vunpack.c.h.b16 %v6398
        %v6759 = vunpack.c.l.b16 %v6399
        %v6760 = vunpack.c.h.b16 %v6399
        %v6761 = vunpack.c.l.b16 %v6400
        %v6762 = vunpack.c.h.b16 %v6400
        %v6763 = vunpack.c.l.b16 %v6401
        %v6764 = vunpack.c.h.b16 %v6401
        %v6765 = vunpack.c.l.b16 %v6402
        %v6766 = vunpack.c.h.b16 %v6402
        %v6767 = vunpack.c.l.b16 %v6403
        %v6768 = vunpack.c.h.b16 %v6403
        %v6769 = vunpack.c.l.b16 %v6404
        %v6770 = vunpack.c.h.b16 %v6404
        %v6771 = vunpack.c.l.b16 %v6405
        %v6772 = vunpack.c.h.b16 %v6405
        %v6773 = vunpack.c.l.b16 %v6406
        %v6774 = vunpack.c.h.b16 %v6406
        %v6775 = vunpack.c.l.b16 %v6407
        %v6776 = vunpack.c.h.b16 %v6407
        %v6777 = vunpack.c.l.b16 %v6408
        %v6778 = vunpack.c.h.b16 %v6408
        %v6779 = vunpack.c.l.b16 %v6409
        %v6780 = vunpack.c.h.b16 %v6409
        %v6781 = vunpack.c.l.b16 %v6410
        %v6782 = vunpack.c.h.b16 %v6410
        %v6783 = vunpack.c.l.b16 %v6411
        %v6784 = vunpack.c.h.b16 %v6411
        %v6785 = vunpack.c.l.b16 %v6412
        %v6786 = vunpack.c.h.b16 %v6412
        %v6787 = vunpack.c.l.b16 %v6413
        %v6788 = vunpack.c.h.b16 %v6413
        %v6789 = vunpack.c.l.b16 %v6414
        %v6790 = vunpack.c.h.b16 %v6414
        %v6791 = vunpack.c.l.b16 %v6415
        %v6792 = vunpack.c.h.b16 %v6415
        %v6793 = vunpack.c.l.b16 %v6416
        %v6794 = vunpack.c.h.b16 %v6416
        %v6795 = vunpack.c.l.b16 %v6417
        %v6796 = vunpack.c.h.b16 %v6417
        %v6797 = vunpack.c.l.b16 %v6418
        %v6798 = vunpack.c.h.b16 %v6418
        %v6799 = vunpack.c.l.b16 %v6419
        %v6800 = vunpack.c.h.b16 %v6419
        %v6801 = vunpack.c.l.b16 %v6420
        %v6802 = vunpack.c.h.b16 %v6420
        %v6803 = vunpack.c.l.b16 %v6421
        %v6804 = vunpack.c.h.b16 %v6421
        %v6805 = vunpack.c.l.b16 %v6422
        %v6806 = vunpack.c.h.b16 %v6422
        %v6807 = vunpack.c.l.b16 %v6423
        %v6808 = vunpack.c.h.b16 %v6423
        %v6809 = vunpack.c.l.b16 %v6424
        %v6810 = vunpack.c.h.b16 %v6424
        %v6811 = vunpack.c.l.b16 %v6425
        %v6812 = vunpack.c.h.b16 %v6425
        %v6813 = vunpack.c.l.b16 %v6426
        %v6814 = vunpack.c.h.b16 %v6426
        %v6815 = vunpack.c.l.b16 %v6427
        %v6816 = vunpack.c.h.b16 %v6427
        %v6817 = vunpack.c.l.b16 %v6428
        %v6818 = vunpack.c.h.b16 %v6428
        %v6819 = vunpack.c.l.b16 %v6429
        %v6820 = vunpack.c.h.b16 %v6429
        %v6821 = vunpack.c.l.b16 %v6430
        %v6822 = vunpack.c.h.b16 %v6430
        %v6823 = vunpack.c.l.b16 %v6431
        %v6824 = vunpack.c.h.b16 %v6431
        %v6825 = vunpack.c.l.b16 %v6432
        %v6826 = vunpack.c.h.b16 %v6432
        %v6827 = vunpack.c.l.b16 %v6433
        %v6828 = vunpack.c.h.b16 %v6433
        %v6829 = vunpack.c.l.b16 %v6434
        %v6830 = vunpack.c.h.b16 %v6434
        %v6831 = vunpack.c.l.b16 %v6435
        %v6832 = vunpack.c.h.b16 %v6435
        %v6833 = vunpack.c.l.b16 %v6436
        %v6834 = vunpack.c.h.b16 %v6436
        %v6835 = vunpack.c.l.b16 %v6437
        %v6836 = vunpack.c.h.b16 %v6437
        %v6837 = vunpack.c.l.b16 %v6438
        %v6838 = vunpack.c.h.b16 %v6438
        %v6839 = vunpack.c.l.b16 %v6439
        %v6840 = vunpack.c.h.b16 %v6439
        %v6841 = vunpack.c.l.b16 %v6440
        %v6842 = vunpack.c.h.b16 %v6440
        %v6843 = vunpack.c.l.b16 %v6441
        %v6844 = vunpack.c.h.b16 %v6441
        %v6845 = vunpack.c.l.b16 %v6442
        %v6846 = vunpack.c.h.b16 %v6442
        %v6847 = vunpack.c.l.b16 %v6443
        %v6848 = vunpack.c.h.b16 %v6443
        %v6849 = vunpack.c.l.b16 %v6444
        %v6850 = vunpack.c.h.b16 %v6444
        %v6851 = vunpack.c.l.b16 %v6445
        %v6852 = vunpack.c.h.b16 %v6445
        %v6853 = vunpack.c.l.b16 %v6446
        %v6854 = vunpack.c.h.b16 %v6446
        %v6855 = vunpack.c.l.b16 %v6447
        %v6856 = vunpack.c.h.b16 %v6447
        %v6857 = vunpack.c.l.b16 %v6448
        %v6858 = vunpack.c.h.b16 %v6448
        %v6859 = vunpack.c.l.b16 %v6449
        %v6860 = vunpack.c.h.b16 %v6449
        %v6861 = vunpack.c.l.b16 %v6450
        %v6862 = vunpack.c.h.b16 %v6450
        %v6863 = vunpack.c.l.b16 %v6451
        %v6864 = vunpack.c.h.b16 %v6451
        %v6865 = vunpack.c.l.b16 %v6452
        %v6866 = vunpack.c.h.b16 %v6452
        %v6867 = vunpack.c.l.b16 %v6453
        %v6868 = vunpack.c.h.b16 %v6453
        %v6869 = vunpack.c.l.b16 %v6454
        %v6870 = vunpack.c.h.b16 %v6454
        %v6871 = vunpack.c.l.b16 %v6455
        %v6872 = vunpack.c.h.b16 %v6455
        %v6873 = vunpack.c.l.b16 %v6456
        %v6874 = vunpack.c.h.b16 %v6456
        %v6875 = vunpack.c.l.b16 %v6457
        %v6876 = vunpack.c.h.b16 %v6457
        %v6877 = vunpack.c.l.b16 %v6458
        %v6878 = vunpack.c.h.b16 %v6458
        %v6879 = vunpack.c.l.b16 %v6459
        %v6880 = vunpack.c.h.b16 %v6459
        %v6881 = vunpack.c.l.b16 %v6460
        %v6882 = vunpack.c.h.b16 %v6460
        %v6883 = vunpack.c.l.b16 %v6461
        %v6884 = vunpack.c.h.b16 %v6461
        %v6885 = vunpack.c.l.b16 %v6462
        %v6886 = vunpack.c.h.b16 %v6462
        %v6887 = vunpack.c.l.b16 %v6463
        %v6888 = vunpack.c.h.b16 %v6463
        %v6889 = vunpack.c.l.b16 %v6464
        %v6890 = vunpack.c.h.b16 %v6464
        %v6891 = vpack.c.b16 %v6643, %v6635
        %v6892 = vpack.c.b16 %v6644, %v6636
        %v6893 = vpack.c.b16 %v6645, %v6637
        %v6894 = vpack.c.b16 %v6646, %v6638
        %v6895 = vpack.c.b16 %v6647, %v6639
        %v6896 = vpack.c.b16 %v6648, %v6640
        %v6897 = vpack.c.b16 %v6649, %v6641
        %v6898 = vpack.c.b16 %v6650, %v6642
        %v6899 = vpack.c.b16 %v6659, %v6651
        %v6900 = vpack.c.b16 %v6660, %v6652
        %v6901 = vpack.c.b16 %v6661, %v6653
        %v6902 = vpack.c.b16 %v6662, %v6654
        %v6903 = vpack.c.b16 %v6663, %v6655
        %v6904 = vpack.c.b16 %v6664, %v6656
        %v6905 = vpack.c.b16 %v6665, %v6657
        %v6906 = vpack.c.b16 %v6666, %v6658
        %v6907 = vpack.c.b16 %v6675, %v6667
        %v6908 = vpack.c.b16 %v6676, %v6668
        %v6909 = vpack.c.b16 %v6677, %v6669
        %v6910 = vpack.c.b16 %v6678, %v6670
        %v6911 = vpack.c.b16 %v6679, %v6671
        %v6912 = vpack.c.b16 %v6680, %v6672
        %v6913 = vpack.c.b16 %v6681, %v6673
        %v6914 = vpack.c.b16 %v6682, %v6674
        %v6915 = vpack.c.b16 %v6691, %v6683
        %v6916 = vpack.c.b16 %v6692, %v6684
        %v6917 = vpack.c.b16 %v6693, %v6685
        %v6918 = vpack.c.b16 %v6694, %v6686
        %v6919 = vpack.c.b16 %v6695, %v6687
        %v6920 = vpack.c.b16 %v6696, %v6688
        %v6921 = vpack.c.b16 %v6697, %v6689
        %v6922 = vpack.c.b16 %v6698, %v6690
        %v6923 = vpack.c.b16 %v6707, %v6699
        %v6924 = vpack.c.b16 %v6708, %v6700
        %v6925 = vpack.c.b16 %v6709, %v6701
        %v6926 = vpack.c.b16 %v6710, %v6702
        %v6927 = vpack.c.b16 %v6711, %v6703
        %v6928 = vpack.c.b16 %v6712, %v6704
        %v6929 = vpack.c.b16 %v6713, %v6705
        %v6930 = vpack.c.b16 %v6714, %v6706
        %v6931 = vpack.c.b16 %v6723, %v6715
        %v6932 = vpack.c.b16 %v6724, %v6716
        %v6933 = vpack.c.b16 %v6725, %v6717
        %v6934 = vpack.c.b16 %v6726, %v6718
        %v6935 = vpack.c.b16 %v6727, %v6719
        %v6936 = vpack.c.b16 %v6728, %v6720
        %v6937 = vpack.c.b16 %v6729, %v6721
        %v6938 = vpack.c.b16 %v6730, %v6722
        %v6939 = vpack.c.b16 %v6739, %v6731
        %v6940 = vpack.c.b16 %v6740, %v6732
        %v6941 = vpack.c.b16 %v6741, %v6733
        %v6942 = vpack.c.b16 %v6742, %v6734
        %v6943 = vpack.c.b16 %v6743, %v6735
        %v6944 = vpack.c.b16 %v6744, %v6736
        %v6945 = vpack.c.b16 %v6745, %v6737
        %v6946 = vpack.c.b16 %v6746, %v6738
        %v6947 = vpack.c.b16 %v6755, %v6747
        %v6948 = vpack.c.b16 %v6756, %v6748
        %v6949 = vpack.c.b16 %v6757, %v6749
        %v6950 = vpack.c.b16 %v6758, %v6750
        %v6951 = vpack.c.b16 %v6759, %v6751
        %v6952 = vpack.c.b16 %v6760, %v6752
        %v6953 = vpack.c.b16 %v6761, %v6753
        %v6954 = vpack.c.b16 %v6762, %v6754
        %v6955 = vpack.c.b16 %v6771, %v6763
        %v6956 = vpack.c.b16 %v6772, %v6764
        %v6957 = vpack.c.b16 %v6773, %v6765
        %v6958 = vpack.c.b16 %v6774, %v6766
        %v6959 = vpack.c.b16 %v6775, %v6767
        %v6960 = vpack.c.b16 %v6776, %v6768
        %v6961 = vpack.c.b16 %v6777, %v6769
        %v6962 = vpack.c.b16 %v6778, %v6770
        %v6963 = vpack.c.b16 %v6787, %v6779
        %v6964 = vpack.c.b16 %v6788, %v6780
        %v6965 = vpack.c.b16 %v6789, %v6781
        %v6966 = vpack.c.b16 %v6790, %v6782
        %v6967 = vpack.c.b16 %v6791, %v6783
        %v6968 = vpack.c.b16 %v6792, %v6784
        %v6969 = vpack.c.b16 %v6793, %v6785
        %v6970 = vpack.c.b16 %v6794, %v6786
        %v6971 = vpack.c.b16 %v6803, %v6795
        %v6972 = vpack.c.b16 %v6804, %v6796
        %v6973 = vpack.c.b16 %v6805, %v6797
        %v6974 = vpack.c.b16 %v6806, %v6798
        %v6975 = vpack.c.b16 %v6807, %v6799
        %v6976 = vpack.c.b16 %v6808, %v6800
        %v6977 = vpack.c.b16 %v6809, %v6801
        %v6978 = vpack.c.b16 %v6810, %v6802
        %v6979 = vpack.c.b16 %v6819, %v6811
        %v6980 = vpack.c.b16 %v6820, %v6812
        %v6981 = vpack.c.b16 %v6821, %v6813
        %v6982 = vpack.c.b16 %v6822, %v6814
        %v6983 = vpack.c.b16 %v6823, %v6815
        %v6984 = vpack.c.b16 %v6824, %v6816
        %v6985 = vpack.c.b16 %v6825, %v6817
        %v6986 = vpack.c.b16 %v6826, %v6818
        %v6987 = vpack.c.b16 %v6835, %v6827
        %v6988 = vpack.c.b16 %v6836, %v6828
        %v6989 = vpack.c.b16 %v6837, %v6829
        %v6990 = vpack.c.b16 %v6838, %v6830
        %v6991 = vpack.c.b16 %v6839, %v6831
        %v6992 = vpack.c.b16 %v6840, %v6832
        %v6993 = vpack.c.b16 %v6841, %v6833
        %v6994 = vpack.c.b16 %v6842, %v6834
        %v6995 = vpack.c.b16 %v6851, %v6843
        %v6996 = vpack.c.b16 %v6852, %v6844
        %v6997 = vpack.c.b16 %v6853, %v6845
        %v6998 = vpack.c.b16 %v6854, %v6846
        %v6999 = vpack.c.b16 %v6855, %v6847
        %v7000 = vpack.c.b16 %v6856, %v6848
        %v7001 = vpack.c.b16 %v6857, %v6849
        %v7002 = vpack.c.b16 %v6858, %v6850
        %v7003 = vpack.c.b16 %v6867, %v6859
        %v7004 = vpack.c.b16 %v6868, %v6860
        %v7005 = vpack.c.b16 %v6869, %v6861
        %v7006 = vpack.c.b16 %v6870, %v6862
        %v7007 = vpack.c.b16 %v6871, %v6863
        %v7008 = vpack.c.b16 %v6872, %v6864
        %v7009 = vpack.c.b16 %v6873, %v6865
        %v7010 = vpack.c.b16 %v6874, %v6866
        %v7011 = vpack.c.b16 %v6883, %v6875
        %v7012 = vpack.c.b16 %v6884, %v6876
        %v7013 = vpack.c.b16 %v6885, %v6877
        %v7014 = vpack.c.b16 %v6886, %v6878
        %v7015 = vpack.c.b16 %v6887, %v6879
        %v7016 = vpack.c.b16 %v6888, %v6880
        %v7017 = vpack.c.b16 %v6889, %v6881
        %v7018 = vpack.c.b16 %v6890, %v6882
        %7147 = vmatprep.subr.bf16.mxu0 %v6892
        %7148 = vmatpush1.bf16.msra.mxu0 %v6891
        %7149 = vmatprep.subr.bf16.mxu0 %v6900
        %7150 = vmatpush1.bf16.msra.mxu0 %v6899
        %7151 = vmatprep.subr.bf16.mxu0 %v6908
        %7152 = vmatpush1.bf16.msra.mxu0 %v6907
        %7153 = vmatprep.subr.bf16.mxu0 %v6916
        %7154 = vmatpush1.bf16.msra.mxu0 %v6915
        %7155 = vmatprep.subr.bf16.mxu0 %v6924
        %7156 = vmatpush1.bf16.msra.mxu0 %v6923
        %7157 = vmatprep.subr.bf16.mxu0 %v6932
        %7158 = vmatpush1.bf16.msra.mxu0 %v6931
        %7159 = vmatprep.subr.bf16.mxu0 %v6940
        %7160 = vmatpush1.bf16.msra.mxu0 %v6939
        %7161 = vmatprep.subr.bf16.mxu0 %v6948
        %7162 = vmatpush1.bf16.msra.mxu0 %v6947
        %7163 = vmatprep.subr.bf16.mxu0 %v6956
        %7164 = vmatpush1.bf16.msra.mxu0 %v6955
        %7165 = vmatprep.subr.bf16.mxu0 %v6964
        %7166 = vmatpush1.bf16.msra.mxu0 %v6963
        %7167 = vmatprep.subr.bf16.mxu0 %v6972
        %7168 = vmatpush1.bf16.msra.mxu0 %v6971
        %7169 = vmatprep.subr.bf16.mxu0 %v6980
        %7170 = vmatpush1.bf16.msra.mxu0 %v6979
        %7171 = vmatprep.subr.bf16.mxu0 %v6988
        %7172 = vmatpush1.bf16.msra.mxu0 %v6987
        %7173 = vmatprep.subr.bf16.mxu0 %v6996
        %7174 = vmatpush1.bf16.msra.mxu0 %v6995
        %7175 = vmatprep.subr.bf16.mxu0 %v7004
        %7176 = vmatpush1.bf16.msra.mxu0 %v7003
        %7177 = vmatprep.subr.bf16.mxu0 %v7012
        %7178 = vmatpush1.bf16.msra.mxu0 %v7011
        %7179 = vmatprep.mubr.bf16.mxu0 %v6322
        %7180 = vmatmul.mubr.bf16.gmra.mrb[0].mxu0 %v6321
        %v7181 = vpop.f32.mrb[0].mxu0
        %v7182 = vadd.f32 %v6470, %v7181
        %v7183 = vpop.f32.mrb[0].mxu0
        %v7184 = vadd.f32 %v6474, %v7183
        %v7185 = vpop.f32.mrb[0].mxu0
        %v7186 = vadd.f32 %v6470, %v7185
        %v7187 = vpop.f32.mrb[0].mxu0
        %v7188 = vadd.f32 %v6474, %v7187
        %7189 = vmatprep.mubr.bf16.mxu0 %v6324
        %7190 = vmatmul.mubr.bf16.gmra.mrb[0].mxu0 %v6323
        %v7191 = vpop.f32.mrb[0].mxu0
        %v7192 = vadd.f32 %v6470, %v7191
        %v7193 = vpop.f32.mrb[0].mxu0
        %v7194 = vadd.f32 %v6474, %v7193
        %v7195 = vpop.f32.mrb[0].mxu0
        %v7196 = vadd.f32 %v6470, %v7195
        %v7197 = vpop.f32.mrb[0].mxu0
        %v7198 = vadd.f32 %v6474, %v7197
        %7199 = vmatprep.mubr.bf16.mxu0 %v6326
        %7200 = vmatmul.mubr.bf16.gmra.mrb[0].mxu0 %v6325
        %v7201 = vpop.f32.mrb[0].mxu0
        %v7202 = vadd.f32 %v6470, %v7201
        %v7203 = vpop.f32.mrb[0].mxu0
        %v7204 = vadd.f32 %v6474, %v7203
        %v7205 = vpop.f32.mrb[0].mxu0
        %v7206 = vadd.f32 %v6470, %v7205
        %v7207 = vpop.f32.mrb[0].mxu0
        %v7208 = vadd.f32 %v6474, %v7207
        %7209 = vmatprep.mubr.bf16.mxu0 %v6328
        %7210 = vmatmul.mubr.bf16.gmra.mrb[0].mxu0 %v6327
        %v7211 = vpop.f32.mrb[0].mxu0
        %v7212 = vadd.f32 %v6470, %v7211
        %v7213 = vpop.f32.mrb[0].mxu0
        %v7214 = vadd.f32 %v6474, %v7213
        %v7215 = vpop.f32.mrb[0].mxu0
        %v7216 = vadd.f32 %v6470, %v7215
        %v7217 = vpop.f32.mrb[0].mxu0
        %v7218 = vadd.f32 %v6474, %v7217
        %7219 = vmatprep.mubr.bf16.mxu0 %v6330
        %7220 = vmatmul.mubr.bf16.gmra.mrb[0].mxu0 %v6329
        %v7221 = vpop.f32.mrb[0].mxu0
        %v7222 = vadd.f32 %v6470, %v7221
        %v7223 = vpop.f32.mrb[0].mxu0
        %v7224 = vadd.f32 %v6474, %v7223
        %v7225 = vpop.f32.mrb[0].mxu0
        %v7226 = vadd.f32 %v6470, %v7225
        %v7227 = vpop.f32.mrb[0].mxu0
        %v7228 = vadd.f32 %v6474, %v7227
        %7229 = vmatprep.mubr.bf16.mxu0 %v6332
        %7230 = vmatmul.mubr.bf16.gmra.mrb[0].mxu0 %v6331
        %v7231 = vpop.f32.mrb[0].mxu0
        %v7232 = vadd.f32 %v6470, %v7231
        %v7233 = vpop.f32.mrb[0].mxu0
        %v7234 = vadd.f32 %v6474, %v7233
        %v7235 = vpop.f32.mrb[0].mxu0
        %v7236 = vadd.f32 %v6470, %v7235
        %v7237 = vpop.f32.mrb[0].mxu0
        %v7238 = vadd.f32 %v6474, %v7237
        %7239 = vmatprep.mubr.bf16.mxu0 %v6334
        %7240 = vmatmul.mubr.bf16.gmra.mrb[0].mxu0 %v6333
        %v7241 = vpop.f32.mrb[0].mxu0
        %v7242 = vadd.f32 %v6470, %v7241
        %v7243 = vpop.f32.mrb[0].mxu0
        %v7244 = vadd.f32 %v6474, %v7243
        %v7245 = vpop.f32.mrb[0].mxu0
        %v7246 = vadd.f32 %v6470, %v7245
        %v7247 = vpop.f32.mrb[0].mxu0
        %v7248 = vadd.f32 %v6474, %v7247
        %7249 = vmatprep.mubr.bf16.mxu0 %v6336
        %7250 = vmatmul.mubr.bf16.gmra.mrb[0].mxu0 %v6335
        %v7251 = vpop.f32.mrb[0].mxu0
        %v7252 = vadd.f32 %v6470, %v7251
        %v7253 = vpop.f32.mrb[0].mxu0
        %v7254 = vadd.f32 %v6474, %v7253
        %v7255 = vpop.f32.mrb[0].mxu0
        %v7256 = vadd.f32 %v6470, %v7255
        %v7257 = vpop.f32.mrb[0].mxu0
        %v7258 = vadd.f32 %v6474, %v7257
        %7259 = vdwg.mxu0
        %7260 = vmatprep.subr.bf16.mxu0 %v6894
        %7261 = vmatpush1.bf16.msra.mxu0 %v6893
        %7262 = vmatprep.subr.bf16.mxu0 %v6902
        %7263 = vmatpush1.bf16.msra.mxu0 %v6901
        %7264 = vmatprep.subr.bf16.mxu0 %v6910
        %7265 = vmatpush1.bf16.msra.mxu0 %v6909
        %7266 = vmatprep.subr.bf16.mxu0 %v6918
        %7267 = vmatpush1.bf16.msra.mxu0 %v6917
        %7268 = vmatprep.subr.bf16.mxu0 %v6926
        %7269 = vmatpush1.bf16.msra.mxu0 %v6925
        %7270 = vmatprep.subr.bf16.mxu0 %v6934
        %7271 = vmatpush1.bf16.msra.mxu0 %v6933
        %7272 = vmatprep.subr.bf16.mxu0 %v6942
        %7273 = vmatpush1.bf16.msra.mxu0 %v6941
        %7274 = vmatprep.subr.bf16.mxu0 %v6950
        %7275 = vmatpush1.bf16.msra.mxu0 %v6949
        %7276 = vmatprep.subr.bf16.mxu0 %v6958
        %7277 = vmatpush1.bf16.msra.mxu0 %v6957
        %7278 = vmatprep.subr.bf16.mxu0 %v6966
        %7279 = vmatpush1.bf16.msra.mxu0 %v6965
        %7280 = vmatprep.subr.bf16.mxu0 %v6974
        %7281 = vmatpush1.bf16.msra.mxu0 %v6973
        %7282 = vmatprep.subr.bf16.mxu0 %v6982
        %7283 = vmatpush1.bf16.msra.mxu0 %v6981
        %7284 = vmatprep.subr.bf16.mxu0 %v6990
        %7285 = vmatpush1.bf16.msra.mxu0 %v6989
        %7286 = vmatprep.subr.bf16.mxu0 %v6998
        %7287 = vmatpush1.bf16.msra.mxu0 %v6997
        %7288 = vmatprep.subr.bf16.mxu0 %v7006
        %7289 = vmatpush1.bf16.msra.mxu0 %v7005
        %7290 = vmatprep.subr.bf16.mxu0 %v7014
        %7291 = vmatpush1.bf16.msra.mxu0 %v7013
        %7292 = vmatprep.mubr.bf16.mxu0 %v6322
        %7293 = vmatmul.mubr.bf16.gmra.mrb[0].mxu0 %v6321
        %v7294 = vpop.f32.mrb[0].mxu0
        %v7295 = vadd.f32 %v6478, %v7294
        %v7296 = vpop.f32.mrb[0].mxu0
        %v7297 = vadd.f32 %v6482, %v7296
        %v7298 = vpop.f32.mrb[0].mxu0
        %v7299 = vadd.f32 %v6478, %v7298
        %v7300 = vpop.f32.mrb[0].mxu0
        %v7301 = vadd.f32 %v6482, %v7300
        %7302 = vmatprep.mubr.bf16.mxu0 %v6324
        %7303 = vmatmul.mubr.bf16.gmra.mrb[0].mxu0 %v6323
        %v7304 = vpop.f32.mrb[0].mxu0
        %v7305 = vadd.f32 %v6478, %v7304
        %v7306 = vpop.f32.mrb[0].mxu0
        %v7307 = vadd.f32 %v6482, %v7306
        %v7308 = vpop.f32.mrb[0].mxu0
        %v7309 = vadd.f32 %v6478, %v7308
        %v7310 = vpop.f32.mrb[0].mxu0
        %v7311 = vadd.f32 %v6482, %v7310
        %7312 = vmatprep.mubr.bf16.mxu0 %v6326
        %7313 = vmatmul.mubr.bf16.gmra.mrb[0].mxu0 %v6325
        %v7314 = vpop.f32.mrb[0].mxu0
        %v7315 = vadd.f32 %v6478, %v7314
        %v7316 = vpop.f32.mrb[0].mxu0
        %v7317 = vadd.f32 %v6482, %v7316
        %v7318 = vpop.f32.mrb[0].mxu0
        %v7319 = vadd.f32 %v6478, %v7318
        %v7320 = vpop.f32.mrb[0].mxu0
        %v7321 = vadd.f32 %v6482, %v7320
        %7322 = vmatprep.mubr.bf16.mxu0 %v6328
        %7323 = vmatmul.mubr.bf16.gmra.mrb[0].mxu0 %v6327
        %v7324 = vpop.f32.mrb[0].mxu0
        %v7325 = vadd.f32 %v6478, %v7324
        %v7326 = vpop.f32.mrb[0].mxu0
        %v7327 = vadd.f32 %v6482, %v7326
        %v7328 = vpop.f32.mrb[0].mxu0
        %v7329 = vadd.f32 %v6478, %v7328
        %v7330 = vpop.f32.mrb[0].mxu0
        %v7331 = vadd.f32 %v6482, %v7330
        %7332 = vmatprep.mubr.bf16.mxu0 %v6330
        %7333 = vmatmul.mubr.bf16.gmra.mrb[0].mxu0 %v6329
        %v7334 = vpop.f32.mrb[0].mxu0
        %v7335 = vadd.f32 %v6478, %v7334
        %v7336 = vpop.f32.mrb[0].mxu0
        %v7337 = vadd.f32 %v6482, %v7336
        %v7338 = vpop.f32.mrb[0].mxu0
        %v7339 = vadd.f32 %v6478, %v7338
        %v7340 = vpop.f32.mrb[0].mxu0
        %v7341 = vadd.f32 %v6482, %v7340
        %7342 = vmatprep.mubr.bf16.mxu0 %v6332
        %7343 = vmatmul.mubr.bf16.gmra.mrb[0].mxu0 %v6331
        %v7344 = vpop.f32.mrb[0].mxu0
        %v7345 = vadd.f32 %v6478, %v7344
        %v7346 = vpop.f32.mrb[0].mxu0
        %v7347 = vadd.f32 %v6482, %v7346
        %v7348 = vpop.f32.mrb[0].mxu0
        %v7349 = vadd.f32 %v6478, %v7348
        %v7350 = vpop.f32.mrb[0].mxu0
        %v7351 = vadd.f32 %v6482, %v7350
        %7352 = vmatprep.mubr.bf16.mxu0 %v6334
        %7353 = vmatmul.mubr.bf16.gmra.mrb[0].mxu0 %v6333
        %v7354 = vpop.f32.mrb[0].mxu0
        %v7355 = vadd.f32 %v6478, %v7354
        %v7356 = vpop.f32.mrb[0].mxu0
        %v7357 = vadd.f32 %v6482, %v7356
        %v7358 = vpop.f32.mrb[0].mxu0
        %v7359 = vadd.f32 %v6478, %v7358
        %v7360 = vpop.f32.mrb[0].mxu0
        %v7361 = vadd.f32 %v6482, %v7360
        %7362 = vmatprep.mubr.bf16.mxu0 %v6336
        %7363 = vmatmul.mubr.bf16.gmra.mrb[0].mxu0 %v6335
        %v7364 = vpop.f32.mrb[0].mxu0
        %v7365 = vadd.f32 %v6478, %v7364
        %v7366 = vpop.f32.mrb[0].mxu0
        %v7367 = vadd.f32 %v6482, %v7366
        %v7368 = vpop.f32.mrb[0].mxu0
        %v7369 = vadd.f32 %v6478, %v7368
        %v7370 = vpop.f32.mrb[0].mxu0
        %v7371 = vadd.f32 %v6482, %v7370
        %7372 = vdwg.mxu0
        %7373 = vmatprep.subr.bf16.mxu0 %v6896
        %7374 = vmatpush1.bf16.msra.mxu0 %v6895
        %7375 = vmatprep.subr.bf16.mxu0 %v6904
        %7376 = vmatpush1.bf16.msra.mxu0 %v6903
        %7377 = vmatprep.subr.bf16.mxu0 %v6912
        %7378 = vmatpush1.bf16.msra.mxu0 %v6911
        %7379 = vmatprep.subr.bf16.mxu0 %v6920
        %7380 = vmatpush1.bf16.msra.mxu0 %v6919
        %7381 = vmatprep.subr.bf16.mxu0 %v6928
        %7382 = vmatpush1.bf16.msra.mxu0 %v6927
        %7383 = vmatprep.subr.bf16.mxu0 %v6936
        %7384 = vmatpush1.bf16.msra.mxu0 %v6935
        %7385 = vmatprep.subr.bf16.mxu0 %v6944
        %7386 = vmatpush1.bf16.msra.mxu0 %v6943
        %7387 = vmatprep.subr.bf16.mxu0 %v6952
        %7388 = vmatpush1.bf16.msra.mxu0 %v6951
        %7389 = vmatprep.subr.bf16.mxu0 %v6960
        %7390 = vmatpush1.bf16.msra.mxu0 %v6959
        %7391 = vmatprep.subr.bf16.mxu0 %v6968
        %7392 = vmatpush1.bf16.msra.mxu0 %v6967
        %7393 = vmatprep.subr.bf16.mxu0 %v6976
        %7394 = vmatpush1.bf16.msra.mxu0 %v6975
        %7395 = vmatprep.subr.bf16.mxu0 %v6984
        %7396 = vmatpush1.bf16.msra.mxu0 %v6983
        %7397 = vmatprep.subr.bf16.mxu0 %v6992
        %7398 = vmatpush1.bf16.msra.mxu0 %v6991
        %7399 = vmatprep.subr.bf16.mxu0 %v7000
        %7400 = vmatpush1.bf16.msra.mxu0 %v6999
        %7401 = vmatprep.subr.bf16.mxu0 %v7008
        %7402 = vmatpush1.bf16.msra.mxu0 %v7007
        %7403 = vmatprep.subr.bf16.mxu0 %v7016
        %7404 = vmatpush1.bf16.msra.mxu0 %v7015
        %7405 = vmatprep.mubr.bf16.mxu0 %v6322
        %7406 = vmatmul.mubr.bf16.gmra.mrb[0].mxu0 %v6321
        %v7407 = vpop.f32.mrb[0].mxu0
        %v7408 = vadd.f32 %v6486, %v7407
        %v7409 = vpop.f32.mrb[0].mxu0
        %v7410 = vadd.f32 %v6490, %v7409
        %v7411 = vpop.f32.mrb[0].mxu0
        %v7412 = vadd.f32 %v6486, %v7411
        %v7413 = vpop.f32.mrb[0].mxu0
        %v7414 = vadd.f32 %v6490, %v7413
        %7415 = vmatprep.mubr.bf16.mxu0 %v6324
        %7416 = vmatmul.mubr.bf16.gmra.mrb[0].mxu0 %v6323
        %v7417 = vpop.f32.mrb[0].mxu0
        %v7418 = vadd.f32 %v6486, %v7417
        %v7419 = vpop.f32.mrb[0].mxu0
        %v7420 = vadd.f32 %v6490, %v7419
        %v7421 = vpop.f32.mrb[0].mxu0
        %v7422 = vadd.f32 %v6486, %v7421
        %v7423 = vpop.f32.mrb[0].mxu0
        %v7424 = vadd.f32 %v6490, %v7423
        %7425 = vmatprep.mubr.bf16.mxu0 %v6326
        %7426 = vmatmul.mubr.bf16.gmra.mrb[0].mxu0 %v6325
        %v7427 = vpop.f32.mrb[0].mxu0
        %v7428 = vadd.f32 %v6486, %v7427
        %v7429 = vpop.f32.mrb[0].mxu0
        %v7430 = vadd.f32 %v6490, %v7429
        %v7431 = vpop.f32.mrb[0].mxu0
        %v7432 = vadd.f32 %v6486, %v7431
        %v7433 = vpop.f32.mrb[0].mxu0
        %v7434 = vadd.f32 %v6490, %v7433
        %7435 = vmatprep.mubr.bf16.mxu0 %v6328
        %7436 = vmatmul.mubr.bf16.gmra.mrb[0].mxu0 %v6327
        %v7437 = vpop.f32.mrb[0].mxu0
        %v7438 = vadd.f32 %v6486, %v7437
        %v7439 = vpop.f32.mrb[0].mxu0
        %v7440 = vadd.f32 %v6490, %v7439
        %v7441 = vpop.f32.mrb[0].mxu0
        %v7442 = vadd.f32 %v6486, %v7441
        %v7443 = vpop.f32.mrb[0].mxu0
        %v7444 = vadd.f32 %v6490, %v7443
        %7445 = vmatprep.mubr.bf16.mxu0 %v6330
        %7446 = vmatmul.mubr.bf16.gmra.mrb[0].mxu0 %v6329
        %v7447 = vpop.f32.mrb[0].mxu0
        %v7448 = vadd.f32 %v6486, %v7447
        %v7449 = vpop.f32.mrb[0].mxu0
        %v7450 = vadd.f32 %v6490, %v7449
        %v7451 = vpop.f32.mrb[0].mxu0
        %v7452 = vadd.f32 %v6486, %v7451
        %v7453 = vpop.f32.mrb[0].mxu0
        %v7454 = vadd.f32 %v6490, %v7453
        %7455 = vmatprep.mubr.bf16.mxu0 %v6332
        %7456 = vmatmul.mubr.bf16.gmra.mrb[0].mxu0 %v6331
        %v7457 = vpop.f32.mrb[0].mxu0
        %v7458 = vadd.f32 %v6486, %v7457
        %v7459 = vpop.f32.mrb[0].mxu0
        %v7460 = vadd.f32 %v6490, %v7459
        %v7461 = vpop.f32.mrb[0].mxu0
        %v7462 = vadd.f32 %v6486, %v7461
        %v7463 = vpop.f32.mrb[0].mxu0
        %v7464 = vadd.f32 %v6490, %v7463
        %7465 = vmatprep.mubr.bf16.mxu0 %v6334
        %7466 = vmatmul.mubr.bf16.gmra.mrb[0].mxu0 %v6333
        %v7467 = vpop.f32.mrb[0].mxu0
        %v7468 = vadd.f32 %v6486, %v7467
        %v7469 = vpop.f32.mrb[0].mxu0
        %v7470 = vadd.f32 %v6490, %v7469
        %v7471 = vpop.f32.mrb[0].mxu0
        %v7472 = vadd.f32 %v6486, %v7471
        %v7473 = vpop.f32.mrb[0].mxu0
        %v7474 = vadd.f32 %v6490, %v7473
        %7475 = vmatprep.mubr.bf16.mxu0 %v6336
        %7476 = vmatmul.mubr.bf16.gmra.mrb[0].mxu0 %v6335
        %v7477 = vpop.f32.mrb[0].mxu0
        %v7478 = vadd.f32 %v6486, %v7477
        %v7479 = vpop.f32.mrb[0].mxu0
        %v7480 = vadd.f32 %v6490, %v7479
        %v7481 = vpop.f32.mrb[0].mxu0
        %v7482 = vadd.f32 %v6486, %v7481
        %v7483 = vpop.f32.mrb[0].mxu0
        %v7484 = vadd.f32 %v6490, %v7483
        %7485 = vdwg.mxu0
        %7486 = vmatprep.subr.bf16.mxu0 %v6898
        %7487 = vmatpush1.bf16.msra.mxu0 %v6897
        %7488 = vmatprep.subr.bf16.mxu0 %v6906
        %7489 = vmatpush1.bf16.msra.mxu0 %v6905
        %7490 = vmatprep.subr.bf16.mxu0 %v6914
        %7491 = vmatpush1.bf16.msra.mxu0 %v6913
        %7492 = vmatprep.subr.bf16.mxu0 %v6922
        %7493 = vmatpush1.bf16.msra.mxu0 %v6921
        %7494 = vmatprep.subr.bf16.mxu0 %v6930
        %7495 = vmatpush1.bf16.msra.mxu0 %v6929
        %7496 = vmatprep.subr.bf16.mxu0 %v6938
        %7497 = vmatpush1.bf16.msra.mxu0 %v6937
        %7498 = vmatprep.subr.bf16.mxu0 %v6946
        %7499 = vmatpush1.bf16.msra.mxu0 %v6945
        %7500 = vmatprep.subr.bf16.mxu0 %v6954
        %7501 = vmatpush1.bf16.msra.mxu0 %v6953
        %7502 = vmatprep.subr.bf16.mxu0 %v6962
        %7503 = vmatpush1.bf16.msra.mxu0 %v6961
        %7504 = vmatprep.subr.bf16.mxu0 %v6970
        %7505 = vmatpush1.bf16.msra.mxu0 %v6969
        %7506 = vmatprep.subr.bf16.mxu0 %v6978
        %7507 = vmatpush1.bf16.msra.mxu0 %v6977
        %7508 = vmatprep.subr.bf16.mxu0 %v6986
        %7509 = vmatpush1.bf16.msra.mxu0 %v6985
        %7510 = vmatprep.subr.bf16.mxu0 %v6994
        %7511 = vmatpush1.bf16.msra.mxu0 %v6993
        %7512 = vmatprep.subr.bf16.mxu0 %v7002
        %7513 = vmatpush1.bf16.msra.mxu0 %v7001
        %7514 = vmatprep.subr.bf16.mxu0 %v7010
        %7515 = vmatpush1.bf16.msra.mxu0 %v7009
        %7516 = vmatprep.subr.bf16.mxu0 %v7018
        %7517 = vmatpush1.bf16.msra.mxu0 %v7017
        %7518 = vmatprep.mubr.bf16.mxu0 %v6322
        %7519 = vmatmul.mubr.bf16.gmra.mrb[0].mxu0 %v6321
        %v7520 = vpop.f32.mrb[0].mxu0
        %v7521 = vadd.f32 %v6494, %v7520
        %v7522 = vpop.f32.mrb[0].mxu0
        %v7523 = vadd.f32 %v6498, %v7522
        %v7524 = vpop.f32.mrb[0].mxu0
        %v7525 = vadd.f32 %v6494, %v7524
        %v7526 = vpop.f32.mrb[0].mxu0
        %v7527 = vadd.f32 %v6498, %v7526
        %7528 = vmatprep.mubr.bf16.mxu0 %v6324
        %7529 = vmatmul.mubr.bf16.gmra.mrb[0].mxu0 %v6323
        %v7530 = vpop.f32.mrb[0].mxu0
        %v7531 = vadd.f32 %v6494, %v7530
        %v7532 = vpop.f32.mrb[0].mxu0
        %v7533 = vadd.f32 %v6498, %v7532
        %v7534 = vpop.f32.mrb[0].mxu0
        %v7535 = vadd.f32 %v6494, %v7534
        %v7536 = vpop.f32.mrb[0].mxu0
        %v7537 = vadd.f32 %v6498, %v7536
        %7538 = vmatprep.mubr.bf16.mxu0 %v6326
        %7539 = vmatmul.mubr.bf16.gmra.mrb[0].mxu0 %v6325
        %v7540 = vpop.f32.mrb[0].mxu0
        %v7541 = vadd.f32 %v6494, %v7540
        %v7542 = vpop.f32.mrb[0].mxu0
        %v7543 = vadd.f32 %v6498, %v7542
        %v7544 = vpop.f32.mrb[0].mxu0
        %v7545 = vadd.f32 %v6494, %v7544
        %v7546 = vpop.f32.mrb[0].mxu0
        %v7547 = vadd.f32 %v6498, %v7546
        %7548 = vmatprep.mubr.bf16.mxu0 %v6328
        %7549 = vmatmul.mubr.bf16.gmra.mrb[0].mxu0 %v6327
        %v7550 = vpop.f32.mrb[0].mxu0
        %v7551 = vadd.f32 %v6494, %v7550
        %v7552 = vpop.f32.mrb[0].mxu0
        %v7553 = vadd.f32 %v6498, %v7552
        %v7554 = vpop.f32.mrb[0].mxu0
        %v7555 = vadd.f32 %v6494, %v7554
        %v7556 = vpop.f32.mrb[0].mxu0
        %v7557 = vadd.f32 %v6498, %v7556
        %7558 = vmatprep.mubr.bf16.mxu0 %v6330
        %7559 = vmatmul.mubr.bf16.gmra.mrb[0].mxu0 %v6329
        %v7560 = vpop.f32.mrb[0].mxu0
        %v7561 = vadd.f32 %v6494, %v7560
        %v7562 = vpop.f32.mrb[0].mxu0
        %v7563 = vadd.f32 %v6498, %v7562
        %v7564 = vpop.f32.mrb[0].mxu0
        %v7565 = vadd.f32 %v6494, %v7564
        %v7566 = vpop.f32.mrb[0].mxu0
        %v7567 = vadd.f32 %v6498, %v7566
        %7568 = vmatprep.mubr.bf16.mxu0 %v6332
        %7569 = vmatmul.mubr.bf16.gmra.mrb[0].mxu0 %v6331
        %v7570 = vpop.f32.mrb[0].mxu0
        %v7571 = vadd.f32 %v6494, %v7570
        %v7572 = vpop.f32.mrb[0].mxu0
        %v7573 = vadd.f32 %v6498, %v7572
        %v7574 = vpop.f32.mrb[0].mxu0
        %v7575 = vadd.f32 %v6494, %v7574
        %v7576 = vpop.f32.mrb[0].mxu0
        %v7577 = vadd.f32 %v6498, %v7576
        %7578 = vmatprep.mubr.bf16.mxu0 %v6334
        %7579 = vmatmul.mubr.bf16.gmra.mrb[0].mxu0 %v6333
        %v7580 = vpop.f32.mrb[0].mxu0
        %v7581 = vadd.f32 %v6494, %v7580
        %v7582 = vpop.f32.mrb[0].mxu0
        %v7583 = vadd.f32 %v6498, %v7582
        %v7584 = vpop.f32.mrb[0].mxu0
        %v7585 = vadd.f32 %v6494, %v7584
        %v7586 = vpop.f32.mrb[0].mxu0
        %v7587 = vadd.f32 %v6498, %v7586
        %7588 = vmatprep.mubr.bf16.mxu0 %v6336
        %7589 = vmatmul.mubr.bf16.gmra.mrb[0].mxu0 %v6335
        %v7590 = vpop.f32.mrb[0].mxu0
        %v7591 = vadd.f32 %v6494, %v7590
        %v7592 = vpop.f32.mrb[0].mxu0
        %v7593 = vadd.f32 %v6498, %v7592
        %v7594 = vpop.f32.mrb[0].mxu0
        %v7595 = vadd.f32 %v6494, %v7594
        %v7596 = vpop.f32.mrb[0].mxu0
        %v7597 = vadd.f32 %v6498, %v7596
        %7598 = vdwg.mxu0
        %v7599 = vand.u32 2147483647, %v7182
        %v7600 = vand.u32 2147483647, %v7184
        %v7601 = vand.u32 2147483647, %v7295
        %v7602 = vand.u32 2147483647, %v7297
        %v7603 = vand.u32 2147483647, %v7408
        %v7604 = vand.u32 2147483647, %v7410
        %v7605 = vand.u32 2147483647, %v7521
        %v7606 = vand.u32 2147483647, %v7523
        %v7607 = vand.u32 2147483647, %v7186
        %v7608 = vand.u32 2147483647, %v7188
        %v7609 = vand.u32 2147483647, %v7299
        %v7610 = vand.u32 2147483647, %v7301
        %v7611 = vand.u32 2147483647, %v7412
        %v7612 = vand.u32 2147483647, %v7414
        %v7613 = vand.u32 2147483647, %v7525
        %v7614 = vand.u32 2147483647, %v7527
        %v7615 = vand.u32 2147483647, %v7192
        %v7616 = vand.u32 2147483647, %v7194
        %v7617 = vand.u32 2147483647, %v7305
        %v7618 = vand.u32 2147483647, %v7307
        %v7619 = vand.u32 2147483647, %v7418
        %v7620 = vand.u32 2147483647, %v7420
        %v7621 = vand.u32 2147483647, %v7531
        %v7622 = vand.u32 2147483647, %v7533
        %v7623 = vand.u32 2147483647, %v7196
        %v7624 = vand.u32 2147483647, %v7198
        %v7625 = vand.u32 2147483647, %v7309
        %v7626 = vand.u32 2147483647, %v7311
        %v7627 = vand.u32 2147483647, %v7422
        %v7628 = vand.u32 2147483647, %v7424
        %v7629 = vand.u32 2147483647, %v7535
        %v7630 = vand.u32 2147483647, %v7537
        %v7631 = vand.u32 2147483647, %v7202
        %v7632 = vand.u32 2147483647, %v7204
        %v7633 = vand.u32 2147483647, %v7315
        %v7634 = vand.u32 2147483647, %v7317
        %v7635 = vand.u32 2147483647, %v7428
        %v7636 = vand.u32 2147483647, %v7430
        %v7637 = vand.u32 2147483647, %v7541
        %v7638 = vand.u32 2147483647, %v7543
        %v7639 = vand.u32 2147483647, %v7206
        %v7640 = vand.u32 2147483647, %v7208
        %v7641 = vand.u32 2147483647, %v7319
        %v7642 = vand.u32 2147483647, %v7321
        %v7643 = vand.u32 2147483647, %v7432
        %v7644 = vand.u32 2147483647, %v7434
        %v7645 = vand.u32 2147483647, %v7545
        %v7646 = vand.u32 2147483647, %v7547
        %v7647 = vand.u32 2147483647, %v7212
        %v7648 = vand.u32 2147483647, %v7214
        %v7649 = vand.u32 2147483647, %v7325
        %v7650 = vand.u32 2147483647, %v7327
        %v7651 = vand.u32 2147483647, %v7438
        %v7652 = vand.u32 2147483647, %v7440
        %v7653 = vand.u32 2147483647, %v7551
        %v7654 = vand.u32 2147483647, %v7553
        %v7655 = vand.u32 2147483647, %v7216
        %v7656 = vand.u32 2147483647, %v7218
        %v7657 = vand.u32 2147483647, %v7329
        %v7658 = vand.u32 2147483647, %v7331
        %v7659 = vand.u32 2147483647, %v7442
        %v7660 = vand.u32 2147483647, %v7444
        %v7661 = vand.u32 2147483647, %v7555
        %v7662 = vand.u32 2147483647, %v7557
        %v7663 = vand.u32 2147483647, %v7222
        %v7664 = vand.u32 2147483647, %v7224
        %v7665 = vand.u32 2147483647, %v7335
        %v7666 = vand.u32 2147483647, %v7337
        %v7667 = vand.u32 2147483647, %v7448
        %v7668 = vand.u32 2147483647, %v7450
        %v7669 = vand.u32 2147483647, %v7561
        %v7670 = vand.u32 2147483647, %v7563
        %v7671 = vand.u32 2147483647, %v7226
        %v7672 = vand.u32 2147483647, %v7228
        %v7673 = vand.u32 2147483647, %v7339
        %v7674 = vand.u32 2147483647, %v7341
        %v7675 = vand.u32 2147483647, %v7452
        %v7676 = vand.u32 2147483647, %v7454
        %v7677 = vand.u32 2147483647, %v7565
        %v7678 = vand.u32 2147483647, %v7567
        %v7679 = vand.u32 2147483647, %v7232
        %v7680 = vand.u32 2147483647, %v7234
        %v7681 = vand.u32 2147483647, %v7345
        %v7682 = vand.u32 2147483647, %v7347
        %v7683 = vand.u32 2147483647, %v7458
        %v7684 = vand.u32 2147483647, %v7460
        %v7685 = vand.u32 2147483647, %v7571
        %v7686 = vand.u32 2147483647, %v7573
        %v7687 = vand.u32 2147483647, %v7236
        %v7688 = vand.u32 2147483647, %v7238
        %v7689 = vand.u32 2147483647, %v7349
        %v7690 = vand.u32 2147483647, %v7351
        %v7691 = vand.u32 2147483647, %v7462
        %v7692 = vand.u32 2147483647, %v7464
        %v7693 = vand.u32 2147483647, %v7575
        %v7694 = vand.u32 2147483647, %v7577
        %v7695 = vand.u32 2147483647, %v7242
        %v7696 = vand.u32 2147483647, %v7244
        %v7697 = vand.u32 2147483647, %v7355
        %v7698 = vand.u32 2147483647, %v7357
        %v7699 = vand.u32 2147483647, %v7468
        %v7700 = vand.u32 2147483647, %v7470
        %v7701 = vand.u32 2147483647, %v7581
        %v7702 = vand.u32 2147483647, %v7583
        %v7703 = vand.u32 2147483647, %v7246
        %v7704 = vand.u32 2147483647, %v7248
        %v7705 = vand.u32 2147483647, %v7359
        %v7706 = vand.u32 2147483647, %v7361
        %v7707 = vand.u32 2147483647, %v7472
        %v7708 = vand.u32 2147483647, %v7474
        %v7709 = vand.u32 2147483647, %v7585
        %v7710 = vand.u32 2147483647, %v7587
        %v7711 = vand.u32 2147483647, %v7252
        %v7712 = vand.u32 2147483647, %v7254
        %v7713 = vand.u32 2147483647, %v7365
        %v7714 = vand.u32 2147483647, %v7367
        %v7715 = vand.u32 2147483647, %v7478
        %v7716 = vand.u32 2147483647, %v7480
        %v7717 = vand.u32 2147483647, %v7591
        %v7718 = vand.u32 2147483647, %v7593
        %v7719 = vand.u32 2147483647, %v7256
        %v7720 = vand.u32 2147483647, %v7258
        %v7721 = vand.u32 2147483647, %v7369
        %v7722 = vand.u32 2147483647, %v7371
        %v7723 = vand.u32 2147483647, %v7482
        %v7724 = vand.u32 2147483647, %v7484
        %v7725 = vand.u32 2147483647, %v7595
        %v7726 = vand.u32 2147483647, %v7597
        %v7727 = vsub.f32 0.0, %v7599
        %v7728 = vsub.f32 0.0, %v7600
        %v7729 = vsub.f32 0.0, %v7601
        %v7730 = vsub.f32 0.0, %v7602
        %v7731 = vsub.f32 0.0, %v7603
        %v7732 = vsub.f32 0.0, %v7604
        %v7733 = vsub.f32 0.0, %v7605
        %v7734 = vsub.f32 0.0, %v7606
        %v7735 = vsub.f32 0.0, %v7607
        %v7736 = vsub.f32 0.0, %v7608
        %v7737 = vsub.f32 0.0, %v7609
        %v7738 = vsub.f32 0.0, %v7610
        %v7739 = vsub.f32 0.0, %v7611
        %v7740 = vsub.f32 0.0, %v7612
        %v7741 = vsub.f32 0.0, %v7613
        %v7742 = vsub.f32 0.0, %v7614
        %v7743 = vsub.f32 0.0, %v7615
        %v7744 = vsub.f32 0.0, %v7616
        %v7745 = vsub.f32 0.0, %v7617
        %v7746 = vsub.f32 0.0, %v7618
        %v7747 = vsub.f32 0.0, %v7619
        %v7748 = vsub.f32 0.0, %v7620
        %v7749 = vsub.f32 0.0, %v7621
        %v7750 = vsub.f32 0.0, %v7622
        %v7751 = vsub.f32 0.0, %v7623
        %v7752 = vsub.f32 0.0, %v7624
        %v7753 = vsub.f32 0.0, %v7625
        %v7754 = vsub.f32 0.0, %v7626
        %v7755 = vsub.f32 0.0, %v7627
        %v7756 = vsub.f32 0.0, %v7628
        %v7757 = vsub.f32 0.0, %v7629
        %v7758 = vsub.f32 0.0, %v7630
        %v7759 = vsub.f32 0.0, %v7631
        %v7760 = vsub.f32 0.0, %v7632
        %v7761 = vsub.f32 0.0, %v7633
        %v7762 = vsub.f32 0.0, %v7634
        %v7763 = vsub.f32 0.0, %v7635
        %v7764 = vsub.f32 0.0, %v7636
        %v7765 = vsub.f32 0.0, %v7637
        %v7766 = vsub.f32 0.0, %v7638
        %v7767 = vsub.f32 0.0, %v7639
        %v7768 = vsub.f32 0.0, %v7640
        %v7769 = vsub.f32 0.0, %v7641
        %v7770 = vsub.f32 0.0, %v7642
        %v7771 = vsub.f32 0.0, %v7643
        %v7772 = vsub.f32 0.0, %v7644
        %v7773 = vsub.f32 0.0, %v7645
        %v7774 = vsub.f32 0.0, %v7646
        %v7775 = vsub.f32 0.0, %v7647
        %v7776 = vsub.f32 0.0, %v7648
        %v7777 = vsub.f32 0.0, %v7649
        %v7778 = vsub.f32 0.0, %v7650
        %v7779 = vsub.f32 0.0, %v7651
        %v7780 = vsub.f32 0.0, %v7652
        %v7781 = vsub.f32 0.0, %v7653
        %v7782 = vsub.f32 0.0, %v7654
        %v7783 = vsub.f32 0.0, %v7655
        %v7784 = vsub.f32 0.0, %v7656
        %v7785 = vsub.f32 0.0, %v7657
        %v7786 = vsub.f32 0.0, %v7658
        %v7787 = vsub.f32 0.0, %v7659
        %v7788 = vsub.f32 0.0, %v7660
        %v7789 = vsub.f32 0.0, %v7661
        %v7790 = vsub.f32 0.0, %v7662
        %v7791 = vsub.f32 0.0, %v7663
        %v7792 = vsub.f32 0.0, %v7664
        %v7793 = vsub.f32 0.0, %v7665
        %v7794 = vsub.f32 0.0, %v7666
        %v7795 = vsub.f32 0.0, %v7667
        %v7796 = vsub.f32 0.0, %v7668
        %v7797 = vsub.f32 0.0, %v7669
        %v7798 = vsub.f32 0.0, %v7670
        %v7799 = vsub.f32 0.0, %v7671
        %v7800 = vsub.f32 0.0, %v7672
        %v7801 = vsub.f32 0.0, %v7673
        %v7802 = vsub.f32 0.0, %v7674
        %v7803 = vsub.f32 0.0, %v7675
        %v7804 = vsub.f32 0.0, %v7676
        %v7805 = vsub.f32 0.0, %v7677
        %v7806 = vsub.f32 0.0, %v7678
        %v7807 = vsub.f32 0.0, %v7679
        %v7808 = vsub.f32 0.0, %v7680
        %v7809 = vsub.f32 0.0, %v7681
        %v7810 = vsub.f32 0.0, %v7682
        %v7811 = vsub.f32 0.0, %v7683
        %v7812 = vsub.f32 0.0, %v7684
        %v7813 = vsub.f32 0.0, %v7685
        %v7814 = vsub.f32 0.0, %v7686
        %v7815 = vsub.f32 0.0, %v7687
        %v7816 = vsub.f32 0.0, %v7688
        %v7817 = vsub.f32 0.0, %v7689
        %v7818 = vsub.f32 0.0, %v7690
        %v7819 = vsub.f32 0.0, %v7691
        %v7820 = vsub.f32 0.0, %v7692
        %v7821 = vsub.f32 0.0, %v7693
        %v7822 = vsub.f32 0.0, %v7694
        %v7823 = vsub.f32 0.0, %v7695
        %v7824 = vsub.f32 0.0, %v7696
        %v7825 = vsub.f32 0.0, %v7697
        %v7826 = vsub.f32 0.0, %v7698
        %v7827 = vsub.f32 0.0, %v7699
        %v7828 = vsub.f32 0.0, %v7700
        %v7829 = vsub.f32 0.0, %v7701
        %v7830 = vsub.f32 0.0, %v7702
        %v7831 = vsub.f32 0.0, %v7703
        %v7832 = vsub.f32 0.0, %v7704
        %v7833 = vsub.f32 0.0, %v7705
        %v7834 = vsub.f32 0.0, %v7706
        %v7835 = vsub.f32 0.0, %v7707
        %v7836 = vsub.f32 0.0, %v7708
        %v7837 = vsub.f32 0.0, %v7709
        %v7838 = vsub.f32 0.0, %v7710
        %v7839 = vsub.f32 0.0, %v7711
        %v7840 = vsub.f32 0.0, %v7712
        %v7841 = vsub.f32 0.0, %v7713
        %v7842 = vsub.f32 0.0, %v7714
        %v7843 = vsub.f32 0.0, %v7715
        %v7844 = vsub.f32 0.0, %v7716
        %v7845 = vsub.f32 0.0, %v7717
        %v7846 = vsub.f32 0.0, %v7718
        %v7847 = vsub.f32 0.0, %v7719
        %v7848 = vsub.f32 0.0, %v7720
        %v7849 = vsub.f32 0.0, %v7721
        %v7850 = vsub.f32 0.0, %v7722
        %v7851 = vsub.f32 0.0, %v7723
        %v7852 = vsub.f32 0.0, %v7724
        %v7853 = vsub.f32 0.0, %v7725
        %v7854 = vsub.f32 0.0, %v7726
        %v7855 = vmul.f32 %v7727, 1.442695
        %v7856 = vpow.pop %v7855
        %v7857 = vmul.f32 %v7728, 1.442695
        %v7858 = vpow.pop %v7857
        %v7859 = vmul.f32 %v7729, 1.442695
        %v7860 = vpow.pop %v7859
        %v7861 = vmul.f32 %v7730, 1.442695
        %v7862 = vpow.pop %v7861
        %v7863 = vmul.f32 %v7731, 1.442695
        %v7864 = vpow.pop %v7863
        %v7865 = vmul.f32 %v7732, 1.442695
        %v7866 = vpow.pop %v7865
        %v7867 = vmul.f32 %v7733, 1.442695
        %v7868 = vpow.pop %v7867
        %v7869 = vmul.f32 %v7734, 1.442695
        %v7870 = vpow.pop %v7869
        %v7871 = vmul.f32 %v7735, 1.442695
        %v7872 = vpow.pop %v7871
        %v7873 = vmul.f32 %v7736, 1.442695
        %v7874 = vpow.pop %v7873
        %v7875 = vmul.f32 %v7737, 1.442695
        %v7876 = vpow.pop %v7875
        %v7877 = vmul.f32 %v7738, 1.442695
        %v7878 = vpow.pop %v7877
        %v7879 = vmul.f32 %v7739, 1.442695
        %v7880 = vpow.pop %v7879
        %v7881 = vmul.f32 %v7740, 1.442695
        %v7882 = vpow.pop %v7881
        %v7883 = vmul.f32 %v7741, 1.442695
        %v7884 = vpow.pop %v7883
        %v7885 = vmul.f32 %v7742, 1.442695
        %v7886 = vpow.pop %v7885
        %v7887 = vmul.f32 %v7743, 1.442695
        %v7888 = vpow.pop %v7887
        %v7889 = vmul.f32 %v7744, 1.442695
        %v7890 = vpow.pop %v7889
        %v7891 = vmul.f32 %v7745, 1.442695
        %v7892 = vpow.pop %v7891
        %v7893 = vmul.f32 %v7746, 1.442695
        %v7894 = vpow.pop %v7893
        %v7895 = vmul.f32 %v7747, 1.442695
        %v7896 = vpow.pop %v7895
        %v7897 = vmul.f32 %v7748, 1.442695
        %v7898 = vpow.pop %v7897
        %v7899 = vmul.f32 %v7749, 1.442695
        %v7900 = vpow.pop %v7899
        %v7901 = vmul.f32 %v7750, 1.442695
        %v7902 = vpow.pop %v7901
        %v7903 = vmul.f32 %v7751, 1.442695
        %v7904 = vpow.pop %v7903
        %v7905 = vmul.f32 %v7752, 1.442695
        %v7906 = vpow.pop %v7905
        %v7907 = vmul.f32 %v7753, 1.442695
        %v7908 = vpow.pop %v7907
        %v7909 = vmul.f32 %v7754, 1.442695
        %v7910 = vpow.pop %v7909
        %v7911 = vmul.f32 %v7755, 1.442695
        %v7912 = vpow.pop %v7911
        %v7913 = vmul.f32 %v7756, 1.442695
        %v7914 = vpow.pop %v7913
        %v7915 = vmul.f32 %v7757, 1.442695
        %v7916 = vpow.pop %v7915
        %v7917 = vmul.f32 %v7758, 1.442695
        %v7918 = vpow.pop %v7917
        %v7919 = vmul.f32 %v7759, 1.442695
        %v7920 = vpow.pop %v7919
        %v7921 = vmul.f32 %v7760, 1.442695
        %v7922 = vpow.pop %v7921
        %v7923 = vmul.f32 %v7761, 1.442695
        %v7924 = vpow.pop %v7923
        %v7925 = vmul.f32 %v7762, 1.442695
        %v7926 = vpow.pop %v7925
        %v7927 = vmul.f32 %v7763, 1.442695
        %v7928 = vpow.pop %v7927
        %v7929 = vmul.f32 %v7764, 1.442695
        %v7930 = vpow.pop %v7929
        %v7931 = vmul.f32 %v7765, 1.442695
        %v7932 = vpow.pop %v7931
        %v7933 = vmul.f32 %v7766, 1.442695
        %v7934 = vpow.pop %v7933
        %v7935 = vmul.f32 %v7767, 1.442695
        %v7936 = vpow.pop %v7935
        %v7937 = vmul.f32 %v7768, 1.442695
        %v7938 = vpow.pop %v7937
        %v7939 = vmul.f32 %v7769, 1.442695
        %v7940 = vpow.pop %v7939
        %v7941 = vmul.f32 %v7770, 1.442695
        %v7942 = vpow.pop %v7941
        %v7943 = vmul.f32 %v7771, 1.442695
        %v7944 = vpow.pop %v7943
        %v7945 = vmul.f32 %v7772, 1.442695
        %v7946 = vpow.pop %v7945
        %v7947 = vmul.f32 %v7773, 1.442695
        %v7948 = vpow.pop %v7947
        %v7949 = vmul.f32 %v7774, 1.442695
        %v7950 = vpow.pop %v7949
        %v7951 = vmul.f32 %v7775, 1.442695
        %v7952 = vpow.pop %v7951
        %v7953 = vmul.f32 %v7776, 1.442695
        %v7954 = vpow.pop %v7953
        %v7955 = vmul.f32 %v7777, 1.442695
        %v7956 = vpow.pop %v7955
        %v7957 = vmul.f32 %v7778, 1.442695
        %v7958 = vpow.pop %v7957
        %v7959 = vmul.f32 %v7779, 1.442695
        %v7960 = vpow.pop %v7959
        %v7961 = vmul.f32 %v7780, 1.442695
        %v7962 = vpow.pop %v7961
        %v7963 = vmul.f32 %v7781, 1.442695
        %v7964 = vpow.pop %v7963
        %v7965 = vmul.f32 %v7782, 1.442695
        %v7966 = vpow.pop %v7965
        %v7967 = vmul.f32 %v7783, 1.442695
        %v7968 = vpow.pop %v7967
        %v7969 = vmul.f32 %v7784, 1.442695
        %v7970 = vpow.pop %v7969
        %v7971 = vmul.f32 %v7785, 1.442695
        %v7972 = vpow.pop %v7971
        %v7973 = vmul.f32 %v7786, 1.442695
        %v7974 = vpow.pop %v7973
        %v7975 = vmul.f32 %v7787, 1.442695
        %v7976 = vpow.pop %v7975
        %v7977 = vmul.f32 %v7788, 1.442695
        %v7978 = vpow.pop %v7977
        %v7979 = vmul.f32 %v7789, 1.442695
        %v7980 = vpow.pop %v7979
        %v7981 = vmul.f32 %v7790, 1.442695
        %v7982 = vpow.pop %v7981
        %v7983 = vmul.f32 %v7791, 1.442695
        %v7984 = vpow.pop %v7983
        %v7985 = vmul.f32 %v7792, 1.442695
        %v7986 = vpow.pop %v7985
        %v7987 = vmul.f32 %v7793, 1.442695
        %v7988 = vpow.pop %v7987
        %v7989 = vmul.f32 %v7794, 1.442695
        %v7990 = vpow.pop %v7989
        %v7991 = vmul.f32 %v7795, 1.442695
        %v7992 = vpow.pop %v7991
        %v7993 = vmul.f32 %v7796, 1.442695
        %v7994 = vpow.pop %v7993
        %v7995 = vmul.f32 %v7797, 1.442695
        %v7996 = vpow.pop %v7995
        %v7997 = vmul.f32 %v7798, 1.442695
        %v7998 = vpow.pop %v7997
        %v7999 = vmul.f32 %v7799, 1.442695
        %v8000 = vpow.pop %v7999
        %v8001 = vmul.f32 %v7800, 1.442695
        %v8002 = vpow.pop %v8001
        %v8003 = vmul.f32 %v7801, 1.442695
        %v8004 = vpow.pop %v8003
        %v8005 = vmul.f32 %v7802, 1.442695
        %v8006 = vpow.pop %v8005
        %v8007 = vmul.f32 %v7803, 1.442695
        %v8008 = vpow.pop %v8007
        %v8009 = vmul.f32 %v7804, 1.442695
        %v8010 = vpow.pop %v8009
        %v8011 = vmul.f32 %v7805, 1.442695
        %v8012 = vpow.pop %v8011
        %v8013 = vmul.f32 %v7806, 1.442695
        %v8014 = vpow.pop %v8013
        %v8015 = vmul.f32 %v7807, 1.442695
        %v8016 = vpow.pop %v8015
        %v8017 = vmul.f32 %v7808, 1.442695
        %v8018 = vpow.pop %v8017
        %v8019 = vmul.f32 %v7809, 1.442695
        %v8020 = vpow.pop %v8019
        %v8021 = vmul.f32 %v7810, 1.442695
        %v8022 = vpow.pop %v8021
        %v8023 = vmul.f32 %v7811, 1.442695
        %v8024 = vpow.pop %v8023
        %v8025 = vmul.f32 %v7812, 1.442695
        %v8026 = vpow.pop %v8025
        %v8027 = vmul.f32 %v7813, 1.442695
        %v8028 = vpow.pop %v8027
        %v8029 = vmul.f32 %v7814, 1.442695
        %v8030 = vpow.pop %v8029
        %v8031 = vmul.f32 %v7815, 1.442695
        %v8032 = vpow.pop %v8031
        %v8033 = vmul.f32 %v7816, 1.442695
        %v8034 = vpow.pop %v8033
        %v8035 = vmul.f32 %v7817, 1.442695
        %v8036 = vpow.pop %v8035
        %v8037 = vmul.f32 %v7818, 1.442695
        %v8038 = vpow.pop %v8037
        %v8039 = vmul.f32 %v7819, 1.442695
        %v8040 = vpow.pop %v8039
        %v8041 = vmul.f32 %v7820, 1.442695
        %v8042 = vpow.pop %v8041
        %v8043 = vmul.f32 %v7821, 1.442695
        %v8044 = vpow.pop %v8043
        %v8045 = vmul.f32 %v7822, 1.442695
        %v8046 = vpow.pop %v8045
        %v8047 = vmul.f32 %v7823, 1.442695
        %v8048 = vpow.pop %v8047
        %v8049 = vmul.f32 %v7824, 1.442695
        %v8050 = vpow.pop %v8049
        %v8051 = vmul.f32 %v7825, 1.442695
        %v8052 = vpow.pop %v8051
        %v8053 = vmul.f32 %v7826, 1.442695
        %v8054 = vpow.pop %v8053
        %v8055 = vmul.f32 %v7827, 1.442695
        %v8056 = vpow.pop %v8055
        %v8057 = vmul.f32 %v7828, 1.442695
        %v8058 = vpow.pop %v8057
        %v8059 = vmul.f32 %v7829, 1.442695
        %v8060 = vpow.pop %v8059
        %v8061 = vmul.f32 %v7830, 1.442695
        %v8062 = vpow.pop %v8061
        %v8063 = vmul.f32 %v7831, 1.442695
        %v8064 = vpow.pop %v8063
        %v8065 = vmul.f32 %v7832, 1.442695
        %v8066 = vpow.pop %v8065
        %v8067 = vmul.f32 %v7833, 1.442695
        %v8068 = vpow.pop %v8067
        %v8069 = vmul.f32 %v7834, 1.442695
        %v8070 = vpow.pop %v8069
        %v8071 = vmul.f32 %v7835, 1.442695
        %v8072 = vpow.pop %v8071
        %v8073 = vmul.f32 %v7836, 1.442695
        %v8074 = vpow.pop %v8073
        %v8075 = vmul.f32 %v7837, 1.442695
        %v8076 = vpow.pop %v8075
        %v8077 = vmul.f32 %v7838, 1.442695
        %v8078 = vpow.pop %v8077
        %v8079 = vmul.f32 %v7839, 1.442695
        %v8080 = vpow.pop %v8079
        %v8081 = vmul.f32 %v7840, 1.442695
        %v8082 = vpow.pop %v8081
        %v8083 = vmul.f32 %v7841, 1.442695
        %v8084 = vpow.pop %v8083
        %v8085 = vmul.f32 %v7842, 1.442695
        %v8086 = vpow.pop %v8085
        %v8087 = vmul.f32 %v7843, 1.442695
        %v8088 = vpow.pop %v8087
        %v8089 = vmul.f32 %v7844, 1.442695
        %v8090 = vpow.pop %v8089
        %v8091 = vmul.f32 %v7845, 1.442695
        %v8092 = vpow.pop %v8091
        %v8093 = vmul.f32 %v7846, 1.442695
        %v8094 = vpow.pop %v8093
        %v8095 = vmul.f32 %v7847, 1.442695
        %v8096 = vpow.pop %v8095
        %v8097 = vmul.f32 %v7848, 1.442695
        %v8098 = vpow.pop %v8097
        %v8099 = vmul.f32 %v7849, 1.442695
        %v8100 = vpow.pop %v8099
        %v8101 = vmul.f32 %v7850, 1.442695
        %v8102 = vpow.pop %v8101
        %v8103 = vmul.f32 %v7851, 1.442695
        %v8104 = vpow.pop %v8103
        %v8105 = vmul.f32 %v7852, 1.442695
        %v8106 = vpow.pop %v8105
        %v8107 = vmul.f32 %v7853, 1.442695
        %v8108 = vpow.pop %v8107
        %v8109 = vmul.f32 %v7854, 1.442695
        %v8110 = vpow.pop %v8109
        %v8111 = vadd.f32 %v7856, 1.0
        %v8112 = vadd.f32 %v7858, 1.0
        %v8113 = vadd.f32 %v7860, 1.0
        %v8114 = vadd.f32 %v7862, 1.0
        %v8115 = vadd.f32 %v7864, 1.0
        %v8116 = vadd.f32 %v7866, 1.0
        %v8117 = vadd.f32 %v7868, 1.0
        %v8118 = vadd.f32 %v7870, 1.0
        %v8119 = vadd.f32 %v7872, 1.0
        %v8120 = vadd.f32 %v7874, 1.0
        %v8121 = vadd.f32 %v7876, 1.0
        %v8122 = vadd.f32 %v7878, 1.0
        %v8123 = vadd.f32 %v7880, 1.0
        %v8124 = vadd.f32 %v7882, 1.0
        %v8125 = vadd.f32 %v7884, 1.0
        %v8126 = vadd.f32 %v7886, 1.0
        %v8127 = vadd.f32 %v7888, 1.0
        %v8128 = vadd.f32 %v7890, 1.0
        %v8129 = vadd.f32 %v7892, 1.0
        %v8130 = vadd.f32 %v7894, 1.0
        %v8131 = vadd.f32 %v7896, 1.0
        %v8132 = vadd.f32 %v7898, 1.0
        %v8133 = vadd.f32 %v7900, 1.0
        %v8134 = vadd.f32 %v7902, 1.0
        %v8135 = vadd.f32 %v7904, 1.0
        %v8136 = vadd.f32 %v7906, 1.0
        %v8137 = vadd.f32 %v7908, 1.0
        %v8138 = vadd.f32 %v7910, 1.0
        %v8139 = vadd.f32 %v7912, 1.0
        %v8140 = vadd.f32 %v7914, 1.0
        %v8141 = vadd.f32 %v7916, 1.0
        %v8142 = vadd.f32 %v7918, 1.0
        %v8143 = vadd.f32 %v7920, 1.0
        %v8144 = vadd.f32 %v7922, 1.0
        %v8145 = vadd.f32 %v7924, 1.0
        %v8146 = vadd.f32 %v7926, 1.0
        %v8147 = vadd.f32 %v7928, 1.0
        %v8148 = vadd.f32 %v7930, 1.0
        %v8149 = vadd.f32 %v7932, 1.0
        %v8150 = vadd.f32 %v7934, 1.0
        %v8151 = vadd.f32 %v7936, 1.0
        %v8152 = vadd.f32 %v7938, 1.0
        %v8153 = vadd.f32 %v7940, 1.0
        %v8154 = vadd.f32 %v7942, 1.0
        %v8155 = vadd.f32 %v7944, 1.0
        %v8156 = vadd.f32 %v7946, 1.0
        %v8157 = vadd.f32 %v7948, 1.0
        %v8158 = vadd.f32 %v7950, 1.0
        %v8159 = vadd.f32 %v7952, 1.0
        %v8160 = vadd.f32 %v7954, 1.0
        %v8161 = vadd.f32 %v7956, 1.0
        %v8162 = vadd.f32 %v7958, 1.0
        %v8163 = vadd.f32 %v7960, 1.0
        %v8164 = vadd.f32 %v7962, 1.0
        %v8165 = vadd.f32 %v7964, 1.0
        %v8166 = vadd.f32 %v7966, 1.0
        %v8167 = vadd.f32 %v7968, 1.0
        %v8168 = vadd.f32 %v7970, 1.0
        %v8169 = vadd.f32 %v7972, 1.0
        %v8170 = vadd.f32 %v7974, 1.0
        %v8171 = vadd.f32 %v7976, 1.0
        %v8172 = vadd.f32 %v7978, 1.0
        %v8173 = vadd.f32 %v7980, 1.0
        %v8174 = vadd.f32 %v7982, 1.0
        %v8175 = vadd.f32 %v7984, 1.0
        %v8176 = vadd.f32 %v7986, 1.0
        %v8177 = vadd.f32 %v7988, 1.0
        %v8178 = vadd.f32 %v7990, 1.0
        %v8179 = vadd.f32 %v7992, 1.0
        %v8180 = vadd.f32 %v7994, 1.0
        %v8181 = vadd.f32 %v7996, 1.0
        %v8182 = vadd.f32 %v7998, 1.0
        %v8183 = vadd.f32 %v8000, 1.0
        %v8184 = vadd.f32 %v8002, 1.0
        %v8185 = vadd.f32 %v8004, 1.0
        %v8186 = vadd.f32 %v8006, 1.0
        %v8187 = vadd.f32 %v8008, 1.0
        %v8188 = vadd.f32 %v8010, 1.0
        %v8189 = vadd.f32 %v8012, 1.0
        %v8190 = vadd.f32 %v8014, 1.0
        %v8191 = vadd.f32 %v8016, 1.0
        %v8192 = vadd.f32 %v8018, 1.0
        %v8193 = vadd.f32 %v8020, 1.0
        %v8194 = vadd.f32 %v8022, 1.0
        %v8195 = vadd.f32 %v8024, 1.0
        %v8196 = vadd.f32 %v8026, 1.0
        %v8197 = vadd.f32 %v8028, 1.0
        %v8198 = vadd.f32 %v8030, 1.0
        %v8199 = vadd.f32 %v8032, 1.0
        %v8200 = vadd.f32 %v8034, 1.0
        %v8201 = vadd.f32 %v8036, 1.0
        %v8202 = vadd.f32 %v8038, 1.0
        %v8203 = vadd.f32 %v8040, 1.0
        %v8204 = vadd.f32 %v8042, 1.0
        %v8205 = vadd.f32 %v8044, 1.0
        %v8206 = vadd.f32 %v8046, 1.0
        %v8207 = vadd.f32 %v8048, 1.0
        %v8208 = vadd.f32 %v8050, 1.0
        %v8209 = vadd.f32 %v8052, 1.0
        %v8210 = vadd.f32 %v8054, 1.0
        %v8211 = vadd.f32 %v8056, 1.0
        %v8212 = vadd.f32 %v8058, 1.0
        %v8213 = vadd.f32 %v8060, 1.0
        %v8214 = vadd.f32 %v8062, 1.0
        %v8215 = vadd.f32 %v8064, 1.0
        %v8216 = vadd.f32 %v8066, 1.0
        %v8217 = vadd.f32 %v8068, 1.0
        %v8218 = vadd.f32 %v8070, 1.0
        %v8219 = vadd.f32 %v8072, 1.0
        %v8220 = vadd.f32 %v8074, 1.0
        %v8221 = vadd.f32 %v8076, 1.0
        %v8222 = vadd.f32 %v8078, 1.0
        %v8223 = vadd.f32 %v8080, 1.0
        %v8224 = vadd.f32 %v8082, 1.0
        %v8225 = vadd.f32 %v8084, 1.0
        %v8226 = vadd.f32 %v8086, 1.0
        %v8227 = vadd.f32 %v8088, 1.0
        %v8228 = vadd.f32 %v8090, 1.0
        %v8229 = vadd.f32 %v8092, 1.0
        %v8230 = vadd.f32 %v8094, 1.0
        %v8231 = vadd.f32 %v8096, 1.0
        %v8232 = vadd.f32 %v8098, 1.0
        %v8233 = vadd.f32 %v8100, 1.0
        %v8234 = vadd.f32 %v8102, 1.0
        %v8235 = vadd.f32 %v8104, 1.0
        %v8236 = vadd.f32 %v8106, 1.0
        %v8237 = vadd.f32 %v8108, 1.0
        %v8238 = vadd.f32 %v8110, 1.0
        %vm8239 = vcmp.ge.f32.partialorder %v7182, 0.0
        %vm8240 = vcmp.ge.f32.partialorder %v7184, 0.0
        %vm8241 = vcmp.ge.f32.partialorder %v7295, 0.0
        %vm8242 = vcmp.ge.f32.partialorder %v7297, 0.0
        %vm8243 = vcmp.ge.f32.partialorder %v7408, 0.0
        %vm8244 = vcmp.ge.f32.partialorder %v7410, 0.0
        %vm8245 = vcmp.ge.f32.partialorder %v7521, 0.0
        %vm8246 = vcmp.ge.f32.partialorder %v7523, 0.0
        %vm8247 = vcmp.ge.f32.partialorder %v7186, 0.0
        %vm8248 = vcmp.ge.f32.partialorder %v7188, 0.0
        %vm8249 = vcmp.ge.f32.partialorder %v7299, 0.0
        %vm8250 = vcmp.ge.f32.partialorder %v7301, 0.0
        %vm8251 = vcmp.ge.f32.partialorder %v7412, 0.0
        %vm8252 = vcmp.ge.f32.partialorder %v7414, 0.0
        %vm8253 = vcmp.ge.f32.partialorder %v7525, 0.0
        %vm8254 = vcmp.ge.f32.partialorder %v7527, 0.0
        %vm8255 = vcmp.ge.f32.partialorder %v7192, 0.0
        %vm8256 = vcmp.ge.f32.partialorder %v7194, 0.0
        %vm8257 = vcmp.ge.f32.partialorder %v7305, 0.0
        %vm8258 = vcmp.ge.f32.partialorder %v7307, 0.0
        %vm8259 = vcmp.ge.f32.partialorder %v7418, 0.0
        %vm8260 = vcmp.ge.f32.partialorder %v7420, 0.0
        %vm8261 = vcmp.ge.f32.partialorder %v7531, 0.0
        %vm8262 = vcmp.ge.f32.partialorder %v7533, 0.0
        %vm8263 = vcmp.ge.f32.partialorder %v7196, 0.0
        %vm8264 = vcmp.ge.f32.partialorder %v7198, 0.0
        %vm8265 = vcmp.ge.f32.partialorder %v7309, 0.0
        %vm8266 = vcmp.ge.f32.partialorder %v7311, 0.0
        %vm8267 = vcmp.ge.f32.partialorder %v7422, 0.0
        %vm8268 = vcmp.ge.f32.partialorder %v7424, 0.0
        %vm8269 = vcmp.ge.f32.partialorder %v7535, 0.0
        %vm8270 = vcmp.ge.f32.partialorder %v7537, 0.0
        %vm8271 = vcmp.ge.f32.partialorder %v7202, 0.0
        %vm8272 = vcmp.ge.f32.partialorder %v7204, 0.0
        %vm8273 = vcmp.ge.f32.partialorder %v7315, 0.0
        %vm8274 = vcmp.ge.f32.partialorder %v7317, 0.0
        %vm8275 = vcmp.ge.f32.partialorder %v7428, 0.0
        %vm8276 = vcmp.ge.f32.partialorder %v7430, 0.0
        %vm8277 = vcmp.ge.f32.partialorder %v7541, 0.0
        %vm8278 = vcmp.ge.f32.partialorder %v7543, 0.0
        %vm8279 = vcmp.ge.f32.partialorder %v7206, 0.0
        %vm8280 = vcmp.ge.f32.partialorder %v7208, 0.0
        %vm8281 = vcmp.ge.f32.partialorder %v7319, 0.0
        %vm8282 = vcmp.ge.f32.partialorder %v7321, 0.0
        %vm8283 = vcmp.ge.f32.partialorder %v7432, 0.0
        %vm8284 = vcmp.ge.f32.partialorder %v7434, 0.0
        %vm8285 = vcmp.ge.f32.partialorder %v7545, 0.0
        %vm8286 = vcmp.ge.f32.partialorder %v7547, 0.0
        %vm8287 = vcmp.ge.f32.partialorder %v7212, 0.0
        %vm8288 = vcmp.ge.f32.partialorder %v7214, 0.0
        %vm8289 = vcmp.ge.f32.partialorder %v7325, 0.0
        %vm8290 = vcmp.ge.f32.partialorder %v7327, 0.0
        %vm8291 = vcmp.ge.f32.partialorder %v7438, 0.0
        %vm8292 = vcmp.ge.f32.partialorder %v7440, 0.0
        %vm8293 = vcmp.ge.f32.partialorder %v7551, 0.0
        %vm8294 = vcmp.ge.f32.partialorder %v7553, 0.0
        %vm8295 = vcmp.ge.f32.partialorder %v7216, 0.0
        %vm8296 = vcmp.ge.f32.partialorder %v7218, 0.0
        %vm8297 = vcmp.ge.f32.partialorder %v7329, 0.0
        %vm8298 = vcmp.ge.f32.partialorder %v7331, 0.0
        %vm8299 = vcmp.ge.f32.partialorder %v7442, 0.0
        %vm8300 = vcmp.ge.f32.partialorder %v7444, 0.0
        %vm8301 = vcmp.ge.f32.partialorder %v7555, 0.0
        %vm8302 = vcmp.ge.f32.partialorder %v7557, 0.0
        %vm8303 = vcmp.ge.f32.partialorder %v7222, 0.0
        %vm8304 = vcmp.ge.f32.partialorder %v7224, 0.0
        %vm8305 = vcmp.ge.f32.partialorder %v7335, 0.0
        %vm8306 = vcmp.ge.f32.partialorder %v7337, 0.0
        %vm8307 = vcmp.ge.f32.partialorder %v7448, 0.0
        %vm8308 = vcmp.ge.f32.partialorder %v7450, 0.0
        %vm8309 = vcmp.ge.f32.partialorder %v7561, 0.0
        %vm8310 = vcmp.ge.f32.partialorder %v7563, 0.0
        %vm8311 = vcmp.ge.f32.partialorder %v7226, 0.0
        %vm8312 = vcmp.ge.f32.partialorder %v7228, 0.0
        %vm8313 = vcmp.ge.f32.partialorder %v7339, 0.0
        %vm8314 = vcmp.ge.f32.partialorder %v7341, 0.0
        %vm8315 = vcmp.ge.f32.partialorder %v7452, 0.0
        %vm8316 = vcmp.ge.f32.partialorder %v7454, 0.0
        %vm8317 = vcmp.ge.f32.partialorder %v7565, 0.0
        %vm8318 = vcmp.ge.f32.partialorder %v7567, 0.0
        %vm8319 = vcmp.ge.f32.partialorder %v7232, 0.0
        %vm8320 = vcmp.ge.f32.partialorder %v7234, 0.0
        %vm8321 = vcmp.ge.f32.partialorder %v7345, 0.0
        %vm8322 = vcmp.ge.f32.partialorder %v7347, 0.0
        %vm8323 = vcmp.ge.f32.partialorder %v7458, 0.0
        %vm8324 = vcmp.ge.f32.partialorder %v7460, 0.0
        %vm8325 = vcmp.ge.f32.partialorder %v7571, 0.0
        %vm8326 = vcmp.ge.f32.partialorder %v7573, 0.0
        %vm8327 = vcmp.ge.f32.partialorder %v7236, 0.0
        %vm8328 = vcmp.ge.f32.partialorder %v7238, 0.0
        %vm8329 = vcmp.ge.f32.partialorder %v7349, 0.0
        %vm8330 = vcmp.ge.f32.partialorder %v7351, 0.0
        %vm8331 = vcmp.ge.f32.partialorder %v7462, 0.0
        %vm8332 = vcmp.ge.f32.partialorder %v7464, 0.0
        %vm8333 = vcmp.ge.f32.partialorder %v7575, 0.0
        %vm8334 = vcmp.ge.f32.partialorder %v7577, 0.0
        %vm8335 = vcmp.ge.f32.partialorder %v7242, 0.0
        %vm8336 = vcmp.ge.f32.partialorder %v7244, 0.0
        %vm8337 = vcmp.ge.f32.partialorder %v7355, 0.0
        %vm8338 = vcmp.ge.f32.partialorder %v7357, 0.0
        %vm8339 = vcmp.ge.f32.partialorder %v7468, 0.0
        %vm8340 = vcmp.ge.f32.partialorder %v7470, 0.0
        %vm8341 = vcmp.ge.f32.partialorder %v7581, 0.0
        %vm8342 = vcmp.ge.f32.partialorder %v7583, 0.0
        %vm8343 = vcmp.ge.f32.partialorder %v7246, 0.0
        %vm8344 = vcmp.ge.f32.partialorder %v7248, 0.0
        %vm8345 = vcmp.ge.f32.partialorder %v7359, 0.0
        %vm8346 = vcmp.ge.f32.partialorder %v7361, 0.0
        %vm8347 = vcmp.ge.f32.partialorder %v7472, 0.0
        %vm8348 = vcmp.ge.f32.partialorder %v7474, 0.0
        %vm8349 = vcmp.ge.f32.partialorder %v7585, 0.0
        %vm8350 = vcmp.ge.f32.partialorder %v7587, 0.0
        %vm8351 = vcmp.ge.f32.partialorder %v7252, 0.0
        %vm8352 = vcmp.ge.f32.partialorder %v7254, 0.0
        %vm8353 = vcmp.ge.f32.partialorder %v7365, 0.0
        %vm8354 = vcmp.ge.f32.partialorder %v7367, 0.0
        %vm8355 = vcmp.ge.f32.partialorder %v7478, 0.0
        %vm8356 = vcmp.ge.f32.partialorder %v7480, 0.0
        %vm8357 = vcmp.ge.f32.partialorder %v7591, 0.0
        %vm8358 = vcmp.ge.f32.partialorder %v7593, 0.0
        %vm8359 = vcmp.ge.f32.partialorder %v7256, 0.0
        %vm8360 = vcmp.ge.f32.partialorder %v7258, 0.0
        %vm8361 = vcmp.ge.f32.partialorder %v7369, 0.0
        %vm8362 = vcmp.ge.f32.partialorder %v7371, 0.0
        %vm8363 = vcmp.ge.f32.partialorder %v7482, 0.0
        %vm8364 = vcmp.ge.f32.partialorder %v7484, 0.0
        %vm8365 = vcmp.ge.f32.partialorder %v7595, 0.0
        %vm8366 = vcmp.ge.f32.partialorder %v7597, 0.0
        %v8367 = vrcp.pop %v8111
        %v8368 = vmul.f32 1.0, %v8367
        %v8369 = vrcp.pop %v8112
        %v8370 = vmul.f32 1.0, %v8369
        %v8371 = vrcp.pop %v8113
        %v8372 = vmul.f32 1.0, %v8371
        %v8373 = vrcp.pop %v8114
        %v8374 = vmul.f32 1.0, %v8373
        %v8375 = vrcp.pop %v8115
        %v8376 = vmul.f32 1.0, %v8375
        %v8377 = vrcp.pop %v8116
        %v8378 = vmul.f32 1.0, %v8377
        %v8379 = vrcp.pop %v8117
        %v8380 = vmul.f32 1.0, %v8379
        %v8381 = vrcp.pop %v8118
        %v8382 = vmul.f32 1.0, %v8381
        %v8383 = vrcp.pop %v8119
        %v8384 = vmul.f32 1.0, %v8383
        %v8385 = vrcp.pop %v8120
        %v8386 = vmul.f32 1.0, %v8385
        %v8387 = vrcp.pop %v8121
        %v8388 = vmul.f32 1.0, %v8387
        %v8389 = vrcp.pop %v8122
        %v8390 = vmul.f32 1.0, %v8389
        %v8391 = vrcp.pop %v8123
        %v8392 = vmul.f32 1.0, %v8391
        %v8393 = vrcp.pop %v8124
        %v8394 = vmul.f32 1.0, %v8393
        %v8395 = vrcp.pop %v8125
        %v8396 = vmul.f32 1.0, %v8395
        %v8397 = vrcp.pop %v8126
        %v8398 = vmul.f32 1.0, %v8397
        %v8399 = vrcp.pop %v8127
        %v8400 = vmul.f32 1.0, %v8399
        %v8401 = vrcp.pop %v8128
        %v8402 = vmul.f32 1.0, %v8401
        %v8403 = vrcp.pop %v8129
        %v8404 = vmul.f32 1.0, %v8403
        %v8405 = vrcp.pop %v8130
        %v8406 = vmul.f32 1.0, %v8405
        %v8407 = vrcp.pop %v8131
        %v8408 = vmul.f32 1.0, %v8407
        %v8409 = vrcp.pop %v8132
        %v8410 = vmul.f32 1.0, %v8409
        %v8411 = vrcp.pop %v8133
        %v8412 = vmul.f32 1.0, %v8411
        %v8413 = vrcp.pop %v8134
        %v8414 = vmul.f32 1.0, %v8413
        %v8415 = vrcp.pop %v8135
        %v8416 = vmul.f32 1.0, %v8415
        %v8417 = vrcp.pop %v8136
        %v8418 = vmul.f32 1.0, %v8417
        %v8419 = vrcp.pop %v8137
        %v8420 = vmul.f32 1.0, %v8419
        %v8421 = vrcp.pop %v8138
        %v8422 = vmul.f32 1.0, %v8421
        %v8423 = vrcp.pop %v8139
        %v8424 = vmul.f32 1.0, %v8423
        %v8425 = vrcp.pop %v8140
        %v8426 = vmul.f32 1.0, %v8425
        %v8427 = vrcp.pop %v8141
        %v8428 = vmul.f32 1.0, %v8427
        %v8429 = vrcp.pop %v8142
        %v8430 = vmul.f32 1.0, %v8429
        %v8431 = vrcp.pop %v8143
        %v8432 = vmul.f32 1.0, %v8431
        %v8433 = vrcp.pop %v8144
        %v8434 = vmul.f32 1.0, %v8433
        %v8435 = vrcp.pop %v8145
        %v8436 = vmul.f32 1.0, %v8435
        %v8437 = vrcp.pop %v8146
        %v8438 = vmul.f32 1.0, %v8437
        %v8439 = vrcp.pop %v8147
        %v8440 = vmul.f32 1.0, %v8439
        %v8441 = vrcp.pop %v8148
        %v8442 = vmul.f32 1.0, %v8441
        %v8443 = vrcp.pop %v8149
        %v8444 = vmul.f32 1.0, %v8443
        %v8445 = vrcp.pop %v8150
        %v8446 = vmul.f32 1.0, %v8445
        %v8447 = vrcp.pop %v8151
        %v8448 = vmul.f32 1.0, %v8447
        %v8449 = vrcp.pop %v8152
        %v8450 = vmul.f32 1.0, %v8449
        %v8451 = vrcp.pop %v8153
        %v8452 = vmul.f32 1.0, %v8451
        %v8453 = vrcp.pop %v8154
        %v8454 = vmul.f32 1.0, %v8453
        %v8455 = vrcp.pop %v8155
        %v8456 = vmul.f32 1.0, %v8455
        %v8457 = vrcp.pop %v8156
        %v8458 = vmul.f32 1.0, %v8457
        %v8459 = vrcp.pop %v8157
        %v8460 = vmul.f32 1.0, %v8459
        %v8461 = vrcp.pop %v8158
        %v8462 = vmul.f32 1.0, %v8461
        %v8463 = vrcp.pop %v8159
        %v8464 = vmul.f32 1.0, %v8463
        %v8465 = vrcp.pop %v8160
        %v8466 = vmul.f32 1.0, %v8465
        %v8467 = vrcp.pop %v8161
        %v8468 = vmul.f32 1.0, %v8467
        %v8469 = vrcp.pop %v8162
        %v8470 = vmul.f32 1.0, %v8469
        %v8471 = vrcp.pop %v8163
        %v8472 = vmul.f32 1.0, %v8471
        %v8473 = vrcp.pop %v8164
        %v8474 = vmul.f32 1.0, %v8473
        %v8475 = vrcp.pop %v8165
        %v8476 = vmul.f32 1.0, %v8475
        %v8477 = vrcp.pop %v8166
        %v8478 = vmul.f32 1.0, %v8477
        %v8479 = vrcp.pop %v8167
        %v8480 = vmul.f32 1.0, %v8479
        %v8481 = vrcp.pop %v8168
        %v8482 = vmul.f32 1.0, %v8481
        %v8483 = vrcp.pop %v8169
        %v8484 = vmul.f32 1.0, %v8483
        %v8485 = vrcp.pop %v8170
        %v8486 = vmul.f32 1.0, %v8485
        %v8487 = vrcp.pop %v8171
        %v8488 = vmul.f32 1.0, %v8487
        %v8489 = vrcp.pop %v8172
        %v8490 = vmul.f32 1.0, %v8489
        %v8491 = vrcp.pop %v8173
        %v8492 = vmul.f32 1.0, %v8491
        %v8493 = vrcp.pop %v8174
        %v8494 = vmul.f32 1.0, %v8493
        %v8495 = vrcp.pop %v8175
        %v8496 = vmul.f32 1.0, %v8495
        %v8497 = vrcp.pop %v8176
        %v8498 = vmul.f32 1.0, %v8497
        %v8499 = vrcp.pop %v8177
        %v8500 = vmul.f32 1.0, %v8499
        %v8501 = vrcp.pop %v8178
        %v8502 = vmul.f32 1.0, %v8501
        %v8503 = vrcp.pop %v8179
        %v8504 = vmul.f32 1.0, %v8503
        %v8505 = vrcp.pop %v8180
        %v8506 = vmul.f32 1.0, %v8505
        %v8507 = vrcp.pop %v8181
        %v8508 = vmul.f32 1.0, %v8507
        %v8509 = vrcp.pop %v8182
        %v8510 = vmul.f32 1.0, %v8509
        %v8511 = vrcp.pop %v8183
        %v8512 = vmul.f32 1.0, %v8511
        %v8513 = vrcp.pop %v8184
        %v8514 = vmul.f32 1.0, %v8513
        %v8515 = vrcp.pop %v8185
        %v8516 = vmul.f32 1.0, %v8515
        %v8517 = vrcp.pop %v8186
        %v8518 = vmul.f32 1.0, %v8517
        %v8519 = vrcp.pop %v8187
        %v8520 = vmul.f32 1.0, %v8519
        %v8521 = vrcp.pop %v8188
        %v8522 = vmul.f32 1.0, %v8521
        %v8523 = vrcp.pop %v8189
        %v8524 = vmul.f32 1.0, %v8523
        %v8525 = vrcp.pop %v8190
        %v8526 = vmul.f32 1.0, %v8525
        %v8527 = vrcp.pop %v8191
        %v8528 = vmul.f32 1.0, %v8527
        %v8529 = vrcp.pop %v8192
        %v8530 = vmul.f32 1.0, %v8529
        %v8531 = vrcp.pop %v8193
        %v8532 = vmul.f32 1.0, %v8531
        %v8533 = vrcp.pop %v8194
        %v8534 = vmul.f32 1.0, %v8533
        %v8535 = vrcp.pop %v8195
        %v8536 = vmul.f32 1.0, %v8535
        %v8537 = vrcp.pop %v8196
        %v8538 = vmul.f32 1.0, %v8537
        %v8539 = vrcp.pop %v8197
        %v8540 = vmul.f32 1.0, %v8539
        %v8541 = vrcp.pop %v8198
        %v8542 = vmul.f32 1.0, %v8541
        %v8543 = vrcp.pop %v8199
        %v8544 = vmul.f32 1.0, %v8543
        %v8545 = vrcp.pop %v8200
        %v8546 = vmul.f32 1.0, %v8545
        %v8547 = vrcp.pop %v8201
        %v8548 = vmul.f32 1.0, %v8547
        %v8549 = vrcp.pop %v8202
        %v8550 = vmul.f32 1.0, %v8549
        %v8551 = vrcp.pop %v8203
        %v8552 = vmul.f32 1.0, %v8551
        %v8553 = vrcp.pop %v8204
        %v8554 = vmul.f32 1.0, %v8553
        %v8555 = vrcp.pop %v8205
        %v8556 = vmul.f32 1.0, %v8555
        %v8557 = vrcp.pop %v8206
        %v8558 = vmul.f32 1.0, %v8557
        %v8559 = vrcp.pop %v8207
        %v8560 = vmul.f32 1.0, %v8559
        %v8561 = vrcp.pop %v8208
        %v8562 = vmul.f32 1.0, %v8561
        %v8563 = vrcp.pop %v8209
        %v8564 = vmul.f32 1.0, %v8563
        %v8565 = vrcp.pop %v8210
        %v8566 = vmul.f32 1.0, %v8565
        %v8567 = vrcp.pop %v8211
        %v8568 = vmul.f32 1.0, %v8567
        %v8569 = vrcp.pop %v8212
        %v8570 = vmul.f32 1.0, %v8569
        %v8571 = vrcp.pop %v8213
        %v8572 = vmul.f32 1.0, %v8571
        %v8573 = vrcp.pop %v8214
        %v8574 = vmul.f32 1.0, %v8573
        %v8575 = vrcp.pop %v8215
        %v8576 = vmul.f32 1.0, %v8575
        %v8577 = vrcp.pop %v8216
        %v8578 = vmul.f32 1.0, %v8577
        %v8579 = vrcp.pop %v8217
        %v8580 = vmul.f32 1.0, %v8579
        %v8581 = vrcp.pop %v8218
        %v8582 = vmul.f32 1.0, %v8581
        %v8583 = vrcp.pop %v8219
        %v8584 = vmul.f32 1.0, %v8583
        %v8585 = vrcp.pop %v8220
        %v8586 = vmul.f32 1.0, %v8585
        %v8587 = vrcp.pop %v8221
        %v8588 = vmul.f32 1.0, %v8587
        %v8589 = vrcp.pop %v8222
        %v8590 = vmul.f32 1.0, %v8589
        %v8591 = vrcp.pop %v8223
        %v8592 = vmul.f32 1.0, %v8591
        %v8593 = vrcp.pop %v8224
        %v8594 = vmul.f32 1.0, %v8593
        %v8595 = vrcp.pop %v8225
        %v8596 = vmul.f32 1.0, %v8595
        %v8597 = vrcp.pop %v8226
        %v8598 = vmul.f32 1.0, %v8597
        %v8599 = vrcp.pop %v8227
        %v8600 = vmul.f32 1.0, %v8599
        %v8601 = vrcp.pop %v8228
        %v8602 = vmul.f32 1.0, %v8601
        %v8603 = vrcp.pop %v8229
        %v8604 = vmul.f32 1.0, %v8603
        %v8605 = vrcp.pop %v8230
        %v8606 = vmul.f32 1.0, %v8605
        %v8607 = vrcp.pop %v8231
        %v8608 = vmul.f32 1.0, %v8607
        %v8609 = vrcp.pop %v8232
        %v8610 = vmul.f32 1.0, %v8609
        %v8611 = vrcp.pop %v8233
        %v8612 = vmul.f32 1.0, %v8611
        %v8613 = vrcp.pop %v8234
        %v8614 = vmul.f32 1.0, %v8613
        %v8615 = vrcp.pop %v8235
        %v8616 = vmul.f32 1.0, %v8615
        %v8617 = vrcp.pop %v8236
        %v8618 = vmul.f32 1.0, %v8617
        %v8619 = vrcp.pop %v8237
        %v8620 = vmul.f32 1.0, %v8619
        %v8621 = vrcp.pop %v8238
        %v8622 = vmul.f32 1.0, %v8621
        %v8623 = vmul.f32 %v7856, %v8367
        %v8624 = vmul.f32 %v7858, %v8369
        %v8625 = vmul.f32 %v7860, %v8371
        %v8626 = vmul.f32 %v7862, %v8373
        %v8627 = vmul.f32 %v7864, %v8375
        %v8628 = vmul.f32 %v7866, %v8377
        %v8629 = vmul.f32 %v7868, %v8379
        %v8630 = vmul.f32 %v7870, %v8381
        %v8631 = vmul.f32 %v7872, %v8383
        %v8632 = vmul.f32 %v7874, %v8385
        %v8633 = vmul.f32 %v7876, %v8387
        %v8634 = vmul.f32 %v7878, %v8389
        %v8635 = vmul.f32 %v7880, %v8391
        %v8636 = vmul.f32 %v7882, %v8393
        %v8637 = vmul.f32 %v7884, %v8395
        %v8638 = vmul.f32 %v7886, %v8397
        %v8639 = vmul.f32 %v7888, %v8399
        %v8640 = vmul.f32 %v7890, %v8401
        %v8641 = vmul.f32 %v7892, %v8403
        %v8642 = vmul.f32 %v7894, %v8405
        %v8643 = vmul.f32 %v7896, %v8407
        %v8644 = vmul.f32 %v7898, %v8409
        %v8645 = vmul.f32 %v7900, %v8411
        %v8646 = vmul.f32 %v7902, %v8413
        %v8647 = vmul.f32 %v7904, %v8415
        %v8648 = vmul.f32 %v7906, %v8417
        %v8649 = vmul.f32 %v7908, %v8419
        %v8650 = vmul.f32 %v7910, %v8421
        %v8651 = vmul.f32 %v7912, %v8423
        %v8652 = vmul.f32 %v7914, %v8425
        %v8653 = vmul.f32 %v7916, %v8427
        %v8654 = vmul.f32 %v7918, %v8429
        %v8655 = vmul.f32 %v7920, %v8431
        %v8656 = vmul.f32 %v7922, %v8433
        %v8657 = vmul.f32 %v7924, %v8435
        %v8658 = vmul.f32 %v7926, %v8437
        %v8659 = vmul.f32 %v7928, %v8439
        %v8660 = vmul.f32 %v7930, %v8441
        %v8661 = vmul.f32 %v7932, %v8443
        %v8662 = vmul.f32 %v7934, %v8445
        %v8663 = vmul.f32 %v7936, %v8447
        %v8664 = vmul.f32 %v7938, %v8449
        %v8665 = vmul.f32 %v7940, %v8451
        %v8666 = vmul.f32 %v7942, %v8453
        %v8667 = vmul.f32 %v7944, %v8455
        %v8668 = vmul.f32 %v7946, %v8457
        %v8669 = vmul.f32 %v7948, %v8459
        %v8670 = vmul.f32 %v7950, %v8461
        %v8671 = vmul.f32 %v7952, %v8463
        %v8672 = vmul.f32 %v7954, %v8465
        %v8673 = vmul.f32 %v7956, %v8467
        %v8674 = vmul.f32 %v7958, %v8469
        %v8675 = vmul.f32 %v7960, %v8471
        %v8676 = vmul.f32 %v7962, %v8473
        %v8677 = vmul.f32 %v7964, %v8475
        %v8678 = vmul.f32 %v7966, %v8477
        %v8679 = vmul.f32 %v7968, %v8479
        %v8680 = vmul.f32 %v7970, %v8481
        %v8681 = vmul.f32 %v7972, %v8483
        %v8682 = vmul.f32 %v7974, %v8485
        %v8683 = vmul.f32 %v7976, %v8487
        %v8684 = vmul.f32 %v7978, %v8489
        %v8685 = vmul.f32 %v7980, %v8491
        %v8686 = vmul.f32 %v7982, %v8493
        %v8687 = vmul.f32 %v7984, %v8495
        %v8688 = vmul.f32 %v7986, %v8497
        %v8689 = vmul.f32 %v7988, %v8499
        %v8690 = vmul.f32 %v7990, %v8501
        %v8691 = vmul.f32 %v7992, %v8503
        %v8692 = vmul.f32 %v7994, %v8505
        %v8693 = vmul.f32 %v7996, %v8507
        %v8694 = vmul.f32 %v7998, %v8509
        %v8695 = vmul.f32 %v8000, %v8511
        %v8696 = vmul.f32 %v8002, %v8513
        %v8697 = vmul.f32 %v8004, %v8515
        %v8698 = vmul.f32 %v8006, %v8517
        %v8699 = vmul.f32 %v8008, %v8519
        %v8700 = vmul.f32 %v8010, %v8521
        %v8701 = vmul.f32 %v8012, %v8523
        %v8702 = vmul.f32 %v8014, %v8525
        %v8703 = vmul.f32 %v8016, %v8527
        %v8704 = vmul.f32 %v8018, %v8529
        %v8705 = vmul.f32 %v8020, %v8531
        %v8706 = vmul.f32 %v8022, %v8533
        %v8707 = vmul.f32 %v8024, %v8535
        %v8708 = vmul.f32 %v8026, %v8537
        %v8709 = vmul.f32 %v8028, %v8539
        %v8710 = vmul.f32 %v8030, %v8541
        %v8711 = vmul.f32 %v8032, %v8543
        %v8712 = vmul.f32 %v8034, %v8545
        %v8713 = vmul.f32 %v8036, %v8547
        %v8714 = vmul.f32 %v8038, %v8549
        %v8715 = vmul.f32 %v8040, %v8551
        %v8716 = vmul.f32 %v8042, %v8553
        %v8717 = vmul.f32 %v8044, %v8555
        %v8718 = vmul.f32 %v8046, %v8557
        %v8719 = vmul.f32 %v8048, %v8559
        %v8720 = vmul.f32 %v8050, %v8561
        %v8721 = vmul.f32 %v8052, %v8563
        %v8722 = vmul.f32 %v8054, %v8565
        %v8723 = vmul.f32 %v8056, %v8567
        %v8724 = vmul.f32 %v8058, %v8569
        %v8725 = vmul.f32 %v8060, %v8571
        %v8726 = vmul.f32 %v8062, %v8573
        %v8727 = vmul.f32 %v8064, %v8575
        %v8728 = vmul.f32 %v8066, %v8577
        %v8729 = vmul.f32 %v8068, %v8579
        %v8730 = vmul.f32 %v8070, %v8581
        %v8731 = vmul.f32 %v8072, %v8583
        %v8732 = vmul.f32 %v8074, %v8585
        %v8733 = vmul.f32 %v8076, %v8587
        %v8734 = vmul.f32 %v8078, %v8589
        %v8735 = vmul.f32 %v8080, %v8591
        %v8736 = vmul.f32 %v8082, %v8593
        %v8737 = vmul.f32 %v8084, %v8595
        %v8738 = vmul.f32 %v8086, %v8597
        %v8739 = vmul.f32 %v8088, %v8599
        %v8740 = vmul.f32 %v8090, %v8601
        %v8741 = vmul.f32 %v8092, %v8603
        %v8742 = vmul.f32 %v8094, %v8605
        %v8743 = vmul.f32 %v8096, %v8607
        %v8744 = vmul.f32 %v8098, %v8609
        %v8745 = vmul.f32 %v8100, %v8611
        %v8746 = vmul.f32 %v8102, %v8613
        %v8747 = vmul.f32 %v8104, %v8615
        %v8748 = vmul.f32 %v8106, %v8617
        %v8749 = vmul.f32 %v8108, %v8619
        %v8750 = vmul.f32 %v8110, %v8621
        %v8751 = vsel %vm8239, %v8368, %v8623
        %v8752 = vsel %vm8240, %v8370, %v8624
        %v8753 = vsel %vm8241, %v8372, %v8625
        %v8754 = vsel %vm8242, %v8374, %v8626
        %v8755 = vsel %vm8243, %v8376, %v8627
        %v8756 = vsel %vm8244, %v8378, %v8628
        %v8757 = vsel %vm8245, %v8380, %v8629
        %v8758 = vsel %vm8246, %v8382, %v8630
        %v8759 = vsel %vm8247, %v8384, %v8631
        %v8760 = vsel %vm8248, %v8386, %v8632
        %v8761 = vsel %vm8249, %v8388, %v8633
        %v8762 = vsel %vm8250, %v8390, %v8634
        %v8763 = vsel %vm8251, %v8392, %v8635
        %v8764 = vsel %vm8252, %v8394, %v8636
        %v8765 = vsel %vm8253, %v8396, %v8637
        %v8766 = vsel %vm8254, %v8398, %v8638
        %v8767 = vsel %vm8255, %v8400, %v8639
        %v8768 = vsel %vm8256, %v8402, %v8640
        %v8769 = vsel %vm8257, %v8404, %v8641
        %v8770 = vsel %vm8258, %v8406, %v8642
        %v8771 = vsel %vm8259, %v8408, %v8643
        %v8772 = vsel %vm8260, %v8410, %v8644
        %v8773 = vsel %vm8261, %v8412, %v8645
        %v8774 = vsel %vm8262, %v8414, %v8646
        %v8775 = vsel %vm8263, %v8416, %v8647
        %v8776 = vsel %vm8264, %v8418, %v8648
        %v8777 = vsel %vm8265, %v8420, %v8649
        %v8778 = vsel %vm8266, %v8422, %v8650
        %v8779 = vsel %vm8267, %v8424, %v8651
        %v8780 = vsel %vm8268, %v8426, %v8652
        %v8781 = vsel %vm8269, %v8428, %v8653
        %v8782 = vsel %vm8270, %v8430, %v8654
        %v8783 = vsel %vm8271, %v8432, %v8655
        %v8784 = vsel %vm8272, %v8434, %v8656
        %v8785 = vsel %vm8273, %v8436, %v8657
        %v8786 = vsel %vm8274, %v8438, %v8658
        %v8787 = vsel %vm8275, %v8440, %v8659
        %v8788 = vsel %vm8276, %v8442, %v8660
        %v8789 = vsel %vm8277, %v8444, %v8661
        %v8790 = vsel %vm8278, %v8446, %v8662
        %v8791 = vsel %vm8279, %v8448, %v8663
        %v8792 = vsel %vm8280, %v8450, %v8664
        %v8793 = vsel %vm8281, %v8452, %v8665
        %v8794 = vsel %vm8282, %v8454, %v8666
        %v8795 = vsel %vm8283, %v8456, %v8667
        %v8796 = vsel %vm8284, %v8458, %v8668
        %v8797 = vsel %vm8285, %v8460, %v8669
        %v8798 = vsel %vm8286, %v8462, %v8670
        %v8799 = vsel %vm8287, %v8464, %v8671
        %v8800 = vsel %vm8288, %v8466, %v8672
        %v8801 = vsel %vm8289, %v8468, %v8673
        %v8802 = vsel %vm8290, %v8470, %v8674
        %v8803 = vsel %vm8291, %v8472, %v8675
        %v8804 = vsel %vm8292, %v8474, %v8676
        %v8805 = vsel %vm8293, %v8476, %v8677
        %v8806 = vsel %vm8294, %v8478, %v8678
        %v8807 = vsel %vm8295, %v8480, %v8679
        %v8808 = vsel %vm8296, %v8482, %v8680
        %v8809 = vsel %vm8297, %v8484, %v8681
        %v8810 = vsel %vm8298, %v8486, %v8682
        %v8811 = vsel %vm8299, %v8488, %v8683
        %v8812 = vsel %vm8300, %v8490, %v8684
        %v8813 = vsel %vm8301, %v8492, %v8685
        %v8814 = vsel %vm8302, %v8494, %v8686
        %v8815 = vsel %vm8303, %v8496, %v8687
        %v8816 = vsel %vm8304, %v8498, %v8688
        %v8817 = vsel %vm8305, %v8500, %v8689
        %v8818 = vsel %vm8306, %v8502, %v8690
        %v8819 = vsel %vm8307, %v8504, %v8691
        %v8820 = vsel %vm8308, %v8506, %v8692
        %v8821 = vsel %vm8309, %v8508, %v8693
        %v8822 = vsel %vm8310, %v8510, %v8694
        %v8823 = vsel %vm8311, %v8512, %v8695
        %v8824 = vsel %vm8312, %v8514, %v8696
        %v8825 = vsel %vm8313, %v8516, %v8697
        %v8826 = vsel %vm8314, %v8518, %v8698
        %v8827 = vsel %vm8315, %v8520, %v8699
        %v8828 = vsel %vm8316, %v8522, %v8700
        %v8829 = vsel %vm8317, %v8524, %v8701
        %v8830 = vsel %vm8318, %v8526, %v8702
        %v8831 = vsel %vm8319, %v8528, %v8703
        %v8832 = vsel %vm8320, %v8530, %v8704
        %v8833 = vsel %vm8321, %v8532, %v8705
        %v8834 = vsel %vm8322, %v8534, %v8706
        %v8835 = vsel %vm8323, %v8536, %v8707
        %v8836 = vsel %vm8324, %v8538, %v8708
        %v8837 = vsel %vm8325, %v8540, %v8709
        %v8838 = vsel %vm8326, %v8542, %v8710
        %v8839 = vsel %vm8327, %v8544, %v8711
        %v8840 = vsel %vm8328, %v8546, %v8712
        %v8841 = vsel %vm8329, %v8548, %v8713
        %v8842 = vsel %vm8330, %v8550, %v8714
        %v8843 = vsel %vm8331, %v8552, %v8715
        %v8844 = vsel %vm8332, %v8554, %v8716
        %v8845 = vsel %vm8333, %v8556, %v8717
        %v8846 = vsel %vm8334, %v8558, %v8718
        %v8847 = vsel %vm8335, %v8560, %v8719
        %v8848 = vsel %vm8336, %v8562, %v8720
        %v8849 = vsel %vm8337, %v8564, %v8721
        %v8850 = vsel %vm8338, %v8566, %v8722
        %v8851 = vsel %vm8339, %v8568, %v8723
        %v8852 = vsel %vm8340, %v8570, %v8724
        %v8853 = vsel %vm8341, %v8572, %v8725
        %v8854 = vsel %vm8342, %v8574, %v8726
        %v8855 = vsel %vm8343, %v8576, %v8727
        %v8856 = vsel %vm8344, %v8578, %v8728
        %v8857 = vsel %vm8345, %v8580, %v8729
        %v8858 = vsel %vm8346, %v8582, %v8730
        %v8859 = vsel %vm8347, %v8584, %v8731
        %v8860 = vsel %vm8348, %v8586, %v8732
        %v8861 = vsel %vm8349, %v8588, %v8733
        %v8862 = vsel %vm8350, %v8590, %v8734
        %v8863 = vsel %vm8351, %v8592, %v8735
        %v8864 = vsel %vm8352, %v8594, %v8736
        %v8865 = vsel %vm8353, %v8596, %v8737
        %v8866 = vsel %vm8354, %v8598, %v8738
        %v8867 = vsel %vm8355, %v8600, %v8739
        %v8868 = vsel %vm8356, %v8602, %v8740
        %v8869 = vsel %vm8357, %v8604, %v8741
        %v8870 = vsel %vm8358, %v8606, %v8742
        %v8871 = vsel %vm8359, %v8608, %v8743
        %v8872 = vsel %vm8360, %v8610, %v8744
        %v8873 = vsel %vm8361, %v8612, %v8745
        %v8874 = vsel %vm8362, %v8614, %v8746
        %v8875 = vsel %vm8363, %v8616, %v8747
        %v8876 = vsel %vm8364, %v8618, %v8748
        %v8877 = vsel %vm8365, %v8620, %v8749
        %v8878 = vsel %vm8366, %v8622, %v8750
        %8879 = vst [vmem:[%s909] sm:$0xff] %v8751
        %8880 = vst [vmem:[%s909 + $0x8] sm:$0xff] %v8752
        %8881 = vst [vmem:[%s909 + $0x10] sm:$0xff] %v8753
        %8882 = vst [vmem:[%s909 + $0x18] sm:$0xff] %v8754
        %8883 = vst [vmem:[%s909 + $0x20] sm:$0xff] %v8755
        %8884 = vst [vmem:[%s909 + $0x28] sm:$0xff] %v8756
        %8885 = vst [vmem:[%s909 + $0x30] sm:$0xff] %v8757
        %8886 = vst [vmem:[%s909 + $0x38] sm:$0xff] %v8758
        %8887 = vst [vmem:[%s909 + $0x40] sm:$0xff] %v8759
        %8888 = vst [vmem:[%s909 + $0x48] sm:$0xff] %v8760
        %8889 = vst [vmem:[%s909 + $0x50] sm:$0xff] %v8761
        %8890 = vst [vmem:[%s909 + $0x58] sm:$0xff] %v8762
        %8891 = vst [vmem:[%s909 + $0x60] sm:$0xff] %v8763
        %8892 = vst [vmem:[%s909 + $0x68] sm:$0xff] %v8764
        %8893 = vst [vmem:[%s909 + $0x70] sm:$0xff] %v8765
        %8894 = vst [vmem:[%s909 + $0x78] sm:$0xff] %v8766
        %8895 = vst [vmem:[%s909 + $0x80] sm:$0xff] %v8767
        %8896 = vst [vmem:[%s909 + $0x88] sm:$0xff] %v8768
        %8897 = vst [vmem:[%s909 + $0x90] sm:$0xff] %v8769
        %8898 = vst [vmem:[%s909 + $0x98] sm:$0xff] %v8770
        %8899 = vst [vmem:[%s909 + $0xa0] sm:$0xff] %v8771
        %8900 = vst [vmem:[%s909 + $0xa8] sm:$0xff] %v8772
        %8901 = vst [vmem:[%s909 + $0xb0] sm:$0xff] %v8773
        %8902 = vst [vmem:[%s909 + $0xb8] sm:$0xff] %v8774
        %8903 = vst [vmem:[%s909 + $0xc0] sm:$0xff] %v8775
        %8904 = vst [vmem:[%s909 + $0xc8] sm:$0xff] %v8776
        %8905 = vst [vmem:[%s909 + $0xd0] sm:$0xff] %v8777
        %8906 = vst [vmem:[%s909 + $0xd8] sm:$0xff] %v8778
        %8907 = vst [vmem:[%s909 + $0xe0] sm:$0xff] %v8779
        %8908 = vst [vmem:[%s909 + $0xe8] sm:$0xff] %v8780
        %8909 = vst [vmem:[%s909 + $0xf0] sm:$0xff] %v8781
        %8910 = vst [vmem:[%s909 + $0xf8] sm:$0xff] %v8782
        %8911 = vst [vmem:[%s909 + $0x100] sm:$0xff] %v8783
        %8912 = vst [vmem:[%s909 + $0x108] sm:$0xff] %v8784
        %8913 = vst [vmem:[%s909 + $0x110] sm:$0xff] %v8785
        %8914 = vst [vmem:[%s909 + $0x118] sm:$0xff] %v8786
        %8915 = vst [vmem:[%s909 + $0x120] sm:$0xff] %v8787
        %8916 = vst [vmem:[%s909 + $0x128] sm:$0xff] %v8788
        %8917 = vst [vmem:[%s909 + $0x130] sm:$0xff] %v8789
        %8918 = vst [vmem:[%s909 + $0x138] sm:$0xff] %v8790
        %8919 = vst [vmem:[%s909 + $0x140] sm:$0xff] %v8791
        %8920 = vst [vmem:[%s909 + $0x148] sm:$0xff] %v8792
        %8921 = vst [vmem:[%s909 + $0x150] sm:$0xff] %v8793
        %8922 = vst [vmem:[%s909 + $0x158] sm:$0xff] %v8794
        %8923 = vst [vmem:[%s909 + $0x160] sm:$0xff] %v8795
        %8924 = vst [vmem:[%s909 + $0x168] sm:$0xff] %v8796
        %8925 = vst [vmem:[%s909 + $0x170] sm:$0xff] %v8797
        %8926 = vst [vmem:[%s909 + $0x178] sm:$0xff] %v8798
        %8927 = vst [vmem:[%s909 + $0x180] sm:$0xff] %v8799
        %8928 = vst [vmem:[%s909 + $0x188] sm:$0xff] %v8800
        %8929 = vst [vmem:[%s909 + $0x190] sm:$0xff] %v8801
        %8930 = vst [vmem:[%s909 + $0x198] sm:$0xff] %v8802
        %8931 = vst [vmem:[%s909 + $0x1a0] sm:$0xff] %v8803
        %8932 = vst [vmem:[%s909 + $0x1a8] sm:$0xff] %v8804
        %8933 = vst [vmem:[%s909 + $0x1b0] sm:$0xff] %v8805
        %8934 = vst [vmem:[%s909 + $0x1b8] sm:$0xff] %v8806
        %8935 = vst [vmem:[%s909 + $0x1c0] sm:$0xff] %v8807
        %8936 = vst [vmem:[%s909 + $0x1c8] sm:$0xff] %v8808
        %8937 = vst [vmem:[%s909 + $0x1d0] sm:$0xff] %v8809
        %8938 = vst [vmem:[%s909 + $0x1d8] sm:$0xff] %v8810
        %8939 = vst [vmem:[%s909 + $0x1e0] sm:$0xff] %v8811
        %8940 = vst [vmem:[%s909 + $0x1e8] sm:$0xff] %v8812
        %8941 = vst [vmem:[%s909 + $0x1f0] sm:$0xff] %v8813
        %8942 = vst [vmem:[%s909 + $0x1f8] sm:$0xff] %v8814
        %8943 = vst [vmem:[%s909 + $0x200] sm:$0xff] %v8815
        %8944 = vst [vmem:[%s909 + $0x208] sm:$0xff] %v8816
        %8945 = vst [vmem:[%s909 + $0x210] sm:$0xff] %v8817
        %8946 = vst [vmem:[%s909 + $0x218] sm:$0xff] %v8818
        %8947 = vst [vmem:[%s909 + $0x220] sm:$0xff] %v8819
        %8948 = vst [vmem:[%s909 + $0x228] sm:$0xff] %v8820
        %8949 = vst [vmem:[%s909 + $0x230] sm:$0xff] %v8821
        %8950 = vst [vmem:[%s909 + $0x238] sm:$0xff] %v8822
        %8951 = vst [vmem:[%s909 + $0x240] sm:$0xff] %v8823
        %8952 = vst [vmem:[%s909 + $0x248] sm:$0xff] %v8824
        %8953 = vst [vmem:[%s909 + $0x250] sm:$0xff] %v8825
        %8954 = vst [vmem:[%s909 + $0x258] sm:$0xff] %v8826
        %8955 = vst [vmem:[%s909 + $0x260] sm:$0xff] %v8827
        %8956 = vst [vmem:[%s909 + $0x268] sm:$0xff] %v8828
        %8957 = vst [vmem:[%s909 + $0x270] sm:$0xff] %v8829
        %8958 = vst [vmem:[%s909 + $0x278] sm:$0xff] %v8830
        %8959 = vst [vmem:[%s909 + $0x280] sm:$0xff] %v8831
        %8960 = vst [vmem:[%s909 + $0x288] sm:$0xff] %v8832
        %8961 = vst [vmem:[%s909 + $0x290] sm:$0xff] %v8833
        %8962 = vst [vmem:[%s909 + $0x298] sm:$0xff] %v8834
        %8963 = vst [vmem:[%s909 + $0x2a0] sm:$0xff] %v8835
        %8964 = vst [vmem:[%s909 + $0x2a8] sm:$0xff] %v8836
        %8965 = vst [vmem:[%s909 + $0x2b0] sm:$0xff] %v8837
        %8966 = vst [vmem:[%s909 + $0x2b8] sm:$0xff] %v8838
        %8967 = vst [vmem:[%s909 + $0x2c0] sm:$0xff] %v8839
        %8968 = vst [vmem:[%s909 + $0x2c8] sm:$0xff] %v8840
        %8969 = vst [vmem:[%s909 + $0x2d0] sm:$0xff] %v8841
        %8970 = vst [vmem:[%s909 + $0x2d8] sm:$0xff] %v8842
        %8971 = vst [vmem:[%s909 + $0x2e0] sm:$0xff] %v8843
        %8972 = vst [vmem:[%s909 + $0x2e8] sm:$0xff] %v8844
        %8973 = vst [vmem:[%s909 + $0x2f0] sm:$0xff] %v8845
        %8974 = vst [vmem:[%s909 + $0x2f8] sm:$0xff] %v8846
        %8975 = vst [vmem:[%s909 + $0x300] sm:$0xff] %v8847
        %8976 = vst [vmem:[%s909 + $0x308] sm:$0xff] %v8848
        %8977 = vst [vmem:[%s909 + $0x310] sm:$0xff] %v8849
        %8978 = vst [vmem:[%s909 + $0x318] sm:$0xff] %v8850
        %8979 = vst [vmem:[%s909 + $0x320] sm:$0xff] %v8851
        %8980 = vst [vmem:[%s909 + $0x328] sm:$0xff] %v8852
        %8981 = vst [vmem:[%s909 + $0x330] sm:$0xff] %v8853
        %8982 = vst [vmem:[%s909 + $0x338] sm:$0xff] %v8854
        %8983 = vst [vmem:[%s909 + $0x340] sm:$0xff] %v8855
        %8984 = vst [vmem:[%s909 + $0x348] sm:$0xff] %v8856
        %8985 = vst [vmem:[%s909 + $0x350] sm:$0xff] %v8857
        %8986 = vst [vmem:[%s909 + $0x358] sm:$0xff] %v8858
        %8987 = vst [vmem:[%s909 + $0x360] sm:$0xff] %v8859
        %8988 = vst [vmem:[%s909 + $0x368] sm:$0xff] %v8860
        %8989 = vst [vmem:[%s909 + $0x370] sm:$0xff] %v8861
        %8990 = vst [vmem:[%s909 + $0x378] sm:$0xff] %v8862
        %8991 = vst [vmem:[%s909 + $0x380] sm:$0xff] %v8863
        %8992 = vst [vmem:[%s909 + $0x388] sm:$0xff] %v8864
        %8993 = vst [vmem:[%s909 + $0x390] sm:$0xff] %v8865
        %8994 = vst [vmem:[%s909 + $0x398] sm:$0xff] %v8866
        %8995 = vst [vmem:[%s909 + $0x3a0] sm:$0xff] %v8867
        %8996 = vst [vmem:[%s909 + $0x3a8] sm:$0xff] %v8868
        %8997 = vst [vmem:[%s909 + $0x3b0] sm:$0xff] %v8869
        %8998 = vst [vmem:[%s909 + $0x3b8] sm:$0xff] %v8870
        %8999 = vst [vmem:[%s909 + $0x3c0] sm:$0xff] %v8871
        %9000 = vst [vmem:[%s909 + $0x3c8] sm:$0xff] %v8872
        %9001 = vst [vmem:[%s909 + $0x3d0] sm:$0xff] %v8873
        %9002 = vst [vmem:[%s909 + $0x3d8] sm:$0xff] %v8874
        %9003 = vst [vmem:[%s909 + $0x3e0] sm:$0xff] %v8875
        %9004 = vst [vmem:[%s909 + $0x3e8] sm:$0xff] %v8876
        %9005 = vst [vmem:[%s909 + $0x3f0] sm:$0xff] %v8877
        %9006 = vst [vmem:[%s909 + $0x3f8] sm:$0xff] %v8878
        %v9007 = vmax.f32 %v7182, 0.0
        %v9008 = vmax.f32 %v7184, 0.0
        %v9009 = vmax.f32 %v7295, 0.0
        %v9010 = vmax.f32 %v7297, 0.0
        %v9011 = vmax.f32 %v7408, 0.0
        %v9012 = vmax.f32 %v7410, 0.0
        %v9013 = vmax.f32 %v7521, 0.0
        %v9014 = vmax.f32 %v7523, 0.0
        %v9015 = vmax.f32 %v7186, 0.0
        %v9016 = vmax.f32 %v7188, 0.0
        %v9017 = vmax.f32 %v7299, 0.0
        %v9018 = vmax.f32 %v7301, 0.0
        %v9019 = vmax.f32 %v7412, 0.0
        %v9020 = vmax.f32 %v7414, 0.0
        %v9021 = vmax.f32 %v7525, 0.0
        %v9022 = vmax.f32 %v7527, 0.0
        %v9023 = vmax.f32 %v7192, 0.0
        %v9024 = vmax.f32 %v7194, 0.0
        %v9025 = vmax.f32 %v7305, 0.0
        %v9026 = vmax.f32 %v7307, 0.0
        %v9027 = vmax.f32 %v7418, 0.0
        %v9028 = vmax.f32 %v7420, 0.0
        %v9029 = vmax.f32 %v7531, 0.0
        %v9030 = vmax.f32 %v7533, 0.0
        %v9031 = vmax.f32 %v7196, 0.0
        %v9032 = vmax.f32 %v7198, 0.0
        %v9033 = vmax.f32 %v7309, 0.0
        %v9034 = vmax.f32 %v7311, 0.0
        %v9035 = vmax.f32 %v7422, 0.0
        %v9036 = vmax.f32 %v7424, 0.0
        %v9037 = vmax.f32 %v7535, 0.0
        %v9038 = vmax.f32 %v7537, 0.0
        %v9039 = vmax.f32 %v7202, 0.0
        %v9040 = vmax.f32 %v7204, 0.0
        %v9041 = vmax.f32 %v7315, 0.0
        %v9042 = vmax.f32 %v7317, 0.0
        %v9043 = vmax.f32 %v7428, 0.0
        %v9044 = vmax.f32 %v7430, 0.0
        %v9045 = vmax.f32 %v7541, 0.0
        %v9046 = vmax.f32 %v7543, 0.0
        %v9047 = vmax.f32 %v7206, 0.0
        %v9048 = vmax.f32 %v7208, 0.0
        %v9049 = vmax.f32 %v7319, 0.0
        %v9050 = vmax.f32 %v7321, 0.0
        %v9051 = vmax.f32 %v7432, 0.0
        %v9052 = vmax.f32 %v7434, 0.0
        %v9053 = vmax.f32 %v7545, 0.0
        %v9054 = vmax.f32 %v7547, 0.0
        %v9055 = vmax.f32 %v7212, 0.0
        %v9056 = vmax.f32 %v7214, 0.0
        %v9057 = vmax.f32 %v7325, 0.0
        %v9058 = vmax.f32 %v7327, 0.0
        %v9059 = vmax.f32 %v7438, 0.0
        %v9060 = vmax.f32 %v7440, 0.0
        %v9061 = vmax.f32 %v7551, 0.0
        %v9062 = vmax.f32 %v7553, 0.0
        %v9063 = vmax.f32 %v7216, 0.0
        %v9064 = vmax.f32 %v7218, 0.0
        %v9065 = vmax.f32 %v7329, 0.0
        %v9066 = vmax.f32 %v7331, 0.0
        %v9067 = vmax.f32 %v7442, 0.0
        %v9068 = vmax.f32 %v7444, 0.0
        %v9069 = vmax.f32 %v7555, 0.0
        %v9070 = vmax.f32 %v7557, 0.0
        %v9071 = vmax.f32 %v7222, 0.0
        %v9072 = vmax.f32 %v7224, 0.0
        %v9073 = vmax.f32 %v7335, 0.0
        %v9074 = vmax.f32 %v7337, 0.0
        %v9075 = vmax.f32 %v7448, 0.0
        %v9076 = vmax.f32 %v7450, 0.0
        %v9077 = vmax.f32 %v7561, 0.0
        %v9078 = vmax.f32 %v7563, 0.0
        %v9079 = vmax.f32 %v7226, 0.0
        %v9080 = vmax.f32 %v7228, 0.0
        %v9081 = vmax.f32 %v7339, 0.0
        %v9082 = vmax.f32 %v7341, 0.0
        %v9083 = vmax.f32 %v7452, 0.0
        %v9084 = vmax.f32 %v7454, 0.0
        %v9085 = vmax.f32 %v7565, 0.0
        %v9086 = vmax.f32 %v7567, 0.0
        %v9087 = vmax.f32 %v7232, 0.0
        %v9088 = vmax.f32 %v7234, 0.0
        %v9089 = vmax.f32 %v7345, 0.0
        %v9090 = vmax.f32 %v7347, 0.0
        %v9091 = vmax.f32 %v7458, 0.0
        %v9092 = vmax.f32 %v7460, 0.0
        %v9093 = vmax.f32 %v7571, 0.0
        %v9094 = vmax.f32 %v7573, 0.0
        %v9095 = vmax.f32 %v7236, 0.0
        %v9096 = vmax.f32 %v7238, 0.0
        %v9097 = vmax.f32 %v7349, 0.0
        %v9098 = vmax.f32 %v7351, 0.0
        %v9099 = vmax.f32 %v7462, 0.0
        %v9100 = vmax.f32 %v7464, 0.0
        %v9101 = vmax.f32 %v7575, 0.0
        %v9102 = vmax.f32 %v7577, 0.0
        %v9103 = vmax.f32 %v7242, 0.0
        %v9104 = vmax.f32 %v7244, 0.0
        %v9105 = vmax.f32 %v7355, 0.0
        %v9106 = vmax.f32 %v7357, 0.0
        %v9107 = vmax.f32 %v7468, 0.0
        %v9108 = vmax.f32 %v7470, 0.0
        %v9109 = vmax.f32 %v7581, 0.0
        %v9110 = vmax.f32 %v7583, 0.0
        %v9111 = vmax.f32 %v7246, 0.0
        %v9112 = vmax.f32 %v7248, 0.0
        %v9113 = vmax.f32 %v7359, 0.0
        %v9114 = vmax.f32 %v7361, 0.0
        %v9115 = vmax.f32 %v7472, 0.0
        %v9116 = vmax.f32 %v7474, 0.0
        %v9117 = vmax.f32 %v7585, 0.0
        %v9118 = vmax.f32 %v7587, 0.0
        %v9119 = vmax.f32 %v7252, 0.0
        %v9120 = vmax.f32 %v7254, 0.0
        %v9121 = vmax.f32 %v7365, 0.0
        %v9122 = vmax.f32 %v7367, 0.0
        %v9123 = vmax.f32 %v7478, 0.0
        %v9124 = vmax.f32 %v7480, 0.0
        %v9125 = vmax.f32 %v7591, 0.0
        %v9126 = vmax.f32 %v7593, 0.0
        %v9127 = vmax.f32 %v7256, 0.0
        %v9128 = vmax.f32 %v7258, 0.0
        %v9129 = vmax.f32 %v7369, 0.0
        %v9130 = vmax.f32 %v7371, 0.0
        %v9131 = vmax.f32 %v7482, 0.0
        %v9132 = vmax.f32 %v7484, 0.0
        %v9133 = vmax.f32 %v7595, 0.0
        %v9134 = vmax.f32 %v7597, 0.0
        %v9135 = vmul.f32 %v921, %v7182
        %v9136 = vmul.f32 %v922, %v7184
        %v9137 = vmul.f32 %v923, %v7295
        %v9138 = vmul.f32 %v924, %v7297
        %v9139 = vmul.f32 %v925, %v7408
        %v9140 = vmul.f32 %v926, %v7410
        %v9141 = vmul.f32 %v927, %v7521
        %v9142 = vmul.f32 %v928, %v7523
        %v9143 = vmul.f32 %v929, %v7186
        %v9144 = vmul.f32 %v930, %v7188
        %v9145 = vmul.f32 %v931, %v7299
        %v9146 = vmul.f32 %v932, %v7301
        %v9147 = vmul.f32 %v933, %v7412
        %v9148 = vmul.f32 %v934, %v7414
        %v9149 = vmul.f32 %v935, %v7525
        %v9150 = vmul.f32 %v936, %v7527
        %v9151 = vmul.f32 %v937, %v7192
        %v9152 = vmul.f32 %v938, %v7194
        %v9153 = vmul.f32 %v939, %v7305
        %v9154 = vmul.f32 %v940, %v7307
        %v9155 = vmul.f32 %v941, %v7418
        %v9156 = vmul.f32 %v942, %v7420
        %v9157 = vmul.f32 %v943, %v7531
        %v9158 = vmul.f32 %v944, %v7533
        %v9159 = vmul.f32 %v945, %v7196
        %v9160 = vmul.f32 %v946, %v7198
        %v9161 = vmul.f32 %v947, %v7309
        %v9162 = vmul.f32 %v948, %v7311
        %v9163 = vmul.f32 %v949, %v7422
        %v9164 = vmul.f32 %v950, %v7424
        %v9165 = vmul.f32 %v951, %v7535
        %v9166 = vmul.f32 %v952, %v7537
        %v9167 = vmul.f32 %v953, %v7202
        %v9168 = vmul.f32 %v954, %v7204
        %v9169 = vmul.f32 %v955, %v7315
        %v9170 = vmul.f32 %v956, %v7317
        %v9171 = vmul.f32 %v957, %v7428
        %v9172 = vmul.f32 %v958, %v7430
        %v9173 = vmul.f32 %v959, %v7541
        %v9174 = vmul.f32 %v960, %v7543
        %v9175 = vmul.f32 %v961, %v7206
        %v9176 = vmul.f32 %v962, %v7208
        %v9177 = vmul.f32 %v963, %v7319
        %v9178 = vmul.f32 %v964, %v7321
        %v9179 = vmul.f32 %v965, %v7432
        %v9180 = vmul.f32 %v966, %v7434
        %v9181 = vmul.f32 %v967, %v7545
        %v9182 = vmul.f32 %v968, %v7547
        %v9183 = vmul.f32 %v969, %v7212
        %v9184 = vmul.f32 %v970, %v7214
        %v9185 = vmul.f32 %v971, %v7325
        %v9186 = vmul.f32 %v972, %v7327
        %v9187 = vmul.f32 %v973, %v7438
        %v9188 = vmul.f32 %v974, %v7440
        %v9189 = vmul.f32 %v975, %v7551
        %v9190 = vmul.f32 %v976, %v7553
        %v9191 = vmul.f32 %v977, %v7216
        %v9192 = vmul.f32 %v978, %v7218
        %v9193 = vmul.f32 %v979, %v7329
        %v9194 = vmul.f32 %v980, %v7331
        %v9195 = vmul.f32 %v981, %v7442
        %v9196 = vmul.f32 %v982, %v7444
        %v9197 = vmul.f32 %v983, %v7555
        %v9198 = vmul.f32 %v984, %v7557
        %v9199 = vmul.f32 %v985, %v7222
        %v9200 = vmul.f32 %v986, %v7224
        %v9201 = vmul.f32 %v987, %v7335
        %v9202 = vmul.f32 %v988, %v7337
        %v9203 = vmul.f32 %v989, %v7448
        %v9204 = vmul.f32 %v990, %v7450
        %v9205 = vmul.f32 %v991, %v7561
        %v9206 = vmul.f32 %v992, %v7563
        %v9207 = vmul.f32 %v993, %v7226
        %v9208 = vmul.f32 %v994, %v7228
        %v9209 = vmul.f32 %v995, %v7339
        %v9210 = vmul.f32 %v996, %v7341
        %v9211 = vmul.f32 %v997, %v7452
        %v9212 = vmul.f32 %v998, %v7454
        %v9213 = vmul.f32 %v999, %v7565
        %v9214 = vmul.f32 %v1000, %v7567
        %v9215 = vmul.f32 %v1001, %v7232
        %v9216 = vmul.f32 %v1002, %v7234
        %v9217 = vmul.f32 %v1003, %v7345
        %v9218 = vmul.f32 %v1004, %v7347
        %v9219 = vmul.f32 %v1005, %v7458
        %v9220 = vmul.f32 %v1006, %v7460
        %v9221 = vmul.f32 %v1007, %v7571
        %v9222 = vmul.f32 %v1008, %v7573
        %v9223 = vmul.f32 %v1009, %v7236
        %v9224 = vmul.f32 %v1010, %v7238
        %v9225 = vmul.f32 %v1011, %v7349
        %v9226 = vmul.f32 %v1012, %v7351
        %v9227 = vmul.f32 %v1013, %v7462
        %v9228 = vmul.f32 %v1014, %v7464
        %v9229 = vmul.f32 %v1015, %v7575
        %v9230 = vmul.f32 %v1016, %v7577
        %v9231 = vmul.f32 %v1017, %v7242
        %v9232 = vmul.f32 %v1018, %v7244
        %v9233 = vmul.f32 %v1019, %v7355
        %v9234 = vmul.f32 %v1020, %v7357
        %v9235 = vmul.f32 %v1021, %v7468
        %v9236 = vmul.f32 %v1022, %v7470
        %v9237 = vmul.f32 %v1023, %v7581
        %v9238 = vmul.f32 %v1024, %v7583
        %v9239 = vmul.f32 %v1025, %v7246
        %v9240 = vmul.f32 %v1026, %v7248
        %v9241 = vmul.f32 %v1027, %v7359
        %v9242 = vmul.f32 %v1028, %v7361
        %v9243 = vmul.f32 %v1029, %v7472
        %v9244 = vmul.f32 %v1030, %v7474
        %v9245 = vmul.f32 %v1031, %v7585
        %v9246 = vmul.f32 %v1032, %v7587
        %v9247 = vmul.f32 %v1033, %v7252
        %v9248 = vmul.f32 %v1034, %v7254
        %v9249 = vmul.f32 %v1035, %v7365
        %v9250 = vmul.f32 %v1036, %v7367
        %v9251 = vmul.f32 %v1037, %v7478
        %v9252 = vmul.f32 %v1038, %v7480
        %v9253 = vmul.f32 %v1039, %v7591
        %v9254 = vmul.f32 %v1040, %v7593
        %v9255 = vmul.f32 %v1041, %v7256
        %v9256 = vmul.f32 %v1042, %v7258
        %v9257 = vmul.f32 %v1043, %v7369
        %v9258 = vmul.f32 %v1044, %v7371
        %v9259 = vmul.f32 %v1045, %v7482
        %v9260 = vmul.f32 %v1046, %v7484
        %v9261 = vmul.f32 %v1047, %v7595
        %v9262 = vmul.f32 %v1048, %v7597
        %v9263 = vsub.f32 %v9007, %v9135
        %v9264 = vsub.f32 %v9008, %v9136
        %v9265 = vsub.f32 %v9009, %v9137
        %v9266 = vsub.f32 %v9010, %v9138
        %v9267 = vsub.f32 %v9011, %v9139
        %v9268 = vsub.f32 %v9012, %v9140
        %v9269 = vsub.f32 %v9013, %v9141
        %v9270 = vsub.f32 %v9014, %v9142
        %v9271 = vsub.f32 %v9015, %v9143
        %v9272 = vsub.f32 %v9016, %v9144
        %v9273 = vsub.f32 %v9017, %v9145
        %v9274 = vsub.f32 %v9018, %v9146
        %v9275 = vsub.f32 %v9019, %v9147
        %v9276 = vsub.f32 %v9020, %v9148
        %v9277 = vsub.f32 %v9021, %v9149
        %v9278 = vsub.f32 %v9022, %v9150
        %v9279 = vsub.f32 %v9023, %v9151
        %v9280 = vsub.f32 %v9024, %v9152
        %v9281 = vsub.f32 %v9025, %v9153
        %v9282 = vsub.f32 %v9026, %v9154
        %v9283 = vsub.f32 %v9027, %v9155
        %v9284 = vsub.f32 %v9028, %v9156
        %v9285 = vsub.f32 %v9029, %v9157
        %v9286 = vsub.f32 %v9030, %v9158
        %v9287 = vsub.f32 %v9031, %v9159
        %v9288 = vsub.f32 %v9032, %v9160
        %v9289 = vsub.f32 %v9033, %v9161
        %v9290 = vsub.f32 %v9034, %v9162
        %v9291 = vsub.f32 %v9035, %v9163
        %v9292 = vsub.f32 %v9036, %v9164
        %v9293 = vsub.f32 %v9037, %v9165
        %v9294 = vsub.f32 %v9038, %v9166
        %v9295 = vsub.f32 %v9039, %v9167
        %v9296 = vsub.f32 %v9040, %v9168
        %v9297 = vsub.f32 %v9041, %v9169
        %v9298 = vsub.f32 %v9042, %v9170
        %v9299 = vsub.f32 %v9043, %v9171
        %v9300 = vsub.f32 %v9044, %v9172
        %v9301 = vsub.f32 %v9045, %v9173
        %v9302 = vsub.f32 %v9046, %v9174
        %v9303 = vsub.f32 %v9047, %v9175
        %v9304 = vsub.f32 %v9048, %v9176
        %v9305 = vsub.f32 %v9049, %v9177
        %v9306 = vsub.f32 %v9050, %v9178
        %v9307 = vsub.f32 %v9051, %v9179
        %v9308 = vsub.f32 %v9052, %v9180
        %v9309 = vsub.f32 %v9053, %v9181
        %v9310 = vsub.f32 %v9054, %v9182
        %v9311 = vsub.f32 %v9055, %v9183
        %v9312 = vsub.f32 %v9056, %v9184
        %v9313 = vsub.f32 %v9057, %v9185
        %v9314 = vsub.f32 %v9058, %v9186
        %v9315 = vsub.f32 %v9059, %v9187
        %v9316 = vsub.f32 %v9060, %v9188
        %v9317 = vsub.f32 %v9061, %v9189
        %v9318 = vsub.f32 %v9062, %v9190
        %v9319 = vsub.f32 %v9063, %v9191
        %v9320 = vsub.f32 %v9064, %v9192
        %v9321 = vsub.f32 %v9065, %v9193
        %v9322 = vsub.f32 %v9066, %v9194
        %v9323 = vsub.f32 %v9067, %v9195
        %v9324 = vsub.f32 %v9068, %v9196
        %v9325 = vsub.f32 %v9069, %v9197
        %v9326 = vsub.f32 %v9070, %v9198
        %v9327 = vsub.f32 %v9071, %v9199
        %v9328 = vsub.f32 %v9072, %v9200
        %v9329 = vsub.f32 %v9073, %v9201
        %v9330 = vsub.f32 %v9074, %v9202
        %v9331 = vsub.f32 %v9075, %v9203
        %v9332 = vsub.f32 %v9076, %v9204
        %v9333 = vsub.f32 %v9077, %v9205
        %v9334 = vsub.f32 %v9078, %v9206
        %v9335 = vsub.f32 %v9079, %v9207
        %v9336 = vsub.f32 %v9080, %v9208
        %v9337 = vsub.f32 %v9081, %v9209
        %v9338 = vsub.f32 %v9082, %v9210
        %v9339 = vsub.f32 %v9083, %v9211
        %v9340 = vsub.f32 %v9084, %v9212
        %v9341 = vsub.f32 %v9085, %v9213
        %v9342 = vsub.f32 %v9086, %v9214
        %v9343 = vsub.f32 %v9087, %v9215
        %v9344 = vsub.f32 %v9088, %v9216
        %v9345 = vsub.f32 %v9089, %v9217
        %v9346 = vsub.f32 %v9090, %v9218
        %v9347 = vsub.f32 %v9091, %v9219
        %v9348 = vsub.f32 %v9092, %v9220
        %v9349 = vsub.f32 %v9093, %v9221
        %v9350 = vsub.f32 %v9094, %v9222
        %v9351 = vsub.f32 %v9095, %v9223
        %v9352 = vsub.f32 %v9096, %v9224
        %v9353 = vsub.f32 %v9097, %v9225
        %v9354 = vsub.f32 %v9098, %v9226
        %v9355 = vsub.f32 %v9099, %v9227
        %v9356 = vsub.f32 %v9100, %v9228
        %v9357 = vsub.f32 %v9101, %v9229
        %v9358 = vsub.f32 %v9102, %v9230
        %v9359 = vsub.f32 %v9103, %v9231
        %v9360 = vsub.f32 %v9104, %v9232
        %v9361 = vsub.f32 %v9105, %v9233
        %v9362 = vsub.f32 %v9106, %v9234
        %v9363 = vsub.f32 %v9107, %v9235
        %v9364 = vsub.f32 %v9108, %v9236
        %v9365 = vsub.f32 %v9109, %v9237
        %v9366 = vsub.f32 %v9110, %v9238
        %v9367 = vsub.f32 %v9111, %v9239
        %v9368 = vsub.f32 %v9112, %v9240
        %v9369 = vsub.f32 %v9113, %v9241
        %v9370 = vsub.f32 %v9114, %v9242
        %v9371 = vsub.f32 %v9115, %v9243
        %v9372 = vsub.f32 %v9116, %v9244
        %v9373 = vsub.f32 %v9117, %v9245
        %v9374 = vsub.f32 %v9118, %v9246
        %v9375 = vsub.f32 %v9119, %v9247
        %v9376 = vsub.f32 %v9120, %v9248
        %v9377 = vsub.f32 %v9121, %v9249
        %v9378 = vsub.f32 %v9122, %v9250
        %v9379 = vsub.f32 %v9123, %v9251
        %v9380 = vsub.f32 %v9124, %v9252
        %v9381 = vsub.f32 %v9125, %v9253
        %v9382 = vsub.f32 %v9126, %v9254
        %v9383 = vsub.f32 %v9127, %v9255
        %v9384 = vsub.f32 %v9128, %v9256
        %v9385 = vsub.f32 %v9129, %v9257
        %v9386 = vsub.f32 %v9130, %v9258
        %v9387 = vsub.f32 %v9131, %v9259
        %v9388 = vsub.f32 %v9132, %v9260
        %v9389 = vsub.f32 %v9133, %v9261
        %v9390 = vsub.f32 %v9134, %v9262
        %v9391 = vadd.f32 %v7856, 1.0
        %v9392 = vlog2.pop %v9391
        %v9393 = vmul.f32 %v9392, 0.6931472
        %v9394 = vmul.f32 -0.5, %v7856
        %v9395 = vadd.f32 %v9394, 1.0
        %v9396 = vmul.f32 %v9395, %v7856
        %v9397 = vand.u32 2147483647, %v7856
        %vm9398 = vcmp.lt.f32.partialorder %v9397, 0.0004427343
        %v9399 = vsel %vm9398, %v9396, %v9393
        %v9400 = vadd.f32 %v7858, 1.0
        %v9401 = vlog2.pop %v9400
        %v9402 = vmul.f32 %v9401, 0.6931472
        %v9403 = vmul.f32 -0.5, %v7858
        %v9404 = vadd.f32 %v9403, 1.0
        %v9405 = vmul.f32 %v9404, %v7858
        %v9406 = vand.u32 2147483647, %v7858
        %vm9407 = vcmp.lt.f32.partialorder %v9406, 0.0004427343
        %v9408 = vsel %vm9407, %v9405, %v9402
        %v9409 = vadd.f32 %v7860, 1.0
        %v9410 = vlog2.pop %v9409
        %v9411 = vmul.f32 %v9410, 0.6931472
        %v9412 = vmul.f32 -0.5, %v7860
        %v9413 = vadd.f32 %v9412, 1.0
        %v9414 = vmul.f32 %v9413, %v7860
        %v9415 = vand.u32 2147483647, %v7860
        %vm9416 = vcmp.lt.f32.partialorder %v9415, 0.0004427343
        %v9417 = vsel %vm9416, %v9414, %v9411
        %v9418 = vadd.f32 %v7862, 1.0
        %v9419 = vlog2.pop %v9418
        %v9420 = vmul.f32 %v9419, 0.6931472
        %v9421 = vmul.f32 -0.5, %v7862
        %v9422 = vadd.f32 %v9421, 1.0
        %v9423 = vmul.f32 %v9422, %v7862
        %v9424 = vand.u32 2147483647, %v7862
        %vm9425 = vcmp.lt.f32.partialorder %v9424, 0.0004427343
        %v9426 = vsel %vm9425, %v9423, %v9420
        %v9427 = vadd.f32 %v7864, 1.0
        %v9428 = vlog2.pop %v9427
        %v9429 = vmul.f32 %v9428, 0.6931472
        %v9430 = vmul.f32 -0.5, %v7864
        %v9431 = vadd.f32 %v9430, 1.0
        %v9432 = vmul.f32 %v9431, %v7864
        %v9433 = vand.u32 2147483647, %v7864
        %vm9434 = vcmp.lt.f32.partialorder %v9433, 0.0004427343
        %v9435 = vsel %vm9434, %v9432, %v9429
        %v9436 = vadd.f32 %v7866, 1.0
        %v9437 = vlog2.pop %v9436
        %v9438 = vmul.f32 %v9437, 0.6931472
        %v9439 = vmul.f32 -0.5, %v7866
        %v9440 = vadd.f32 %v9439, 1.0
        %v9441 = vmul.f32 %v9440, %v7866
        %v9442 = vand.u32 2147483647, %v7866
        %vm9443 = vcmp.lt.f32.partialorder %v9442, 0.0004427343
        %v9444 = vsel %vm9443, %v9441, %v9438
        %v9445 = vadd.f32 %v7868, 1.0
        %v9446 = vlog2.pop %v9445
        %v9447 = vmul.f32 %v9446, 0.6931472
        %v9448 = vmul.f32 -0.5, %v7868
        %v9449 = vadd.f32 %v9448, 1.0
        %v9450 = vmul.f32 %v9449, %v7868
        %v9451 = vand.u32 2147483647, %v7868
        %vm9452 = vcmp.lt.f32.partialorder %v9451, 0.0004427343
        %v9453 = vsel %vm9452, %v9450, %v9447
        %v9454 = vadd.f32 %v7870, 1.0
        %v9455 = vlog2.pop %v9454
        %v9456 = vmul.f32 %v9455, 0.6931472
        %v9457 = vmul.f32 -0.5, %v7870
        %v9458 = vadd.f32 %v9457, 1.0
        %v9459 = vmul.f32 %v9458, %v7870
        %v9460 = vand.u32 2147483647, %v7870
        %vm9461 = vcmp.lt.f32.partialorder %v9460, 0.0004427343
        %v9462 = vsel %vm9461, %v9459, %v9456
        %v9463 = vadd.f32 %v7872, 1.0
        %v9464 = vlog2.pop %v9463
        %v9465 = vmul.f32 %v9464, 0.6931472
        %v9466 = vmul.f32 -0.5, %v7872
        %v9467 = vadd.f32 %v9466, 1.0
        %v9468 = vmul.f32 %v9467, %v7872
        %v9469 = vand.u32 2147483647, %v7872
        %vm9470 = vcmp.lt.f32.partialorder %v9469, 0.0004427343
        %v9471 = vsel %vm9470, %v9468, %v9465
        %v9472 = vadd.f32 %v7874, 1.0
        %v9473 = vlog2.pop %v9472
        %v9474 = vmul.f32 %v9473, 0.6931472
        %v9475 = vmul.f32 -0.5, %v7874
        %v9476 = vadd.f32 %v9475, 1.0
        %v9477 = vmul.f32 %v9476, %v7874
        %v9478 = vand.u32 2147483647, %v7874
        %vm9479 = vcmp.lt.f32.partialorder %v9478, 0.0004427343
        %v9480 = vsel %vm9479, %v9477, %v9474
        %v9481 = vadd.f32 %v7876, 1.0
        %v9482 = vlog2.pop %v9481
        %v9483 = vmul.f32 %v9482, 0.6931472
        %v9484 = vmul.f32 -0.5, %v7876
        %v9485 = vadd.f32 %v9484, 1.0
        %v9486 = vmul.f32 %v9485, %v7876
        %v9487 = vand.u32 2147483647, %v7876
        %vm9488 = vcmp.lt.f32.partialorder %v9487, 0.0004427343
        %v9489 = vsel %vm9488, %v9486, %v9483
        %v9490 = vadd.f32 %v7878, 1.0
        %v9491 = vlog2.pop %v9490
        %v9492 = vmul.f32 %v9491, 0.6931472
        %v9493 = vmul.f32 -0.5, %v7878
        %v9494 = vadd.f32 %v9493, 1.0
        %v9495 = vmul.f32 %v9494, %v7878
        %v9496 = vand.u32 2147483647, %v7878
        %vm9497 = vcmp.lt.f32.partialorder %v9496, 0.0004427343
        %v9498 = vsel %vm9497, %v9495, %v9492
        %v9499 = vadd.f32 %v7880, 1.0
        %v9500 = vlog2.pop %v9499
        %v9501 = vmul.f32 %v9500, 0.6931472
        %v9502 = vmul.f32 -0.5, %v7880
        %v9503 = vadd.f32 %v9502, 1.0
        %v9504 = vmul.f32 %v9503, %v7880
        %v9505 = vand.u32 2147483647, %v7880
        %vm9506 = vcmp.lt.f32.partialorder %v9505, 0.0004427343
        %v9507 = vsel %vm9506, %v9504, %v9501
        %v9508 = vadd.f32 %v7882, 1.0
        %v9509 = vlog2.pop %v9508
        %v9510 = vmul.f32 %v9509, 0.6931472
        %v9511 = vmul.f32 -0.5, %v7882
        %v9512 = vadd.f32 %v9511, 1.0
        %v9513 = vmul.f32 %v9512, %v7882
        %v9514 = vand.u32 2147483647, %v7882
        %vm9515 = vcmp.lt.f32.partialorder %v9514, 0.0004427343
        %v9516 = vsel %vm9515, %v9513, %v9510
        %v9517 = vadd.f32 %v7884, 1.0
        %v9518 = vlog2.pop %v9517
        %v9519 = vmul.f32 %v9518, 0.6931472
        %v9520 = vmul.f32 -0.5, %v7884
        %v9521 = vadd.f32 %v9520, 1.0
        %v9522 = vmul.f32 %v9521, %v7884
        %v9523 = vand.u32 2147483647, %v7884
        %vm9524 = vcmp.lt.f32.partialorder %v9523, 0.0004427343
        %v9525 = vsel %vm9524, %v9522, %v9519
        %v9526 = vadd.f32 %v7886, 1.0
        %v9527 = vlog2.pop %v9526
        %v9528 = vmul.f32 %v9527, 0.6931472
        %v9529 = vmul.f32 -0.5, %v7886
        %v9530 = vadd.f32 %v9529, 1.0
        %v9531 = vmul.f32 %v9530, %v7886
        %v9532 = vand.u32 2147483647, %v7886
        %vm9533 = vcmp.lt.f32.partialorder %v9532, 0.0004427343
        %v9534 = vsel %vm9533, %v9531, %v9528
        %v9535 = vadd.f32 %v7888, 1.0
        %v9536 = vlog2.pop %v9535
        %v9537 = vmul.f32 %v9536, 0.6931472
        %v9538 = vmul.f32 -0.5, %v7888
        %v9539 = vadd.f32 %v9538, 1.0
        %v9540 = vmul.f32 %v9539, %v7888
        %v9541 = vand.u32 2147483647, %v7888
        %vm9542 = vcmp.lt.f32.partialorder %v9541, 0.0004427343
        %v9543 = vsel %vm9542, %v9540, %v9537
        %v9544 = vadd.f32 %v7890, 1.0
        %v9545 = vlog2.pop %v9544
        %v9546 = vmul.f32 %v9545, 0.6931472
        %v9547 = vmul.f32 -0.5, %v7890
        %v9548 = vadd.f32 %v9547, 1.0
        %v9549 = vmul.f32 %v9548, %v7890
        %v9550 = vand.u32 2147483647, %v7890
        %vm9551 = vcmp.lt.f32.partialorder %v9550, 0.0004427343
        %v9552 = vsel %vm9551, %v9549, %v9546
        %v9553 = vadd.f32 %v7892, 1.0
        %v9554 = vlog2.pop %v9553
        %v9555 = vmul.f32 %v9554, 0.6931472
        %v9556 = vmul.f32 -0.5, %v7892
        %v9557 = vadd.f32 %v9556, 1.0
        %v9558 = vmul.f32 %v9557, %v7892
        %v9559 = vand.u32 2147483647, %v7892
        %vm9560 = vcmp.lt.f32.partialorder %v9559, 0.0004427343
        %v9561 = vsel %vm9560, %v9558, %v9555
        %v9562 = vadd.f32 %v7894, 1.0
        %v9563 = vlog2.pop %v9562
        %v9564 = vmul.f32 %v9563, 0.6931472
        %v9565 = vmul.f32 -0.5, %v7894
        %v9566 = vadd.f32 %v9565, 1.0
        %v9567 = vmul.f32 %v9566, %v7894
        %v9568 = vand.u32 2147483647, %v7894
        %vm9569 = vcmp.lt.f32.partialorder %v9568, 0.0004427343
        %v9570 = vsel %vm9569, %v9567, %v9564
        %v9571 = vadd.f32 %v7896, 1.0
        %v9572 = vlog2.pop %v9571
        %v9573 = vmul.f32 %v9572, 0.6931472
        %v9574 = vmul.f32 -0.5, %v7896
        %v9575 = vadd.f32 %v9574, 1.0
        %v9576 = vmul.f32 %v9575, %v7896
        %v9577 = vand.u32 2147483647, %v7896
        %vm9578 = vcmp.lt.f32.partialorder %v9577, 0.0004427343
        %v9579 = vsel %vm9578, %v9576, %v9573
        %v9580 = vadd.f32 %v7898, 1.0
        %v9581 = vlog2.pop %v9580
        %v9582 = vmul.f32 %v9581, 0.6931472
        %v9583 = vmul.f32 -0.5, %v7898
        %v9584 = vadd.f32 %v9583, 1.0
        %v9585 = vmul.f32 %v9584, %v7898
        %v9586 = vand.u32 2147483647, %v7898
        %vm9587 = vcmp.lt.f32.partialorder %v9586, 0.0004427343
        %v9588 = vsel %vm9587, %v9585, %v9582
        %v9589 = vadd.f32 %v7900, 1.0
        %v9590 = vlog2.pop %v9589
        %v9591 = vmul.f32 %v9590, 0.6931472
        %v9592 = vmul.f32 -0.5, %v7900
        %v9593 = vadd.f32 %v9592, 1.0
        %v9594 = vmul.f32 %v9593, %v7900
        %v9595 = vand.u32 2147483647, %v7900
        %vm9596 = vcmp.lt.f32.partialorder %v9595, 0.0004427343
        %v9597 = vsel %vm9596, %v9594, %v9591
        %v9598 = vadd.f32 %v7902, 1.0
        %v9599 = vlog2.pop %v9598
        %v9600 = vmul.f32 %v9599, 0.6931472
        %v9601 = vmul.f32 -0.5, %v7902
        %v9602 = vadd.f32 %v9601, 1.0
        %v9603 = vmul.f32 %v9602, %v7902
        %v9604 = vand.u32 2147483647, %v7902
        %vm9605 = vcmp.lt.f32.partialorder %v9604, 0.0004427343
        %v9606 = vsel %vm9605, %v9603, %v9600
        %v9607 = vadd.f32 %v7904, 1.0
        %v9608 = vlog2.pop %v9607
        %v9609 = vmul.f32 %v9608, 0.6931472
        %v9610 = vmul.f32 -0.5, %v7904
        %v9611 = vadd.f32 %v9610, 1.0
        %v9612 = vmul.f32 %v9611, %v7904
        %v9613 = vand.u32 2147483647, %v7904
        %vm9614 = vcmp.lt.f32.partialorder %v9613, 0.0004427343
        %v9615 = vsel %vm9614, %v9612, %v9609
        %v9616 = vadd.f32 %v7906, 1.0
        %v9617 = vlog2.pop %v9616
        %v9618 = vmul.f32 %v9617, 0.6931472
        %v9619 = vmul.f32 -0.5, %v7906
        %v9620 = vadd.f32 %v9619, 1.0
        %v9621 = vmul.f32 %v9620, %v7906
        %v9622 = vand.u32 2147483647, %v7906
        %vm9623 = vcmp.lt.f32.partialorder %v9622, 0.0004427343
        %v9624 = vsel %vm9623, %v9621, %v9618
        %v9625 = vadd.f32 %v7908, 1.0
        %v9626 = vlog2.pop %v9625
        %v9627 = vmul.f32 %v9626, 0.6931472
        %v9628 = vmul.f32 -0.5, %v7908
        %v9629 = vadd.f32 %v9628, 1.0
        %v9630 = vmul.f32 %v9629, %v7908
        %v9631 = vand.u32 2147483647, %v7908
        %vm9632 = vcmp.lt.f32.partialorder %v9631, 0.0004427343
        %v9633 = vsel %vm9632, %v9630, %v9627
        %v9634 = vadd.f32 %v7910, 1.0
        %v9635 = vlog2.pop %v9634
        %v9636 = vmul.f32 %v9635, 0.6931472
        %v9637 = vmul.f32 -0.5, %v7910
        %v9638 = vadd.f32 %v9637, 1.0
        %v9639 = vmul.f32 %v9638, %v7910
        %v9640 = vand.u32 2147483647, %v7910
        %vm9641 = vcmp.lt.f32.partialorder %v9640, 0.0004427343
        %v9642 = vsel %vm9641, %v9639, %v9636
        %v9643 = vadd.f32 %v7912, 1.0
        %v9644 = vlog2.pop %v9643
        %v9645 = vmul.f32 %v9644, 0.6931472
        %v9646 = vmul.f32 -0.5, %v7912
        %v9647 = vadd.f32 %v9646, 1.0
        %v9648 = vmul.f32 %v9647, %v7912
        %v9649 = vand.u32 2147483647, %v7912
        %vm9650 = vcmp.lt.f32.partialorder %v9649, 0.0004427343
        %v9651 = vsel %vm9650, %v9648, %v9645
        %v9652 = vadd.f32 %v7914, 1.0
        %v9653 = vlog2.pop %v9652
        %v9654 = vmul.f32 %v9653, 0.6931472
        %v9655 = vmul.f32 -0.5, %v7914
        %v9656 = vadd.f32 %v9655, 1.0
        %v9657 = vmul.f32 %v9656, %v7914
        %v9658 = vand.u32 2147483647, %v7914
        %vm9659 = vcmp.lt.f32.partialorder %v9658, 0.0004427343
        %v9660 = vsel %vm9659, %v9657, %v9654
        %v9661 = vadd.f32 %v7916, 1.0
        %v9662 = vlog2.pop %v9661
        %v9663 = vmul.f32 %v9662, 0.6931472
        %v9664 = vmul.f32 -0.5, %v7916
        %v9665 = vadd.f32 %v9664, 1.0
        %v9666 = vmul.f32 %v9665, %v7916
        %v9667 = vand.u32 2147483647, %v7916
        %vm9668 = vcmp.lt.f32.partialorder %v9667, 0.0004427343
        %v9669 = vsel %vm9668, %v9666, %v9663
        %v9670 = vadd.f32 %v7918, 1.0
        %v9671 = vlog2.pop %v9670
        %v9672 = vmul.f32 %v9671, 0.6931472
        %v9673 = vmul.f32 -0.5, %v7918
        %v9674 = vadd.f32 %v9673, 1.0
        %v9675 = vmul.f32 %v9674, %v7918
        %v9676 = vand.u32 2147483647, %v7918
        %vm9677 = vcmp.lt.f32.partialorder %v9676, 0.0004427343
        %v9678 = vsel %vm9677, %v9675, %v9672
        %v9679 = vadd.f32 %v7920, 1.0
        %v9680 = vlog2.pop %v9679
        %v9681 = vmul.f32 %v9680, 0.6931472
        %v9682 = vmul.f32 -0.5, %v7920
        %v9683 = vadd.f32 %v9682, 1.0
        %v9684 = vmul.f32 %v9683, %v7920
        %v9685 = vand.u32 2147483647, %v7920
        %vm9686 = vcmp.lt.f32.partialorder %v9685, 0.0004427343
        %v9687 = vsel %vm9686, %v9684, %v9681
        %v9688 = vadd.f32 %v7922, 1.0
        %v9689 = vlog2.pop %v9688
        %v9690 = vmul.f32 %v9689, 0.6931472
        %v9691 = vmul.f32 -0.5, %v7922
        %v9692 = vadd.f32 %v9691, 1.0
        %v9693 = vmul.f32 %v9692, %v7922
        %v9694 = vand.u32 2147483647, %v7922
        %vm9695 = vcmp.lt.f32.partialorder %v9694, 0.0004427343
        %v9696 = vsel %vm9695, %v9693, %v9690
        %v9697 = vadd.f32 %v7924, 1.0
        %v9698 = vlog2.pop %v9697
        %v9699 = vmul.f32 %v9698, 0.6931472
        %v9700 = vmul.f32 -0.5, %v7924
        %v9701 = vadd.f32 %v9700, 1.0
        %v9702 = vmul.f32 %v9701, %v7924
        %v9703 = vand.u32 2147483647, %v7924
        %vm9704 = vcmp.lt.f32.partialorder %v9703, 0.0004427343
        %v9705 = vsel %vm9704, %v9702, %v9699
        %v9706 = vadd.f32 %v7926, 1.0
        %v9707 = vlog2.pop %v9706
        %v9708 = vmul.f32 %v9707, 0.6931472
        %v9709 = vmul.f32 -0.5, %v7926
        %v9710 = vadd.f32 %v9709, 1.0
        %v9711 = vmul.f32 %v9710, %v7926
        %v9712 = vand.u32 2147483647, %v7926
        %vm9713 = vcmp.lt.f32.partialorder %v9712, 0.0004427343
        %v9714 = vsel %vm9713, %v9711, %v9708
        %v9715 = vadd.f32 %v7928, 1.0
        %v9716 = vlog2.pop %v9715
        %v9717 = vmul.f32 %v9716, 0.6931472
        %v9718 = vmul.f32 -0.5, %v7928
        %v9719 = vadd.f32 %v9718, 1.0
        %v9720 = vmul.f32 %v9719, %v7928
        %v9721 = vand.u32 2147483647, %v7928
        %vm9722 = vcmp.lt.f32.partialorder %v9721, 0.0004427343
        %v9723 = vsel %vm9722, %v9720, %v9717
        %v9724 = vadd.f32 %v7930, 1.0
        %v9725 = vlog2.pop %v9724
        %v9726 = vmul.f32 %v9725, 0.6931472
        %v9727 = vmul.f32 -0.5, %v7930
        %v9728 = vadd.f32 %v9727, 1.0
        %v9729 = vmul.f32 %v9728, %v7930
        %v9730 = vand.u32 2147483647, %v7930
        %vm9731 = vcmp.lt.f32.partialorder %v9730, 0.0004427343
        %v9732 = vsel %vm9731, %v9729, %v9726
        %v9733 = vadd.f32 %v7932, 1.0
        %v9734 = vlog2.pop %v9733
        %v9735 = vmul.f32 %v9734, 0.6931472
        %v9736 = vmul.f32 -0.5, %v7932
        %v9737 = vadd.f32 %v9736, 1.0
        %v9738 = vmul.f32 %v9737, %v7932
        %v9739 = vand.u32 2147483647, %v7932
        %vm9740 = vcmp.lt.f32.partialorder %v9739, 0.0004427343
        %v9741 = vsel %vm9740, %v9738, %v9735
        %v9742 = vadd.f32 %v7934, 1.0
        %v9743 = vlog2.pop %v9742
        %v9744 = vmul.f32 %v9743, 0.6931472
        %v9745 = vmul.f32 -0.5, %v7934
        %v9746 = vadd.f32 %v9745, 1.0
        %v9747 = vmul.f32 %v9746, %v7934
        %v9748 = vand.u32 2147483647, %v7934
        %vm9749 = vcmp.lt.f32.partialorder %v9748, 0.0004427343
        %v9750 = vsel %vm9749, %v9747, %v9744
        %v9751 = vadd.f32 %v7936, 1.0
        %v9752 = vlog2.pop %v9751
        %v9753 = vmul.f32 %v9752, 0.6931472
        %v9754 = vmul.f32 -0.5, %v7936
        %v9755 = vadd.f32 %v9754, 1.0
        %v9756 = vmul.f32 %v9755, %v7936
        %v9757 = vand.u32 2147483647, %v7936
        %vm9758 = vcmp.lt.f32.partialorder %v9757, 0.0004427343
        %v9759 = vsel %vm9758, %v9756, %v9753
        %v9760 = vadd.f32 %v7938, 1.0
        %v9761 = vlog2.pop %v9760
        %v9762 = vmul.f32 %v9761, 0.6931472
        %v9763 = vmul.f32 -0.5, %v7938
        %v9764 = vadd.f32 %v9763, 1.0
        %v9765 = vmul.f32 %v9764, %v7938
        %v9766 = vand.u32 2147483647, %v7938
        %vm9767 = vcmp.lt.f32.partialorder %v9766, 0.0004427343
        %v9768 = vsel %vm9767, %v9765, %v9762
        %v9769 = vadd.f32 %v7940, 1.0
        %v9770 = vlog2.pop %v9769
        %v9771 = vmul.f32 %v9770, 0.6931472
        %v9772 = vmul.f32 -0.5, %v7940
        %v9773 = vadd.f32 %v9772, 1.0
        %v9774 = vmul.f32 %v9773, %v7940
        %v9775 = vand.u32 2147483647, %v7940
        %vm9776 = vcmp.lt.f32.partialorder %v9775, 0.0004427343
        %v9777 = vsel %vm9776, %v9774, %v9771
        %v9778 = vadd.f32 %v7942, 1.0
        %v9779 = vlog2.pop %v9778
        %v9780 = vmul.f32 %v9779, 0.6931472
        %v9781 = vmul.f32 -0.5, %v7942
        %v9782 = vadd.f32 %v9781, 1.0
        %v9783 = vmul.f32 %v9782, %v7942
        %v9784 = vand.u32 2147483647, %v7942
        %vm9785 = vcmp.lt.f32.partialorder %v9784, 0.0004427343
        %v9786 = vsel %vm9785, %v9783, %v9780
        %v9787 = vadd.f32 %v7944, 1.0
        %v9788 = vlog2.pop %v9787
        %v9789 = vmul.f32 %v9788, 0.6931472
        %v9790 = vmul.f32 -0.5, %v7944
        %v9791 = vadd.f32 %v9790, 1.0
        %v9792 = vmul.f32 %v9791, %v7944
        %v9793 = vand.u32 2147483647, %v7944
        %vm9794 = vcmp.lt.f32.partialorder %v9793, 0.0004427343
        %v9795 = vsel %vm9794, %v9792, %v9789
        %v9796 = vadd.f32 %v7946, 1.0
        %v9797 = vlog2.pop %v9796
        %v9798 = vmul.f32 %v9797, 0.6931472
        %v9799 = vmul.f32 -0.5, %v7946
        %v9800 = vadd.f32 %v9799, 1.0
        %v9801 = vmul.f32 %v9800, %v7946
        %v9802 = vand.u32 2147483647, %v7946
        %vm9803 = vcmp.lt.f32.partialorder %v9802, 0.0004427343
        %v9804 = vsel %vm9803, %v9801, %v9798
        %v9805 = vadd.f32 %v7948, 1.0
        %v9806 = vlog2.pop %v9805
        %v9807 = vmul.f32 %v9806, 0.6931472
        %v9808 = vmul.f32 -0.5, %v7948
        %v9809 = vadd.f32 %v9808, 1.0
        %v9810 = vmul.f32 %v9809, %v7948
        %v9811 = vand.u32 2147483647, %v7948
        %vm9812 = vcmp.lt.f32.partialorder %v9811, 0.0004427343
        %v9813 = vsel %vm9812, %v9810, %v9807
        %v9814 = vadd.f32 %v7950, 1.0
        %v9815 = vlog2.pop %v9814
        %v9816 = vmul.f32 %v9815, 0.6931472
        %v9817 = vmul.f32 -0.5, %v7950
        %v9818 = vadd.f32 %v9817, 1.0
        %v9819 = vmul.f32 %v9818, %v7950
        %v9820 = vand.u32 2147483647, %v7950
        %vm9821 = vcmp.lt.f32.partialorder %v9820, 0.0004427343
        %v9822 = vsel %vm9821, %v9819, %v9816
        %v9823 = vadd.f32 %v7952, 1.0
        %v9824 = vlog2.pop %v9823
        %v9825 = vmul.f32 %v9824, 0.6931472
        %v9826 = vmul.f32 -0.5, %v7952
        %v9827 = vadd.f32 %v9826, 1.0
        %v9828 = vmul.f32 %v9827, %v7952
        %v9829 = vand.u32 2147483647, %v7952
        %vm9830 = vcmp.lt.f32.partialorder %v9829, 0.0004427343
        %v9831 = vsel %vm9830, %v9828, %v9825
        %v9832 = vadd.f32 %v7954, 1.0
        %v9833 = vlog2.pop %v9832
        %v9834 = vmul.f32 %v9833, 0.6931472
        %v9835 = vmul.f32 -0.5, %v7954
        %v9836 = vadd.f32 %v9835, 1.0
        %v9837 = vmul.f32 %v9836, %v7954
        %v9838 = vand.u32 2147483647, %v7954
        %vm9839 = vcmp.lt.f32.partialorder %v9838, 0.0004427343
        %v9840 = vsel %vm9839, %v9837, %v9834
        %v9841 = vadd.f32 %v7956, 1.0
        %v9842 = vlog2.pop %v9841
        %v9843 = vmul.f32 %v9842, 0.6931472
        %v9844 = vmul.f32 -0.5, %v7956
        %v9845 = vadd.f32 %v9844, 1.0
        %v9846 = vmul.f32 %v9845, %v7956
        %v9847 = vand.u32 2147483647, %v7956
        %vm9848 = vcmp.lt.f32.partialorder %v9847, 0.0004427343
        %v9849 = vsel %vm9848, %v9846, %v9843
        %v9850 = vadd.f32 %v7958, 1.0
        %v9851 = vlog2.pop %v9850
        %v9852 = vmul.f32 %v9851, 0.6931472
        %v9853 = vmul.f32 -0.5, %v7958
        %v9854 = vadd.f32 %v9853, 1.0
        %v9855 = vmul.f32 %v9854, %v7958
        %v9856 = vand.u32 2147483647, %v7958
        %vm9857 = vcmp.lt.f32.partialorder %v9856, 0.0004427343
        %v9858 = vsel %vm9857, %v9855, %v9852
        %v9859 = vadd.f32 %v7960, 1.0
        %v9860 = vlog2.pop %v9859
        %v9861 = vmul.f32 %v9860, 0.6931472
        %v9862 = vmul.f32 -0.5, %v7960
        %v9863 = vadd.f32 %v9862, 1.0
        %v9864 = vmul.f32 %v9863, %v7960
        %v9865 = vand.u32 2147483647, %v7960
        %vm9866 = vcmp.lt.f32.partialorder %v9865, 0.0004427343
        %v9867 = vsel %vm9866, %v9864, %v9861
        %v9868 = vadd.f32 %v7962, 1.0
        %v9869 = vlog2.pop %v9868
        %v9870 = vmul.f32 %v9869, 0.6931472
        %v9871 = vmul.f32 -0.5, %v7962
        %v9872 = vadd.f32 %v9871, 1.0
        %v9873 = vmul.f32 %v9872, %v7962
        %v9874 = vand.u32 2147483647, %v7962
        %vm9875 = vcmp.lt.f32.partialorder %v9874, 0.0004427343
        %v9876 = vsel %vm9875, %v9873, %v9870
        %v9877 = vadd.f32 %v7964, 1.0
        %v9878 = vlog2.pop %v9877
        %v9879 = vmul.f32 %v9878, 0.6931472
        %v9880 = vmul.f32 -0.5, %v7964
        %v9881 = vadd.f32 %v9880, 1.0
        %v9882 = vmul.f32 %v9881, %v7964
        %v9883 = vand.u32 2147483647, %v7964
        %vm9884 = vcmp.lt.f32.partialorder %v9883, 0.0004427343
        %v9885 = vsel %vm9884, %v9882, %v9879
        %v9886 = vadd.f32 %v7966, 1.0
        %v9887 = vlog2.pop %v9886
        %v9888 = vmul.f32 %v9887, 0.6931472
        %v9889 = vmul.f32 -0.5, %v7966
        %v9890 = vadd.f32 %v9889, 1.0
        %v9891 = vmul.f32 %v9890, %v7966
        %v9892 = vand.u32 2147483647, %v7966
        %vm9893 = vcmp.lt.f32.partialorder %v9892, 0.0004427343
        %v9894 = vsel %vm9893, %v9891, %v9888
        %v9895 = vadd.f32 %v7968, 1.0
        %v9896 = vlog2.pop %v9895
        %v9897 = vmul.f32 %v9896, 0.6931472
        %v9898 = vmul.f32 -0.5, %v7968
        %v9899 = vadd.f32 %v9898, 1.0
        %v9900 = vmul.f32 %v9899, %v7968
        %v9901 = vand.u32 2147483647, %v7968
        %vm9902 = vcmp.lt.f32.partialorder %v9901, 0.0004427343
        %v9903 = vsel %vm9902, %v9900, %v9897
        %v9904 = vadd.f32 %v7970, 1.0
        %v9905 = vlog2.pop %v9904
        %v9906 = vmul.f32 %v9905, 0.6931472
        %v9907 = vmul.f32 -0.5, %v7970
        %v9908 = vadd.f32 %v9907, 1.0
        %v9909 = vmul.f32 %v9908, %v7970
        %v9910 = vand.u32 2147483647, %v7970
        %vm9911 = vcmp.lt.f32.partialorder %v9910, 0.0004427343
        %v9912 = vsel %vm9911, %v9909, %v9906
        %v9913 = vadd.f32 %v7972, 1.0
        %v9914 = vlog2.pop %v9913
        %v9915 = vmul.f32 %v9914, 0.6931472
        %v9916 = vmul.f32 -0.5, %v7972
        %v9917 = vadd.f32 %v9916, 1.0
        %v9918 = vmul.f32 %v9917, %v7972
        %v9919 = vand.u32 2147483647, %v7972
        %vm9920 = vcmp.lt.f32.partialorder %v9919, 0.0004427343
        %v9921 = vsel %vm9920, %v9918, %v9915
        %v9922 = vadd.f32 %v7974, 1.0
        %v9923 = vlog2.pop %v9922
        %v9924 = vmul.f32 %v9923, 0.6931472
        %v9925 = vmul.f32 -0.5, %v7974
        %v9926 = vadd.f32 %v9925, 1.0
        %v9927 = vmul.f32 %v9926, %v7974
        %v9928 = vand.u32 2147483647, %v7974
        %vm9929 = vcmp.lt.f32.partialorder %v9928, 0.0004427343
        %v9930 = vsel %vm9929, %v9927, %v9924
        %v9931 = vadd.f32 %v7976, 1.0
        %v9932 = vlog2.pop %v9931
        %v9933 = vmul.f32 %v9932, 0.6931472
        %v9934 = vmul.f32 -0.5, %v7976
        %v9935 = vadd.f32 %v9934, 1.0
        %v9936 = vmul.f32 %v9935, %v7976
        %v9937 = vand.u32 2147483647, %v7976
        %vm9938 = vcmp.lt.f32.partialorder %v9937, 0.0004427343
        %v9939 = vsel %vm9938, %v9936, %v9933
        %v9940 = vadd.f32 %v7978, 1.0
        %v9941 = vlog2.pop %v9940
        %v9942 = vmul.f32 %v9941, 0.6931472
        %v9943 = vmul.f32 -0.5, %v7978
        %v9944 = vadd.f32 %v9943, 1.0
        %v9945 = vmul.f32 %v9944, %v7978
        %v9946 = vand.u32 2147483647, %v7978
        %vm9947 = vcmp.lt.f32.partialorder %v9946, 0.0004427343
        %v9948 = vsel %vm9947, %v9945, %v9942
        %v9949 = vadd.f32 %v7980, 1.0
        %v9950 = vlog2.pop %v9949
        %v9951 = vmul.f32 %v9950, 0.6931472
        %v9952 = vmul.f32 -0.5, %v7980
        %v9953 = vadd.f32 %v9952, 1.0
        %v9954 = vmul.f32 %v9953, %v7980
        %v9955 = vand.u32 2147483647, %v7980
        %vm9956 = vcmp.lt.f32.partialorder %v9955, 0.0004427343
        %v9957 = vsel %vm9956, %v9954, %v9951
        %v9958 = vadd.f32 %v7982, 1.0
        %v9959 = vlog2.pop %v9958
        %v9960 = vmul.f32 %v9959, 0.6931472
        %v9961 = vmul.f32 -0.5, %v7982
        %v9962 = vadd.f32 %v9961, 1.0
        %v9963 = vmul.f32 %v9962, %v7982
        %v9964 = vand.u32 2147483647, %v7982
        %vm9965 = vcmp.lt.f32.partialorder %v9964, 0.0004427343
        %v9966 = vsel %vm9965, %v9963, %v9960
        %v9967 = vadd.f32 %v7984, 1.0
        %v9968 = vlog2.pop %v9967
        %v9969 = vmul.f32 %v9968, 0.6931472
        %v9970 = vmul.f32 -0.5, %v7984
        %v9971 = vadd.f32 %v9970, 1.0
        %v9972 = vmul.f32 %v9971, %v7984
        %v9973 = vand.u32 2147483647, %v7984
        %vm9974 = vcmp.lt.f32.partialorder %v9973, 0.0004427343
        %v9975 = vsel %vm9974, %v9972, %v9969
        %v9976 = vadd.f32 %v7986, 1.0
        %v9977 = vlog2.pop %v9976
        %v9978 = vmul.f32 %v9977, 0.6931472
        %v9979 = vmul.f32 -0.5, %v7986
        %v9980 = vadd.f32 %v9979, 1.0
        %v9981 = vmul.f32 %v9980, %v7986
        %v9982 = vand.u32 2147483647, %v7986
        %vm9983 = vcmp.lt.f32.partialorder %v9982, 0.0004427343
        %v9984 = vsel %vm9983, %v9981, %v9978
        %v9985 = vadd.f32 %v7988, 1.0
        %v9986 = vlog2.pop %v9985
        %v9987 = vmul.f32 %v9986, 0.6931472
        %v9988 = vmul.f32 -0.5, %v7988
        %v9989 = vadd.f32 %v9988, 1.0
        %v9990 = vmul.f32 %v9989, %v7988
        %v9991 = vand.u32 2147483647, %v7988
        %vm9992 = vcmp.lt.f32.partialorder %v9991, 0.0004427343
        %v9993 = vsel %vm9992, %v9990, %v9987
        %v9994 = vadd.f32 %v7990, 1.0
        %v9995 = vlog2.pop %v9994
        %v9996 = vmul.f32 %v9995, 0.6931472
        %v9997 = vmul.f32 -0.5, %v7990
        %v9998 = vadd.f32 %v9997, 1.0
        %v9999 = vmul.f32 %v9998, %v7990
        %v10000 = vand.u32 2147483647, %v7990
        %vm10001 = vcmp.lt.f32.partialorder %v10000, 0.0004427343
        %v10002 = vsel %vm10001, %v9999, %v9996
        %v10003 = vadd.f32 %v7992, 1.0
        %v10004 = vlog2.pop %v10003
        %v10005 = vmul.f32 %v10004, 0.6931472
        %v10006 = vmul.f32 -0.5, %v7992
        %v10007 = vadd.f32 %v10006, 1.0
        %v10008 = vmul.f32 %v10007, %v7992
        %v10009 = vand.u32 2147483647, %v7992
        %vm10010 = vcmp.lt.f32.partialorder %v10009, 0.0004427343
        %v10011 = vsel %vm10010, %v10008, %v10005
        %v10012 = vadd.f32 %v7994, 1.0
        %v10013 = vlog2.pop %v10012
        %v10014 = vmul.f32 %v10013, 0.6931472
        %v10015 = vmul.f32 -0.5, %v7994
        %v10016 = vadd.f32 %v10015, 1.0
        %v10017 = vmul.f32 %v10016, %v7994
        %v10018 = vand.u32 2147483647, %v7994
        %vm10019 = vcmp.lt.f32.partialorder %v10018, 0.0004427343
        %v10020 = vsel %vm10019, %v10017, %v10014
        %v10021 = vadd.f32 %v7996, 1.0
        %v10022 = vlog2.pop %v10021
        %v10023 = vmul.f32 %v10022, 0.6931472
        %v10024 = vmul.f32 -0.5, %v7996
        %v10025 = vadd.f32 %v10024, 1.0
        %v10026 = vmul.f32 %v10025, %v7996
        %v10027 = vand.u32 2147483647, %v7996
        %vm10028 = vcmp.lt.f32.partialorder %v10027, 0.0004427343
        %v10029 = vsel %vm10028, %v10026, %v10023
        %v10030 = vadd.f32 %v7998, 1.0
        %v10031 = vlog2.pop %v10030
        %v10032 = vmul.f32 %v10031, 0.6931472
        %v10033 = vmul.f32 -0.5, %v7998
        %v10034 = vadd.f32 %v10033, 1.0
        %v10035 = vmul.f32 %v10034, %v7998
        %v10036 = vand.u32 2147483647, %v7998
        %vm10037 = vcmp.lt.f32.partialorder %v10036, 0.0004427343
        %v10038 = vsel %vm10037, %v10035, %v10032
        %v10039 = vadd.f32 %v8000, 1.0
        %v10040 = vlog2.pop %v10039
        %v10041 = vmul.f32 %v10040, 0.6931472
        %v10042 = vmul.f32 -0.5, %v8000
        %v10043 = vadd.f32 %v10042, 1.0
        %v10044 = vmul.f32 %v10043, %v8000
        %v10045 = vand.u32 2147483647, %v8000
        %vm10046 = vcmp.lt.f32.partialorder %v10045, 0.0004427343
        %v10047 = vsel %vm10046, %v10044, %v10041
        %v10048 = vadd.f32 %v8002, 1.0
        %v10049 = vlog2.pop %v10048
        %v10050 = vmul.f32 %v10049, 0.6931472
        %v10051 = vmul.f32 -0.5, %v8002
        %v10052 = vadd.f32 %v10051, 1.0
        %v10053 = vmul.f32 %v10052, %v8002
        %v10054 = vand.u32 2147483647, %v8002
        %vm10055 = vcmp.lt.f32.partialorder %v10054, 0.0004427343
        %v10056 = vsel %vm10055, %v10053, %v10050
        %v10057 = vadd.f32 %v8004, 1.0
        %v10058 = vlog2.pop %v10057
        %v10059 = vmul.f32 %v10058, 0.6931472
        %v10060 = vmul.f32 -0.5, %v8004
        %v10061 = vadd.f32 %v10060, 1.0
        %v10062 = vmul.f32 %v10061, %v8004
        %v10063 = vand.u32 2147483647, %v8004
        %vm10064 = vcmp.lt.f32.partialorder %v10063, 0.0004427343
        %v10065 = vsel %vm10064, %v10062, %v10059
        %v10066 = vadd.f32 %v8006, 1.0
        %v10067 = vlog2.pop %v10066
        %v10068 = vmul.f32 %v10067, 0.6931472
        %v10069 = vmul.f32 -0.5, %v8006
        %v10070 = vadd.f32 %v10069, 1.0
        %v10071 = vmul.f32 %v10070, %v8006
        %v10072 = vand.u32 2147483647, %v8006
        %vm10073 = vcmp.lt.f32.partialorder %v10072, 0.0004427343
        %v10074 = vsel %vm10073, %v10071, %v10068
        %v10075 = vadd.f32 %v8008, 1.0
        %v10076 = vlog2.pop %v10075
        %v10077 = vmul.f32 %v10076, 0.6931472
        %v10078 = vmul.f32 -0.5, %v8008
        %v10079 = vadd.f32 %v10078, 1.0
        %v10080 = vmul.f32 %v10079, %v8008
        %v10081 = vand.u32 2147483647, %v8008
        %vm10082 = vcmp.lt.f32.partialorder %v10081, 0.0004427343
        %v10083 = vsel %vm10082, %v10080, %v10077
        %v10084 = vadd.f32 %v8010, 1.0
        %v10085 = vlog2.pop %v10084
        %v10086 = vmul.f32 %v10085, 0.6931472
        %v10087 = vmul.f32 -0.5, %v8010
        %v10088 = vadd.f32 %v10087, 1.0
        %v10089 = vmul.f32 %v10088, %v8010
        %v10090 = vand.u32 2147483647, %v8010
        %vm10091 = vcmp.lt.f32.partialorder %v10090, 0.0004427343
        %v10092 = vsel %vm10091, %v10089, %v10086
        %v10093 = vadd.f32 %v8012, 1.0
        %v10094 = vlog2.pop %v10093
        %v10095 = vmul.f32 %v10094, 0.6931472
        %v10096 = vmul.f32 -0.5, %v8012
        %v10097 = vadd.f32 %v10096, 1.0
        %v10098 = vmul.f32 %v10097, %v8012
        %v10099 = vand.u32 2147483647, %v8012
        %vm10100 = vcmp.lt.f32.partialorder %v10099, 0.0004427343
        %v10101 = vsel %vm10100, %v10098, %v10095
        %v10102 = vadd.f32 %v8014, 1.0
        %v10103 = vlog2.pop %v10102
        %v10104 = vmul.f32 %v10103, 0.6931472
        %v10105 = vmul.f32 -0.5, %v8014
        %v10106 = vadd.f32 %v10105, 1.0
        %v10107 = vmul.f32 %v10106, %v8014
        %v10108 = vand.u32 2147483647, %v8014
        %vm10109 = vcmp.lt.f32.partialorder %v10108, 0.0004427343
        %v10110 = vsel %vm10109, %v10107, %v10104
        %v10111 = vadd.f32 %v8016, 1.0
        %v10112 = vlog2.pop %v10111
        %v10113 = vmul.f32 %v10112, 0.6931472
        %v10114 = vmul.f32 -0.5, %v8016
        %v10115 = vadd.f32 %v10114, 1.0
        %v10116 = vmul.f32 %v10115, %v8016
        %v10117 = vand.u32 2147483647, %v8016
        %vm10118 = vcmp.lt.f32.partialorder %v10117, 0.0004427343
        %v10119 = vsel %vm10118, %v10116, %v10113
        %v10120 = vadd.f32 %v8018, 1.0
        %v10121 = vlog2.pop %v10120
        %v10122 = vmul.f32 %v10121, 0.6931472
        %v10123 = vmul.f32 -0.5, %v8018
        %v10124 = vadd.f32 %v10123, 1.0
        %v10125 = vmul.f32 %v10124, %v8018
        %v10126 = vand.u32 2147483647, %v8018
        %vm10127 = vcmp.lt.f32.partialorder %v10126, 0.0004427343
        %v10128 = vsel %vm10127, %v10125, %v10122
        %v10129 = vadd.f32 %v8020, 1.0
        %v10130 = vlog2.pop %v10129
        %v10131 = vmul.f32 %v10130, 0.6931472
        %v10132 = vmul.f32 -0.5, %v8020
        %v10133 = vadd.f32 %v10132, 1.0
        %v10134 = vmul.f32 %v10133, %v8020
        %v10135 = vand.u32 2147483647, %v8020
        %vm10136 = vcmp.lt.f32.partialorder %v10135, 0.0004427343
        %v10137 = vsel %vm10136, %v10134, %v10131
        %v10138 = vadd.f32 %v8022, 1.0
        %v10139 = vlog2.pop %v10138
        %v10140 = vmul.f32 %v10139, 0.6931472
        %v10141 = vmul.f32 -0.5, %v8022
        %v10142 = vadd.f32 %v10141, 1.0
        %v10143 = vmul.f32 %v10142, %v8022
        %v10144 = vand.u32 2147483647, %v8022
        %vm10145 = vcmp.lt.f32.partialorder %v10144, 0.0004427343
        %v10146 = vsel %vm10145, %v10143, %v10140
        %v10147 = vadd.f32 %v8024, 1.0
        %v10148 = vlog2.pop %v10147
        %v10149 = vmul.f32 %v10148, 0.6931472
        %v10150 = vmul.f32 -0.5, %v8024
        %v10151 = vadd.f32 %v10150, 1.0
        %v10152 = vmul.f32 %v10151, %v8024
        %v10153 = vand.u32 2147483647, %v8024
        %vm10154 = vcmp.lt.f32.partialorder %v10153, 0.0004427343
        %v10155 = vsel %vm10154, %v10152, %v10149
        %v10156 = vadd.f32 %v8026, 1.0
        %v10157 = vlog2.pop %v10156
        %v10158 = vmul.f32 %v10157, 0.6931472
        %v10159 = vmul.f32 -0.5, %v8026
        %v10160 = vadd.f32 %v10159, 1.0
        %v10161 = vmul.f32 %v10160, %v8026
        %v10162 = vand.u32 2147483647, %v8026
        %vm10163 = vcmp.lt.f32.partialorder %v10162, 0.0004427343
        %v10164 = vsel %vm10163, %v10161, %v10158
        %v10165 = vadd.f32 %v8028, 1.0
        %v10166 = vlog2.pop %v10165
        %v10167 = vmul.f32 %v10166, 0.6931472
        %v10168 = vmul.f32 -0.5, %v8028
        %v10169 = vadd.f32 %v10168, 1.0
        %v10170 = vmul.f32 %v10169, %v8028
        %v10171 = vand.u32 2147483647, %v8028
        %vm10172 = vcmp.lt.f32.partialorder %v10171, 0.0004427343
        %v10173 = vsel %vm10172, %v10170, %v10167
        %v10174 = vadd.f32 %v8030, 1.0
        %v10175 = vlog2.pop %v10174
        %v10176 = vmul.f32 %v10175, 0.6931472
        %v10177 = vmul.f32 -0.5, %v8030
        %v10178 = vadd.f32 %v10177, 1.0
        %v10179 = vmul.f32 %v10178, %v8030
        %v10180 = vand.u32 2147483647, %v8030
        %vm10181 = vcmp.lt.f32.partialorder %v10180, 0.0004427343
        %v10182 = vsel %vm10181, %v10179, %v10176
        %v10183 = vadd.f32 %v8032, 1.0
        %v10184 = vlog2.pop %v10183
        %v10185 = vmul.f32 %v10184, 0.6931472
        %v10186 = vmul.f32 -0.5, %v8032
        %v10187 = vadd.f32 %v10186, 1.0
        %v10188 = vmul.f32 %v10187, %v8032
        %v10189 = vand.u32 2147483647, %v8032
        %vm10190 = vcmp.lt.f32.partialorder %v10189, 0.0004427343
        %v10191 = vsel %vm10190, %v10188, %v10185
        %v10192 = vadd.f32 %v8034, 1.0
        %v10193 = vlog2.pop %v10192
        %v10194 = vmul.f32 %v10193, 0.6931472
        %v10195 = vmul.f32 -0.5, %v8034
        %v10196 = vadd.f32 %v10195, 1.0
        %v10197 = vmul.f32 %v10196, %v8034
        %v10198 = vand.u32 2147483647, %v8034
        %vm10199 = vcmp.lt.f32.partialorder %v10198, 0.0004427343
        %v10200 = vsel %vm10199, %v10197, %v10194
        %v10201 = vadd.f32 %v8036, 1.0
        %v10202 = vlog2.pop %v10201
        %v10203 = vmul.f32 %v10202, 0.6931472
        %v10204 = vmul.f32 -0.5, %v8036
        %v10205 = vadd.f32 %v10204, 1.0
        %v10206 = vmul.f32 %v10205, %v8036
        %v10207 = vand.u32 2147483647, %v8036
        %vm10208 = vcmp.lt.f32.partialorder %v10207, 0.0004427343
        %v10209 = vsel %vm10208, %v10206, %v10203
        %v10210 = vadd.f32 %v8038, 1.0
        %v10211 = vlog2.pop %v10210
        %v10212 = vmul.f32 %v10211, 0.6931472
        %v10213 = vmul.f32 -0.5, %v8038
        %v10214 = vadd.f32 %v10213, 1.0
        %v10215 = vmul.f32 %v10214, %v8038
        %v10216 = vand.u32 2147483647, %v8038
        %vm10217 = vcmp.lt.f32.partialorder %v10216, 0.0004427343
        %v10218 = vsel %vm10217, %v10215, %v10212
        %v10219 = vadd.f32 %v8040, 1.0
        %v10220 = vlog2.pop %v10219
        %v10221 = vmul.f32 %v10220, 0.6931472
        %v10222 = vmul.f32 -0.5, %v8040
        %v10223 = vadd.f32 %v10222, 1.0
        %v10224 = vmul.f32 %v10223, %v8040
        %v10225 = vand.u32 2147483647, %v8040
        %vm10226 = vcmp.lt.f32.partialorder %v10225, 0.0004427343
        %v10227 = vsel %vm10226, %v10224, %v10221
        %v10228 = vadd.f32 %v8042, 1.0
        %v10229 = vlog2.pop %v10228
        %v10230 = vmul.f32 %v10229, 0.6931472
        %v10231 = vmul.f32 -0.5, %v8042
        %v10232 = vadd.f32 %v10231, 1.0
        %v10233 = vmul.f32 %v10232, %v8042
        %v10234 = vand.u32 2147483647, %v8042
        %vm10235 = vcmp.lt.f32.partialorder %v10234, 0.0004427343
        %v10236 = vsel %vm10235, %v10233, %v10230
        %v10237 = vadd.f32 %v8044, 1.0
        %v10238 = vlog2.pop %v10237
        %v10239 = vmul.f32 %v10238, 0.6931472
        %v10240 = vmul.f32 -0.5, %v8044
        %v10241 = vadd.f32 %v10240, 1.0
        %v10242 = vmul.f32 %v10241, %v8044
        %v10243 = vand.u32 2147483647, %v8044
        %vm10244 = vcmp.lt.f32.partialorder %v10243, 0.0004427343
        %v10245 = vsel %vm10244, %v10242, %v10239
        %v10246 = vadd.f32 %v8046, 1.0
        %v10247 = vlog2.pop %v10246
        %v10248 = vmul.f32 %v10247, 0.6931472
        %v10249 = vmul.f32 -0.5, %v8046
        %v10250 = vadd.f32 %v10249, 1.0
        %v10251 = vmul.f32 %v10250, %v8046
        %v10252 = vand.u32 2147483647, %v8046
        %vm10253 = vcmp.lt.f32.partialorder %v10252, 0.0004427343
        %v10254 = vsel %vm10253, %v10251, %v10248
        %v10255 = vadd.f32 %v8048, 1.0
        %v10256 = vlog2.pop %v10255
        %v10257 = vmul.f32 %v10256, 0.6931472
        %v10258 = vmul.f32 -0.5, %v8048
        %v10259 = vadd.f32 %v10258, 1.0
        %v10260 = vmul.f32 %v10259, %v8048
        %v10261 = vand.u32 2147483647, %v8048
        %vm10262 = vcmp.lt.f32.partialorder %v10261, 0.0004427343
        %v10263 = vsel %vm10262, %v10260, %v10257
        %v10264 = vadd.f32 %v8050, 1.0
        %v10265 = vlog2.pop %v10264
        %v10266 = vmul.f32 %v10265, 0.6931472
        %v10267 = vmul.f32 -0.5, %v8050
        %v10268 = vadd.f32 %v10267, 1.0
        %v10269 = vmul.f32 %v10268, %v8050
        %v10270 = vand.u32 2147483647, %v8050
        %vm10271 = vcmp.lt.f32.partialorder %v10270, 0.0004427343
        %v10272 = vsel %vm10271, %v10269, %v10266
        %v10273 = vadd.f32 %v8052, 1.0
        %v10274 = vlog2.pop %v10273
        %v10275 = vmul.f32 %v10274, 0.6931472
        %v10276 = vmul.f32 -0.5, %v8052
        %v10277 = vadd.f32 %v10276, 1.0
        %v10278 = vmul.f32 %v10277, %v8052
        %v10279 = vand.u32 2147483647, %v8052
        %vm10280 = vcmp.lt.f32.partialorder %v10279, 0.0004427343
        %v10281 = vsel %vm10280, %v10278, %v10275
        %v10282 = vadd.f32 %v8054, 1.0
        %v10283 = vlog2.pop %v10282
        %v10284 = vmul.f32 %v10283, 0.6931472
        %v10285 = vmul.f32 -0.5, %v8054
        %v10286 = vadd.f32 %v10285, 1.0
        %v10287 = vmul.f32 %v10286, %v8054
        %v10288 = vand.u32 2147483647, %v8054
        %vm10289 = vcmp.lt.f32.partialorder %v10288, 0.0004427343
        %v10290 = vsel %vm10289, %v10287, %v10284
        %v10291 = vadd.f32 %v8056, 1.0
        %v10292 = vlog2.pop %v10291
        %v10293 = vmul.f32 %v10292, 0.6931472
        %v10294 = vmul.f32 -0.5, %v8056
        %v10295 = vadd.f32 %v10294, 1.0
        %v10296 = vmul.f32 %v10295, %v8056
        %v10297 = vand.u32 2147483647, %v8056
        %vm10298 = vcmp.lt.f32.partialorder %v10297, 0.0004427343
        %v10299 = vsel %vm10298, %v10296, %v10293
        %v10300 = vadd.f32 %v8058, 1.0
        %v10301 = vlog2.pop %v10300
        %v10302 = vmul.f32 %v10301, 0.6931472
        %v10303 = vmul.f32 -0.5, %v8058
        %v10304 = vadd.f32 %v10303, 1.0
        %v10305 = vmul.f32 %v10304, %v8058
        %v10306 = vand.u32 2147483647, %v8058
        %vm10307 = vcmp.lt.f32.partialorder %v10306, 0.0004427343
        %v10308 = vsel %vm10307, %v10305, %v10302
        %v10309 = vadd.f32 %v8060, 1.0
        %v10310 = vlog2.pop %v10309
        %v10311 = vmul.f32 %v10310, 0.6931472
        %v10312 = vmul.f32 -0.5, %v8060
        %v10313 = vadd.f32 %v10312, 1.0
        %v10314 = vmul.f32 %v10313, %v8060
        %v10315 = vand.u32 2147483647, %v8060
        %vm10316 = vcmp.lt.f32.partialorder %v10315, 0.0004427343
        %v10317 = vsel %vm10316, %v10314, %v10311
        %v10318 = vadd.f32 %v8062, 1.0
        %v10319 = vlog2.pop %v10318
        %v10320 = vmul.f32 %v10319, 0.6931472
        %v10321 = vmul.f32 -0.5, %v8062
        %v10322 = vadd.f32 %v10321, 1.0
        %v10323 = vmul.f32 %v10322, %v8062
        %v10324 = vand.u32 2147483647, %v8062
        %vm10325 = vcmp.lt.f32.partialorder %v10324, 0.0004427343
        %v10326 = vsel %vm10325, %v10323, %v10320
        %v10327 = vadd.f32 %v8064, 1.0
        %v10328 = vlog2.pop %v10327
        %v10329 = vmul.f32 %v10328, 0.6931472
        %v10330 = vmul.f32 -0.5, %v8064
        %v10331 = vadd.f32 %v10330, 1.0
        %v10332 = vmul.f32 %v10331, %v8064
        %v10333 = vand.u32 2147483647, %v8064
        %vm10334 = vcmp.lt.f32.partialorder %v10333, 0.0004427343
        %v10335 = vsel %vm10334, %v10332, %v10329
        %v10336 = vadd.f32 %v8066, 1.0
        %v10337 = vlog2.pop %v10336
        %v10338 = vmul.f32 %v10337, 0.6931472
        %v10339 = vmul.f32 -0.5, %v8066
        %v10340 = vadd.f32 %v10339, 1.0
        %v10341 = vmul.f32 %v10340, %v8066
        %v10342 = vand.u32 2147483647, %v8066
        %vm10343 = vcmp.lt.f32.partialorder %v10342, 0.0004427343
        %v10344 = vsel %vm10343, %v10341, %v10338
        %v10345 = vadd.f32 %v8068, 1.0
        %v10346 = vlog2.pop %v10345
        %v10347 = vmul.f32 %v10346, 0.6931472
        %v10348 = vmul.f32 -0.5, %v8068
        %v10349 = vadd.f32 %v10348, 1.0
        %v10350 = vmul.f32 %v10349, %v8068
        %v10351 = vand.u32 2147483647, %v8068
        %vm10352 = vcmp.lt.f32.partialorder %v10351, 0.0004427343
        %v10353 = vsel %vm10352, %v10350, %v10347
        %v10354 = vadd.f32 %v8070, 1.0
        %v10355 = vlog2.pop %v10354
        %v10356 = vmul.f32 %v10355, 0.6931472
        %v10357 = vmul.f32 -0.5, %v8070
        %v10358 = vadd.f32 %v10357, 1.0
        %v10359 = vmul.f32 %v10358, %v8070
        %v10360 = vand.u32 2147483647, %v8070
        %vm10361 = vcmp.lt.f32.partialorder %v10360, 0.0004427343
        %v10362 = vsel %vm10361, %v10359, %v10356
        %v10363 = vadd.f32 %v8072, 1.0
        %v10364 = vlog2.pop %v10363
        %v10365 = vmul.f32 %v10364, 0.6931472
        %v10366 = vmul.f32 -0.5, %v8072
        %v10367 = vadd.f32 %v10366, 1.0
        %v10368 = vmul.f32 %v10367, %v8072
        %v10369 = vand.u32 2147483647, %v8072
        %vm10370 = vcmp.lt.f32.partialorder %v10369, 0.0004427343
        %v10371 = vsel %vm10370, %v10368, %v10365
        %v10372 = vadd.f32 %v8074, 1.0
        %v10373 = vlog2.pop %v10372
        %v10374 = vmul.f32 %v10373, 0.6931472
        %v10375 = vmul.f32 -0.5, %v8074
        %v10376 = vadd.f32 %v10375, 1.0
        %v10377 = vmul.f32 %v10376, %v8074
        %v10378 = vand.u32 2147483647, %v8074
        %vm10379 = vcmp.lt.f32.partialorder %v10378, 0.0004427343
        %v10380 = vsel %vm10379, %v10377, %v10374
        %v10381 = vadd.f32 %v8076, 1.0
        %v10382 = vlog2.pop %v10381
        %v10383 = vmul.f32 %v10382, 0.6931472
        %v10384 = vmul.f32 -0.5, %v8076
        %v10385 = vadd.f32 %v10384, 1.0
        %v10386 = vmul.f32 %v10385, %v8076
        %v10387 = vand.u32 2147483647, %v8076
        %vm10388 = vcmp.lt.f32.partialorder %v10387, 0.0004427343
        %v10389 = vsel %vm10388, %v10386, %v10383
        %v10390 = vadd.f32 %v8078, 1.0
        %v10391 = vlog2.pop %v10390
        %v10392 = vmul.f32 %v10391, 0.6931472
        %v10393 = vmul.f32 -0.5, %v8078
        %v10394 = vadd.f32 %v10393, 1.0
        %v10395 = vmul.f32 %v10394, %v8078
        %v10396 = vand.u32 2147483647, %v8078
        %vm10397 = vcmp.lt.f32.partialorder %v10396, 0.0004427343
        %v10398 = vsel %vm10397, %v10395, %v10392
        %v10399 = vadd.f32 %v8080, 1.0
        %v10400 = vlog2.pop %v10399
        %v10401 = vmul.f32 %v10400, 0.6931472
        %v10402 = vmul.f32 -0.5, %v8080
        %v10403 = vadd.f32 %v10402, 1.0
        %v10404 = vmul.f32 %v10403, %v8080
        %v10405 = vand.u32 2147483647, %v8080
        %vm10406 = vcmp.lt.f32.partialorder %v10405, 0.0004427343
        %v10407 = vsel %vm10406, %v10404, %v10401
        %v10408 = vadd.f32 %v8082, 1.0
        %v10409 = vlog2.pop %v10408
        %v10410 = vmul.f32 %v10409, 0.6931472
        %v10411 = vmul.f32 -0.5, %v8082
        %v10412 = vadd.f32 %v10411, 1.0
        %v10413 = vmul.f32 %v10412, %v8082
        %v10414 = vand.u32 2147483647, %v8082
        %vm10415 = vcmp.lt.f32.partialorder %v10414, 0.0004427343
        %v10416 = vsel %vm10415, %v10413, %v10410
        %v10417 = vadd.f32 %v8084, 1.0
        %v10418 = vlog2.pop %v10417
        %v10419 = vmul.f32 %v10418, 0.6931472
        %v10420 = vmul.f32 -0.5, %v8084
        %v10421 = vadd.f32 %v10420, 1.0
        %v10422 = vmul.f32 %v10421, %v8084
        %v10423 = vand.u32 2147483647, %v8084
        %vm10424 = vcmp.lt.f32.partialorder %v10423, 0.0004427343
        %v10425 = vsel %vm10424, %v10422, %v10419
        %v10426 = vadd.f32 %v8086, 1.0
        %v10427 = vlog2.pop %v10426
        %v10428 = vmul.f32 %v10427, 0.6931472
        %v10429 = vmul.f32 -0.5, %v8086
        %v10430 = vadd.f32 %v10429, 1.0
        %v10431 = vmul.f32 %v10430, %v8086
        %v10432 = vand.u32 2147483647, %v8086
        %vm10433 = vcmp.lt.f32.partialorder %v10432, 0.0004427343
        %v10434 = vsel %vm10433, %v10431, %v10428
        %v10435 = vadd.f32 %v8088, 1.0
        %v10436 = vlog2.pop %v10435
        %v10437 = vmul.f32 %v10436, 0.6931472
        %v10438 = vmul.f32 -0.5, %v8088
        %v10439 = vadd.f32 %v10438, 1.0
        %v10440 = vmul.f32 %v10439, %v8088
        %v10441 = vand.u32 2147483647, %v8088
        %vm10442 = vcmp.lt.f32.partialorder %v10441, 0.0004427343
        %v10443 = vsel %vm10442, %v10440, %v10437
        %v10444 = vadd.f32 %v8090, 1.0
        %v10445 = vlog2.pop %v10444
        %v10446 = vmul.f32 %v10445, 0.6931472
        %v10447 = vmul.f32 -0.5, %v8090
        %v10448 = vadd.f32 %v10447, 1.0
        %v10449 = vmul.f32 %v10448, %v8090
        %v10450 = vand.u32 2147483647, %v8090
        %vm10451 = vcmp.lt.f32.partialorder %v10450, 0.0004427343
        %v10452 = vsel %vm10451, %v10449, %v10446
        %v10453 = vadd.f32 %v8092, 1.0
        %v10454 = vlog2.pop %v10453
        %v10455 = vmul.f32 %v10454, 0.6931472
        %v10456 = vmul.f32 -0.5, %v8092
        %v10457 = vadd.f32 %v10456, 1.0
        %v10458 = vmul.f32 %v10457, %v8092
        %v10459 = vand.u32 2147483647, %v8092
        %vm10460 = vcmp.lt.f32.partialorder %v10459, 0.0004427343
        %v10461 = vsel %vm10460, %v10458, %v10455
        %v10462 = vadd.f32 %v8094, 1.0
        %v10463 = vlog2.pop %v10462
        %v10464 = vmul.f32 %v10463, 0.6931472
        %v10465 = vmul.f32 -0.5, %v8094
        %v10466 = vadd.f32 %v10465, 1.0
        %v10467 = vmul.f32 %v10466, %v8094
        %v10468 = vand.u32 2147483647, %v8094
        %vm10469 = vcmp.lt.f32.partialorder %v10468, 0.0004427343
        %v10470 = vsel %vm10469, %v10467, %v10464
        %v10471 = vadd.f32 %v8096, 1.0
        %v10472 = vlog2.pop %v10471
        %v10473 = vmul.f32 %v10472, 0.6931472
        %v10474 = vmul.f32 -0.5, %v8096
        %v10475 = vadd.f32 %v10474, 1.0
        %v10476 = vmul.f32 %v10475, %v8096
        %v10477 = vand.u32 2147483647, %v8096
        %vm10478 = vcmp.lt.f32.partialorder %v10477, 0.0004427343
        %v10479 = vsel %vm10478, %v10476, %v10473
        %v10480 = vadd.f32 %v8098, 1.0
        %v10481 = vlog2.pop %v10480
        %v10482 = vmul.f32 %v10481, 0.6931472
        %v10483 = vmul.f32 -0.5, %v8098
        %v10484 = vadd.f32 %v10483, 1.0
        %v10485 = vmul.f32 %v10484, %v8098
        %v10486 = vand.u32 2147483647, %v8098
        %vm10487 = vcmp.lt.f32.partialorder %v10486, 0.0004427343
        %v10488 = vsel %vm10487, %v10485, %v10482
        %v10489 = vadd.f32 %v8100, 1.0
        %v10490 = vlog2.pop %v10489
        %v10491 = vmul.f32 %v10490, 0.6931472
        %v10492 = vmul.f32 -0.5, %v8100
        %v10493 = vadd.f32 %v10492, 1.0
        %v10494 = vmul.f32 %v10493, %v8100
        %v10495 = vand.u32 2147483647, %v8100
        %vm10496 = vcmp.lt.f32.partialorder %v10495, 0.0004427343
        %v10497 = vsel %vm10496, %v10494, %v10491
        %v10498 = vadd.f32 %v8102, 1.0
        %v10499 = vlog2.pop %v10498
        %v10500 = vmul.f32 %v10499, 0.6931472
        %v10501 = vmul.f32 -0.5, %v8102
        %v10502 = vadd.f32 %v10501, 1.0
        %v10503 = vmul.f32 %v10502, %v8102
        %v10504 = vand.u32 2147483647, %v8102
        %vm10505 = vcmp.lt.f32.partialorder %v10504, 0.0004427343
        %v10506 = vsel %vm10505, %v10503, %v10500
        %v10507 = vadd.f32 %v8104, 1.0
        %v10508 = vlog2.pop %v10507
        %v10509 = vmul.f32 %v10508, 0.6931472
        %v10510 = vmul.f32 -0.5, %v8104
        %v10511 = vadd.f32 %v10510, 1.0
        %v10512 = vmul.f32 %v10511, %v8104
        %v10513 = vand.u32 2147483647, %v8104
        %vm10514 = vcmp.lt.f32.partialorder %v10513, 0.0004427343
        %v10515 = vsel %vm10514, %v10512, %v10509
        %v10516 = vadd.f32 %v8106, 1.0
        %v10517 = vlog2.pop %v10516
        %v10518 = vmul.f32 %v10517, 0.6931472
        %v10519 = vmul.f32 -0.5, %v8106
        %v10520 = vadd.f32 %v10519, 1.0
        %v10521 = vmul.f32 %v10520, %v8106
        %v10522 = vand.u32 2147483647, %v8106
        %vm10523 = vcmp.lt.f32.partialorder %v10522, 0.0004427343
        %v10524 = vsel %vm10523, %v10521, %v10518
        %v10525 = vadd.f32 %v8108, 1.0
        %v10526 = vlog2.pop %v10525
        %v10527 = vmul.f32 %v10526, 0.6931472
        %v10528 = vmul.f32 -0.5, %v8108
        %v10529 = vadd.f32 %v10528, 1.0
        %v10530 = vmul.f32 %v10529, %v8108
        %v10531 = vand.u32 2147483647, %v8108
        %vm10532 = vcmp.lt.f32.partialorder %v10531, 0.0004427343
        %v10533 = vsel %vm10532, %v10530, %v10527
        %v10534 = vadd.f32 %v8110, 1.0
        %v10535 = vlog2.pop %v10534
        %v10536 = vmul.f32 %v10535, 0.6931472
        %v10537 = vmul.f32 -0.5, %v8110
        %v10538 = vadd.f32 %v10537, 1.0
        %v10539 = vmul.f32 %v10538, %v8110
        %v10540 = vand.u32 2147483647, %v8110
        %vm10541 = vcmp.lt.f32.partialorder %v10540, 0.0004427343
        %v10542 = vsel %vm10541, %v10539, %v10536
        %v10543 = vadd.f32 %v9263, %v9399
        %v10544 = vadd.f32 %v9264, %v9408
        %v10545 = vadd.f32 %v9265, %v9417
        %v10546 = vadd.f32 %v9266, %v9426
        %v10547 = vadd.f32 %v9267, %v9435
        %v10548 = vadd.f32 %v9268, %v9444
        %v10549 = vadd.f32 %v9269, %v9453
        %v10550 = vadd.f32 %v9270, %v9462
        %v10551 = vadd.f32 %v9271, %v9471
        %v10552 = vadd.f32 %v9272, %v9480
        %v10553 = vadd.f32 %v9273, %v9489
        %v10554 = vadd.f32 %v9274, %v9498
        %v10555 = vadd.f32 %v9275, %v9507
        %v10556 = vadd.f32 %v9276, %v9516
        %v10557 = vadd.f32 %v9277, %v9525
        %v10558 = vadd.f32 %v9278, %v9534
        %v10559 = vadd.f32 %v9279, %v9543
        %v10560 = vadd.f32 %v9280, %v9552
        %v10561 = vadd.f32 %v9281, %v9561
        %v10562 = vadd.f32 %v9282, %v9570
        %v10563 = vadd.f32 %v9283, %v9579
        %v10564 = vadd.f32 %v9284, %v9588
        %v10565 = vadd.f32 %v9285, %v9597
        %v10566 = vadd.f32 %v9286, %v9606
        %v10567 = vadd.f32 %v9287, %v9615
        %v10568 = vadd.f32 %v9288, %v9624
        %v10569 = vadd.f32 %v9289, %v9633
        %v10570 = vadd.f32 %v9290, %v9642
        %v10571 = vadd.f32 %v9291, %v9651
        %v10572 = vadd.f32 %v9292, %v9660
        %v10573 = vadd.f32 %v9293, %v9669
        %v10574 = vadd.f32 %v9294, %v9678
        %v10575 = vadd.f32 %v9295, %v9687
        %v10576 = vadd.f32 %v9296, %v9696
        %v10577 = vadd.f32 %v9297, %v9705
        %v10578 = vadd.f32 %v9298, %v9714
        %v10579 = vadd.f32 %v9299, %v9723
        %v10580 = vadd.f32 %v9300, %v9732
        %v10581 = vadd.f32 %v9301, %v9741
        %v10582 = vadd.f32 %v9302, %v9750
        %v10583 = vadd.f32 %v9303, %v9759
        %v10584 = vadd.f32 %v9304, %v9768
        %v10585 = vadd.f32 %v9305, %v9777
        %v10586 = vadd.f32 %v9306, %v9786
        %v10587 = vadd.f32 %v9307, %v9795
        %v10588 = vadd.f32 %v9308, %v9804
        %v10589 = vadd.f32 %v9309, %v9813
        %v10590 = vadd.f32 %v9310, %v9822
        %v10591 = vadd.f32 %v9311, %v9831
        %v10592 = vadd.f32 %v9312, %v9840
        %v10593 = vadd.f32 %v9313, %v9849
        %v10594 = vadd.f32 %v9314, %v9858
        %v10595 = vadd.f32 %v9315, %v9867
        %v10596 = vadd.f32 %v9316, %v9876
        %v10597 = vadd.f32 %v9317, %v9885
        %v10598 = vadd.f32 %v9318, %v9894
        %v10599 = vadd.f32 %v9319, %v9903
        %v10600 = vadd.f32 %v9320, %v9912
        %v10601 = vadd.f32 %v9321, %v9921
        %v10602 = vadd.f32 %v9322, %v9930
        %v10603 = vadd.f32 %v9323, %v9939
        %v10604 = vadd.f32 %v9324, %v9948
        %v10605 = vadd.f32 %v9325, %v9957
        %v10606 = vadd.f32 %v9326, %v9966
        %v10607 = vadd.f32 %v9327, %v9975
        %v10608 = vadd.f32 %v9328, %v9984
        %v10609 = vadd.f32 %v9329, %v9993
        %v10610 = vadd.f32 %v9330, %v10002
        %v10611 = vadd.f32 %v9331, %v10011
        %v10612 = vadd.f32 %v9332, %v10020
        %v10613 = vadd.f32 %v9333, %v10029
        %v10614 = vadd.f32 %v9334, %v10038
        %v10615 = vadd.f32 %v9335, %v10047
        %v10616 = vadd.f32 %v9336, %v10056
        %v10617 = vadd.f32 %v9337, %v10065
        %v10618 = vadd.f32 %v9338, %v10074
        %v10619 = vadd.f32 %v9339, %v10083
        %v10620 = vadd.f32 %v9340, %v10092
        %v10621 = vadd.f32 %v9341, %v10101
        %v10622 = vadd.f32 %v9342, %v10110
        %v10623 = vadd.f32 %v9343, %v10119
        %v10624 = vadd.f32 %v9344, %v10128
        %v10625 = vadd.f32 %v9345, %v10137
        %v10626 = vadd.f32 %v9346, %v10146
        %v10627 = vadd.f32 %v9347, %v10155
        %v10628 = vadd.f32 %v9348, %v10164
        %v10629 = vadd.f32 %v9349, %v10173
        %v10630 = vadd.f32 %v9350, %v10182
        %v10631 = vadd.f32 %v9351, %v10191
        %v10632 = vadd.f32 %v9352, %v10200
        %v10633 = vadd.f32 %v9353, %v10209
        %v10634 = vadd.f32 %v9354, %v10218
        %v10635 = vadd.f32 %v9355, %v10227
        %v10636 = vadd.f32 %v9356, %v10236
        %v10637 = vadd.f32 %v9357, %v10245
        %v10638 = vadd.f32 %v9358, %v10254
        %v10639 = vadd.f32 %v9359, %v10263
        %v10640 = vadd.f32 %v9360, %v10272
        %v10641 = vadd.f32 %v9361, %v10281
        %v10642 = vadd.f32 %v9362, %v10290
        %v10643 = vadd.f32 %v9363, %v10299
        %v10644 = vadd.f32 %v9364, %v10308
        %v10645 = vadd.f32 %v9365, %v10317
        %v10646 = vadd.f32 %v9366, %v10326
        %v10647 = vadd.f32 %v9367, %v10335
        %v10648 = vadd.f32 %v9368, %v10344
        %v10649 = vadd.f32 %v9369, %v10353
        %v10650 = vadd.f32 %v9370, %v10362
        %v10651 = vadd.f32 %v9371, %v10371
        %v10652 = vadd.f32 %v9372, %v10380
        %v10653 = vadd.f32 %v9373, %v10389
        %v10654 = vadd.f32 %v9374, %v10398
        %v10655 = vadd.f32 %v9375, %v10407
        %v10656 = vadd.f32 %v9376, %v10416
        %v10657 = vadd.f32 %v9377, %v10425
        %v10658 = vadd.f32 %v9378, %v10434
        %v10659 = vadd.f32 %v9379, %v10443
        %v10660 = vadd.f32 %v9380, %v10452
        %v10661 = vadd.f32 %v9381, %v10461
        %v10662 = vadd.f32 %v9382, %v10470
        %v10663 = vadd.f32 %v9383, %v10479
        %v10664 = vadd.f32 %v9384, %v10488
        %v10665 = vadd.f32 %v9385, %v10497
        %v10666 = vadd.f32 %v9386, %v10506
        %v10667 = vadd.f32 %v9387, %v10515
        %v10668 = vadd.f32 %v9388, %v10524
        %v10669 = vadd.f32 %v9389, %v10533
        %v10670 = vadd.f32 %v9390, %v10542
        %10671 = vst [vmem:[%s918] sm:$0xff] %v10543
        %10672 = vst [vmem:[%s918 + $0x8] sm:$0xff] %v10544
        %10673 = vst [vmem:[%s918 + $0x10] sm:$0xff] %v10545
        %10674 = vst [vmem:[%s918 + $0x18] sm:$0xff] %v10546
        %10675 = vst [vmem:[%s918 + $0x20] sm:$0xff] %v10547
        %10676 = vst [vmem:[%s918 + $0x28] sm:$0xff] %v10548
        %10677 = vst [vmem:[%s918 + $0x30] sm:$0xff] %v10549
        %10678 = vst [vmem:[%s918 + $0x38] sm:$0xff] %v10550
        %10679 = vst [vmem:[%s918 + $0x40] sm:$0xff] %v10551
        %10680 = vst [vmem:[%s918 + $0x48] sm:$0xff] %v10552
        %10681 = vst [vmem:[%s918 + $0x50] sm:$0xff] %v10553
        %10682 = vst [vmem:[%s918 + $0x58] sm:$0xff] %v10554
        %10683 = vst [vmem:[%s918 + $0x60] sm:$0xff] %v10555
        %10684 = vst [vmem:[%s918 + $0x68] sm:$0xff] %v10556
        %10685 = vst [vmem:[%s918 + $0x70] sm:$0xff] %v10557
        %10686 = vst [vmem:[%s918 + $0x78] sm:$0xff] %v10558
        %10687 = vst [vmem:[%s918 + $0x80] sm:$0xff] %v10559
        %10688 = vst [vmem:[%s918 + $0x88] sm:$0xff] %v10560
        %10689 = vst [vmem:[%s918 + $0x90] sm:$0xff] %v10561
        %10690 = vst [vmem:[%s918 + $0x98] sm:$0xff] %v10562
        %10691 = vst [vmem:[%s918 + $0xa0] sm:$0xff] %v10563
        %10692 = vst [vmem:[%s918 + $0xa8] sm:$0xff] %v10564
        %10693 = vst [vmem:[%s918 + $0xb0] sm:$0xff] %v10565
        %10694 = vst [vmem:[%s918 + $0xb8] sm:$0xff] %v10566
        %10695 = vst [vmem:[%s918 + $0xc0] sm:$0xff] %v10567
        %10696 = vst [vmem:[%s918 + $0xc8] sm:$0xff] %v10568
        %10697 = vst [vmem:[%s918 + $0xd0] sm:$0xff] %v10569
        %10698 = vst [vmem:[%s918 + $0xd8] sm:$0xff] %v10570
        %10699 = vst [vmem:[%s918 + $0xe0] sm:$0xff] %v10571
        %10700 = vst [vmem:[%s918 + $0xe8] sm:$0xff] %v10572
        %10701 = vst [vmem:[%s918 + $0xf0] sm:$0xff] %v10573
        %10702 = vst [vmem:[%s918 + $0xf8] sm:$0xff] %v10574
        %10703 = vst [vmem:[%s918 + $0x100] sm:$0xff] %v10575
        %10704 = vst [vmem:[%s918 + $0x108] sm:$0xff] %v10576
        %10705 = vst [vmem:[%s918 + $0x110] sm:$0xff] %v10577
        %10706 = vst [vmem:[%s918 + $0x118] sm:$0xff] %v10578
        %10707 = vst [vmem:[%s918 + $0x120] sm:$0xff] %v10579
        %10708 = vst [vmem:[%s918 + $0x128] sm:$0xff] %v10580
        %10709 = vst [vmem:[%s918 + $0x130] sm:$0xff] %v10581
        %10710 = vst [vmem:[%s918 + $0x138] sm:$0xff] %v10582
        %10711 = vst [vmem:[%s918 + $0x140] sm:$0xff] %v10583
        %10712 = vst [vmem:[%s918 + $0x148] sm:$0xff] %v10584
        %10713 = vst [vmem:[%s918 + $0x150] sm:$0xff] %v10585
        %10714 = vst [vmem:[%s918 + $0x158] sm:$0xff] %v10586
        %10715 = vst [vmem:[%s918 + $0x160] sm:$0xff] %v10587
        %10716 = vst [vmem:[%s918 + $0x168] sm:$0xff] %v10588
        %10717 = vst [vmem:[%s918 + $0x170] sm:$0xff] %v10589
        %10718 = vst [vmem:[%s918 + $0x178] sm:$0xff] %v10590
        %10719 = vst [vmem:[%s918 + $0x180] sm:$0xff] %v10591
        %10720 = vst [vmem:[%s918 + $0x188] sm:$0xff] %v10592
        %10721 = vst [vmem:[%s918 + $0x190] sm:$0xff] %v10593
        %10722 = vst [vmem:[%s918 + $0x198] sm:$0xff] %v10594
        %10723 = vst [vmem:[%s918 + $0x1a0] sm:$0xff] %v10595
        %10724 = vst [vmem:[%s918 + $0x1a8] sm:$0xff] %v10596
        %10725 = vst [vmem:[%s918 + $0x1b0] sm:$0xff] %v10597
        %10726 = vst [vmem:[%s918 + $0x1b8] sm:$0xff] %v10598
        %10727 = vst [vmem:[%s918 + $0x1c0] sm:$0xff] %v10599
        %10728 = vst [vmem:[%s918 + $0x1c8] sm:$0xff] %v10600
        %10729 = vst [vmem:[%s918 + $0x1d0] sm:$0xff] %v10601
        %10730 = vst [vmem:[%s918 + $0x1d8] sm:$0xff] %v10602
        %10731 = vst [vmem:[%s918 + $0x1e0] sm:$0xff] %v10603
        %10732 = vst [vmem:[%s918 + $0x1e8] sm:$0xff] %v10604
        %10733 = vst [vmem:[%s918 + $0x1f0] sm:$0xff] %v10605
        %10734 = vst [vmem:[%s918 + $0x1f8] sm:$0xff] %v10606
        %10735 = vst [vmem:[%s918 + $0x200] sm:$0xff] %v10607
        %10736 = vst [vmem:[%s918 + $0x208] sm:$0xff] %v10608
        %10737 = vst [vmem:[%s918 + $0x210] sm:$0xff] %v10609
        %10738 = vst [vmem:[%s918 + $0x218] sm:$0xff] %v10610
        %10739 = vst [vmem:[%s918 + $0x220] sm:$0xff] %v10611
        %10740 = vst [vmem:[%s918 + $0x228] sm:$0xff] %v10612
        %10741 = vst [vmem:[%s918 + $0x230] sm:$0xff] %v10613
        %10742 = vst [vmem:[%s918 + $0x238] sm:$0xff] %v10614
        %10743 = vst [vmem:[%s918 + $0x240] sm:$0xff] %v10615
        %10744 = vst [vmem:[%s918 + $0x248] sm:$0xff] %v10616
        %10745 = vst [vmem:[%s918 + $0x250] sm:$0xff] %v10617
        %10746 = vst [vmem:[%s918 + $0x258] sm:$0xff] %v10618
        %10747 = vst [vmem:[%s918 + $0x260] sm:$0xff] %v10619
        %10748 = vst [vmem:[%s918 + $0x268] sm:$0xff] %v10620
        %10749 = vst [vmem:[%s918 + $0x270] sm:$0xff] %v10621
        %10750 = vst [vmem:[%s918 + $0x278] sm:$0xff] %v10622
        %10751 = vst [vmem:[%s918 + $0x280] sm:$0xff] %v10623
        %10752 = vst [vmem:[%s918 + $0x288] sm:$0xff] %v10624
        %10753 = vst [vmem:[%s918 + $0x290] sm:$0xff] %v10625
        %10754 = vst [vmem:[%s918 + $0x298] sm:$0xff] %v10626
        %10755 = vst [vmem:[%s918 + $0x2a0] sm:$0xff] %v10627
        %10756 = vst [vmem:[%s918 + $0x2a8] sm:$0xff] %v10628
        %10757 = vst [vmem:[%s918 + $0x2b0] sm:$0xff] %v10629
        %10758 = vst [vmem:[%s918 + $0x2b8] sm:$0xff] %v10630
        %10759 = vst [vmem:[%s918 + $0x2c0] sm:$0xff] %v10631
        %10760 = vst [vmem:[%s918 + $0x2c8] sm:$0xff] %v10632
        %10761 = vst [vmem:[%s918 + $0x2d0] sm:$0xff] %v10633
        %10762 = vst [vmem:[%s918 + $0x2d8] sm:$0xff] %v10634
        %10763 = vst [vmem:[%s918 + $0x2e0] sm:$0xff] %v10635
        %10764 = vst [vmem:[%s918 + $0x2e8] sm:$0xff] %v10636
        %10765 = vst [vmem:[%s918 + $0x2f0] sm:$0xff] %v10637
        %10766 = vst [vmem:[%s918 + $0x2f8] sm:$0xff] %v10638
        %10767 = vst [vmem:[%s918 + $0x300] sm:$0xff] %v10639
        %10768 = vst [vmem:[%s918 + $0x308] sm:$0xff] %v10640
        %10769 = vst [vmem:[%s918 + $0x310] sm:$0xff] %v10641
        %10770 = vst [vmem:[%s918 + $0x318] sm:$0xff] %v10642
        %10771 = vst [vmem:[%s918 + $0x320] sm:$0xff] %v10643
        %10772 = vst [vmem:[%s918 + $0x328] sm:$0xff] %v10644
        %10773 = vst [vmem:[%s918 + $0x330] sm:$0xff] %v10645
        %10774 = vst [vmem:[%s918 + $0x338] sm:$0xff] %v10646
        %10775 = vst [vmem:[%s918 + $0x340] sm:$0xff] %v10647
        %10776 = vst [vmem:[%s918 + $0x348] sm:$0xff] %v10648
        %10777 = vst [vmem:[%s918 + $0x350] sm:$0xff] %v10649
        %10778 = vst [vmem:[%s918 + $0x358] sm:$0xff] %v10650
        %10779 = vst [vmem:[%s918 + $0x360] sm:$0xff] %v10651
        %10780 = vst [vmem:[%s918 + $0x368] sm:$0xff] %v10652
        %10781 = vst [vmem:[%s918 + $0x370] sm:$0xff] %v10653
        %10782 = vst [vmem:[%s918 + $0x378] sm:$0xff] %v10654
        %10783 = vst [vmem:[%s918 + $0x380] sm:$0xff] %v10655
        %10784 = vst [vmem:[%s918 + $0x388] sm:$0xff] %v10656
        %10785 = vst [vmem:[%s918 + $0x390] sm:$0xff] %v10657
        %10786 = vst [vmem:[%s918 + $0x398] sm:$0xff] %v10658
        %10787 = vst [vmem:[%s918 + $0x3a0] sm:$0xff] %v10659
        %10788 = vst [vmem:[%s918 + $0x3a8] sm:$0xff] %v10660
        %10789 = vst [vmem:[%s918 + $0x3b0] sm:$0xff] %v10661
        %10790 = vst [vmem:[%s918 + $0x3b8] sm:$0xff] %v10662
        %10791 = vst [vmem:[%s918 + $0x3c0] sm:$0xff] %v10663
        %10792 = vst [vmem:[%s918 + $0x3c8] sm:$0xff] %v10664
        %10793 = vst [vmem:[%s918 + $0x3d0] sm:$0xff] %v10665
        %10794 = vst [vmem:[%s918 + $0x3d8] sm:$0xff] %v10666
        %10795 = vst [vmem:[%s918 + $0x3e0] sm:$0xff] %v10667
        %10796 = vst [vmem:[%s918 + $0x3e8] sm:$0xff] %v10668
        %10797 = vst [vmem:[%s918 + $0x3f0] sm:$0xff] %v10669
        %10798 = vst [vmem:[%s918 + $0x3f8] sm:$0xff] %v10670
        %s10799 = sand.u32 %s390, 1
        %s10800 = scalar_lea.sflag [#allocation4], %s10799
        %s10801 = sand.u32 %s390, 1
        %s10802 = smul.addr %s10801, 128
        %s10803 = scalar_lea.vmem [#allocation19], %s10802
        %s10804 = sand.u32 %s52, 1
        %s10805 = scalar_lea.sflag [#allocation21], %s10804
        %s10806 = sand.u32 %s416, 1
        %s10807 = smul.addr %s10806, 128
        %s10808 = scalar_lea.vmem [#allocation20], %s10807
        %s10809 = sand.u32 %s52, 1
        %s10810 = scalar_lea.sflag [#allocation21], %s10809
        %s10811 = sand.u32 %s442, 1
        %s10812 = smul.addr %s10811, 128
        %s10813 = scalar_lea.vmem [#allocation22], %s10812
        %s10814 = smul.u32 16, %s52
        %p10815 = scmp.lt.s32.totalorder %s10814, 31
        %s10816 = scalar_select %p10815, %s10814, 31
        %s10817 = smul.addr %s10816, 8
        %s10818 = smul.addr %s10817, 8
        %s10819 = scalar_lea.vmem %s18, %s10818
        %s10820 = sand.u32 %s52, 1
        %s10821 = scalar_lea.sflag [#allocation24], %s10820
        %s10822 = sand.u32 %s494, 1
        %s10823 = smul.addr %s10822, 128
        %s10824 = scalar_lea.vmem [#allocation23], %s10823
        %s10825 = sand.u32 %s52, 1
        %s10826 = scalar_lea.sflag [#allocation24], %s10825
        %s10827 = sand.u32 %s520, 1
        %s10828 = smul.addr %s10827, 128
        %s10829 = scalar_lea.vmem [#allocation25], %s10828
        %s10830 = smul.u32 16, %s52
        %p10831 = scmp.lt.s32.totalorder %s10830, 31
        %s10832 = scalar_select %p10831, %s10830, 31
        %s10833 = smul.addr %s10832, 8
        %s10834 = smul.addr %s10833, 8
        %s10835 = scalar_lea.vmem %s21, %s10834
        // Predicated region
        $region121: #{tvae_forward.1} parent=79 // pred_check
          %p10836 = pneg %p400
        $region122: #{tvae_forward.1} parent=79 // pred_check_branch
          %10838 = sbr.rel (%p10836) target = $region124
        $region123: #{tvae_forward.1} parent=79 // pred_region
          %s10839 = smul.u32 16, %s52
          %s10841 = ssub.s32 2048, 2048
          %10842 = vsyncadd %s10800, %s10841
          %s10843 = smul.addr %s10839, 128
          %s10844 = scalar_lea.hbm %s15, %s10843
          %s10845 = sshll.u32 %s10803, 4
          %s10846 = int_to_ptr.vmem [resolvable:$true] %s10845
          %10851 = dma.vmem_to_hbm [thread:$0]  %s10846, 2048, %s10844, %s10800, 128, 128, 8
        $region124: #{tvae_forward.1} parent=79 // pred_fallthru
          _
        // Predicated region
        $region125: #{tvae_forward.1} parent=79 // pred_check
          %p10852 = pneg %p426
        $region126: #{tvae_forward.1} parent=79 // pred_check_branch
          %10854 = sbr.rel (%p10852) target = $region128
        $region127: #{tvae_forward.1} parent=79 // pred_region
          %s10855 = smul.u32 16, %s52
          %s10857 = ssub.s32 2048, 2048
          %10858 = vsyncadd %s10805, %s10857
          %s10859 = smul.addr %s10855, 128
          %s10860 = scalar_lea.hbm %s16, %s10859
          %s10861 = sshll.u32 %s10808, 4
          %s10862 = int_to_ptr.vmem [resolvable:$true] %s10861
          %10867 = dma.vmem_to_hbm [thread:$0]  %s10862, 2048, %s10860, %s10805, 128, 128, 8
        $region128: #{tvae_forward.1} parent=79 // pred_fallthru
          _
        // Predicated region
        $region129: #{tvae_forward.1} parent=79 // pred_check
          %p10868 = pneg %p452
        $region130: #{tvae_forward.1} parent=79 // pred_check_branch
          %10870 = sbr.rel (%p10868) target = $region132
        $region131: #{tvae_forward.1} parent=79 // pred_region
          %s10871 = smul.u32 16, %s52
          %s10873 = ssub.s32 2048, 2048
          %10874 = vsyncadd %s10810, %s10873
          %s10875 = smul.addr %s10871, 128
          %s10876 = scalar_lea.hbm %s17, %s10875
          %s10877 = sshll.u32 %s10813, 4
          %s10878 = int_to_ptr.vmem [resolvable:$true] %s10877
          %10883 = dma.vmem_to_hbm [thread:$0]  %s10878, 2048, %s10876, %s10810, 128, 128, 8
        $region132: #{tvae_forward.1} parent=79 // pred_fallthru
          _
        // Predicated region
        $region133: #{tvae_forward.1} parent=79 // pred_check
          %p10884 = pneg %p478
        $region134: #{tvae_forward.1} parent=79 // pred_check_branch
          %10886 = sbr.rel (%p10884) target = $region136
        $region135: #{tvae_forward.1} parent=79 // pred_region
          %s10887 = smul.u32 16, %s52
        $region136: #{tvae_forward.1} parent=79 // pred_fallthru
          _
        // Predicated region
        $region137: #{tvae_forward.1} parent=79 // pred_check
          %p10888 = pneg %p504
        $region138: #{tvae_forward.1} parent=79 // pred_check_branch
          %10890 = sbr.rel (%p10888) target = $region140
        $region139: #{tvae_forward.1} parent=79 // pred_region
          %s10891 = smul.u32 16, %s52
          %s10893 = ssub.s32 2048, 2048
          %10894 = vsyncadd %s10821, %s10893
          %s10895 = smul.addr %s10891, 128
          %s10896 = scalar_lea.hbm %s19, %s10895
          %s10897 = sshll.u32 %s10824, 4
          %s10898 = int_to_ptr.vmem [resolvable:$true] %s10897
          %10903 = dma.vmem_to_hbm [thread:$0]  %s10898, 2048, %s10896, %s10821, 128, 128, 8
        $region140: #{tvae_forward.1} parent=79 // pred_fallthru
          _
        // Predicated region
        $region141: #{tvae_forward.1} parent=79 // pred_check
          %p10904 = pneg %p530
        $region142: #{tvae_forward.1} parent=79 // pred_check_branch
          %10906 = sbr.rel (%p10904) target = $region144
        $region143: #{tvae_forward.1} parent=79 // pred_region
          %s10907 = smul.u32 16, %s52
          %s10909 = ssub.s32 2048, 2048
          %10910 = vsyncadd %s10826, %s10909
          %s10911 = smul.addr %s10907, 128
          %s10912 = scalar_lea.hbm %s20, %s10911
          %s10913 = sshll.u32 %s10829, 4
          %s10914 = int_to_ptr.vmem [resolvable:$true] %s10913
          %10919 = dma.vmem_to_hbm [thread:$0]  %s10914, 2048, %s10912, %s10826, 128, 128, 8
        $region144: #{tvae_forward.1} parent=79 // pred_fallthru
          _
        // Predicated region
        $region145: #{tvae_forward.1} parent=79 // pred_check
          %p10920 = pneg %p556
        $region146: #{tvae_forward.1} parent=79 // pred_check_branch
          %10922 = sbr.rel (%p10920) target = $region148
        $region147: #{tvae_forward.1} parent=79 // pred_region
          %s10923 = smul.u32 16, %s52
        $region148: #{tvae_forward.1} parent=79 // pred_fallthru
          _
      $region80: #{tvae_forward.1} parent=5 // pred_fallthru
        _
      %p10924 = scmp.le.s32.totalorder 2, %s47
      // Predicated region
      $region149: #{tvae_forward.1} parent=5 // pred_check
        %p10925 = pneg %p10924
      $region150: #{tvae_forward.1} parent=5 // pred_check_branch
        %10927 = sbr.rel (%p10925) target = $region152
      $region151: #{tvae_forward.1} parent=5 // pred_region
        %s10928 = ssub.s32 %s47, 2
        // Predicated region
        $region153: #{tvae_forward.1} parent=151 // pred_check
          %p10929 = pneg %p406
        $region154: #{tvae_forward.1} parent=151 // pred_check_branch
          %10931 = sbr.rel (%p10929) target = $region156
        $region155: #{tvae_forward.1} parent=151 // pred_region
          %s10932 = sand.u32 %s391, 1
          %s10933 = scalar_lea.sflag [#allocation4], %s10932
          %s10934 = sand.u32 %s391, 1
          %s10935 = smul.addr %s10934, 128
          %s10936 = scalar_lea.vmem [#allocation19], %s10935
          %10937 = dma.done %s10933, 2048
        $region156: #{tvae_forward.1} parent=151 // pred_fallthru
          _
        // Predicated region
        $region157: #{tvae_forward.1} parent=151 // pred_check
          %p10938 = pneg %p432
        $region158: #{tvae_forward.1} parent=151 // pred_check_branch
          %10940 = sbr.rel (%p10938) target = $region160
        $region159: #{tvae_forward.1} parent=151 // pred_region
          %s10941 = sand.u32 %s53, 1
          %s10942 = scalar_lea.sflag [#allocation21], %s10941
          %s10943 = sand.u32 %s417, 1
          %s10944 = smul.addr %s10943, 128
          %s10945 = scalar_lea.vmem [#allocation20], %s10944
          %10946 = dma.done %s10942, 2048
        $region160: #{tvae_forward.1} parent=151 // pred_fallthru
          _
        // Predicated region
        $region161: #{tvae_forward.1} parent=151 // pred_check
          %p10947 = pneg %p458
        $region162: #{tvae_forward.1} parent=151 // pred_check_branch
          %10949 = sbr.rel (%p10947) target = $region164
        $region163: #{tvae_forward.1} parent=151 // pred_region
          %s10950 = sand.u32 %s53, 1
          %s10951 = scalar_lea.sflag [#allocation21], %s10950
          %s10952 = sand.u32 %s443, 1
          %s10953 = smul.addr %s10952, 128
          %s10954 = scalar_lea.vmem [#allocation22], %s10953
          %10955 = dma.done %s10951, 2048
        $region164: #{tvae_forward.1} parent=151 // pred_fallthru
          _
        // Predicated region
        $region165: #{tvae_forward.1} parent=151 // pred_check
          %p10956 = pneg %p484
        $region166: #{tvae_forward.1} parent=151 // pred_check_branch
          %10958 = sbr.rel (%p10956) target = $region168
        $region167: #{tvae_forward.1} parent=151 // pred_region
          %s10959 = smul.u32 16, %s53
          %p10960 = scmp.lt.s32.totalorder %s10959, 31
          %s10961 = scalar_select %p10960, %s10959, 31
          %s10962 = smul.addr %s10961, 8
          %s10963 = smul.addr %s10962, 8
          %s10964 = scalar_lea.vmem %s18, %s10963
        $region168: #{tvae_forward.1} parent=151 // pred_fallthru
          _
        // Predicated region
        $region169: #{tvae_forward.1} parent=151 // pred_check
          %p10965 = pneg %p510
        $region170: #{tvae_forward.1} parent=151 // pred_check_branch
          %10967 = sbr.rel (%p10965) target = $region172
        $region171: #{tvae_forward.1} parent=151 // pred_region
          %s10968 = sand.u32 %s53, 1
          %s10969 = scalar_lea.sflag [#allocation24], %s10968
          %s10970 = sand.u32 %s495, 1
          %s10971 = smul.addr %s10970, 128
          %s10972 = scalar_lea.vmem [#allocation23], %s10971
          %10973 = dma.done %s10969, 2048
        $region172: #{tvae_forward.1} parent=151 // pred_fallthru
          _
        // Predicated region
        $region173: #{tvae_forward.1} parent=151 // pred_check
          %p10974 = pneg %p536
        $region174: #{tvae_forward.1} parent=151 // pred_check_branch
          %10976 = sbr.rel (%p10974) target = $region176
        $region175: #{tvae_forward.1} parent=151 // pred_region
          %s10977 = sand.u32 %s53, 1
          %s10978 = scalar_lea.sflag [#allocation24], %s10977
          %s10979 = sand.u32 %s521, 1
          %s10980 = smul.addr %s10979, 128
          %s10981 = scalar_lea.vmem [#allocation25], %s10980
          %10982 = dma.done %s10978, 2048
        $region176: #{tvae_forward.1} parent=151 // pred_fallthru
          _
        // Predicated region
        $region177: #{tvae_forward.1} parent=151 // pred_check
          %p10983 = pneg %p562
        $region178: #{tvae_forward.1} parent=151 // pred_check_branch
          %10985 = sbr.rel (%p10983) target = $region180
        $region179: #{tvae_forward.1} parent=151 // pred_region
          %s10986 = smul.u32 16, %s53
          %p10987 = scmp.lt.s32.totalorder %s10986, 31
          %s10988 = scalar_select %p10987, %s10986, 31
          %s10989 = smul.addr %s10988, 8
          %s10990 = smul.addr %s10989, 8
          %s10991 = scalar_lea.vmem %s21, %s10990
        $region180: #{tvae_forward.1} parent=151 // pred_fallthru
          _
      $region152: #{tvae_forward.1} parent=5 // pred_fallthru
        _
    $region6: #{tvae_forward.1} parent=1 // loop_footer
      %s51 = sadd.s32 1, %s47
    $region7: #{tvae_forward.1} parent=1 // loop_footer_branch
      %46 = sbr.rel target = $region3
    $region8: #{tvae_forward.1} parent=1 // loop_exit
      _
    %10992 = vsyncpa [#allocation3], 1
    %s10993 = scalar_lea.sflag [#allocation3], 1
    %10994 = vsyncpa %s10993, 1
    %10995 = vsyncpa [#allocation6], 1
    %s10996 = scalar_lea.sflag [#allocation6], 1
    %10997 = vsyncpa %s10996, 1
    %10998 = vsyncpa [#allocation9], 1
    %10999 = vsyncpa [#allocation12], 1
    %11000 = vsyncpa [#allocation15], 1
    %11001 = vsyncpa [#allocation18], 1
    %11002 = vsyncpa [#allocation4], 1
    %s11003 = scalar_lea.sflag [#allocation4], 1
    %11004 = vsyncpa %s11003, 1
    %11005 = vsyncpa [#allocation21], 1
    %s11006 = scalar_lea.sflag [#allocation21], 1
    %11007 = vsyncpa %s11006, 1
    %11008 = vsyncpa [#allocation24], 1
    %s11009 = scalar_lea.sflag [#allocation24], 1
    %11010 = vsyncpa %s11009, 1

</llo_original>
